<compile_context>
chip_gen: v6e
topology: v6e:2x2x1
jax: 0.10.0
libtpu: 0.0.40
codegen_flags: <defaults>
</compile_context>

<pallas_src>
from functools import partial

import numpy as np
import jax
import jax.numpy as jnp
from jax.experimental import pallas as pl
from jax.experimental.pallas import tpu as pltpu


# ----------------------------------------------------------------------------
# Helpers
# ----------------------------------------------------------------------------
def _round_up(x, m):
    return (x + m - 1) // m * m


def _pick_tile_m(m):
    """Row (sublane) tile: multiple of 8, ~<=256 rows, >=2 grid steps if possible."""
    mp = _round_up(m, 8)
    for t in (256, 128, 64, 32, 16, 8):
        if mp % t == 0 and mp // t >= 2:
            return t
    return mp


def _pick_tile_lanes(m):
    """Lane tile for the lane-dense output kernel: multiple of 128, >=2 steps."""
    mp = _round_up(m, 128)
    for t in (512, 384, 256, 128):
        if mp % t == 0 and mp // t >= 2:
            return t
    return mp


def _vmem_limit(block_bytes):
    # Headroom for double-buffered inputs + outputs; clamp inside v7x's 64 MiB.
    return int(min(max(3 * block_bytes + (2 << 20), 16 << 20), 48 << 20))


# ----------------------------------------------------------------------------
# Pallas kernel 1: fused (im2col-matmul) + folded-BN affine + LeakyReLU
# ----------------------------------------------------------------------------
def _matmul_bn_act_kernel(x_ref, w_ref, scale_ref, bias_ref, o_ref, *,
                          negative_slope, apply_act):
    # x_ref    : (tile_m, K)   bf16   (K = taps*Cin, lane-concatenated im2col)
    # w_ref    : (K, Cout)     bf16
    # scale/bias: (1, Cout)    f32    (folded BN)
    # o_ref    : (tile_m, Cout)
    acc = jnp.dot(x_ref[...], w_ref[...], preferred_element_type=jnp.float32)
    y = acc * scale_ref[...] + bias_ref[...]
    if apply_act:
        y = jnp.where(y >= 0, y, negative_slope * y)
    o_ref[...] = y.astype(o_ref.dtype)


def _matmul_bn_act(x_cols, w, scale, bias, *, negative_slope=0.2,
                   apply_act=True, out_dtype=jnp.bfloat16):
    m, k = x_cols.shape
    k2, cout = w.shape
    assert k == k2
    tile_m = _pick_tile_m(m)
    mp = _round_up(m, tile_m)
    if mp != m:
        x_cols = jnp.pad(x_cols, ((0, mp - m), (0, 0)))

    block_bytes = (2 * tile_m * k * 2              # x tile, double-buffered bf16
                   + k * cout * 2                  # resident weights (bf16)
                   + 2 * cout * 4                  # scale + bias (f32)
                   + 2 * tile_m * cout * jnp.dtype(out_dtype).itemsize)

    kernel = partial(_matmul_bn_act_kernel,
                     negative_slope=negative_slope, apply_act=apply_act)

    out = pl.pallas_call(
        kernel,
        out_shape=jax.ShapeDtypeStruct((mp, cout), out_dtype),
        grid=(mp // tile_m,),
        in_specs=[
            pl.BlockSpec((tile_m, k), lambda i: (i, 0)),
            pl.BlockSpec((k, cout), lambda i: (0, 0)),     # constant -> resident
            pl.BlockSpec((1, cout), lambda i: (0, 0)),
            pl.BlockSpec((1, cout), lambda i: (0, 0)),
        ],
        out_specs=pl.BlockSpec((tile_m, cout), lambda i: (i, 0)),
        compiler_params=pltpu.CompilerParams(
            dimension_semantics=("parallel",),
            vmem_limit_bytes=_vmem_limit(block_bytes)),
    )(x_cols,
      w.astype(jnp.bfloat16),
      scale.reshape(1, -1).astype(jnp.float32),
      bias.reshape(1, -1).astype(jnp.float32))

    return out[:m]


def _im2col_3x3(x):
    """x: (N,H,W,C) -> (N*H*W, 9*C) lane-concatenated patches ('same' padding)."""
    n, h, w, c = x.shape
    xp = jnp.pad(x, ((0, 0), (1, 1), (1, 1), (0, 0)))
    cols = [xp[:, dy:dy + h, dx:dx + w, :] for dy in range(3) for dx in range(3)]
    return jnp.concatenate(cols, axis=-1).reshape(n * h * w, 9 * c)


def conv3x3_bn_act(x, p):
    """x: (N,H,W,Cin) -> (N,H,W,Cout), fused conv+BN+LeakyReLU(0.2), bf16 out."""
    n, h, w, _ = x.shape
    cols = _im2col_3x3(x.astype(jnp.bfloat16))
    y = _matmul_bn_act(cols, p["w"], p["scale"], p["bias"])
    return y.reshape(n, h, w, -1)


# ----------------------------------------------------------------------------
# Pallas kernel 2: final 1x1 conv + bias + residual, lane-dense (C, M) output
# ----------------------------------------------------------------------------
_CPAD = 8  # pad the 3 output channels to 8 sublanes -> fully aligned stores


def _outconv_residual_kernel(xt_ref, wt_ref, bias_ref, res_ref, o_ref):
    # xt_ref  : (Cin, tile)  bf16    (activation, transposed: M on lanes)
    # wt_ref  : (8, Cin)     bf16    (1x1 conv weight^T, channel-padded)
    # bias_ref: (8, 1)       f32
    # res_ref : (8, tile)    f32     (residual, channel-major)
    # o_ref   : (8, tile)    f32
    y = jnp.dot(wt_ref[...], xt_ref[...], preferred_element_type=jnp.float32)
    o_ref[...] = y + bias_ref[...] + res_ref[...]


def out_conv_residual(x_nhwc, p, residual_nchw):
    n, h, w, cin = x_nhwc.shape
    cout = p["w"].shape[-1]          # 3
    m = n * h * w
    tile = _pick_tile_lanes(m)
    mp = _round_up(m, tile)

    # Activation: (N,H,W,Cin) -> (Cin, M), bf16, lane-padded to mp.
    xt = x_nhwc.reshape(m, cin).astype(jnp.bfloat16).T
    xt = jnp.pad(xt, ((0, 0), (0, mp - m)))

    # Residual: NCHW is already channel-major -> (3, M) -> (8, mp) f32.
    res = jnp.transpose(residual_nchw, (1, 0, 2, 3)).reshape(cout, m)
    res = jnp.pad(res.astype(jnp.float32), ((0, _CPAD - cout), (0, mp - m)))

    wt = jnp.pad(p["w"].astype(jnp.bfloat16).T, ((0, _CPAD - cout), (0, 0)))
    bias = jnp.pad(p["bias"].astype(jnp.float32), (0, _CPAD - cout)).reshape(_CPAD, 1)

    block_bytes = (2 * cin * tile * 2 + _CPAD * cin * 2 + _CPAD * 4
                   + 2 * _CPAD * tile * 4 + 2 * _CPAD * tile * 4)

    out = pl.pallas_call(
        _outconv_residual_kernel,
        out_shape=jax.ShapeDtypeStruct((_CPAD, mp), jnp.float32),
        grid=(mp // tile,),
        in_specs=[
            pl.BlockSpec((cin, tile), lambda i: (0, i)),
            pl.BlockSpec((_CPAD, cin), lambda i: (0, 0)),
            pl.BlockSpec((_CPAD, 1), lambda i: (0, 0)),
            pl.BlockSpec((_CPAD, tile), lambda i: (0, i)),
        ],
        out_specs=pl.BlockSpec((_CPAD, tile), lambda i: (0, i)),
        compiler_params=pltpu.CompilerParams(
            dimension_semantics=("parallel",),
            vmem_limit_bytes=_vmem_limit(block_bytes)),
    )(xt, wt, bias, res)

    out = out[:cout, :m].reshape(cout, n, h, w)
    return jnp.transpose(out, (1, 0, 2, 3))     # -> (N, 3, H, W)


# ----------------------------------------------------------------------------
# Plain-JAX glue ops (data movement only)
# ----------------------------------------------------------------------------
def maxpool2x2(x):
    n, h, w, c = x.shape
    assert h % 2 == 0 and w % 2 == 0
    return x.reshape(n, h // 2, 2, w // 2, 2, c).max(axis=(2, 4))


def _interp_matrix(n_in, n_out):
    m = np.zeros((n_out, n_in), np.float32)
    if n_in == 1:
        m[:, 0] = 1.0
        return jnp.asarray(m)
    pos = np.arange(n_out) * (n_in - 1) / (n_out - 1)
    lo = np.minimum(np.floor(pos).astype(np.int64), n_in - 2)
    frac = (pos - lo).astype(np.float32)
    m[np.arange(n_out), lo] = 1.0 - frac
    m[np.arange(n_out), lo + 1] = frac
    return jnp.asarray(m)


def upsample_bilinear_x2(x):
    # nn.Upsample(scale_factor=2, mode='bilinear', align_corners=True)
    n, h, w, c = x.shape
    dtype = x.dtype
    mh = _interp_matrix(h, 2 * h)
    mw = _interp_matrix(w, 2 * w)
    y = jnp.einsum('oh,nhwc->nowc', mh, x)
    y = jnp.einsum('pw,nhwc->nhpc', mw, y)
    return y.astype(dtype)


# ----------------------------------------------------------------------------
# Deterministic parameter init (shapes from UNet.__init__; eval-mode BN fold)
# ----------------------------------------------------------------------------
_EPS = 1e-5


def _make_conv_bn(key, cin, cout, *, k=3, with_bn=True):
    kw, kb, kg, kbe = jax.random.split(key, 4)
    fan_in = cin * k * k
    w = jax.random.normal(kw, (k * k * cin, cout), jnp.float32) / np.sqrt(fan_in)
    b = 0.01 * jax.random.normal(kb, (cout,), jnp.float32)
    if with_bn:
        gamma = 1.0 + 0.05 * jax.random.normal(kg, (cout,), jnp.float32)
        beta = 0.05 * jax.random.normal(kbe, (cout,), jnp.float32)
        run_mean = jnp.zeros((cout,), jnp.float32)   # PyTorch BN defaults
        run_var = jnp.ones((cout,), jnp.float32)
        scale = gamma / jnp.sqrt(run_var + _EPS)
        bias = beta + scale * (b - run_mean)
    else:
        scale = jnp.ones((cout,), jnp.float32)
        bias = b
    return {"w": w.astype(jnp.bfloat16), "scale": scale, "bias": bias}


def init_unet_params(key, in_channels, num_unet_blocks=2):
    keys = jax.random.split(key, 64)
    ki = iter(range(64))
    params = {"conv1": _make_conv_bn(keys[next(ki)], in_channels, 32)}

    params["down"] = []
    for i in range(num_unet_blocks):
        cin, cout = 32 * 2 ** i, 32 * 2 ** (i + 1)
        params["down"].append({
            "a": _make_conv_bn(keys[next(ki)], cin, cout),
            "b": _make_conv_bn(keys[next(ki)], cout, cout),
        })

    cb = 32 * 2 ** num_unet_blocks
    params["bottleneck"] = {
        "a": _make_conv_bn(keys[next(ki)], cb, cb),
        "b": _make_conv_bn(keys[next(ki)], cb, cb),
    }

    params["up"] = []
    for i in range(num_unet_blocks):
        cin = 32 * 2 ** (num_unet_blocks - i)
        cout = 32 * 2 ** (num_unet_blocks - i - 1)
        params["up"].append({
            "a": _make_conv_bn(keys[next(ki)], cin + cout, cout),
            "b": _make_conv_bn(keys[next(ki)], cout, cout),
        })

    params["out"] = _make_conv_bn(keys[next(ki)], 32, 3, k=1, with_bn=False)
    return params


# ----------------------------------------------------------------------------
# Forward pass (matches UNet.forward, eval mode)
# ----------------------------------------------------------------------------
def unet_forward(params, x_nchw):
    x_nchw = x_nchw.astype(jnp.float32)
    x = jnp.transpose(x_nchw, (0, 2, 3, 1))      # NCHW -> NHWC

    # conv1 + BN + LeakyReLU
    x = conv3x3_bn_act(x, params["conv1"])

    # Down path
    skips = []
    for p in params["down"]:
        skips.append(x)
        x = maxpool2x2(x)
        x = conv3x3_bn_act(x, p["a"])
        x = conv3x3_bn_act(x, p["b"])

    # Bottleneck (Dropout2d is identity in eval mode)
    x = conv3x3_bn_act(x, params["bottleneck"]["a"])
    x = conv3x3_bn_act(x, params["bottleneck"]["b"])

    # Up path
    for p in params["up"]:
        skip = skips.pop()
        x = upsample_bilinear_x2(x)
        dh = skip.shape[1] - x.shape[1]
        dw = skip.shape[2] - x.shape[2]
        x = jnp.pad(x, ((0, 0), (dh // 2, dh - dh // 2),
                        (dw // 2, dw - dw // 2), (0, 0)))
        x = jnp.concatenate([x, skip], axis=-1)   # cat([x, skip], dim=channel)
        x = conv3x3_bn_act(x, p["a"])
        x = conv3x3_bn_act(x, p["b"])

    # 1x1 output conv (no BN, no activation) + fused residual add, f32, NCHW.
    return out_conv_residual(x, params["out"], x_nchw)


# TODO(synk): training-mode BatchNorm (batch statistics) and active Dropout2d
# are stochastic/stateful; this implements the deterministic eval-mode forward.

if __name__ == "__main__":
    N, C, H, W = 2, 3, 16, 16
    x = jax.random.normal(jax.random.PRNGKey(0), (N, C, H, W), jnp.float32)
    params = init_unet_params(jax.random.PRNGKey(1), in_channels=C,
                              num_unet_blocks=2)

    fwd = jax.jit(unet_forward)
    out = jax.block_until_ready(fwd(params, x))

    assert out.shape == (N, 3, H, W), out.shape
    assert bool(jnp.isfinite(out).all())
    print("KERNEL_OK")
</pallas_src>

<mosaic_0001>
module attributes {stable_mosaic.version = 11 : i64} {
  func.func @_matmul_bn_act_kernel(%arg0: i32, %arg1: memref<256x27xbf16, #tpu.memory_space<vmem>>, %arg2: memref<27x32xbf16, #tpu.memory_space<vmem>>, %arg3: memref<1x32xf32, #tpu.memory_space<vmem>>, %arg4: memref<1x32xf32, #tpu.memory_space<vmem>>, %arg5: memref<256x32xbf16, #tpu.memory_space<vmem>>) attributes {dimension_semantics = [#tpu.dimension_semantics<parallel>], iteration_bounds = array<i64: 2>, scalar_prefetch = 0 : i64, scratch_operands = 0 : i64, tpu.core_type = #tpu.core_type<tc>, window_params = [{transform_indices = @transform_0, window_bounds = array<i64: 256, 27>}, {pipeline_mode = #tpu.pipeline_mode<synchronous>, transform_indices = @transform_1, window_bounds = array<i64: 27, 32>}, {pipeline_mode = #tpu.pipeline_mode<synchronous>, transform_indices = @transform_2, window_bounds = array<i64: 1, 32>}, {pipeline_mode = #tpu.pipeline_mode<synchronous>, transform_indices = @transform_3, window_bounds = array<i64: 1, 32>}, {transform_indices = @transform_4, window_bounds = array<i64: 256, 32>}]} {
    %c0 = arith.constant 0 : index
    %c0_0 = arith.constant 0 : index
    %0 = vector.load %arg1[%c0, %c0_0] : memref<256x27xbf16, #tpu.memory_space<vmem>>, vector<256x27xbf16>
    %c0_1 = arith.constant 0 : index
    %c0_2 = arith.constant 0 : index
    %1 = vector.load %arg2[%c0_1, %c0_2] : memref<27x32xbf16, #tpu.memory_space<vmem>>, vector<27x32xbf16>
    %cst = arith.constant dense<0.000000e+00> : vector<256x32xf32>
    %2 = tpu.matmul %0, %1, %cst {dimension_numbers = #tpu.dot_dimension_numbers<[1], [0], [0], [1], [0, 0, 1, 1], [], []>} : vector<256x27xbf16>, vector<27x32xbf16>, vector<256x32xf32> -> vector<256x32xf32>
    %c0_3 = arith.constant 0 : index
    %c0_4 = arith.constant 0 : index
    %3 = vector.load %arg3[%c0_3, %c0_4] : memref<1x32xf32, #tpu.memory_space<vmem>>, vector<1x32xf32>
    %4 = vector.broadcast %3 : vector<1x32xf32> to vector<256x32xf32>
    %5 = arith.mulf %2, %4 : vector<256x32xf32>
    %c0_5 = arith.constant 0 : index
    %c0_6 = arith.constant 0 : index
    %6 = vector.load %arg4[%c0_5, %c0_6] : memref<1x32xf32, #tpu.memory_space<vmem>>, vector<1x32xf32>
    %7 = vector.broadcast %6 : vector<1x32xf32> to vector<256x32xf32>
    %8 = arith.addf %5, %7 : vector<256x32xf32>
    %cst_7 = arith.constant 0.000000e+00 : f32
    %9 = vector.broadcast %cst_7 : f32 to vector<256x32xf32>
    %10 = arith.cmpf oge, %8, %9 : vector<256x32xf32>
    %cst_8 = arith.constant 2.000000e-01 : f32
    %11 = vector.broadcast %cst_8 : f32 to vector<256x32xf32>
    %12 = arith.mulf %11, %8 : vector<256x32xf32>
    %13 = arith.select %10, %8, %12 : vector<256x32xi1>, vector<256x32xf32>
    %14 = arith.truncf %13 : vector<256x32xf32> to vector<256x32xbf16>
    %c0_9 = arith.constant 0 : index
    %c0_10 = arith.constant 0 : index
    %15 = vector.load %arg5[%c0_9, %c0_10] : memref<256x32xbf16, #tpu.memory_space<vmem>>, vector<256x32xbf16>
    tpu.vector_store %arg5[%c0_9, %c0_10], %14 {strides = array<i32>} : memref<256x32xbf16, #tpu.memory_space<vmem>>, vector<256x32xbf16>,
    return
  }
  func.func @transform_0(%arg0: i32) -> (i32, i32) {
    %c0_i32 = arith.constant 0 : i32
    %c0_i32_0 = arith.constant 0 : i32
    return %arg0, %c0_i32 : i32, i32
  }
  func.func @transform_1(%arg0: i32) -> (i32, i32) {
    %c0_i32 = arith.constant 0 : i32
    %c0_i32_0 = arith.constant 0 : i32
    %c0_i32_1 = arith.constant 0 : i32
    return %c0_i32, %c0_i32_0 : i32, i32
  }
  func.func @transform_2(%arg0: i32) -> (i32, i32) {
    %c0_i32 = arith.constant 0 : i32
    %c0_i32_0 = arith.constant 0 : i32
    %c0_i32_1 = arith.constant 0 : i32
    return %c0_i32, %c0_i32_0 : i32, i32
  }
  func.func @transform_3(%arg0: i32) -> (i32, i32) {
    %c0_i32 = arith.constant 0 : i32
    %c0_i32_0 = arith.constant 0 : i32
    %c0_i32_1 = arith.constant 0 : i32
    return %c0_i32, %c0_i32_0 : i32, i32
  }
  func.func @transform_4(%arg0: i32) -> (i32, i32) {
    %c0_i32 = arith.constant 0 : i32
    %c0_i32_0 = arith.constant 0 : i32
    return %arg0, %c0_i32 : i32, i32
  }
}

module attributes {stable_mosaic.version = 11 : i64} {
  func.func @_matmul_bn_act_kernel(%arg0: i32, %arg1: memref<64x288xbf16, #tpu.memory_space<vmem>>, %arg2: memref<288x64xbf16, #tpu.memory_space<vmem>>, %arg3: memref<1x64xf32, #tpu.memory_space<vmem>>, %arg4: memref<1x64xf32, #tpu.memory_space<vmem>>, %arg5: memref<64x64xbf16, #tpu.memory_space<vmem>>) attributes {dimension_semantics = [#tpu.dimension_semantics<parallel>], iteration_bounds = array<i64: 2>, scalar_prefetch = 0 : i64, scratch_operands = 0 : i64, tpu.core_type = #tpu.core_type<tc>, window_params = [{transform_indices = @transform_0, window_bounds = array<i64: 64, 288>}, {pipeline_mode = #tpu.pipeline_mode<synchronous>, transform_indices = @transform_1, window_bounds = array<i64: 288, 64>}, {pipeline_mode = #tpu.pipeline_mode<synchronous>, transform_indices = @transform_2, window_bounds = array<i64: 1, 64>}, {pipeline_mode = #tpu.pipeline_mode<synchronous>, transform_indices = @transform_3, window_bounds = array<i64: 1, 64>}, {transform_indices = @transform_4, window_bounds = array<i64: 64, 64>}]} {
    %c0 = arith.constant 0 : index
    %c0_0 = arith.constant 0 : index
    %0 = vector.load %arg1[%c0, %c0_0] : memref<64x288xbf16, #tpu.memory_space<vmem>>, vector<64x288xbf16>
    %c0_1 = arith.constant 0 : index
    %c0_2 = arith.constant 0 : index
    %1 = vector.load %arg2[%c0_1, %c0_2] : memref<288x64xbf16, #tpu.memory_space<vmem>>, vector<288x64xbf16>
    %cst = arith.constant dense<0.000000e+00> : vector<64x64xf32>
    %2 = tpu.matmul %0, %1, %cst {dimension_numbers = #tpu.dot_dimension_numbers<[1], [0], [0], [1], [0, 0, 1, 1], [], []>} : vector<64x288xbf16>, vector<288x64xbf16>, vector<64x64xf32> -> vector<64x64xf32>
    %c0_3 = arith.constant 0 : index
    %c0_4 = arith.constant 0 : index
    %3 = vector.load %arg3[%c0_3, %c0_4] : memref<1x64xf32, #tpu.memory_space<vmem>>, vector<1x64xf32>
    %4 = vector.broadcast %3 : vector<1x64xf32> to vector<64x64xf32>
    %5 = arith.mulf %2, %4 : vector<64x64xf32>
    %c0_5 = arith.constant 0 : index
    %c0_6 = arith.constant 0 : index
    %6 = vector.load %arg4[%c0_5, %c0_6] : memref<1x64xf32, #tpu.memory_space<vmem>>, vector<1x64xf32>
    %7 = vector.broadcast %6 : vector<1x64xf32> to vector<64x64xf32>
    %8 = arith.addf %5, %7 : vector<64x64xf32>
    %cst_7 = arith.constant 0.000000e+00 : f32
    %9 = vector.broadcast %cst_7 : f32 to vector<64x64xf32>
    %10 = arith.cmpf oge, %8, %9 : vector<64x64xf32>
    %cst_8 = arith.constant 2.000000e-01 : f32
    %11 = vector.broadcast %cst_8 : f32 to vector<64x64xf32>
    %12 = arith.mulf %11, %8 : vector<64x64xf32>
    %13 = arith.select %10, %8, %12 : vector<64x64xi1>, vector<64x64xf32>
    %14 = arith.truncf %13 : vector<64x64xf32> to vector<64x64xbf16>
    %c0_9 = arith.constant 0 : index
    %c0_10 = arith.constant 0 : index
    %15 = vector.load %arg5[%c0_9, %c0_10] : memref<64x64xbf16, #tpu.memory_space<vmem>>, vector<64x64xbf16>
    tpu.vector_store %arg5[%c0_9, %c0_10], %14 {strides = array<i32>} : memref<64x64xbf16, #tpu.memory_space<vmem>>, vector<64x64xbf16>,
    return
  }
  func.func @transform_0(%arg0: i32) -> (i32, i32) {
    %c0_i32 = arith.constant 0 : i32
    %c0_i32_0 = arith.constant 0 : i32
    return %arg0, %c0_i32 : i32, i32
  }
  func.func @transform_1(%arg0: i32) -> (i32, i32) {
    %c0_i32 = arith.constant 0 : i32
    %c0_i32_0 = arith.constant 0 : i32
    %c0_i32_1 = arith.constant 0 : i32
    return %c0_i32, %c0_i32_0 : i32, i32
  }
  func.func @transform_2(%arg0: i32) -> (i32, i32) {
    %c0_i32 = arith.constant 0 : i32
    %c0_i32_0 = arith.constant 0 : i32
    %c0_i32_1 = arith.constant 0 : i32
    return %c0_i32, %c0_i32_0 : i32, i32
  }
  func.func @transform_3(%arg0: i32) -> (i32, i32) {
    %c0_i32 = arith.constant 0 : i32
    %c0_i32_0 = arith.constant 0 : i32
    %c0_i32_1 = arith.constant 0 : i32
    return %c0_i32, %c0_i32_0 : i32, i32
  }
  func.func @transform_4(%arg0: i32) -> (i32, i32) {
    %c0_i32 = arith.constant 0 : i32
    %c0_i32_0 = arith.constant 0 : i32
    return %arg0, %c0_i32 : i32, i32
  }
}

module attributes {stable_mosaic.version = 11 : i64} {
  func.func @_matmul_bn_act_kernel(%arg0: i32, %arg1: memref<64x576xbf16, #tpu.memory_space<vmem>>, %arg2: memref<576x64xbf16, #tpu.memory_space<vmem>>, %arg3: memref<1x64xf32, #tpu.memory_space<vmem>>, %arg4: memref<1x64xf32, #tpu.memory_space<vmem>>, %arg5: memref<64x64xbf16, #tpu.memory_space<vmem>>) attributes {dimension_semantics = [#tpu.dimension_semantics<parallel>], iteration_bounds = array<i64: 2>, scalar_prefetch = 0 : i64, scratch_operands = 0 : i64, tpu.core_type = #tpu.core_type<tc>, window_params = [{transform_indices = @transform_0, window_bounds = array<i64: 64, 576>}, {pipeline_mode = #tpu.pipeline_mode<synchronous>, transform_indices = @transform_1, window_bounds = array<i64: 576, 64>}, {pipeline_mode = #tpu.pipeline_mode<synchronous>, transform_indices = @transform_2, window_bounds = array<i64: 1, 64>}, {pipeline_mode = #tpu.pipeline_mode<synchronous>, transform_indices = @transform_3, window_bounds = array<i64: 1, 64>}, {transform_indices = @transform_4, window_bounds = array<i64: 64, 64>}]} {
    %c0 = arith.constant 0 : index
    %c0_0 = arith.constant 0 : index
    %0 = vector.load %arg1[%c0, %c0_0] : memref<64x576xbf16, #tpu.memory_space<vmem>>, vector<64x576xbf16>
    %c0_1 = arith.constant 0 : index
    %c0_2 = arith.constant 0 : index
    %1 = vector.load %arg2[%c0_1, %c0_2] : memref<576x64xbf16, #tpu.memory_space<vmem>>, vector<576x64xbf16>
    %cst = arith.constant dense<0.000000e+00> : vector<64x64xf32>
    %2 = tpu.matmul %0, %1, %cst {dimension_numbers = #tpu.dot_dimension_numbers<[1], [0], [0], [1], [0, 0, 1, 1], [], []>} : vector<64x576xbf16>, vector<576x64xbf16>, vector<64x64xf32> -> vector<64x64xf32>
    %c0_3 = arith.constant 0 : index
    %c0_4 = arith.constant 0 : index
    %3 = vector.load %arg3[%c0_3, %c0_4] : memref<1x64xf32, #tpu.memory_space<vmem>>, vector<1x64xf32>
    %4 = vector.broadcast %3 : vector<1x64xf32> to vector<64x64xf32>
    %5 = arith.mulf %2, %4 : vector<64x64xf32>
    %c0_5 = arith.constant 0 : index
    %c0_6 = arith.constant 0 : index
    %6 = vector.load %arg4[%c0_5, %c0_6] : memref<1x64xf32, #tpu.memory_space<vmem>>, vector<1x64xf32>
    %7 = vector.broadcast %6 : vector<1x64xf32> to vector<64x64xf32>
    %8 = arith.addf %5, %7 : vector<64x64xf32>
    %cst_7 = arith.constant 0.000000e+00 : f32
    %9 = vector.broadcast %cst_7 : f32 to vector<64x64xf32>
    %10 = arith.cmpf oge, %8, %9 : vector<64x64xf32>
    %cst_8 = arith.constant 2.000000e-01 : f32
    %11 = vector.broadcast %cst_8 : f32 to vector<64x64xf32>
    %12 = arith.mulf %11, %8 : vector<64x64xf32>
    %13 = arith.select %10, %8, %12 : vector<64x64xi1>, vector<64x64xf32>
    %14 = arith.truncf %13 : vector<64x64xf32> to vector<64x64xbf16>
    %c0_9 = arith.constant 0 : index
    %c0_10 = arith.constant 0 : index
    %15 = vector.load %arg5[%c0_9, %c0_10] : memref<64x64xbf16, #tpu.memory_space<vmem>>, vector<64x64xbf16>
    tpu.vector_store %arg5[%c0_9, %c0_10], %14 {strides = array<i32>} : memref<64x64xbf16, #tpu.memory_space<vmem>>, vector<64x64xbf16>,
    return
  }
  func.func @transform_0(%arg0: i32) -> (i32, i32) {
    %c0_i32 = arith.constant 0 : i32
    %c0_i32_0 = arith.constant 0 : i32
    return %arg0, %c0_i32 : i32, i32
  }
  func.func @transform_1(%arg0: i32) -> (i32, i32) {
    %c0_i32 = arith.constant 0 : i32
    %c0_i32_0 = arith.constant 0 : i32
    %c0_i32_1 = arith.constant 0 : i32
    return %c0_i32, %c0_i32_0 : i32, i32
  }
  func.func @transform_2(%arg0: i32) -> (i32, i32) {
    %c0_i32 = arith.constant 0 : i32
    %c0_i32_0 = arith.constant 0 : i32
    %c0_i32_1 = arith.constant 0 : i32
    return %c0_i32, %c0_i32_0 : i32, i32
  }
  func.func @transform_3(%arg0: i32) -> (i32, i32) {
    %c0_i32 = arith.constant 0 : i32
    %c0_i32_0 = arith.constant 0 : i32
    %c0_i32_1 = arith.constant 0 : i32
    return %c0_i32, %c0_i32_0 : i32, i32
  }
  func.func @transform_4(%arg0: i32) -> (i32, i32) {
    %c0_i32 = arith.constant 0 : i32
    %c0_i32_0 = arith.constant 0 : i32
    return %arg0, %c0_i32 : i32, i32
  }
}

module attributes {stable_mosaic.version = 11 : i64} {
  func.func @_matmul_bn_act_kernel(%arg0: i32, %arg1: memref<16x576xbf16, #tpu.memory_space<vmem>>, %arg2: memref<576x128xbf16, #tpu.memory_space<vmem>>, %arg3: memref<1x128xf32, #tpu.memory_space<vmem>>, %arg4: memref<1x128xf32, #tpu.memory_space<vmem>>, %arg5: memref<16x128xbf16, #tpu.memory_space<vmem>>) attributes {dimension_semantics = [#tpu.dimension_semantics<parallel>], iteration_bounds = array<i64: 2>, scalar_prefetch = 0 : i64, scratch_operands = 0 : i64, tpu.core_type = #tpu.core_type<tc>, window_params = [{transform_indices = @transform_0, window_bounds = array<i64: 16, 576>}, {pipeline_mode = #tpu.pipeline_mode<synchronous>, transform_indices = @transform_1, window_bounds = array<i64: 576, 128>}, {pipeline_mode = #tpu.pipeline_mode<synchronous>, transform_indices = @transform_2, window_bounds = array<i64: 1, 128>}, {pipeline_mode = #tpu.pipeline_mode<synchronous>, transform_indices = @transform_3, window_bounds = array<i64: 1, 128>}, {transform_indices = @transform_4, window_bounds = array<i64: 16, 128>}]} {
    %c0 = arith.constant 0 : index
    %c0_0 = arith.constant 0 : index
    %0 = vector.load %arg1[%c0, %c0_0] : memref<16x576xbf16, #tpu.memory_space<vmem>>, vector<16x576xbf16>
    %c0_1 = arith.constant 0 : index
    %c0_2 = arith.constant 0 : index
    %1 = vector.load %arg2[%c0_1, %c0_2] : memref<576x128xbf16, #tpu.memory_space<vmem>>, vector<576x128xbf16>
    %cst = arith.constant dense<0.000000e+00> : vector<16x128xf32>
    %2 = tpu.matmul %0, %1, %cst {dimension_numbers = #tpu.dot_dimension_numbers<[1], [0], [0], [1], [0, 0, 1, 1], [], []>} : vector<16x576xbf16>, vector<576x128xbf16>, vector<16x128xf32> -> vector<16x128xf32>
    %c0_3 = arith.constant 0 : index
    %c0_4 = arith.constant 0 : index
    %3 = vector.load %arg3[%c0_3, %c0_4] : memref<1x128xf32, #tpu.memory_space<vmem>>, vector<1x128xf32>
    %4 = vector.broadcast %3 : vector<1x128xf32> to vector<16x128xf32>
    %5 = arith.mulf %2, %4 : vector<16x128xf32>
    %c0_5 = arith.constant 0 : index
    %c0_6 = arith.constant 0 : index
    %6 = vector.load %arg4[%c0_5, %c0_6] : memref<1x128xf32, #tpu.memory_space<vmem>>, vector<1x128xf32>
    %7 = vector.broadcast %6 : vector<1x128xf32> to vector<16x128xf32>
    %8 = arith.addf %5, %7 : vector<16x128xf32>
    %cst_7 = arith.constant 0.000000e+00 : f32
    %9 = vector.broadcast %cst_7 : f32 to vector<16x128xf32>
    %10 = arith.cmpf oge, %8, %9 : vector<16x128xf32>
    %cst_8 = arith.constant 2.000000e-01 : f32
    %11 = vector.broadcast %cst_8 : f32 to vector<16x128xf32>
    %12 = arith.mulf %11, %8 : vector<16x128xf32>
    %13 = arith.select %10, %8, %12 : vector<16x128xi1>, vector<16x128xf32>
    %14 = arith.truncf %13 : vector<16x128xf32> to vector<16x128xbf16>
    %c0_9 = arith.constant 0 : index
    %c0_10 = arith.constant 0 : index
    %15 = vector.load %arg5[%c0_9, %c0_10] : memref<16x128xbf16, #tpu.memory_space<vmem>>, vector<16x128xbf16>
    tpu.vector_store %arg5[%c0_9, %c0_10], %14 {strides = array<i32>} : memref<16x128xbf16, #tpu.memory_space<vmem>>, vector<16x128xbf16>,
    return
  }
  func.func @transform_0(%arg0: i32) -> (i32, i32) {
    %c0_i32 = arith.constant 0 : i32
    %c0_i32_0 = arith.constant 0 : i32
    return %arg0, %c0_i32 : i32, i32
  }
  func.func @transform_1(%arg0: i32) -> (i32, i32) {
    %c0_i32 = arith.constant 0 : i32
    %c0_i32_0 = arith.constant 0 : i32
    %c0_i32_1 = arith.constant 0 : i32
    return %c0_i32, %c0_i32_0 : i32, i32
  }
  func.func @transform_2(%arg0: i32) -> (i32, i32) {
    %c0_i32 = arith.constant 0 : i32
    %c0_i32_0 = arith.constant 0 : i32
    %c0_i32_1 = arith.constant 0 : i32
    return %c0_i32, %c0_i32_0 : i32, i32
  }
  func.func @transform_3(%arg0: i32) -> (i32, i32) {
    %c0_i32 = arith.constant 0 : i32
    %c0_i32_0 = arith.constant 0 : i32
    %c0_i32_1 = arith.constant 0 : i32
    return %c0_i32, %c0_i32_0 : i32, i32
  }
  func.func @transform_4(%arg0: i32) -> (i32, i32) {
    %c0_i32 = arith.constant 0 : i32
    %c0_i32_0 = arith.constant 0 : i32
    return %arg0, %c0_i32 : i32, i32
  }
}

module attributes {stable_mosaic.version = 11 : i64} {
  func.func @_matmul_bn_act_kernel(%arg0: i32, %arg1: memref<16x1152xbf16, #tpu.memory_space<vmem>>, %arg2: memref<1152x128xbf16, #tpu.memory_space<vmem>>, %arg3: memref<1x128xf32, #tpu.memory_space<vmem>>, %arg4: memref<1x128xf32, #tpu.memory_space<vmem>>, %arg5: memref<16x128xbf16, #tpu.memory_space<vmem>>) attributes {dimension_semantics = [#tpu.dimension_semantics<parallel>], iteration_bounds = array<i64: 2>, scalar_prefetch = 0 : i64, scratch_operands = 0 : i64, tpu.core_type = #tpu.core_type<tc>, window_params = [{transform_indices = @transform_0, window_bounds = array<i64: 16, 1152>}, {pipeline_mode = #tpu.pipeline_mode<synchronous>, transform_indices = @transform_1, window_bounds = array<i64: 1152, 128>}, {pipeline_mode = #tpu.pipeline_mode<synchronous>, transform_indices = @transform_2, window_bounds = array<i64: 1, 128>}, {pipeline_mode = #tpu.pipeline_mode<synchronous>, transform_indices = @transform_3, window_bounds = array<i64: 1, 128>}, {transform_indices = @transform_4, window_bounds = array<i64: 16, 128>}]} {
    %c0 = arith.constant 0 : index
    %c0_0 = arith.constant 0 : index
    %0 = vector.load %arg1[%c0, %c0_0] : memref<16x1152xbf16, #tpu.memory_space<vmem>>, vector<16x1152xbf16>
    %c0_1 = arith.constant 0 : index
    %c0_2 = arith.constant 0 : index
    %1 = vector.load %arg2[%c0_1, %c0_2] : memref<1152x128xbf16, #tpu.memory_space<vmem>>, vector<1152x128xbf16>
    %cst = arith.constant dense<0.000000e+00> : vector<16x128xf32>
    %2 = tpu.matmul %0, %1, %cst {dimension_numbers = #tpu.dot_dimension_numbers<[1], [0], [0], [1], [0, 0, 1, 1], [], []>} : vector<16x1152xbf16>, vector<1152x128xbf16>, vector<16x128xf32> -> vector<16x128xf32>
    %c0_3 = arith.constant 0 : index
    %c0_4 = arith.constant 0 : index
    %3 = vector.load %arg3[%c0_3, %c0_4] : memref<1x128xf32, #tpu.memory_space<vmem>>, vector<1x128xf32>
    %4 = vector.broadcast %3 : vector<1x128xf32> to vector<16x128xf32>
    %5 = arith.mulf %2, %4 : vector<16x128xf32>
    %c0_5 = arith.constant 0 : index
    %c0_6 = arith.constant 0 : index
    %6 = vector.load %arg4[%c0_5, %c0_6] : memref<1x128xf32, #tpu.memory_space<vmem>>, vector<1x128xf32>
    %7 = vector.broadcast %6 : vector<1x128xf32> to vector<16x128xf32>
    %8 = arith.addf %5, %7 : vector<16x128xf32>
    %cst_7 = arith.constant 0.000000e+00 : f32
    %9 = vector.broadcast %cst_7 : f32 to vector<16x128xf32>
    %10 = arith.cmpf oge, %8, %9 : vector<16x128xf32>
    %cst_8 = arith.constant 2.000000e-01 : f32
    %11 = vector.broadcast %cst_8 : f32 to vector<16x128xf32>
    %12 = arith.mulf %11, %8 : vector<16x128xf32>
    %13 = arith.select %10, %8, %12 : vector<16x128xi1>, vector<16x128xf32>
    %14 = arith.truncf %13 : vector<16x128xf32> to vector<16x128xbf16>
    %c0_9 = arith.constant 0 : index
    %c0_10 = arith.constant 0 : index
    %15 = vector.load %arg5[%c0_9, %c0_10] : memref<16x128xbf16, #tpu.memory_space<vmem>>, vector<16x128xbf16>
    tpu.vector_store %arg5[%c0_9, %c0_10], %14 {strides = array<i32>} : memref<16x128xbf16, #tpu.memory_space<vmem>>, vector<16x128xbf16>,
    return
  }
  func.func @transform_0(%arg0: i32) -> (i32, i32) {
    %c0_i32 = arith.constant 0 : i32
    %c0_i32_0 = arith.constant 0 : i32
    return %arg0, %c0_i32 : i32, i32
  }
  func.func @transform_1(%arg0: i32) -> (i32, i32) {
    %c0_i32 = arith.constant 0 : i32
    %c0_i32_0 = arith.constant 0 : i32
    %c0_i32_1 = arith.constant 0 : i32
    return %c0_i32, %c0_i32_0 : i32, i32
  }
  func.func @transform_2(%arg0: i32) -> (i32, i32) {
    %c0_i32 = arith.constant 0 : i32
    %c0_i32_0 = arith.constant 0 : i32
    %c0_i32_1 = arith.constant 0 : i32
    return %c0_i32, %c0_i32_0 : i32, i32
  }
  func.func @transform_3(%arg0: i32) -> (i32, i32) {
    %c0_i32 = arith.constant 0 : i32
    %c0_i32_0 = arith.constant 0 : i32
    %c0_i32_1 = arith.constant 0 : i32
    return %c0_i32, %c0_i32_0 : i32, i32
  }
  func.func @transform_4(%arg0: i32) -> (i32, i32) {
    %c0_i32 = arith.constant 0 : i32
    %c0_i32_0 = arith.constant 0 : i32
    return %arg0, %c0_i32 : i32, i32
  }
}

module attributes {stable_mosaic.version = 11 : i64} {
  func.func @_matmul_bn_act_kernel(%arg0: i32, %arg1: memref<64x1728xbf16, #tpu.memory_space<vmem>>, %arg2: memref<1728x64xbf16, #tpu.memory_space<vmem>>, %arg3: memref<1x64xf32, #tpu.memory_space<vmem>>, %arg4: memref<1x64xf32, #tpu.memory_space<vmem>>, %arg5: memref<64x64xbf16, #tpu.memory_space<vmem>>) attributes {dimension_semantics = [#tpu.dimension_semantics<parallel>], iteration_bounds = array<i64: 2>, scalar_prefetch = 0 : i64, scratch_operands = 0 : i64, tpu.core_type = #tpu.core_type<tc>, window_params = [{transform_indices = @transform_0, window_bounds = array<i64: 64, 1728>}, {pipeline_mode = #tpu.pipeline_mode<synchronous>, transform_indices = @transform_1, window_bounds = array<i64: 1728, 64>}, {pipeline_mode = #tpu.pipeline_mode<synchronous>, transform_indices = @transform_2, window_bounds = array<i64: 1, 64>}, {pipeline_mode = #tpu.pipeline_mode<synchronous>, transform_indices = @transform_3, window_bounds = array<i64: 1, 64>}, {transform_indices = @transform_4, window_bounds = array<i64: 64, 64>}]} {
    %c0 = arith.constant 0 : index
    %c0_0 = arith.constant 0 : index
    %0 = vector.load %arg1[%c0, %c0_0] : memref<64x1728xbf16, #tpu.memory_space<vmem>>, vector<64x1728xbf16>
    %c0_1 = arith.constant 0 : index
    %c0_2 = arith.constant 0 : index
    %1 = vector.load %arg2[%c0_1, %c0_2] : memref<1728x64xbf16, #tpu.memory_space<vmem>>, vector<1728x64xbf16>
    %cst = arith.constant dense<0.000000e+00> : vector<64x64xf32>
    %2 = tpu.matmul %0, %1, %cst {dimension_numbers = #tpu.dot_dimension_numbers<[1], [0], [0], [1], [0, 0, 1, 1], [], []>} : vector<64x1728xbf16>, vector<1728x64xbf16>, vector<64x64xf32> -> vector<64x64xf32>
    %c0_3 = arith.constant 0 : index
    %c0_4 = arith.constant 0 : index
    %3 = vector.load %arg3[%c0_3, %c0_4] : memref<1x64xf32, #tpu.memory_space<vmem>>, vector<1x64xf32>
    %4 = vector.broadcast %3 : vector<1x64xf32> to vector<64x64xf32>
    %5 = arith.mulf %2, %4 : vector<64x64xf32>
    %c0_5 = arith.constant 0 : index
    %c0_6 = arith.constant 0 : index
    %6 = vector.load %arg4[%c0_5, %c0_6] : memref<1x64xf32, #tpu.memory_space<vmem>>, vector<1x64xf32>
    %7 = vector.broadcast %6 : vector<1x64xf32> to vector<64x64xf32>
    %8 = arith.addf %5, %7 : vector<64x64xf32>
    %cst_7 = arith.constant 0.000000e+00 : f32
    %9 = vector.broadcast %cst_7 : f32 to vector<64x64xf32>
    %10 = arith.cmpf oge, %8, %9 : vector<64x64xf32>
    %cst_8 = arith.constant 2.000000e-01 : f32
    %11 = vector.broadcast %cst_8 : f32 to vector<64x64xf32>
    %12 = arith.mulf %11, %8 : vector<64x64xf32>
    %13 = arith.select %10, %8, %12 : vector<64x64xi1>, vector<64x64xf32>
    %14 = arith.truncf %13 : vector<64x64xf32> to vector<64x64xbf16>
    %c0_9 = arith.constant 0 : index
    %c0_10 = arith.constant 0 : index
    %15 = vector.load %arg5[%c0_9, %c0_10] : memref<64x64xbf16, #tpu.memory_space<vmem>>, vector<64x64xbf16>
    tpu.vector_store %arg5[%c0_9, %c0_10], %14 {strides = array<i32>} : memref<64x64xbf16, #tpu.memory_space<vmem>>, vector<64x64xbf16>,
    return
  }
  func.func @transform_0(%arg0: i32) -> (i32, i32) {
    %c0_i32 = arith.constant 0 : i32
    %c0_i32_0 = arith.constant 0 : i32
    return %arg0, %c0_i32 : i32, i32
  }
  func.func @transform_1(%arg0: i32) -> (i32, i32) {
    %c0_i32 = arith.constant 0 : i32
    %c0_i32_0 = arith.constant 0 : i32
    %c0_i32_1 = arith.constant 0 : i32
    return %c0_i32, %c0_i32_0 : i32, i32
  }
  func.func @transform_2(%arg0: i32) -> (i32, i32) {
    %c0_i32 = arith.constant 0 : i32
    %c0_i32_0 = arith.constant 0 : i32
    %c0_i32_1 = arith.constant 0 : i32
    return %c0_i32, %c0_i32_0 : i32, i32
  }
  func.func @transform_3(%arg0: i32) -> (i32, i32) {
    %c0_i32 = arith.constant 0 : i32
    %c0_i32_0 = arith.constant 0 : i32
    %c0_i32_1 = arith.constant 0 : i32
    return %c0_i32, %c0_i32_0 : i32, i32
  }
  func.func @transform_4(%arg0: i32) -> (i32, i32) {
    %c0_i32 = arith.constant 0 : i32
    %c0_i32_0 = arith.constant 0 : i32
    return %arg0, %c0_i32 : i32, i32
  }
}

module attributes {stable_mosaic.version = 11 : i64} {
  func.func @_matmul_bn_act_kernel(%arg0: i32, %arg1: memref<256x864xbf16, #tpu.memory_space<vmem>>, %arg2: memref<864x32xbf16, #tpu.memory_space<vmem>>, %arg3: memref<1x32xf32, #tpu.memory_space<vmem>>, %arg4: memref<1x32xf32, #tpu.memory_space<vmem>>, %arg5: memref<256x32xbf16, #tpu.memory_space<vmem>>) attributes {dimension_semantics = [#tpu.dimension_semantics<parallel>], iteration_bounds = array<i64: 2>, scalar_prefetch = 0 : i64, scratch_operands = 0 : i64, tpu.core_type = #tpu.core_type<tc>, window_params = [{transform_indices = @transform_0, window_bounds = array<i64: 256, 864>}, {pipeline_mode = #tpu.pipeline_mode<synchronous>, transform_indices = @transform_1, window_bounds = array<i64: 864, 32>}, {pipeline_mode = #tpu.pipeline_mode<synchronous>, transform_indices = @transform_2, window_bounds = array<i64: 1, 32>}, {pipeline_mode = #tpu.pipeline_mode<synchronous>, transform_indices = @transform_3, window_bounds = array<i64: 1, 32>}, {transform_indices = @transform_4, window_bounds = array<i64: 256, 32>}]} {
    %c0 = arith.constant 0 : index
    %c0_0 = arith.constant 0 : index
    %0 = vector.load %arg1[%c0, %c0_0] : memref<256x864xbf16, #tpu.memory_space<vmem>>, vector<256x864xbf16>
    %c0_1 = arith.constant 0 : index
    %c0_2 = arith.constant 0 : index
    %1 = vector.load %arg2[%c0_1, %c0_2] : memref<864x32xbf16, #tpu.memory_space<vmem>>, vector<864x32xbf16>
    %cst = arith.constant dense<0.000000e+00> : vector<256x32xf32>
    %2 = tpu.matmul %0, %1, %cst {dimension_numbers = #tpu.dot_dimension_numbers<[1], [0], [0], [1], [0, 0, 1, 1], [], []>} : vector<256x864xbf16>, vector<864x32xbf16>, vector<256x32xf32> -> vector<256x32xf32>
    %c0_3 = arith.constant 0 : index
    %c0_4 = arith.constant 0 : index
    %3 = vector.load %arg3[%c0_3, %c0_4] : memref<1x32xf32, #tpu.memory_space<vmem>>, vector<1x32xf32>
    %4 = vector.broadcast %3 : vector<1x32xf32> to vector<256x32xf32>
    %5 = arith.mulf %2, %4 : vector<256x32xf32>
    %c0_5 = arith.constant 0 : index
    %c0_6 = arith.constant 0 : index
    %6 = vector.load %arg4[%c0_5, %c0_6] : memref<1x32xf32, #tpu.memory_space<vmem>>, vector<1x32xf32>
    %7 = vector.broadcast %6 : vector<1x32xf32> to vector<256x32xf32>
    %8 = arith.addf %5, %7 : vector<256x32xf32>
    %cst_7 = arith.constant 0.000000e+00 : f32
    %9 = vector.broadcast %cst_7 : f32 to vector<256x32xf32>
    %10 = arith.cmpf oge, %8, %9 : vector<256x32xf32>
    %cst_8 = arith.constant 2.000000e-01 : f32
    %11 = vector.broadcast %cst_8 : f32 to vector<256x32xf32>
    %12 = arith.mulf %11, %8 : vector<256x32xf32>
    %13 = arith.select %10, %8, %12 : vector<256x32xi1>, vector<256x32xf32>
    %14 = arith.truncf %13 : vector<256x32xf32> to vector<256x32xbf16>
    %c0_9 = arith.constant 0 : index
    %c0_10 = arith.constant 0 : index
    %15 = vector.load %arg5[%c0_9, %c0_10] : memref<256x32xbf16, #tpu.memory_space<vmem>>, vector<256x32xbf16>
    tpu.vector_store %arg5[%c0_9, %c0_10], %14 {strides = array<i32>} : memref<256x32xbf16, #tpu.memory_space<vmem>>, vector<256x32xbf16>,
    return
  }
  func.func @transform_0(%arg0: i32) -> (i32, i32) {
    %c0_i32 = arith.constant 0 : i32
    %c0_i32_0 = arith.constant 0 : i32
    return %arg0, %c0_i32 : i32, i32
  }
  func.func @transform_1(%arg0: i32) -> (i32, i32) {
    %c0_i32 = arith.constant 0 : i32
    %c0_i32_0 = arith.constant 0 : i32
    %c0_i32_1 = arith.constant 0 : i32
    return %c0_i32, %c0_i32_0 : i32, i32
  }
  func.func @transform_2(%arg0: i32) -> (i32, i32) {
    %c0_i32 = arith.constant 0 : i32
    %c0_i32_0 = arith.constant 0 : i32
    %c0_i32_1 = arith.constant 0 : i32
    return %c0_i32, %c0_i32_0 : i32, i32
  }
  func.func @transform_3(%arg0: i32) -> (i32, i32) {
    %c0_i32 = arith.constant 0 : i32
    %c0_i32_0 = arith.constant 0 : i32
    %c0_i32_1 = arith.constant 0 : i32
    return %c0_i32, %c0_i32_0 : i32, i32
  }
  func.func @transform_4(%arg0: i32) -> (i32, i32) {
    %c0_i32 = arith.constant 0 : i32
    %c0_i32_0 = arith.constant 0 : i32
    return %arg0, %c0_i32 : i32, i32
  }
}

module attributes {stable_mosaic.version = 11 : i64} {
  func.func @_matmul_bn_act_kernel(%arg0: i32, %arg1: memref<256x288xbf16, #tpu.memory_space<vmem>>, %arg2: memref<288x32xbf16, #tpu.memory_space<vmem>>, %arg3: memref<1x32xf32, #tpu.memory_space<vmem>>, %arg4: memref<1x32xf32, #tpu.memory_space<vmem>>, %arg5: memref<256x32xbf16, #tpu.memory_space<vmem>>) attributes {dimension_semantics = [#tpu.dimension_semantics<parallel>], iteration_bounds = array<i64: 2>, scalar_prefetch = 0 : i64, scratch_operands = 0 : i64, tpu.core_type = #tpu.core_type<tc>, window_params = [{transform_indices = @transform_0, window_bounds = array<i64: 256, 288>}, {pipeline_mode = #tpu.pipeline_mode<synchronous>, transform_indices = @transform_1, window_bounds = array<i64: 288, 32>}, {pipeline_mode = #tpu.pipeline_mode<synchronous>, transform_indices = @transform_2, window_bounds = array<i64: 1, 32>}, {pipeline_mode = #tpu.pipeline_mode<synchronous>, transform_indices = @transform_3, window_bounds = array<i64: 1, 32>}, {transform_indices = @transform_4, window_bounds = array<i64: 256, 32>}]} {
    %c0 = arith.constant 0 : index
    %c0_0 = arith.constant 0 : index
    %0 = vector.load %arg1[%c0, %c0_0] : memref<256x288xbf16, #tpu.memory_space<vmem>>, vector<256x288xbf16>
    %c0_1 = arith.constant 0 : index
    %c0_2 = arith.constant 0 : index
    %1 = vector.load %arg2[%c0_1, %c0_2] : memref<288x32xbf16, #tpu.memory_space<vmem>>, vector<288x32xbf16>
    %cst = arith.constant dense<0.000000e+00> : vector<256x32xf32>
    %2 = tpu.matmul %0, %1, %cst {dimension_numbers = #tpu.dot_dimension_numbers<[1], [0], [0], [1], [0, 0, 1, 1], [], []>} : vector<256x288xbf16>, vector<288x32xbf16>, vector<256x32xf32> -> vector<256x32xf32>
    %c0_3 = arith.constant 0 : index
    %c0_4 = arith.constant 0 : index
    %3 = vector.load %arg3[%c0_3, %c0_4] : memref<1x32xf32, #tpu.memory_space<vmem>>, vector<1x32xf32>
    %4 = vector.broadcast %3 : vector<1x32xf32> to vector<256x32xf32>
    %5 = arith.mulf %2, %4 : vector<256x32xf32>
    %c0_5 = arith.constant 0 : index
    %c0_6 = arith.constant 0 : index
    %6 = vector.load %arg4[%c0_5, %c0_6] : memref<1x32xf32, #tpu.memory_space<vmem>>, vector<1x32xf32>
    %7 = vector.broadcast %6 : vector<1x32xf32> to vector<256x32xf32>
    %8 = arith.addf %5, %7 : vector<256x32xf32>
    %cst_7 = arith.constant 0.000000e+00 : f32
    %9 = vector.broadcast %cst_7 : f32 to vector<256x32xf32>
    %10 = arith.cmpf oge, %8, %9 : vector<256x32xf32>
    %cst_8 = arith.constant 2.000000e-01 : f32
    %11 = vector.broadcast %cst_8 : f32 to vector<256x32xf32>
    %12 = arith.mulf %11, %8 : vector<256x32xf32>
    %13 = arith.select %10, %8, %12 : vector<256x32xi1>, vector<256x32xf32>
    %14 = arith.truncf %13 : vector<256x32xf32> to vector<256x32xbf16>
    %c0_9 = arith.constant 0 : index
    %c0_10 = arith.constant 0 : index
    %15 = vector.load %arg5[%c0_9, %c0_10] : memref<256x32xbf16, #tpu.memory_space<vmem>>, vector<256x32xbf16>
    tpu.vector_store %arg5[%c0_9, %c0_10], %14 {strides = array<i32>} : memref<256x32xbf16, #tpu.memory_space<vmem>>, vector<256x32xbf16>,
    return
  }
  func.func @transform_0(%arg0: i32) -> (i32, i32) {
    %c0_i32 = arith.constant 0 : i32
    %c0_i32_0 = arith.constant 0 : i32
    return %arg0, %c0_i32 : i32, i32
  }
  func.func @transform_1(%arg0: i32) -> (i32, i32) {
    %c0_i32 = arith.constant 0 : i32
    %c0_i32_0 = arith.constant 0 : i32
    %c0_i32_1 = arith.constant 0 : i32
    return %c0_i32, %c0_i32_0 : i32, i32
  }
  func.func @transform_2(%arg0: i32) -> (i32, i32) {
    %c0_i32 = arith.constant 0 : i32
    %c0_i32_0 = arith.constant 0 : i32
    %c0_i32_1 = arith.constant 0 : i32
    return %c0_i32, %c0_i32_0 : i32, i32
  }
  func.func @transform_3(%arg0: i32) -> (i32, i32) {
    %c0_i32 = arith.constant 0 : i32
    %c0_i32_0 = arith.constant 0 : i32
    %c0_i32_1 = arith.constant 0 : i32
    return %c0_i32, %c0_i32_0 : i32, i32
  }
  func.func @transform_4(%arg0: i32) -> (i32, i32) {
    %c0_i32 = arith.constant 0 : i32
    %c0_i32_0 = arith.constant 0 : i32
    return %arg0, %c0_i32 : i32, i32
  }
}

module attributes {stable_mosaic.version = 11 : i64} {
  func.func @_outconv_residual_kernel(%arg0: i32, %arg1: memref<32x256xbf16, #tpu.memory_space<vmem>>, %arg2: memref<8x32xbf16, #tpu.memory_space<vmem>>, %arg3: memref<8x1xf32, #tpu.memory_space<vmem>>, %arg4: memref<8x256xf32, #tpu.memory_space<vmem>>, %arg5: memref<8x256xf32, #tpu.memory_space<vmem>>) attributes {dimension_semantics = [#tpu.dimension_semantics<parallel>], iteration_bounds = array<i64: 2>, scalar_prefetch = 0 : i64, scratch_operands = 0 : i64, tpu.core_type = #tpu.core_type<tc>, window_params = [{transform_indices = @transform_0, window_bounds = array<i64: 32, 256>}, {pipeline_mode = #tpu.pipeline_mode<synchronous>, transform_indices = @transform_1, window_bounds = array<i64: 8, 32>}, {pipeline_mode = #tpu.pipeline_mode<synchronous>, transform_indices = @transform_2, window_bounds = array<i64: 8, 1>}, {transform_indices = @transform_3, window_bounds = array<i64: 8, 256>}, {transform_indices = @transform_4, window_bounds = array<i64: 8, 256>}]} {
    %c0 = arith.constant 0 : index
    %c0_0 = arith.constant 0 : index
    %0 = vector.load %arg2[%c0, %c0_0] : memref<8x32xbf16, #tpu.memory_space<vmem>>, vector<8x32xbf16>
    %c0_1 = arith.constant 0 : index
    %c0_2 = arith.constant 0 : index
    %1 = vector.load %arg1[%c0_1, %c0_2] : memref<32x256xbf16, #tpu.memory_space<vmem>>, vector<32x256xbf16>
    %cst = arith.constant dense<0.000000e+00> : vector<8x256xf32>
    %2 = tpu.matmul %0, %1, %cst {dimension_numbers = #tpu.dot_dimension_numbers<[1], [0], [0], [1], [0, 0, 1, 1], [], []>} : vector<8x32xbf16>, vector<32x256xbf16>, vector<8x256xf32> -> vector<8x256xf32>
    %c0_3 = arith.constant 0 : index
    %c0_4 = arith.constant 0 : index
    %3 = vector.load %arg3[%c0_3, %c0_4] : memref<8x1xf32, #tpu.memory_space<vmem>>, vector<8x1xf32>
    %4 = vector.broadcast %3 : vector<8x1xf32> to vector<8x256xf32>
    %5 = arith.addf %2, %4 : vector<8x256xf32>
    %c0_5 = arith.constant 0 : index
    %c0_6 = arith.constant 0 : index
    %6 = vector.load %arg4[%c0_5, %c0_6] : memref<8x256xf32, #tpu.memory_space<vmem>>, vector<8x256xf32>
    %7 = arith.addf %5, %6 : vector<8x256xf32>
    %c0_7 = arith.constant 0 : index
    %c0_8 = arith.constant 0 : index
    %8 = vector.load %arg5[%c0_7, %c0_8] : memref<8x256xf32, #tpu.memory_space<vmem>>, vector<8x256xf32>
    tpu.vector_store %arg5[%c0_7, %c0_8], %7 {strides = array<i32>} : memref<8x256xf32, #tpu.memory_space<vmem>>, vector<8x256xf32>,
    return
  }
  func.func @transform_0(%arg0: i32) -> (i32, i32) {
    %c0_i32 = arith.constant 0 : i32
    %c0_i32_0 = arith.constant 0 : i32
    return %c0_i32, %arg0 : i32, i32
  }
  func.func @transform_1(%arg0: i32) -> (i32, i32) {
    %c0_i32 = arith.constant 0 : i32
    %c0_i32_0 = arith.constant 0 : i32
    %c0_i32_1 = arith.constant 0 : i32
    return %c0_i32, %c0_i32_0 : i32, i32
  }
  func.func @transform_2(%arg0: i32) -> (i32, i32) {
    %c0_i32 = arith.constant 0 : i32
    %c0_i32_0 = arith.constant 0 : i32
    %c0_i32_1 = arith.constant 0 : i32
    return %c0_i32, %c0_i32_0 : i32, i32
  }
  func.func @transform_3(%arg0: i32) -> (i32, i32) {
    %c0_i32 = arith.constant 0 : i32
    %c0_i32_0 = arith.constant 0 : i32
    return %c0_i32, %arg0 : i32, i32
  }
  func.func @transform_4(%arg0: i32) -> (i32, i32) {
    %c0_i32 = arith.constant 0 : i32
    %c0_i32_0 = arith.constant 0 : i32
    return %c0_i32, %arg0 : i32, i32
  }
}

</mosaic_0001>

<llo_original>
// kernel: unet_forward.12
$region0: #{unet_forward.12}
  #allocation0 [shape = 'u32[]', space=smem, size = 0x4, offset = 0x4, fixed_abs, tag = 'smem constant byte address 0x4 - core index']
  #allocation1 [shape = 'u32[144,128]{1,0:T(1,128)}', space=vmem, size = 0x12000, scoped, tag = 'internal scratch']
  %s0 = inlined_call_operand.vmem [shape: bf16[512,27], index: 0, kind: input, shape index: {}]
  %s1 = inlined_call_operand.vmem [shape: bf16[27,32], index: 1, kind: input, shape index: {}]
  %s2 = inlined_call_operand.vmem [shape: f32[1,32], index: 2, kind: input, shape index: {}]
  %s3 = inlined_call_operand.vmem [shape: f32[1,32], index: 3, kind: input, shape index: {}]
  %s4 = inlined_call_operand.vmem [shape: bf16[512,32], index: 4, kind: output, shape index: {}]
  %s5 = sld [smem:[#allocation0]]
  $region49: #{unet_forward.12} parent=0
    _
  %s7 = ssub.s32 1, %s5
  %s8 = scalar_select 0, %s7, %s5
  loop: start=0, step=1, limit=4
  $region2: #{unet_forward.12} parent=0 // loop_pre_header
    _
  $region3: #{unet_forward.12} parent=0 // loop_header
    %s10 = sphi 0, %s14
    %p11 = scmp.ge.s32.totalorder %s10, 4
    %s20 = sphi 0, %s22
    %s23 = sphi 0, %s20
    %s24 = sphi 0, %s23
    %s40 = sphi 0, %s24
    %s44 = sphi 0, %s44
    %s46 = sphi 0, %s44
    %s47 = sphi 0, %s46
    %s61 = sphi 0, %s47
    %s65 = sphi 0, %s65
    %s67 = sphi 0, %s65
    %s68 = sphi 0, %s67
    %s82 = sphi 0, %s68
    %s86 = sphi 0, %s86
    %s88 = sphi 0, %s86
    %s89 = sphi 0, %s88
    %s103 = sphi 0, %s89
    %s109 = sphi 0, %s111
    %s112 = sphi 0, %s109
    %s113 = sphi 0, %s112
    %s129 = sphi 0, %s113
  $region4: #{unet_forward.12} parent=0 // loop_header_branch
    %13 = sbr.rel (%p11) target = $region8
  $region5: #{unet_forward.12} parent=0 // loop_body
    %s15 = ssub.s32 %s10, 1
    %s16 = ssub.s32 %s10, 2
    %s17 = sadd.s32 %s10, 1
    %s18 = ssub.s32 %s10, %s17
    %p19 = scmp.eq.s32.totalorder %s18, 0
    %s21 = sadd.s32 %s20, 1
    %s22 = scalar_select %p19, %s20, %s21
    %p25 = pneg %p19
    %p26 = scmp.eq.s32.totalorder %s10, 1
    %p27 = por %p25, %p26
    %p28 = scmp.ne.s32.totalorder %s20, %s23
    %p29 = scmp.eq.s32.totalorder %s10, 0
    %p30 = por %p28, %p29
    %p31 = scmp.ne.s32.totalorder %s20, %s23
    %p32 = scmp.eq.s32.totalorder %s15, 1
    %p33 = por %p31, %p32
    %p34 = scmp.ne.s32.totalorder %s23, %s24
    %p35 = scmp.eq.s32.totalorder %s15, 0
    %p36 = por %p34, %p35
    %p37 = scmp.ne.s32.totalorder %s23, %s24
    %p38 = scmp.eq.s32.totalorder %s16, 1
    %p39 = por %p37, %p38
    %p41 = scmp.ne.s32.totalorder %s24, %s40
    %p42 = scmp.eq.s32.totalorder %s16, 0
    %p43 = por %p41, %p42
    %s45 = sadd.s32 %s44, 1
    %p48 = scmp.eq.s32.totalorder %s10, 1
    %p49 = scmp.ne.s32.totalorder %s44, %s46
    %p50 = scmp.eq.s32.totalorder %s10, 0
    %p51 = por %p49, %p50
    %p52 = scmp.ne.s32.totalorder %s44, %s46
    %p53 = scmp.eq.s32.totalorder %s15, 1
    %p54 = por %p52, %p53
    %p55 = scmp.ne.s32.totalorder %s46, %s47
    %p56 = scmp.eq.s32.totalorder %s15, 0
    %p57 = por %p55, %p56
    %p58 = scmp.ne.s32.totalorder %s46, %s47
    %p59 = scmp.eq.s32.totalorder %s16, 1
    %p60 = por %p58, %p59
    %p62 = scmp.ne.s32.totalorder %s47, %s61
    %p63 = scmp.eq.s32.totalorder %s16, 0
    %p64 = por %p62, %p63
    %s66 = sadd.s32 %s65, 1
    %p69 = scmp.eq.s32.totalorder %s10, 1
    %p70 = scmp.ne.s32.totalorder %s65, %s67
    %p71 = scmp.eq.s32.totalorder %s10, 0
    %p72 = por %p70, %p71
    %p73 = scmp.ne.s32.totalorder %s65, %s67
    %p74 = scmp.eq.s32.totalorder %s15, 1
    %p75 = por %p73, %p74
    %p76 = scmp.ne.s32.totalorder %s67, %s68
    %p77 = scmp.eq.s32.totalorder %s15, 0
    %p78 = por %p76, %p77
    %p79 = scmp.ne.s32.totalorder %s67, %s68
    %p80 = scmp.eq.s32.totalorder %s16, 1
    %p81 = por %p79, %p80
    %p83 = scmp.ne.s32.totalorder %s68, %s82
    %p84 = scmp.eq.s32.totalorder %s16, 0
    %p85 = por %p83, %p84
    %s87 = sadd.s32 %s86, 1
    %p90 = scmp.eq.s32.totalorder %s10, 1
    %p91 = scmp.ne.s32.totalorder %s86, %s88
    %p92 = scmp.eq.s32.totalorder %s10, 0
    %p93 = por %p91, %p92
    %p94 = scmp.ne.s32.totalorder %s86, %s88
    %p95 = scmp.eq.s32.totalorder %s15, 1
    %p96 = por %p94, %p95
    %p97 = scmp.ne.s32.totalorder %s88, %s89
    %p98 = scmp.eq.s32.totalorder %s15, 0
    %p99 = por %p97, %p98
    %p100 = scmp.ne.s32.totalorder %s88, %s89
    %p101 = scmp.eq.s32.totalorder %s16, 1
    %p102 = por %p100, %p101
    %p104 = scmp.ne.s32.totalorder %s89, %s103
    %p105 = scmp.eq.s32.totalorder %s16, 0
    %p106 = por %p104, %p105
    %s107 = ssub.s32 %s10, %s17
    %p108 = scmp.eq.s32.totalorder %s107, 0
    %s110 = sadd.s32 %s109, 1
    %s111 = scalar_select %p108, %s109, %s110
    %p114 = pneg %p108
    %p115 = scmp.eq.s32.totalorder %s10, 1
    %p116 = por %p114, %p115
    %p117 = scmp.ne.s32.totalorder %s109, %s112
    %p118 = scmp.eq.s32.totalorder %s10, 0
    %p119 = por %p117, %p118
    %p120 = scmp.ne.s32.totalorder %s109, %s112
    %p121 = scmp.eq.s32.totalorder %s15, 1
    %p122 = por %p120, %p121
    %p123 = scmp.ne.s32.totalorder %s112, %s113
    %p124 = scmp.eq.s32.totalorder %s15, 0
    %p125 = por %p123, %p124
    %p126 = scmp.ne.s32.totalorder %s112, %s113
    %p127 = scmp.eq.s32.totalorder %s16, 1
    %p128 = por %p126, %p127
    %p130 = scmp.ne.s32.totalorder %s113, %s129
    %p131 = scmp.eq.s32.totalorder %s16, 0
    %p132 = por %p130, %p131
    %p133 = scmp.le.s32.totalorder 1, %s10
    %p134 = scmp.lt.s32.totalorder %s10, 3
    %p135 = pnand %p133, %p134
    %p136 = pneg %p135
    // Predicated region
    $region9: #{unet_forward.12} parent=5 // pred_check
      _
    $region10: #{unet_forward.12} parent=5 // pred_check_branch
      %138 = sbr.rel (%p135) target = $region12
    $region11: #{unet_forward.12} parent=5 // pred_region
      %s139 = ssub.s32 %s10, 1
      // Predicated region
      $region13: #{unet_forward.12} parent=11 // pred_check
        %p140 = pneg %p57
      $region14: #{unet_forward.12} parent=11 // pred_check_branch
        %142 = sbr.rel (%p140) target = $region16
      $region15: #{unet_forward.12} parent=11 // pred_region
        _
      $region16: #{unet_forward.12} parent=11 // pred_fallthru
        _
      // Predicated region
      $region17: #{unet_forward.12} parent=11 // pred_check
        %p143 = pneg %p78
      $region18: #{unet_forward.12} parent=11 // pred_check_branch
        %145 = sbr.rel (%p143) target = $region20
      $region19: #{unet_forward.12} parent=11 // pred_region
        _
      $region20: #{unet_forward.12} parent=11 // pred_fallthru
        _
      // Predicated region
      $region21: #{unet_forward.12} parent=11 // pred_check
        %p146 = pneg %p99
      $region22: #{unet_forward.12} parent=11 // pred_check_branch
        %148 = sbr.rel (%p146) target = $region24
      $region23: #{unet_forward.12} parent=11 // pred_region
        _
      $region24: #{unet_forward.12} parent=11 // pred_fallthru
        _
    $region12: #{unet_forward.12} parent=5 // pred_fallthru
      _
    %p149 = scmp.lt.s32.totalorder %s10, 2
    // Predicated region
    $region25: #{unet_forward.12} parent=5 // pred_check
      %p150 = pneg %p149
    $region26: #{unet_forward.12} parent=5 // pred_check_branch
      %152 = sbr.rel (%p150) target = $region28
    $region27: #{unet_forward.12} parent=5 // pred_region
      // Predicated region
      $region29: #{unet_forward.12} parent=27 // pred_check
        %p153 = pneg %p30
      $region30: #{unet_forward.12} parent=27 // pred_check_branch
        %155 = sbr.rel (%p153) target = $region32
      $region31: #{unet_forward.12} parent=27 // pred_region
        %s156 = smul.u32 32, %s10
        %p157 = scmp.lt.s32.totalorder %s156, 63
        %s158 = scalar_select %p157, %s156, 63
        %s159 = smul.addr %s158, 4
        %s160 = scalar_lea.vmem %s0, %s159
        %s161 = smul.u32 32, %s10
      $region32: #{unet_forward.12} parent=27 // pred_fallthru
        _
    $region28: #{unet_forward.12} parent=5 // pred_fallthru
      _
    %p162 = scmp.le.s32.totalorder 1, %s10
    %p163 = scmp.lt.s32.totalorder %s10, 3
    %p164 = pnand %p162, %p163
    %p165 = pneg %p164
    // Predicated region
    $region33: #{unet_forward.12} parent=5 // pred_check
      _
    $region34: #{unet_forward.12} parent=5 // pred_check_branch
      %167 = sbr.rel (%p164) target = $region36
    $region35: #{unet_forward.12} parent=5 // pred_region
      %s168 = ssub.s32 %s10, 1
      %s169 = smul.u32 32, %s15
      %p170 = scmp.lt.s32.totalorder %s169, 63
      %s171 = scalar_select %p170, %s169, 63
      %s172 = smul.addr %s171, 4
      %s173 = scalar_lea.vmem %s0, %s172
      %p174 = pneg %p36
      %p175 = pneg %p33
      %p176 = pneg %p57
      %p177 = pneg %p54
      %p178 = pneg %p78
      %p179 = pneg %p75
      %p180 = pneg %p99
      %p181 = pneg %p96
      %p182 = pneg %p125
      %p183 = pneg %p122
      %s184 = smul.u32 32, %s15
      %p185 = scmp.lt.s32.totalorder %s184, 63
      %s186 = scalar_select %p185, %s184, 63
      %s187 = smul.addr %s186, 4
      %s188 = scalar_lea.vmem %s4, %s187
      %s189 = smul.u32 32, %s15
      %p190 = scmp.lt.s32.totalorder %s189, 63
      %s191 = scalar_select %p190, %s189, 63
      %s192 = smul.addr %s191, 4
      %s193 = scalar_lea.vmem %s0, %s192
      %s194 = smul.u32 32, %s15
      %s195 = smul.u32 32, %s15
      %p196 = scmp.lt.s32.totalorder %s195, 63
      %s197 = scalar_select %p196, %s195, 63
      %s198 = smul.addr %s197, 4
      %s199 = scalar_lea.vmem %s4, %s198
      %s200 = smul.u32 32, %s15
      %v202 = vld [vmem:[%s193] sm:$0xf]
      %v203 = vld [vmem:[%s193 + $0x4] sm:$0xf]
      %v204 = vld [vmem:[%s193 + $0x8] sm:$0xf]
      %v205 = vld [vmem:[%s193 + $0xc] sm:$0xf]
      %v206 = vld [vmem:[%s193 + $0x10] sm:$0xf]
      %v207 = vld [vmem:[%s193 + $0x14] sm:$0xf]
      %v208 = vld [vmem:[%s193 + $0x18] sm:$0xf]
      %v209 = vld [vmem:[%s193 + $0x1c] sm:$0xf]
      %v210 = vld [vmem:[%s193 + $0x20] sm:$0xf]
      %v211 = vld [vmem:[%s193 + $0x24] sm:$0xf]
      %v212 = vld [vmem:[%s193 + $0x28] sm:$0xf]
      %v213 = vld [vmem:[%s193 + $0x2c] sm:$0xf]
      %v214 = vld [vmem:[%s193 + $0x30] sm:$0xf]
      %v215 = vld [vmem:[%s193 + $0x34] sm:$0xf]
      %v216 = vld [vmem:[%s193 + $0x38] sm:$0xf]
      %v217 = vld [vmem:[%s193 + $0x3c] sm:$0xf]
      %v218 = vld [vmem:[%s193 + $0x40] sm:$0xf]
      %v219 = vld [vmem:[%s193 + $0x44] sm:$0xf]
      %v220 = vld [vmem:[%s193 + $0x48] sm:$0xf]
      %v221 = vld [vmem:[%s193 + $0x4c] sm:$0xf]
      %v222 = vld [vmem:[%s193 + $0x50] sm:$0xf]
      %v223 = vld [vmem:[%s193 + $0x54] sm:$0xf]
      %v224 = vld [vmem:[%s193 + $0x58] sm:$0xf]
      %v225 = vld [vmem:[%s193 + $0x5c] sm:$0xf]
      %v226 = vld [vmem:[%s193 + $0x60] sm:$0xf]
      %v227 = vld [vmem:[%s193 + $0x64] sm:$0xf]
      %v228 = vld [vmem:[%s193 + $0x68] sm:$0xf]
      %v229 = vld [vmem:[%s193 + $0x6c] sm:$0xf]
      %v230 = vld [vmem:[%s193 + $0x70] sm:$0xf]
      %v231 = vld [vmem:[%s193 + $0x74] sm:$0xf]
      %v232 = vld [vmem:[%s193 + $0x78] sm:$0xf]
      %v233 = vld [vmem:[%s193 + $0x7c] sm:$0xf]
      %v234 = vld [vmem:[%s1] sm:$0xf]
      %v235 = vld [vmem:[%s1 + $0x4] sm:$0xf]
      %v236 = vld [vmem:[%s1 + $0x8] sm:$0xf]
      %v237 = vld [vmem:[%s1 + $0xc] sm:$0x3]
      %v270 = vunpack.c.l.b16 %v202
      %v271 = vunpack.c.l.b16 %v203
      %v272 = vunpack.c.l.b16 %v204
      %v273 = vunpack.c.l.b16 %v205
      %v274 = vunpack.c.l.b16 %v206
      %v275 = vunpack.c.l.b16 %v207
      %v276 = vunpack.c.l.b16 %v208
      %v277 = vunpack.c.l.b16 %v209
      %v278 = vunpack.c.l.b16 %v210
      %v279 = vunpack.c.l.b16 %v211
      %v280 = vunpack.c.l.b16 %v212
      %v281 = vunpack.c.l.b16 %v213
      %v282 = vunpack.c.l.b16 %v214
      %v283 = vunpack.c.l.b16 %v215
      %v284 = vunpack.c.l.b16 %v216
      %v285 = vunpack.c.l.b16 %v217
      %v286 = vunpack.c.l.b16 %v218
      %v287 = vunpack.c.l.b16 %v219
      %v288 = vunpack.c.l.b16 %v220
      %v289 = vunpack.c.l.b16 %v221
      %v290 = vunpack.c.l.b16 %v222
      %v291 = vunpack.c.l.b16 %v223
      %v292 = vunpack.c.l.b16 %v224
      %v293 = vunpack.c.l.b16 %v225
      %v294 = vunpack.c.l.b16 %v226
      %v295 = vunpack.c.l.b16 %v227
      %v296 = vunpack.c.l.b16 %v228
      %v297 = vunpack.c.l.b16 %v229
      %v298 = vunpack.c.l.b16 %v230
      %v299 = vunpack.c.l.b16 %v231
      %v300 = vunpack.c.l.b16 %v232
      %v301 = vunpack.c.l.b16 %v233
      %v302 = vpack.c.b16 %v271, %v270
      %v303 = vpack.c.b16 %v273, %v272
      %v304 = vpack.c.b16 %v275, %v274
      %v305 = vpack.c.b16 %v277, %v276
      %v306 = vpack.c.b16 %v279, %v278
      %v307 = vpack.c.b16 %v281, %v280
      %v308 = vpack.c.b16 %v283, %v282
      %v309 = vpack.c.b16 %v285, %v284
      %v310 = vpack.c.b16 %v287, %v286
      %v311 = vpack.c.b16 %v289, %v288
      %v312 = vpack.c.b16 %v291, %v290
      %v313 = vpack.c.b16 %v293, %v292
      %v314 = vpack.c.b16 %v295, %v294
      %v315 = vpack.c.b16 %v297, %v296
      %v316 = vpack.c.b16 %v299, %v298
      %v317 = vpack.c.b16 %v301, %v300
      %v322 = vunpack.c.l.b16 %v234
      %v323 = vunpack.c.l.b16 %v235
      %v324 = vunpack.c.l.b16 %v236
      %v325 = vunpack.c.l.b16 %v237
      %v326 = vpack.c.b16 %v323, %v322
      %v327 = vpack.c.b16 %v325, %v324
      %vm329 = vcmask 220160
      %v331 = vsel %vm329, %v302, 0
      %v334 = vsel %vm329, %v303, 0
      %v337 = vsel %vm329, %v304, 0
      %v340 = vsel %vm329, %v305, 0
      %v343 = vsel %vm329, %v306, 0
      %v346 = vsel %vm329, %v307, 0
      %v349 = vsel %vm329, %v308, 0
      %v352 = vsel %vm329, %v309, 0
      %v355 = vsel %vm329, %v310, 0
      %v358 = vsel %vm329, %v311, 0
      %v361 = vsel %vm329, %v312, 0
      %v364 = vsel %vm329, %v313, 0
      %v367 = vsel %vm329, %v314, 0
      %v370 = vsel %vm329, %v315, 0
      %v373 = vsel %vm329, %v316, 0
      %v376 = vsel %vm329, %v317, 0
      %vm378 = vcmask 1044480
      %vm379 = vcmask 1045504
      %v380 = vsel %vm378, 4294967295, 65535
      %v381 = vsel %vm379, %v380, 0
      %v383 = vand.u32 %v327, %v381
      %385 = vmatprep.subr.bf16.mxu0 0
      %386 = vmatpush1.bf16.msra.mxu0 0
      %387 = vmatprep.subr.bf16.mxu0 0
      %388 = vmatpush1.bf16.msra.mxu0 0
      %389 = vmatprep.subr.bf16.mxu0 0
      %390 = vmatpush1.bf16.msra.mxu0 0
      %391 = vmatprep.subr.bf16.mxu0 0
      %392 = vmatpush1.bf16.msra.mxu0 0
      %393 = vmatprep.subr.bf16.mxu0 0
      %394 = vmatpush1.bf16.msra.mxu0 0
      %395 = vmatprep.subr.bf16.mxu0 0
      %396 = vmatpush1.bf16.msra.mxu0 0
      %397 = vmatprep.subr.bf16.mxu0 0
      %398 = vmatpush1.bf16.msra.mxu0 %v383
      %399 = vmatprep.subr.bf16.mxu0 0
      %400 = vmatpush1.bf16.msra.mxu0 %v326
      %401 = vmatprep.subr.bf16.mxu0 0
      %402 = vmatpush2.bf16.msra.mxu0 0
      %403 = vmatprep.subr.bf16.mxu0 0
      %404 = vmatpush2.bf16.msra.mxu0 0
      %405 = vmatprep.subr.bf16.mxu0 0
      %406 = vmatpush2.bf16.msra.mxu0 0
      %407 = vmatprep.subr.bf16.mxu0 0
      %408 = vmatpush2.bf16.msra.mxu0 0
      %409 = vmatprep.subr.bf16.mxu0 0
      %410 = vmatpush2.bf16.msra.mxu0 0
      %411 = vmatprep.subr.bf16.mxu0 0
      %412 = vmatpush2.bf16.msra.mxu0 0
      %413 = vmatprep.subr.bf16.mxu0 0
      %414 = vmatpush2.bf16.msra.mxu0 0
      %415 = vmatprep.subr.bf16.mxu0 0
      %416 = vmatpush2.bf16.msra.mxu0 0
      %417 = vmatprep.mubr.bf16.mxu0 0
      %418 = vmatmul.mubr.bf16.gmra.mxu0 %v331
      %v419 = vpop.f32.mrf.mxu0
      %v420 = vadd.f32 0.0, %v419
      %v421 = vpop.f32.mrf.mxu0
      %v422 = vpop.f32.mrf.mxu0
      %v423 = vadd.f32 0.0, %v422
      %v424 = vpop.f32.mrf.mxu0
      %425 = vmatprep.mubr.bf16.mxu0 0
      %426 = vmatmul.mubr.bf16.gmra.mxu0 %v334
      %v427 = vpop.f32.mrf.mxu0
      %v428 = vadd.f32 0.0, %v427
      %v429 = vpop.f32.mrf.mxu0
      %v430 = vpop.f32.mrf.mxu0
      %v431 = vadd.f32 0.0, %v430
      %v432 = vpop.f32.mrf.mxu0
      %433 = vmatprep.mubr.bf16.mxu0 0
      %434 = vmatmul.mubr.bf16.gmra.mxu0 %v337
      %v435 = vpop.f32.mrf.mxu0
      %v436 = vadd.f32 0.0, %v435
      %v437 = vpop.f32.mrf.mxu0
      %v438 = vpop.f32.mrf.mxu0
      %v439 = vadd.f32 0.0, %v438
      %v440 = vpop.f32.mrf.mxu0
      %441 = vmatprep.mubr.bf16.mxu0 0
      %442 = vmatmul.mubr.bf16.gmra.mxu0 %v340
      %v443 = vpop.f32.mrf.mxu0
      %v444 = vadd.f32 0.0, %v443
      %v445 = vpop.f32.mrf.mxu0
      %v446 = vpop.f32.mrf.mxu0
      %v447 = vadd.f32 0.0, %v446
      %v448 = vpop.f32.mrf.mxu0
      %449 = vmatprep.mubr.bf16.mxu0 0
      %450 = vmatmul.mubr.bf16.gmra.mxu0 %v343
      %v451 = vpop.f32.mrf.mxu0
      %v452 = vadd.f32 0.0, %v451
      %v453 = vpop.f32.mrf.mxu0
      %v454 = vpop.f32.mrf.mxu0
      %v455 = vadd.f32 0.0, %v454
      %v456 = vpop.f32.mrf.mxu0
      %457 = vmatprep.mubr.bf16.mxu0 0
      %458 = vmatmul.mubr.bf16.gmra.mxu0 %v346
      %v459 = vpop.f32.mrf.mxu0
      %v460 = vadd.f32 0.0, %v459
      %v461 = vpop.f32.mrf.mxu0
      %v462 = vpop.f32.mrf.mxu0
      %v463 = vadd.f32 0.0, %v462
      %v464 = vpop.f32.mrf.mxu0
      %465 = vmatprep.mubr.bf16.mxu0 0
      %466 = vmatmul.mubr.bf16.gmra.mxu0 %v349
      %v467 = vpop.f32.mrf.mxu0
      %v468 = vadd.f32 0.0, %v467
      %v469 = vpop.f32.mrf.mxu0
      %v470 = vpop.f32.mrf.mxu0
      %v471 = vadd.f32 0.0, %v470
      %v472 = vpop.f32.mrf.mxu0
      %473 = vmatprep.mubr.bf16.mxu0 0
      %474 = vmatmul.mubr.bf16.gmra.mxu0 %v352
      %v475 = vpop.f32.mrf.mxu0
      %v476 = vadd.f32 0.0, %v475
      %v477 = vpop.f32.mrf.mxu0
      %v478 = vpop.f32.mrf.mxu0
      %v479 = vadd.f32 0.0, %v478
      %v480 = vpop.f32.mrf.mxu0
      %481 = vmatprep.mubr.bf16.mxu0 0
      %482 = vmatmul.mubr.bf16.gmra.mxu0 %v355
      %v483 = vpop.f32.mrf.mxu0
      %v484 = vadd.f32 0.0, %v483
      %v485 = vpop.f32.mrf.mxu0
      %v486 = vpop.f32.mrf.mxu0
      %v487 = vadd.f32 0.0, %v486
      %v488 = vpop.f32.mrf.mxu0
      %489 = vmatprep.mubr.bf16.mxu0 0
      %490 = vmatmul.mubr.bf16.gmra.mxu0 %v358
      %v491 = vpop.f32.mrf.mxu0
      %v492 = vadd.f32 0.0, %v491
      %v493 = vpop.f32.mrf.mxu0
      %v494 = vpop.f32.mrf.mxu0
      %v495 = vadd.f32 0.0, %v494
      %v496 = vpop.f32.mrf.mxu0
      %497 = vmatprep.mubr.bf16.mxu0 0
      %498 = vmatmul.mubr.bf16.gmra.mxu0 %v361
      %v499 = vpop.f32.mrf.mxu0
      %v500 = vadd.f32 0.0, %v499
      %v501 = vpop.f32.mrf.mxu0
      %v502 = vpop.f32.mrf.mxu0
      %v503 = vadd.f32 0.0, %v502
      %v504 = vpop.f32.mrf.mxu0
      %505 = vmatprep.mubr.bf16.mxu0 0
      %506 = vmatmul.mubr.bf16.gmra.mxu0 %v364
      %v507 = vpop.f32.mrf.mxu0
      %v508 = vadd.f32 0.0, %v507
      %v509 = vpop.f32.mrf.mxu0
      %v510 = vpop.f32.mrf.mxu0
      %v511 = vadd.f32 0.0, %v510
      %v512 = vpop.f32.mrf.mxu0
      %513 = vmatprep.mubr.bf16.mxu0 0
      %514 = vmatmul.mubr.bf16.gmra.mxu0 %v367
      %v515 = vpop.f32.mrf.mxu0
      %v516 = vadd.f32 0.0, %v515
      %v517 = vpop.f32.mrf.mxu0
      %v518 = vpop.f32.mrf.mxu0
      %v519 = vadd.f32 0.0, %v518
      %v520 = vpop.f32.mrf.mxu0
      %521 = vmatprep.mubr.bf16.mxu0 0
      %522 = vmatmul.mubr.bf16.gmra.mxu0 %v370
      %v523 = vpop.f32.mrf.mxu0
      %v524 = vadd.f32 0.0, %v523
      %v525 = vpop.f32.mrf.mxu0
      %v526 = vpop.f32.mrf.mxu0
      %v527 = vadd.f32 0.0, %v526
      %v528 = vpop.f32.mrf.mxu0
      %529 = vmatprep.mubr.bf16.mxu0 0
      %530 = vmatmul.mubr.bf16.gmra.mxu0 %v373
      %v531 = vpop.f32.mrf.mxu0
      %v532 = vadd.f32 0.0, %v531
      %v533 = vpop.f32.mrf.mxu0
      %v534 = vpop.f32.mrf.mxu0
      %v535 = vadd.f32 0.0, %v534
      %v536 = vpop.f32.mrf.mxu0
      %537 = vmatprep.mubr.bf16.mxu0 0
      %538 = vmatmul.mubr.bf16.gmra.mxu0 %v376
      %v539 = vpop.f32.mrf.mxu0
      %v540 = vadd.f32 0.0, %v539
      %v541 = vpop.f32.mrf.mxu0
      %v542 = vpop.f32.mrf.mxu0
      %v543 = vadd.f32 0.0, %v542
      %v544 = vpop.f32.mrf.mxu0
      %545 = vdwg.mxu0
      %v546 = vld [vmem:[%s2] sm:$0x1]
      %v548 = vlaneseq
      %v549 = vshrl.u32 %v548, 7
      %v550 = vsub.s32 0, %v549
      %v551 = vrot.slane %v546, %v550
      %v553 = vmul.f32 %v420, %v551
      %v554 = vmul.f32 %v423, %v551
      %v555 = vmul.f32 %v428, %v551
      %v556 = vmul.f32 %v431, %v551
      %v557 = vmul.f32 %v436, %v551
      %v558 = vmul.f32 %v439, %v551
      %v559 = vmul.f32 %v444, %v551
      %v560 = vmul.f32 %v447, %v551
      %v561 = vmul.f32 %v452, %v551
      %v562 = vmul.f32 %v455, %v551
      %v563 = vmul.f32 %v460, %v551
      %v564 = vmul.f32 %v463, %v551
      %v565 = vmul.f32 %v468, %v551
      %v566 = vmul.f32 %v471, %v551
      %v567 = vmul.f32 %v476, %v551
      %v568 = vmul.f32 %v479, %v551
      %v569 = vmul.f32 %v484, %v551
      %v570 = vmul.f32 %v487, %v551
      %v571 = vmul.f32 %v492, %v551
      %v572 = vmul.f32 %v495, %v551
      %v573 = vmul.f32 %v500, %v551
      %v574 = vmul.f32 %v503, %v551
      %v575 = vmul.f32 %v508, %v551
      %v576 = vmul.f32 %v511, %v551
      %v577 = vmul.f32 %v516, %v551
      %v578 = vmul.f32 %v519, %v551
      %v579 = vmul.f32 %v524, %v551
      %v580 = vmul.f32 %v527, %v551
      %v581 = vmul.f32 %v532, %v551
      %v582 = vmul.f32 %v535, %v551
      %v583 = vmul.f32 %v540, %v551
      %v584 = vmul.f32 %v543, %v551
      %v585 = vld [vmem:[%s3] sm:$0x1]
      %v587 = vlaneseq
      %v588 = vshrl.u32 %v587, 7
      %v589 = vsub.s32 0, %v588
      %v590 = vrot.slane %v585, %v589
      %v592 = vadd.f32 %v553, %v590
      %v593 = vadd.f32 %v554, %v590
      %v594 = vadd.f32 %v555, %v590
      %v595 = vadd.f32 %v556, %v590
      %v596 = vadd.f32 %v557, %v590
      %v597 = vadd.f32 %v558, %v590
      %v598 = vadd.f32 %v559, %v590
      %v599 = vadd.f32 %v560, %v590
      %v600 = vadd.f32 %v561, %v590
      %v601 = vadd.f32 %v562, %v590
      %v602 = vadd.f32 %v563, %v590
      %v603 = vadd.f32 %v564, %v590
      %v604 = vadd.f32 %v565, %v590
      %v605 = vadd.f32 %v566, %v590
      %v606 = vadd.f32 %v567, %v590
      %v607 = vadd.f32 %v568, %v590
      %v608 = vadd.f32 %v569, %v590
      %v609 = vadd.f32 %v570, %v590
      %v610 = vadd.f32 %v571, %v590
      %v611 = vadd.f32 %v572, %v590
      %v612 = vadd.f32 %v573, %v590
      %v613 = vadd.f32 %v574, %v590
      %v614 = vadd.f32 %v575, %v590
      %v615 = vadd.f32 %v576, %v590
      %v616 = vadd.f32 %v577, %v590
      %v617 = vadd.f32 %v578, %v590
      %v618 = vadd.f32 %v579, %v590
      %v619 = vadd.f32 %v580, %v590
      %v620 = vadd.f32 %v581, %v590
      %v621 = vadd.f32 %v582, %v590
      %v622 = vadd.f32 %v583, %v590
      %v623 = vadd.f32 %v584, %v590
      %vm624 = vcmp.ge.f32.partialorder %v592, 0.0
      %vm625 = vcmp.ge.f32.partialorder %v593, 0.0
      %vm626 = vcmp.ge.f32.partialorder %v594, 0.0
      %vm627 = vcmp.ge.f32.partialorder %v595, 0.0
      %vm628 = vcmp.ge.f32.partialorder %v596, 0.0
      %vm629 = vcmp.ge.f32.partialorder %v597, 0.0
      %vm630 = vcmp.ge.f32.partialorder %v598, 0.0
      %vm631 = vcmp.ge.f32.partialorder %v599, 0.0
      %vm632 = vcmp.ge.f32.partialorder %v600, 0.0
      %vm633 = vcmp.ge.f32.partialorder %v601, 0.0
      %vm634 = vcmp.ge.f32.partialorder %v602, 0.0
      %vm635 = vcmp.ge.f32.partialorder %v603, 0.0
      %vm636 = vcmp.ge.f32.partialorder %v604, 0.0
      %vm637 = vcmp.ge.f32.partialorder %v605, 0.0
      %vm638 = vcmp.ge.f32.partialorder %v606, 0.0
      %vm639 = vcmp.ge.f32.partialorder %v607, 0.0
      %vm640 = vcmp.ge.f32.partialorder %v608, 0.0
      %vm641 = vcmp.ge.f32.partialorder %v609, 0.0
      %vm642 = vcmp.ge.f32.partialorder %v610, 0.0
      %vm643 = vcmp.ge.f32.partialorder %v611, 0.0
      %vm644 = vcmp.ge.f32.partialorder %v612, 0.0
      %vm645 = vcmp.ge.f32.partialorder %v613, 0.0
      %vm646 = vcmp.ge.f32.partialorder %v614, 0.0
      %vm647 = vcmp.ge.f32.partialorder %v615, 0.0
      %vm648 = vcmp.ge.f32.partialorder %v616, 0.0
      %vm649 = vcmp.ge.f32.partialorder %v617, 0.0
      %vm650 = vcmp.ge.f32.partialorder %v618, 0.0
      %vm651 = vcmp.ge.f32.partialorder %v619, 0.0
      %vm652 = vcmp.ge.f32.partialorder %v620, 0.0
      %vm653 = vcmp.ge.f32.partialorder %v621, 0.0
      %vm654 = vcmp.ge.f32.partialorder %v622, 0.0
      %vm655 = vcmp.ge.f32.partialorder %v623, 0.0
      %v656 = vmul.f32 %v592, 0.2
      %v657 = vmul.f32 %v593, 0.2
      %v658 = vmul.f32 %v594, 0.2
      %v659 = vmul.f32 %v595, 0.2
      %v660 = vmul.f32 %v596, 0.2
      %v661 = vmul.f32 %v597, 0.2
      %v662 = vmul.f32 %v598, 0.2
      %v663 = vmul.f32 %v599, 0.2
      %v664 = vmul.f32 %v600, 0.2
      %v665 = vmul.f32 %v601, 0.2
      %v666 = vmul.f32 %v602, 0.2
      %v667 = vmul.f32 %v603, 0.2
      %v668 = vmul.f32 %v604, 0.2
      %v669 = vmul.f32 %v605, 0.2
      %v670 = vmul.f32 %v606, 0.2
      %v671 = vmul.f32 %v607, 0.2
      %v672 = vmul.f32 %v608, 0.2
      %v673 = vmul.f32 %v609, 0.2
      %v674 = vmul.f32 %v610, 0.2
      %v675 = vmul.f32 %v611, 0.2
      %v676 = vmul.f32 %v612, 0.2
      %v677 = vmul.f32 %v613, 0.2
      %v678 = vmul.f32 %v614, 0.2
      %v679 = vmul.f32 %v615, 0.2
      %v680 = vmul.f32 %v616, 0.2
      %v681 = vmul.f32 %v617, 0.2
      %v682 = vmul.f32 %v618, 0.2
      %v683 = vmul.f32 %v619, 0.2
      %v684 = vmul.f32 %v620, 0.2
      %v685 = vmul.f32 %v621, 0.2
      %v686 = vmul.f32 %v622, 0.2
      %v687 = vmul.f32 %v623, 0.2
      %v688 = vsel %vm624, %v592, %v656
      %v689 = vsel %vm625, %v593, %v657
      %v690 = vsel %vm626, %v594, %v658
      %v691 = vsel %vm627, %v595, %v659
      %v692 = vsel %vm628, %v596, %v660
      %v693 = vsel %vm629, %v597, %v661
      %v694 = vsel %vm630, %v598, %v662
      %v695 = vsel %vm631, %v599, %v663
      %v696 = vsel %vm632, %v600, %v664
      %v697 = vsel %vm633, %v601, %v665
      %v698 = vsel %vm634, %v602, %v666
      %v699 = vsel %vm635, %v603, %v667
      %v700 = vsel %vm636, %v604, %v668
      %v701 = vsel %vm637, %v605, %v669
      %v702 = vsel %vm638, %v606, %v670
      %v703 = vsel %vm639, %v607, %v671
      %v704 = vsel %vm640, %v608, %v672
      %v705 = vsel %vm641, %v609, %v673
      %v706 = vsel %vm642, %v610, %v674
      %v707 = vsel %vm643, %v611, %v675
      %v708 = vsel %vm644, %v612, %v676
      %v709 = vsel %vm645, %v613, %v677
      %v710 = vsel %vm646, %v614, %v678
      %v711 = vsel %vm647, %v615, %v679
      %v712 = vsel %vm648, %v616, %v680
      %v713 = vsel %vm649, %v617, %v681
      %v714 = vsel %vm650, %v618, %v682
      %v715 = vsel %vm651, %v619, %v683
      %v716 = vsel %vm652, %v620, %v684
      %v717 = vsel %vm653, %v621, %v685
      %v718 = vsel %vm654, %v622, %v686
      %v719 = vsel %vm655, %v623, %v687
      %v720 = vpack.c.bf16 %v689, %v688
      %v721 = vpack.c.bf16 %v691, %v690
      %v722 = vpack.c.bf16 %v693, %v692
      %v723 = vpack.c.bf16 %v695, %v694
      %v724 = vpack.c.bf16 %v697, %v696
      %v725 = vpack.c.bf16 %v699, %v698
      %v726 = vpack.c.bf16 %v701, %v700
      %v727 = vpack.c.bf16 %v703, %v702
      %v728 = vpack.c.bf16 %v705, %v704
      %v729 = vpack.c.bf16 %v707, %v706
      %v730 = vpack.c.bf16 %v709, %v708
      %v731 = vpack.c.bf16 %v711, %v710
      %v732 = vpack.c.bf16 %v713, %v712
      %v733 = vpack.c.bf16 %v715, %v714
      %v734 = vpack.c.bf16 %v717, %v716
      %v735 = vpack.c.bf16 %v719, %v718
      %v752 = vunpack.c.l.b16 %v720
      %v753 = vunpack.c.h.b16 %v720
      %v754 = vunpack.c.l.b16 %v721
      %v755 = vunpack.c.h.b16 %v721
      %v756 = vunpack.c.l.b16 %v722
      %v757 = vunpack.c.h.b16 %v722
      %v758 = vunpack.c.l.b16 %v723
      %v759 = vunpack.c.h.b16 %v723
      %v760 = vunpack.c.l.b16 %v724
      %v761 = vunpack.c.h.b16 %v724
      %v762 = vunpack.c.l.b16 %v725
      %v763 = vunpack.c.h.b16 %v725
      %v764 = vunpack.c.l.b16 %v726
      %v765 = vunpack.c.h.b16 %v726
      %v766 = vunpack.c.l.b16 %v727
      %v767 = vunpack.c.h.b16 %v727
      %v768 = vunpack.c.l.b16 %v728
      %v769 = vunpack.c.h.b16 %v728
      %v770 = vunpack.c.l.b16 %v729
      %v771 = vunpack.c.h.b16 %v729
      %v772 = vunpack.c.l.b16 %v730
      %v773 = vunpack.c.h.b16 %v730
      %v774 = vunpack.c.l.b16 %v731
      %v775 = vunpack.c.h.b16 %v731
      %v776 = vunpack.c.l.b16 %v732
      %v777 = vunpack.c.h.b16 %v732
      %v778 = vunpack.c.l.b16 %v733
      %v779 = vunpack.c.h.b16 %v733
      %v780 = vunpack.c.l.b16 %v734
      %v781 = vunpack.c.h.b16 %v734
      %v782 = vunpack.c.l.b16 %v735
      %v783 = vunpack.c.h.b16 %v735
      %v784 = vpack.c.b16 %v752, %v752
      %v785 = vpack.c.b16 %v753, %v753
      %v786 = vpack.c.b16 %v754, %v754
      %v787 = vpack.c.b16 %v755, %v755
      %v788 = vpack.c.b16 %v756, %v756
      %v789 = vpack.c.b16 %v757, %v757
      %v790 = vpack.c.b16 %v758, %v758
      %v791 = vpack.c.b16 %v759, %v759
      %v792 = vpack.c.b16 %v760, %v760
      %v793 = vpack.c.b16 %v761, %v761
      %v794 = vpack.c.b16 %v762, %v762
      %v795 = vpack.c.b16 %v763, %v763
      %v796 = vpack.c.b16 %v764, %v764
      %v797 = vpack.c.b16 %v765, %v765
      %v798 = vpack.c.b16 %v766, %v766
      %v799 = vpack.c.b16 %v767, %v767
      %v800 = vpack.c.b16 %v768, %v768
      %v801 = vpack.c.b16 %v769, %v769
      %v802 = vpack.c.b16 %v770, %v770
      %v803 = vpack.c.b16 %v771, %v771
      %v804 = vpack.c.b16 %v772, %v772
      %v805 = vpack.c.b16 %v773, %v773
      %v806 = vpack.c.b16 %v774, %v774
      %v807 = vpack.c.b16 %v775, %v775
      %v808 = vpack.c.b16 %v776, %v776
      %v809 = vpack.c.b16 %v777, %v777
      %v810 = vpack.c.b16 %v778, %v778
      %v811 = vpack.c.b16 %v779, %v779
      %v812 = vpack.c.b16 %v780, %v780
      %v813 = vpack.c.b16 %v781, %v781
      %v814 = vpack.c.b16 %v782, %v782
      %v815 = vpack.c.b16 %v783, %v783
      %vm848 = vcmask 257024
      %849 = vst.msk [vmem:[%s199] sm:$0xf] %vm848, %v784
      %850 = vst.msk [vmem:[%s199 + $0x4] sm:$0xf] %vm848, %v785
      %851 = vst.msk [vmem:[%s199 + $0x8] sm:$0xf] %vm848, %v786
      %852 = vst.msk [vmem:[%s199 + $0xc] sm:$0xf] %vm848, %v787
      %853 = vst.msk [vmem:[%s199 + $0x10] sm:$0xf] %vm848, %v788
      %854 = vst.msk [vmem:[%s199 + $0x14] sm:$0xf] %vm848, %v789
      %855 = vst.msk [vmem:[%s199 + $0x18] sm:$0xf] %vm848, %v790
      %856 = vst.msk [vmem:[%s199 + $0x1c] sm:$0xf] %vm848, %v791
      %857 = vst.msk [vmem:[%s199 + $0x20] sm:$0xf] %vm848, %v792
      %858 = vst.msk [vmem:[%s199 + $0x24] sm:$0xf] %vm848, %v793
      %859 = vst.msk [vmem:[%s199 + $0x28] sm:$0xf] %vm848, %v794
      %860 = vst.msk [vmem:[%s199 + $0x2c] sm:$0xf] %vm848, %v795
      %861 = vst.msk [vmem:[%s199 + $0x30] sm:$0xf] %vm848, %v796
      %862 = vst.msk [vmem:[%s199 + $0x34] sm:$0xf] %vm848, %v797
      %863 = vst.msk [vmem:[%s199 + $0x38] sm:$0xf] %vm848, %v798
      %864 = vst.msk [vmem:[%s199 + $0x3c] sm:$0xf] %vm848, %v799
      %865 = vst.msk [vmem:[%s199 + $0x40] sm:$0xf] %vm848, %v800
      %866 = vst.msk [vmem:[%s199 + $0x44] sm:$0xf] %vm848, %v801
      %867 = vst.msk [vmem:[%s199 + $0x48] sm:$0xf] %vm848, %v802
      %868 = vst.msk [vmem:[%s199 + $0x4c] sm:$0xf] %vm848, %v803
      %869 = vst.msk [vmem:[%s199 + $0x50] sm:$0xf] %vm848, %v804
      %870 = vst.msk [vmem:[%s199 + $0x54] sm:$0xf] %vm848, %v805
      %871 = vst.msk [vmem:[%s199 + $0x58] sm:$0xf] %vm848, %v806
      %872 = vst.msk [vmem:[%s199 + $0x5c] sm:$0xf] %vm848, %v807
      %873 = vst.msk [vmem:[%s199 + $0x60] sm:$0xf] %vm848, %v808
      %874 = vst.msk [vmem:[%s199 + $0x64] sm:$0xf] %vm848, %v809
      %875 = vst.msk [vmem:[%s199 + $0x68] sm:$0xf] %vm848, %v810
      %876 = vst.msk [vmem:[%s199 + $0x6c] sm:$0xf] %vm848, %v811
      %877 = vst.msk [vmem:[%s199 + $0x70] sm:$0xf] %vm848, %v812
      %878 = vst.msk [vmem:[%s199 + $0x74] sm:$0xf] %vm848, %v813
      %879 = vst.msk [vmem:[%s199 + $0x78] sm:$0xf] %vm848, %v814
      %880 = vst.msk [vmem:[%s199 + $0x7c] sm:$0xf] %vm848, %v815
      %s881 = smul.u32 32, %s15
      %p882 = scmp.lt.s32.totalorder %s881, 63
      %s883 = scalar_select %p882, %s881, 63
      %s884 = smul.addr %s883, 4
      %s885 = scalar_lea.vmem %s4, %s884
      // Predicated region
      $region37: #{unet_forward.12} parent=35 // pred_check
        %p886 = pneg %p122
      $region38: #{unet_forward.12} parent=35 // pred_check_branch
        %888 = sbr.rel (%p886) target = $region40
      $region39: #{unet_forward.12} parent=35 // pred_region
        %s889 = smul.u32 32, %s15
      $region40: #{unet_forward.12} parent=35 // pred_fallthru
        _
    $region36: #{unet_forward.12} parent=5 // pred_fallthru
      _
    %p890 = scmp.le.s32.totalorder 2, %s10
    // Predicated region
    $region41: #{unet_forward.12} parent=5 // pred_check
      %p891 = pneg %p890
    $region42: #{unet_forward.12} parent=5 // pred_check_branch
      %893 = sbr.rel (%p891) target = $region44
    $region43: #{unet_forward.12} parent=5 // pred_region
      %s894 = ssub.s32 %s10, 2
      // Predicated region
      $region45: #{unet_forward.12} parent=43 // pred_check
        %p895 = pneg %p128
      $region46: #{unet_forward.12} parent=43 // pred_check_branch
        %897 = sbr.rel (%p895) target = $region48
      $region47: #{unet_forward.12} parent=43 // pred_region
        %s898 = smul.u32 32, %s16
        %p899 = scmp.lt.s32.totalorder %s898, 63
        %s900 = scalar_select %p899, %s898, 63
        %s901 = smul.addr %s900, 4
        %s902 = scalar_lea.vmem %s4, %s901
      $region48: #{unet_forward.12} parent=43 // pred_fallthru
        _
    $region44: #{unet_forward.12} parent=5 // pred_fallthru
      _
  $region6: #{unet_forward.12} parent=0 // loop_footer
    %s14 = sadd.s32 1, %s10
  $region7: #{unet_forward.12} parent=0 // loop_footer_branch
    %9 = sbr.rel target = $region3
  $region8: #{unet_forward.12} parent=0 // loop_exit
    _

// kernel: unet_forward.13
$region0: #{unet_forward.13}
  #allocation0 [shape = 'u32[]', space=smem, size = 0x4, offset = 0x4, fixed_abs, tag = 'smem constant byte address 0x4 - core index']
  #allocation1 [shape = 'u32[144,128]{1,0:T(1,128)}', space=vmem, size = 0x12000, scoped, tag = 'internal scratch']
  %s0 = inlined_call_operand.vmem [shape: bf16[128,288], index: 0, kind: input, shape index: {}]
  %s1 = inlined_call_operand.vmem [shape: bf16[288,64], index: 1, kind: input, shape index: {}]
  %s2 = inlined_call_operand.vmem [shape: f32[1,64], index: 2, kind: input, shape index: {}]
  %s3 = inlined_call_operand.vmem [shape: f32[1,64], index: 3, kind: input, shape index: {}]
  %s4 = inlined_call_operand.vmem [shape: bf16[128,64], index: 4, kind: output, shape index: {}]
  %s5 = sld [smem:[#allocation0]]
  $region49: #{unet_forward.13} parent=0
    _
  %s7 = ssub.s32 1, %s5
  %s8 = scalar_select 0, %s7, %s5
  loop: start=0, step=1, limit=4
  $region2: #{unet_forward.13} parent=0 // loop_pre_header
    _
  $region3: #{unet_forward.13} parent=0 // loop_header
    %s10 = sphi 0, %s14
    %p11 = scmp.ge.s32.totalorder %s10, 4
    %s20 = sphi 0, %s22
    %s23 = sphi 0, %s20
    %s24 = sphi 0, %s23
    %s40 = sphi 0, %s24
    %s44 = sphi 0, %s44
    %s46 = sphi 0, %s44
    %s47 = sphi 0, %s46
    %s61 = sphi 0, %s47
    %s65 = sphi 0, %s65
    %s67 = sphi 0, %s65
    %s68 = sphi 0, %s67
    %s82 = sphi 0, %s68
    %s86 = sphi 0, %s86
    %s88 = sphi 0, %s86
    %s89 = sphi 0, %s88
    %s103 = sphi 0, %s89
    %s109 = sphi 0, %s111
    %s112 = sphi 0, %s109
    %s113 = sphi 0, %s112
    %s129 = sphi 0, %s113
  $region4: #{unet_forward.13} parent=0 // loop_header_branch
    %13 = sbr.rel (%p11) target = $region8
  $region5: #{unet_forward.13} parent=0 // loop_body
    %s15 = ssub.s32 %s10, 1
    %s16 = ssub.s32 %s10, 2
    %s17 = sadd.s32 %s10, 1
    %s18 = ssub.s32 %s10, %s17
    %p19 = scmp.eq.s32.totalorder %s18, 0
    %s21 = sadd.s32 %s20, 1
    %s22 = scalar_select %p19, %s20, %s21
    %p25 = pneg %p19
    %p26 = scmp.eq.s32.totalorder %s10, 1
    %p27 = por %p25, %p26
    %p28 = scmp.ne.s32.totalorder %s20, %s23
    %p29 = scmp.eq.s32.totalorder %s10, 0
    %p30 = por %p28, %p29
    %p31 = scmp.ne.s32.totalorder %s20, %s23
    %p32 = scmp.eq.s32.totalorder %s15, 1
    %p33 = por %p31, %p32
    %p34 = scmp.ne.s32.totalorder %s23, %s24
    %p35 = scmp.eq.s32.totalorder %s15, 0
    %p36 = por %p34, %p35
    %p37 = scmp.ne.s32.totalorder %s23, %s24
    %p38 = scmp.eq.s32.totalorder %s16, 1
    %p39 = por %p37, %p38
    %p41 = scmp.ne.s32.totalorder %s24, %s40
    %p42 = scmp.eq.s32.totalorder %s16, 0
    %p43 = por %p41, %p42
    %s45 = sadd.s32 %s44, 1
    %p48 = scmp.eq.s32.totalorder %s10, 1
    %p49 = scmp.ne.s32.totalorder %s44, %s46
    %p50 = scmp.eq.s32.totalorder %s10, 0
    %p51 = por %p49, %p50
    %p52 = scmp.ne.s32.totalorder %s44, %s46
    %p53 = scmp.eq.s32.totalorder %s15, 1
    %p54 = por %p52, %p53
    %p55 = scmp.ne.s32.totalorder %s46, %s47
    %p56 = scmp.eq.s32.totalorder %s15, 0
    %p57 = por %p55, %p56
    %p58 = scmp.ne.s32.totalorder %s46, %s47
    %p59 = scmp.eq.s32.totalorder %s16, 1
    %p60 = por %p58, %p59
    %p62 = scmp.ne.s32.totalorder %s47, %s61
    %p63 = scmp.eq.s32.totalorder %s16, 0
    %p64 = por %p62, %p63
    %s66 = sadd.s32 %s65, 1
    %p69 = scmp.eq.s32.totalorder %s10, 1
    %p70 = scmp.ne.s32.totalorder %s65, %s67
    %p71 = scmp.eq.s32.totalorder %s10, 0
    %p72 = por %p70, %p71
    %p73 = scmp.ne.s32.totalorder %s65, %s67
    %p74 = scmp.eq.s32.totalorder %s15, 1
    %p75 = por %p73, %p74
    %p76 = scmp.ne.s32.totalorder %s67, %s68
    %p77 = scmp.eq.s32.totalorder %s15, 0
    %p78 = por %p76, %p77
    %p79 = scmp.ne.s32.totalorder %s67, %s68
    %p80 = scmp.eq.s32.totalorder %s16, 1
    %p81 = por %p79, %p80
    %p83 = scmp.ne.s32.totalorder %s68, %s82
    %p84 = scmp.eq.s32.totalorder %s16, 0
    %p85 = por %p83, %p84
    %s87 = sadd.s32 %s86, 1
    %p90 = scmp.eq.s32.totalorder %s10, 1
    %p91 = scmp.ne.s32.totalorder %s86, %s88
    %p92 = scmp.eq.s32.totalorder %s10, 0
    %p93 = por %p91, %p92
    %p94 = scmp.ne.s32.totalorder %s86, %s88
    %p95 = scmp.eq.s32.totalorder %s15, 1
    %p96 = por %p94, %p95
    %p97 = scmp.ne.s32.totalorder %s88, %s89
    %p98 = scmp.eq.s32.totalorder %s15, 0
    %p99 = por %p97, %p98
    %p100 = scmp.ne.s32.totalorder %s88, %s89
    %p101 = scmp.eq.s32.totalorder %s16, 1
    %p102 = por %p100, %p101
    %p104 = scmp.ne.s32.totalorder %s89, %s103
    %p105 = scmp.eq.s32.totalorder %s16, 0
    %p106 = por %p104, %p105
    %s107 = ssub.s32 %s10, %s17
    %p108 = scmp.eq.s32.totalorder %s107, 0
    %s110 = sadd.s32 %s109, 1
    %s111 = scalar_select %p108, %s109, %s110
    %p114 = pneg %p108
    %p115 = scmp.eq.s32.totalorder %s10, 1
    %p116 = por %p114, %p115
    %p117 = scmp.ne.s32.totalorder %s109, %s112
    %p118 = scmp.eq.s32.totalorder %s10, 0
    %p119 = por %p117, %p118
    %p120 = scmp.ne.s32.totalorder %s109, %s112
    %p121 = scmp.eq.s32.totalorder %s15, 1
    %p122 = por %p120, %p121
    %p123 = scmp.ne.s32.totalorder %s112, %s113
    %p124 = scmp.eq.s32.totalorder %s15, 0
    %p125 = por %p123, %p124
    %p126 = scmp.ne.s32.totalorder %s112, %s113
    %p127 = scmp.eq.s32.totalorder %s16, 1
    %p128 = por %p126, %p127
    %p130 = scmp.ne.s32.totalorder %s113, %s129
    %p131 = scmp.eq.s32.totalorder %s16, 0
    %p132 = por %p130, %p131
    %p133 = scmp.le.s32.totalorder 1, %s10
    %p134 = scmp.lt.s32.totalorder %s10, 3
    %p135 = pnand %p133, %p134
    %p136 = pneg %p135
    // Predicated region
    $region9: #{unet_forward.13} parent=5 // pred_check
      _
    $region10: #{unet_forward.13} parent=5 // pred_check_branch
      %138 = sbr.rel (%p135) target = $region12
    $region11: #{unet_forward.13} parent=5 // pred_region
      %s139 = ssub.s32 %s10, 1
      // Predicated region
      $region13: #{unet_forward.13} parent=11 // pred_check
        %p140 = pneg %p57
      $region14: #{unet_forward.13} parent=11 // pred_check_branch
        %142 = sbr.rel (%p140) target = $region16
      $region15: #{unet_forward.13} parent=11 // pred_region
        _
      $region16: #{unet_forward.13} parent=11 // pred_fallthru
        _
      // Predicated region
      $region17: #{unet_forward.13} parent=11 // pred_check
        %p143 = pneg %p78
      $region18: #{unet_forward.13} parent=11 // pred_check_branch
        %145 = sbr.rel (%p143) target = $region20
      $region19: #{unet_forward.13} parent=11 // pred_region
        _
      $region20: #{unet_forward.13} parent=11 // pred_fallthru
        _
      // Predicated region
      $region21: #{unet_forward.13} parent=11 // pred_check
        %p146 = pneg %p99
      $region22: #{unet_forward.13} parent=11 // pred_check_branch
        %148 = sbr.rel (%p146) target = $region24
      $region23: #{unet_forward.13} parent=11 // pred_region
        _
      $region24: #{unet_forward.13} parent=11 // pred_fallthru
        _
    $region12: #{unet_forward.13} parent=5 // pred_fallthru
      _
    %p149 = scmp.lt.s32.totalorder %s10, 2
    // Predicated region
    $region25: #{unet_forward.13} parent=5 // pred_check
      %p150 = pneg %p149
    $region26: #{unet_forward.13} parent=5 // pred_check_branch
      %152 = sbr.rel (%p150) target = $region28
    $region27: #{unet_forward.13} parent=5 // pred_region
      // Predicated region
      $region29: #{unet_forward.13} parent=27 // pred_check
        %p153 = pneg %p30
      $region30: #{unet_forward.13} parent=27 // pred_check_branch
        %155 = sbr.rel (%p153) target = $region32
      $region31: #{unet_forward.13} parent=27 // pred_region
        %s156 = smul.u32 8, %s10
        %p157 = scmp.lt.s32.totalorder %s156, 15
        %s158 = scalar_select %p157, %s156, 15
        %s159 = smul.addr %s158, 3
        %s160 = smul.addr %s159, 4
        %s161 = scalar_lea.vmem %s0, %s160
        %s162 = smul.u32 8, %s10
      $region32: #{unet_forward.13} parent=27 // pred_fallthru
        _
    $region28: #{unet_forward.13} parent=5 // pred_fallthru
      _
    %p163 = scmp.le.s32.totalorder 1, %s10
    %p164 = scmp.lt.s32.totalorder %s10, 3
    %p165 = pnand %p163, %p164
    %p166 = pneg %p165
    // Predicated region
    $region33: #{unet_forward.13} parent=5 // pred_check
      _
    $region34: #{unet_forward.13} parent=5 // pred_check_branch
      %168 = sbr.rel (%p165) target = $region36
    $region35: #{unet_forward.13} parent=5 // pred_region
      %s169 = ssub.s32 %s10, 1
      %s170 = smul.u32 8, %s15
      %p171 = scmp.lt.s32.totalorder %s170, 15
      %s172 = scalar_select %p171, %s170, 15
      %s173 = smul.addr %s172, 3
      %s174 = smul.addr %s173, 4
      %s175 = scalar_lea.vmem %s0, %s174
      %p176 = pneg %p36
      %p177 = pneg %p33
      %p178 = pneg %p57
      %p179 = pneg %p54
      %p180 = pneg %p78
      %p181 = pneg %p75
      %p182 = pneg %p99
      %p183 = pneg %p96
      %p184 = pneg %p125
      %p185 = pneg %p122
      %s186 = smul.u32 8, %s15
      %p187 = scmp.lt.s32.totalorder %s186, 15
      %s188 = scalar_select %p187, %s186, 15
      %s189 = smul.addr %s188, 4
      %s190 = scalar_lea.vmem %s4, %s189
      %s191 = smul.u32 8, %s15
      %p192 = scmp.lt.s32.totalorder %s191, 15
      %s193 = scalar_select %p192, %s191, 15
      %s194 = smul.addr %s193, 3
      %s195 = smul.addr %s194, 4
      %s196 = scalar_lea.vmem %s0, %s195
      %s197 = smul.u32 8, %s15
      %s198 = smul.u32 8, %s15
      %p199 = scmp.lt.s32.totalorder %s198, 15
      %s200 = scalar_select %p199, %s198, 15
      %s201 = smul.addr %s200, 4
      %s202 = scalar_lea.vmem %s4, %s201
      %s203 = smul.u32 8, %s15
      %v205 = vld [vmem:[%s196] sm:$0xff]
      %v206 = vld [vmem:[%s196 + $0x8] sm:$0xf]
      %v207 = vld [vmem:[%s196 + $0xc] sm:$0xff]
      %v208 = vld [vmem:[%s196 + $0x14] sm:$0xf]
      %v209 = vld [vmem:[%s196 + $0x18] sm:$0xff]
      %v210 = vld [vmem:[%s196 + $0x20] sm:$0xf]
      %v211 = vld [vmem:[%s196 + $0x24] sm:$0xff]
      %v212 = vld [vmem:[%s196 + $0x2c] sm:$0xf]
      %v213 = vld [vmem:[%s196 + $0x30] sm:$0xff]
      %v214 = vld [vmem:[%s196 + $0x38] sm:$0xf]
      %v215 = vld [vmem:[%s196 + $0x3c] sm:$0xff]
      %v216 = vld [vmem:[%s196 + $0x44] sm:$0xf]
      %v217 = vld [vmem:[%s196 + $0x48] sm:$0xff]
      %v218 = vld [vmem:[%s196 + $0x50] sm:$0xf]
      %v219 = vld [vmem:[%s196 + $0x54] sm:$0xff]
      %v220 = vld [vmem:[%s196 + $0x5c] sm:$0xf]
      %v221 = vld [vmem:[%s1] sm:$0xf]
      %v222 = vld [vmem:[%s1 + $0x4] sm:$0xf]
      %v223 = vld [vmem:[%s1 + $0x8] sm:$0xf]
      %v224 = vld [vmem:[%s1 + $0xc] sm:$0xf]
      %v225 = vld [vmem:[%s1 + $0x10] sm:$0xf]
      %v226 = vld [vmem:[%s1 + $0x14] sm:$0xf]
      %v227 = vld [vmem:[%s1 + $0x18] sm:$0xf]
      %v228 = vld [vmem:[%s1 + $0x1c] sm:$0xf]
      %v229 = vld [vmem:[%s1 + $0x20] sm:$0xf]
      %v230 = vld [vmem:[%s1 + $0x24] sm:$0xf]
      %v231 = vld [vmem:[%s1 + $0x28] sm:$0xf]
      %v232 = vld [vmem:[%s1 + $0x2c] sm:$0xf]
      %v233 = vld [vmem:[%s1 + $0x30] sm:$0xf]
      %v234 = vld [vmem:[%s1 + $0x34] sm:$0xf]
      %v235 = vld [vmem:[%s1 + $0x38] sm:$0xf]
      %v236 = vld [vmem:[%s1 + $0x3c] sm:$0xf]
      %v237 = vld [vmem:[%s1 + $0x40] sm:$0xf]
      %v238 = vld [vmem:[%s1 + $0x44] sm:$0xf]
      %v239 = vld [vmem:[%s1 + $0x48] sm:$0xf]
      %v240 = vld [vmem:[%s1 + $0x4c] sm:$0xf]
      %v241 = vld [vmem:[%s1 + $0x50] sm:$0xf]
      %v242 = vld [vmem:[%s1 + $0x54] sm:$0xf]
      %v243 = vld [vmem:[%s1 + $0x58] sm:$0xf]
      %v244 = vld [vmem:[%s1 + $0x5c] sm:$0xf]
      %v245 = vld [vmem:[%s1 + $0x60] sm:$0xf]
      %v246 = vld [vmem:[%s1 + $0x64] sm:$0xf]
      %v247 = vld [vmem:[%s1 + $0x68] sm:$0xf]
      %v248 = vld [vmem:[%s1 + $0x6c] sm:$0xf]
      %v249 = vld [vmem:[%s1 + $0x70] sm:$0xf]
      %v250 = vld [vmem:[%s1 + $0x74] sm:$0xf]
      %v251 = vld [vmem:[%s1 + $0x78] sm:$0xf]
      %v252 = vld [vmem:[%s1 + $0x7c] sm:$0xf]
      %v253 = vld [vmem:[%s1 + $0x80] sm:$0xf]
      %v254 = vld [vmem:[%s1 + $0x84] sm:$0xf]
      %v255 = vld [vmem:[%s1 + $0x88] sm:$0xf]
      %v256 = vld [vmem:[%s1 + $0x8c] sm:$0xf]
      %v273 = vunpack.c.l.b16 %v205
      %v274 = vunpack.c.h.b16 %v205
      %v275 = vunpack.c.l.b16 %v206
      %v276 = vunpack.c.l.b16 %v207
      %v277 = vunpack.c.h.b16 %v207
      %v278 = vunpack.c.l.b16 %v208
      %v279 = vunpack.c.l.b16 %v209
      %v280 = vunpack.c.h.b16 %v209
      %v281 = vunpack.c.l.b16 %v210
      %v282 = vunpack.c.l.b16 %v211
      %v283 = vunpack.c.h.b16 %v211
      %v284 = vunpack.c.l.b16 %v212
      %v285 = vunpack.c.l.b16 %v213
      %v286 = vunpack.c.h.b16 %v213
      %v287 = vunpack.c.l.b16 %v214
      %v288 = vunpack.c.l.b16 %v215
      %v289 = vunpack.c.h.b16 %v215
      %v290 = vunpack.c.l.b16 %v216
      %v291 = vunpack.c.l.b16 %v217
      %v292 = vunpack.c.h.b16 %v217
      %v293 = vunpack.c.l.b16 %v218
      %v294 = vunpack.c.l.b16 %v219
      %v295 = vunpack.c.h.b16 %v219
      %v296 = vunpack.c.l.b16 %v220
      %v297 = vpack.c.b16 %v276, %v273
      %v298 = vpack.c.b16 %v277, %v274
      %v299 = vpack.c.b16 %v278, %v275
      %v300 = vpack.c.b16 %v282, %v279
      %v301 = vpack.c.b16 %v283, %v280
      %v302 = vpack.c.b16 %v284, %v281
      %v303 = vpack.c.b16 %v288, %v285
      %v304 = vpack.c.b16 %v289, %v286
      %v305 = vpack.c.b16 %v290, %v287
      %v306 = vpack.c.b16 %v294, %v291
      %v307 = vpack.c.b16 %v295, %v292
      %v308 = vpack.c.b16 %v296, %v293
      %v353 = vunpack.c.l.b16 %v221
      %v354 = vunpack.c.l.b16 %v222
      %v355 = vunpack.c.l.b16 %v223
      %v356 = vunpack.c.l.b16 %v224
      %v357 = vunpack.c.l.b16 %v225
      %v358 = vunpack.c.l.b16 %v226
      %v359 = vunpack.c.l.b16 %v227
      %v360 = vunpack.c.l.b16 %v228
      %v361 = vunpack.c.l.b16 %v229
      %v362 = vunpack.c.l.b16 %v230
      %v363 = vunpack.c.l.b16 %v231
      %v364 = vunpack.c.l.b16 %v232
      %v365 = vunpack.c.l.b16 %v233
      %v366 = vunpack.c.l.b16 %v234
      %v367 = vunpack.c.l.b16 %v235
      %v368 = vunpack.c.l.b16 %v236
      %v369 = vunpack.c.l.b16 %v237
      %v370 = vunpack.c.l.b16 %v238
      %v371 = vunpack.c.l.b16 %v239
      %v372 = vunpack.c.l.b16 %v240
      %v373 = vunpack.c.l.b16 %v241
      %v374 = vunpack.c.l.b16 %v242
      %v375 = vunpack.c.l.b16 %v243
      %v376 = vunpack.c.l.b16 %v244
      %v377 = vunpack.c.l.b16 %v245
      %v378 = vunpack.c.l.b16 %v246
      %v379 = vunpack.c.l.b16 %v247
      %v380 = vunpack.c.l.b16 %v248
      %v381 = vunpack.c.l.b16 %v249
      %v382 = vunpack.c.l.b16 %v250
      %v383 = vunpack.c.l.b16 %v251
      %v384 = vunpack.c.l.b16 %v252
      %v385 = vunpack.c.l.b16 %v253
      %v386 = vunpack.c.l.b16 %v254
      %v387 = vunpack.c.l.b16 %v255
      %v388 = vunpack.c.l.b16 %v256
      %v389 = vpack.c.b16 %v354, %v353
      %v390 = vpack.c.b16 %v356, %v355
      %v391 = vpack.c.b16 %v358, %v357
      %v392 = vpack.c.b16 %v360, %v359
      %v393 = vpack.c.b16 %v362, %v361
      %v394 = vpack.c.b16 %v364, %v363
      %v395 = vpack.c.b16 %v366, %v365
      %v396 = vpack.c.b16 %v368, %v367
      %v397 = vpack.c.b16 %v370, %v369
      %v398 = vpack.c.b16 %v372, %v371
      %v399 = vpack.c.b16 %v374, %v373
      %v400 = vpack.c.b16 %v376, %v375
      %v401 = vpack.c.b16 %v378, %v377
      %v402 = vpack.c.b16 %v380, %v379
      %v403 = vpack.c.b16 %v382, %v381
      %v404 = vpack.c.b16 %v384, %v383
      %v405 = vpack.c.b16 %v386, %v385
      %v406 = vpack.c.b16 %v388, %v387
      %vm425 = vcmask 261120
      %v427 = vsel %vm425, %v299, 0
      %v430 = vsel %vm425, %v302, 0
      %v433 = vsel %vm425, %v305, 0
      %v436 = vsel %vm425, %v308, 0
      %438 = vmatprep.subr.bf16.mxu0 0
      %439 = vmatpush1.bf16.msra.mxu0 %v396
      %440 = vmatprep.subr.bf16.mxu0 0
      %441 = vmatpush1.bf16.msra.mxu0 %v395
      %442 = vmatprep.subr.bf16.mxu0 0
      %443 = vmatpush1.bf16.msra.mxu0 %v394
      %444 = vmatprep.subr.bf16.mxu0 0
      %445 = vmatpush1.bf16.msra.mxu0 %v393
      %446 = vmatprep.subr.bf16.mxu0 0
      %447 = vmatpush1.bf16.msra.mxu0 %v392
      %448 = vmatprep.subr.bf16.mxu0 0
      %449 = vmatpush1.bf16.msra.mxu0 %v391
      %450 = vmatprep.subr.bf16.mxu0 0
      %451 = vmatpush1.bf16.msra.mxu0 %v390
      %452 = vmatprep.subr.bf16.mxu0 0
      %453 = vmatpush1.bf16.msra.mxu0 %v389
      %454 = vmatprep.subr.bf16.mxu0 0
      %455 = vmatpush2.bf16.msra.mxu0 %v404
      %456 = vmatprep.subr.bf16.mxu0 0
      %457 = vmatpush2.bf16.msra.mxu0 %v403
      %458 = vmatprep.subr.bf16.mxu0 0
      %459 = vmatpush2.bf16.msra.mxu0 %v402
      %460 = vmatprep.subr.bf16.mxu0 0
      %461 = vmatpush2.bf16.msra.mxu0 %v401
      %462 = vmatprep.subr.bf16.mxu0 0
      %463 = vmatpush2.bf16.msra.mxu0 %v400
      %464 = vmatprep.subr.bf16.mxu0 0
      %465 = vmatpush2.bf16.msra.mxu0 %v399
      %466 = vmatprep.subr.bf16.mxu0 0
      %467 = vmatpush2.bf16.msra.mxu0 %v398
      %468 = vmatprep.subr.bf16.mxu0 0
      %469 = vmatpush2.bf16.msra.mxu0 %v397
      %470 = vmatprep.mubr.bf16.mxu0 %v298
      %471 = vmatmul.mubr.bf16.gmra.mxu0 %v297
      %v472 = vpop.f32.mrf.mxu0
      %v473 = vadd.f32 0.0, %v472
      %v474 = vpop.f32.mrf.mxu0
      %v475 = vpop.f32.mrf.mxu0
      %v476 = vadd.f32 0.0, %v475
      %v477 = vpop.f32.mrf.mxu0
      %478 = vmatprep.mubr.bf16.mxu0 %v301
      %479 = vmatmul.mubr.bf16.gmra.mxu0 %v300
      %v480 = vpop.f32.mrf.mxu0
      %v481 = vadd.f32 0.0, %v480
      %v482 = vpop.f32.mrf.mxu0
      %v483 = vpop.f32.mrf.mxu0
      %v484 = vadd.f32 0.0, %v483
      %v485 = vpop.f32.mrf.mxu0
      %486 = vmatprep.mubr.bf16.mxu0 %v304
      %487 = vmatmul.mubr.bf16.gmra.mxu0 %v303
      %v488 = vpop.f32.mrf.mxu0
      %v489 = vadd.f32 0.0, %v488
      %v490 = vpop.f32.mrf.mxu0
      %v491 = vpop.f32.mrf.mxu0
      %v492 = vadd.f32 0.0, %v491
      %v493 = vpop.f32.mrf.mxu0
      %494 = vmatprep.mubr.bf16.mxu0 %v307
      %495 = vmatmul.mubr.bf16.gmra.mxu0 %v306
      %v496 = vpop.f32.mrf.mxu0
      %v497 = vadd.f32 0.0, %v496
      %v498 = vpop.f32.mrf.mxu0
      %v499 = vpop.f32.mrf.mxu0
      %v500 = vadd.f32 0.0, %v499
      %v501 = vpop.f32.mrf.mxu0
      %502 = vdwg.mxu0
      %503 = vmatprep.subr.bf16.mxu0 0
      %504 = vmatpush1.bf16.msra.mxu0 0
      %505 = vmatprep.subr.bf16.mxu0 0
      %506 = vmatpush1.bf16.msra.mxu0 0
      %507 = vmatprep.subr.bf16.mxu0 0
      %508 = vmatpush1.bf16.msra.mxu0 0
      %509 = vmatprep.subr.bf16.mxu0 0
      %510 = vmatpush1.bf16.msra.mxu0 0
      %511 = vmatprep.subr.bf16.mxu0 0
      %512 = vmatpush1.bf16.msra.mxu0 0
      %513 = vmatprep.subr.bf16.mxu0 0
      %514 = vmatpush1.bf16.msra.mxu0 0
      %515 = vmatprep.subr.bf16.mxu0 0
      %516 = vmatpush1.bf16.msra.mxu0 %v406
      %517 = vmatprep.subr.bf16.mxu0 0
      %518 = vmatpush1.bf16.msra.mxu0 %v405
      %519 = vmatprep.subr.bf16.mxu0 0
      %520 = vmatpush2.bf16.msra.mxu0 0
      %521 = vmatprep.subr.bf16.mxu0 0
      %522 = vmatpush2.bf16.msra.mxu0 0
      %523 = vmatprep.subr.bf16.mxu0 0
      %524 = vmatpush2.bf16.msra.mxu0 0
      %525 = vmatprep.subr.bf16.mxu0 0
      %526 = vmatpush2.bf16.msra.mxu0 0
      %527 = vmatprep.subr.bf16.mxu0 0
      %528 = vmatpush2.bf16.msra.mxu0 0
      %529 = vmatprep.subr.bf16.mxu0 0
      %530 = vmatpush2.bf16.msra.mxu0 0
      %531 = vmatprep.subr.bf16.mxu0 0
      %532 = vmatpush2.bf16.msra.mxu0 0
      %533 = vmatprep.subr.bf16.mxu0 0
      %534 = vmatpush2.bf16.msra.mxu0 0
      %535 = vmatprep.mubr.bf16.mxu0 0
      %536 = vmatmul.mubr.bf16.gmra.mxu0 %v427
      %v537 = vpop.f32.mrf.mxu0
      %v538 = vadd.f32 %v473, %v537
      %v539 = vpop.f32.mrf.mxu0
      %v540 = vpop.f32.mrf.mxu0
      %v541 = vadd.f32 %v476, %v540
      %v542 = vpop.f32.mrf.mxu0
      %543 = vmatprep.mubr.bf16.mxu0 0
      %544 = vmatmul.mubr.bf16.gmra.mxu0 %v430
      %v545 = vpop.f32.mrf.mxu0
      %v546 = vadd.f32 %v481, %v545
      %v547 = vpop.f32.mrf.mxu0
      %v548 = vpop.f32.mrf.mxu0
      %v549 = vadd.f32 %v484, %v548
      %v550 = vpop.f32.mrf.mxu0
      %551 = vmatprep.mubr.bf16.mxu0 0
      %552 = vmatmul.mubr.bf16.gmra.mxu0 %v433
      %v553 = vpop.f32.mrf.mxu0
      %v554 = vadd.f32 %v489, %v553
      %v555 = vpop.f32.mrf.mxu0
      %v556 = vpop.f32.mrf.mxu0
      %v557 = vadd.f32 %v492, %v556
      %v558 = vpop.f32.mrf.mxu0
      %559 = vmatprep.mubr.bf16.mxu0 0
      %560 = vmatmul.mubr.bf16.gmra.mxu0 %v436
      %v561 = vpop.f32.mrf.mxu0
      %v562 = vadd.f32 %v497, %v561
      %v563 = vpop.f32.mrf.mxu0
      %v564 = vpop.f32.mrf.mxu0
      %v565 = vadd.f32 %v500, %v564
      %v566 = vpop.f32.mrf.mxu0
      %567 = vdwg.mxu0
      %v568 = vld [vmem:[%s2] sm:$0x1]
      %v570 = vlaneseq
      %v571 = vshrl.u32 %v570, 7
      %v572 = vsub.s32 0, %v571
      %v573 = vrot.slane %v568, %v572
      %v575 = vmul.f32 %v538, %v573
      %v576 = vmul.f32 %v541, %v573
      %v577 = vmul.f32 %v546, %v573
      %v578 = vmul.f32 %v549, %v573
      %v579 = vmul.f32 %v554, %v573
      %v580 = vmul.f32 %v557, %v573
      %v581 = vmul.f32 %v562, %v573
      %v582 = vmul.f32 %v565, %v573
      %v583 = vld [vmem:[%s3] sm:$0x1]
      %v585 = vlaneseq
      %v586 = vshrl.u32 %v585, 7
      %v587 = vsub.s32 0, %v586
      %v588 = vrot.slane %v583, %v587
      %v590 = vadd.f32 %v575, %v588
      %v591 = vadd.f32 %v576, %v588
      %v592 = vadd.f32 %v577, %v588
      %v593 = vadd.f32 %v578, %v588
      %v594 = vadd.f32 %v579, %v588
      %v595 = vadd.f32 %v580, %v588
      %v596 = vadd.f32 %v581, %v588
      %v597 = vadd.f32 %v582, %v588
      %vm598 = vcmp.ge.f32.partialorder %v590, 0.0
      %vm599 = vcmp.ge.f32.partialorder %v591, 0.0
      %vm600 = vcmp.ge.f32.partialorder %v592, 0.0
      %vm601 = vcmp.ge.f32.partialorder %v593, 0.0
      %vm602 = vcmp.ge.f32.partialorder %v594, 0.0
      %vm603 = vcmp.ge.f32.partialorder %v595, 0.0
      %vm604 = vcmp.ge.f32.partialorder %v596, 0.0
      %vm605 = vcmp.ge.f32.partialorder %v597, 0.0
      %v606 = vmul.f32 %v590, 0.2
      %v607 = vmul.f32 %v591, 0.2
      %v608 = vmul.f32 %v592, 0.2
      %v609 = vmul.f32 %v593, 0.2
      %v610 = vmul.f32 %v594, 0.2
      %v611 = vmul.f32 %v595, 0.2
      %v612 = vmul.f32 %v596, 0.2
      %v613 = vmul.f32 %v597, 0.2
      %v614 = vsel %vm598, %v590, %v606
      %v615 = vsel %vm599, %v591, %v607
      %v616 = vsel %vm600, %v592, %v608
      %v617 = vsel %vm601, %v593, %v609
      %v618 = vsel %vm602, %v594, %v610
      %v619 = vsel %vm603, %v595, %v611
      %v620 = vsel %vm604, %v596, %v612
      %v621 = vsel %vm605, %v597, %v613
      %v622 = vpack.c.bf16 %v615, %v614
      %v623 = vpack.c.bf16 %v617, %v616
      %v624 = vpack.c.bf16 %v619, %v618
      %v625 = vpack.c.bf16 %v621, %v620
      %v630 = vunpack.c.l.b16 %v622
      %v631 = vunpack.c.h.b16 %v622
      %v632 = vunpack.c.l.b16 %v623
      %v633 = vunpack.c.h.b16 %v623
      %v634 = vunpack.c.l.b16 %v624
      %v635 = vunpack.c.h.b16 %v624
      %v636 = vunpack.c.l.b16 %v625
      %v637 = vunpack.c.h.b16 %v625
      %v638 = vpack.c.b16 %v630, %v630
      %v639 = vpack.c.b16 %v631, %v631
      %v640 = vpack.c.b16 %v632, %v632
      %v641 = vpack.c.b16 %v633, %v633
      %v642 = vpack.c.b16 %v634, %v634
      %v643 = vpack.c.b16 %v635, %v635
      %v644 = vpack.c.b16 %v636, %v636
      %v645 = vpack.c.b16 %v637, %v637
      %vm654 = vcmask 519168
      %655 = vst.msk [vmem:[%s202] sm:$0xf] %vm654, %v638
      %656 = vst.msk [vmem:[%s202 + $0x4] sm:$0xf] %vm654, %v639
      %657 = vst.msk [vmem:[%s202 + $0x8] sm:$0xf] %vm654, %v640
      %658 = vst.msk [vmem:[%s202 + $0xc] sm:$0xf] %vm654, %v641
      %659 = vst.msk [vmem:[%s202 + $0x10] sm:$0xf] %vm654, %v642
      %660 = vst.msk [vmem:[%s202 + $0x14] sm:$0xf] %vm654, %v643
      %661 = vst.msk [vmem:[%s202 + $0x18] sm:$0xf] %vm654, %v644
      %662 = vst.msk [vmem:[%s202 + $0x1c] sm:$0xf] %vm654, %v645
      %s663 = smul.u32 8, %s15
      %p664 = scmp.lt.s32.totalorder %s663, 15
      %s665 = scalar_select %p664, %s663, 15
      %s666 = smul.addr %s665, 4
      %s667 = scalar_lea.vmem %s4, %s666
      // Predicated region
      $region37: #{unet_forward.13} parent=35 // pred_check
        %p668 = pneg %p122
      $region38: #{unet_forward.13} parent=35 // pred_check_branch
        %670 = sbr.rel (%p668) target = $region40
      $region39: #{unet_forward.13} parent=35 // pred_region
        %s671 = smul.u32 8, %s15
      $region40: #{unet_forward.13} parent=35 // pred_fallthru
        _
    $region36: #{unet_forward.13} parent=5 // pred_fallthru
      _
    %p672 = scmp.le.s32.totalorder 2, %s10
    // Predicated region
    $region41: #{unet_forward.13} parent=5 // pred_check
      %p673 = pneg %p672
    $region42: #{unet_forward.13} parent=5 // pred_check_branch
      %675 = sbr.rel (%p673) target = $region44
    $region43: #{unet_forward.13} parent=5 // pred_region
      %s676 = ssub.s32 %s10, 2
      // Predicated region
      $region45: #{unet_forward.13} parent=43 // pred_check
        %p677 = pneg %p128
      $region46: #{unet_forward.13} parent=43 // pred_check_branch
        %679 = sbr.rel (%p677) target = $region48
      $region47: #{unet_forward.13} parent=43 // pred_region
        %s680 = smul.u32 8, %s16
        %p681 = scmp.lt.s32.totalorder %s680, 15
        %s682 = scalar_select %p681, %s680, 15
        %s683 = smul.addr %s682, 4
        %s684 = scalar_lea.vmem %s4, %s683
      $region48: #{unet_forward.13} parent=43 // pred_fallthru
        _
    $region44: #{unet_forward.13} parent=5 // pred_fallthru
      _
  $region6: #{unet_forward.13} parent=0 // loop_footer
    %s14 = sadd.s32 1, %s10
  $region7: #{unet_forward.13} parent=0 // loop_footer_branch
    %9 = sbr.rel target = $region3
  $region8: #{unet_forward.13} parent=0 // loop_exit
    _

// kernel: unet_forward.14
$region0: #{unet_forward.14}
  #allocation0 [shape = 'u32[]', space=smem, size = 0x4, offset = 0x4, fixed_abs, tag = 'smem constant byte address 0x4 - core index']
  #allocation1 [shape = 'u32[144,128]{1,0:T(1,128)}', space=vmem, size = 0x12000, scoped, tag = 'internal scratch']
  %s0 = inlined_call_operand.vmem [shape: bf16[128,576], index: 0, kind: input, shape index: {}]
  %s1 = inlined_call_operand.vmem [shape: bf16[576,64], index: 1, kind: input, shape index: {}]
  %s2 = inlined_call_operand.vmem [shape: f32[1,64], index: 2, kind: input, shape index: {}]
  %s3 = inlined_call_operand.vmem [shape: f32[1,64], index: 3, kind: input, shape index: {}]
  %s4 = inlined_call_operand.vmem [shape: bf16[128,64], index: 4, kind: output, shape index: {}]
  %s5 = sld [smem:[#allocation0]]
  $region49: #{unet_forward.14} parent=0
    _
  %s7 = ssub.s32 1, %s5
  %s8 = scalar_select 0, %s7, %s5
  loop: start=0, step=1, limit=4
  $region2: #{unet_forward.14} parent=0 // loop_pre_header
    _
  $region3: #{unet_forward.14} parent=0 // loop_header
    %s10 = sphi 0, %s14
    %p11 = scmp.ge.s32.totalorder %s10, 4
    %s20 = sphi 0, %s22
    %s23 = sphi 0, %s20
    %s24 = sphi 0, %s23
    %s40 = sphi 0, %s24
    %s44 = sphi 0, %s44
    %s46 = sphi 0, %s44
    %s47 = sphi 0, %s46
    %s61 = sphi 0, %s47
    %s65 = sphi 0, %s65
    %s67 = sphi 0, %s65
    %s68 = sphi 0, %s67
    %s82 = sphi 0, %s68
    %s86 = sphi 0, %s86
    %s88 = sphi 0, %s86
    %s89 = sphi 0, %s88
    %s103 = sphi 0, %s89
    %s109 = sphi 0, %s111
    %s112 = sphi 0, %s109
    %s113 = sphi 0, %s112
    %s129 = sphi 0, %s113
  $region4: #{unet_forward.14} parent=0 // loop_header_branch
    %13 = sbr.rel (%p11) target = $region8
  $region5: #{unet_forward.14} parent=0 // loop_body
    %s15 = ssub.s32 %s10, 1
    %s16 = ssub.s32 %s10, 2
    %s17 = sadd.s32 %s10, 1
    %s18 = ssub.s32 %s10, %s17
    %p19 = scmp.eq.s32.totalorder %s18, 0
    %s21 = sadd.s32 %s20, 1
    %s22 = scalar_select %p19, %s20, %s21
    %p25 = pneg %p19
    %p26 = scmp.eq.s32.totalorder %s10, 1
    %p27 = por %p25, %p26
    %p28 = scmp.ne.s32.totalorder %s20, %s23
    %p29 = scmp.eq.s32.totalorder %s10, 0
    %p30 = por %p28, %p29
    %p31 = scmp.ne.s32.totalorder %s20, %s23
    %p32 = scmp.eq.s32.totalorder %s15, 1
    %p33 = por %p31, %p32
    %p34 = scmp.ne.s32.totalorder %s23, %s24
    %p35 = scmp.eq.s32.totalorder %s15, 0
    %p36 = por %p34, %p35
    %p37 = scmp.ne.s32.totalorder %s23, %s24
    %p38 = scmp.eq.s32.totalorder %s16, 1
    %p39 = por %p37, %p38
    %p41 = scmp.ne.s32.totalorder %s24, %s40
    %p42 = scmp.eq.s32.totalorder %s16, 0
    %p43 = por %p41, %p42
    %s45 = sadd.s32 %s44, 1
    %p48 = scmp.eq.s32.totalorder %s10, 1
    %p49 = scmp.ne.s32.totalorder %s44, %s46
    %p50 = scmp.eq.s32.totalorder %s10, 0
    %p51 = por %p49, %p50
    %p52 = scmp.ne.s32.totalorder %s44, %s46
    %p53 = scmp.eq.s32.totalorder %s15, 1
    %p54 = por %p52, %p53
    %p55 = scmp.ne.s32.totalorder %s46, %s47
    %p56 = scmp.eq.s32.totalorder %s15, 0
    %p57 = por %p55, %p56
    %p58 = scmp.ne.s32.totalorder %s46, %s47
    %p59 = scmp.eq.s32.totalorder %s16, 1
    %p60 = por %p58, %p59
    %p62 = scmp.ne.s32.totalorder %s47, %s61
    %p63 = scmp.eq.s32.totalorder %s16, 0
    %p64 = por %p62, %p63
    %s66 = sadd.s32 %s65, 1
    %p69 = scmp.eq.s32.totalorder %s10, 1
    %p70 = scmp.ne.s32.totalorder %s65, %s67
    %p71 = scmp.eq.s32.totalorder %s10, 0
    %p72 = por %p70, %p71
    %p73 = scmp.ne.s32.totalorder %s65, %s67
    %p74 = scmp.eq.s32.totalorder %s15, 1
    %p75 = por %p73, %p74
    %p76 = scmp.ne.s32.totalorder %s67, %s68
    %p77 = scmp.eq.s32.totalorder %s15, 0
    %p78 = por %p76, %p77
    %p79 = scmp.ne.s32.totalorder %s67, %s68
    %p80 = scmp.eq.s32.totalorder %s16, 1
    %p81 = por %p79, %p80
    %p83 = scmp.ne.s32.totalorder %s68, %s82
    %p84 = scmp.eq.s32.totalorder %s16, 0
    %p85 = por %p83, %p84
    %s87 = sadd.s32 %s86, 1
    %p90 = scmp.eq.s32.totalorder %s10, 1
    %p91 = scmp.ne.s32.totalorder %s86, %s88
    %p92 = scmp.eq.s32.totalorder %s10, 0
    %p93 = por %p91, %p92
    %p94 = scmp.ne.s32.totalorder %s86, %s88
    %p95 = scmp.eq.s32.totalorder %s15, 1
    %p96 = por %p94, %p95
    %p97 = scmp.ne.s32.totalorder %s88, %s89
    %p98 = scmp.eq.s32.totalorder %s15, 0
    %p99 = por %p97, %p98
    %p100 = scmp.ne.s32.totalorder %s88, %s89
    %p101 = scmp.eq.s32.totalorder %s16, 1
    %p102 = por %p100, %p101
    %p104 = scmp.ne.s32.totalorder %s89, %s103
    %p105 = scmp.eq.s32.totalorder %s16, 0
    %p106 = por %p104, %p105
    %s107 = ssub.s32 %s10, %s17
    %p108 = scmp.eq.s32.totalorder %s107, 0
    %s110 = sadd.s32 %s109, 1
    %s111 = scalar_select %p108, %s109, %s110
    %p114 = pneg %p108
    %p115 = scmp.eq.s32.totalorder %s10, 1
    %p116 = por %p114, %p115
    %p117 = scmp.ne.s32.totalorder %s109, %s112
    %p118 = scmp.eq.s32.totalorder %s10, 0
    %p119 = por %p117, %p118
    %p120 = scmp.ne.s32.totalorder %s109, %s112
    %p121 = scmp.eq.s32.totalorder %s15, 1
    %p122 = por %p120, %p121
    %p123 = scmp.ne.s32.totalorder %s112, %s113
    %p124 = scmp.eq.s32.totalorder %s15, 0
    %p125 = por %p123, %p124
    %p126 = scmp.ne.s32.totalorder %s112, %s113
    %p127 = scmp.eq.s32.totalorder %s16, 1
    %p128 = por %p126, %p127
    %p130 = scmp.ne.s32.totalorder %s113, %s129
    %p131 = scmp.eq.s32.totalorder %s16, 0
    %p132 = por %p130, %p131
    %p133 = scmp.le.s32.totalorder 1, %s10
    %p134 = scmp.lt.s32.totalorder %s10, 3
    %p135 = pnand %p133, %p134
    %p136 = pneg %p135
    // Predicated region
    $region9: #{unet_forward.14} parent=5 // pred_check
      _
    $region10: #{unet_forward.14} parent=5 // pred_check_branch
      %138 = sbr.rel (%p135) target = $region12
    $region11: #{unet_forward.14} parent=5 // pred_region
      %s139 = ssub.s32 %s10, 1
      // Predicated region
      $region13: #{unet_forward.14} parent=11 // pred_check
        %p140 = pneg %p57
      $region14: #{unet_forward.14} parent=11 // pred_check_branch
        %142 = sbr.rel (%p140) target = $region16
      $region15: #{unet_forward.14} parent=11 // pred_region
        _
      $region16: #{unet_forward.14} parent=11 // pred_fallthru
        _
      // Predicated region
      $region17: #{unet_forward.14} parent=11 // pred_check
        %p143 = pneg %p78
      $region18: #{unet_forward.14} parent=11 // pred_check_branch
        %145 = sbr.rel (%p143) target = $region20
      $region19: #{unet_forward.14} parent=11 // pred_region
        _
      $region20: #{unet_forward.14} parent=11 // pred_fallthru
        _
      // Predicated region
      $region21: #{unet_forward.14} parent=11 // pred_check
        %p146 = pneg %p99
      $region22: #{unet_forward.14} parent=11 // pred_check_branch
        %148 = sbr.rel (%p146) target = $region24
      $region23: #{unet_forward.14} parent=11 // pred_region
        _
      $region24: #{unet_forward.14} parent=11 // pred_fallthru
        _
    $region12: #{unet_forward.14} parent=5 // pred_fallthru
      _
    %p149 = scmp.lt.s32.totalorder %s10, 2
    // Predicated region
    $region25: #{unet_forward.14} parent=5 // pred_check
      %p150 = pneg %p149
    $region26: #{unet_forward.14} parent=5 // pred_check_branch
      %152 = sbr.rel (%p150) target = $region28
    $region27: #{unet_forward.14} parent=5 // pred_region
      // Predicated region
      $region29: #{unet_forward.14} parent=27 // pred_check
        %p153 = pneg %p30
      $region30: #{unet_forward.14} parent=27 // pred_check_branch
        %155 = sbr.rel (%p153) target = $region32
      $region31: #{unet_forward.14} parent=27 // pred_region
        %s156 = smul.u32 8, %s10
        %p157 = scmp.lt.s32.totalorder %s156, 15
        %s158 = scalar_select %p157, %s156, 15
        %s159 = smul.addr %s158, 5
        %s160 = smul.addr %s159, 4
        %s161 = scalar_lea.vmem %s0, %s160
        %s162 = smul.u32 8, %s10
      $region32: #{unet_forward.14} parent=27 // pred_fallthru
        _
    $region28: #{unet_forward.14} parent=5 // pred_fallthru
      _
    %p163 = scmp.le.s32.totalorder 1, %s10
    %p164 = scmp.lt.s32.totalorder %s10, 3
    %p165 = pnand %p163, %p164
    %p166 = pneg %p165
    // Predicated region
    $region33: #{unet_forward.14} parent=5 // pred_check
      _
    $region34: #{unet_forward.14} parent=5 // pred_check_branch
      %168 = sbr.rel (%p165) target = $region36
    $region35: #{unet_forward.14} parent=5 // pred_region
      %s169 = ssub.s32 %s10, 1
      %s170 = smul.u32 8, %s15
      %p171 = scmp.lt.s32.totalorder %s170, 15
      %s172 = scalar_select %p171, %s170, 15
      %s173 = smul.addr %s172, 5
      %s174 = smul.addr %s173, 4
      %s175 = scalar_lea.vmem %s0, %s174
      %p176 = pneg %p36
      %p177 = pneg %p33
      %p178 = pneg %p57
      %p179 = pneg %p54
      %p180 = pneg %p78
      %p181 = pneg %p75
      %p182 = pneg %p99
      %p183 = pneg %p96
      %p184 = pneg %p125
      %p185 = pneg %p122
      %s186 = smul.u32 8, %s15
      %p187 = scmp.lt.s32.totalorder %s186, 15
      %s188 = scalar_select %p187, %s186, 15
      %s189 = smul.addr %s188, 4
      %s190 = scalar_lea.vmem %s4, %s189
      %s191 = smul.u32 8, %s15
      %p192 = scmp.lt.s32.totalorder %s191, 15
      %s193 = scalar_select %p192, %s191, 15
      %s194 = smul.addr %s193, 5
      %s195 = smul.addr %s194, 4
      %s196 = scalar_lea.vmem %s0, %s195
      %s197 = smul.u32 8, %s15
      %s198 = smul.u32 8, %s15
      %p199 = scmp.lt.s32.totalorder %s198, 15
      %s200 = scalar_select %p199, %s198, 15
      %s201 = smul.addr %s200, 4
      %s202 = scalar_lea.vmem %s4, %s201
      %s203 = smul.u32 8, %s15
      %v205 = vld [vmem:[%s196] sm:$0xff]
      %v206 = vld [vmem:[%s196 + $0x8] sm:$0xff]
      %v207 = vld [vmem:[%s196 + $0x10] sm:$0xf]
      %v208 = vld [vmem:[%s196 + $0x14] sm:$0xff]
      %v209 = vld [vmem:[%s196 + $0x1c] sm:$0xff]
      %v210 = vld [vmem:[%s196 + $0x24] sm:$0xf]
      %v211 = vld [vmem:[%s196 + $0x28] sm:$0xff]
      %v212 = vld [vmem:[%s196 + $0x30] sm:$0xff]
      %v213 = vld [vmem:[%s196 + $0x38] sm:$0xf]
      %v214 = vld [vmem:[%s196 + $0x3c] sm:$0xff]
      %v215 = vld [vmem:[%s196 + $0x44] sm:$0xff]
      %v216 = vld [vmem:[%s196 + $0x4c] sm:$0xf]
      %v217 = vld [vmem:[%s196 + $0x50] sm:$0xff]
      %v218 = vld [vmem:[%s196 + $0x58] sm:$0xff]
      %v219 = vld [vmem:[%s196 + $0x60] sm:$0xf]
      %v220 = vld [vmem:[%s196 + $0x64] sm:$0xff]
      %v221 = vld [vmem:[%s196 + $0x6c] sm:$0xff]
      %v222 = vld [vmem:[%s196 + $0x74] sm:$0xf]
      %v223 = vld [vmem:[%s196 + $0x78] sm:$0xff]
      %v224 = vld [vmem:[%s196 + $0x80] sm:$0xff]
      %v225 = vld [vmem:[%s196 + $0x88] sm:$0xf]
      %v226 = vld [vmem:[%s196 + $0x8c] sm:$0xff]
      %v227 = vld [vmem:[%s196 + $0x94] sm:$0xff]
      %v228 = vld [vmem:[%s196 + $0x9c] sm:$0xf]
      %v229 = vld [vmem:[%s1] sm:$0xf]
      %v230 = vld [vmem:[%s1 + $0x4] sm:$0xf]
      %v231 = vld [vmem:[%s1 + $0x8] sm:$0xf]
      %v232 = vld [vmem:[%s1 + $0xc] sm:$0xf]
      %v233 = vld [vmem:[%s1 + $0x10] sm:$0xf]
      %v234 = vld [vmem:[%s1 + $0x14] sm:$0xf]
      %v235 = vld [vmem:[%s1 + $0x18] sm:$0xf]
      %v236 = vld [vmem:[%s1 + $0x1c] sm:$0xf]
      %v237 = vld [vmem:[%s1 + $0x20] sm:$0xf]
      %v238 = vld [vmem:[%s1 + $0x24] sm:$0xf]
      %v239 = vld [vmem:[%s1 + $0x28] sm:$0xf]
      %v240 = vld [vmem:[%s1 + $0x2c] sm:$0xf]
      %v241 = vld [vmem:[%s1 + $0x30] sm:$0xf]
      %v242 = vld [vmem:[%s1 + $0x34] sm:$0xf]
      %v243 = vld [vmem:[%s1 + $0x38] sm:$0xf]
      %v244 = vld [vmem:[%s1 + $0x3c] sm:$0xf]
      %v245 = vld [vmem:[%s1 + $0x40] sm:$0xf]
      %v246 = vld [vmem:[%s1 + $0x44] sm:$0xf]
      %v247 = vld [vmem:[%s1 + $0x48] sm:$0xf]
      %v248 = vld [vmem:[%s1 + $0x4c] sm:$0xf]
      %v249 = vld [vmem:[%s1 + $0x50] sm:$0xf]
      %v250 = vld [vmem:[%s1 + $0x54] sm:$0xf]
      %v251 = vld [vmem:[%s1 + $0x58] sm:$0xf]
      %v252 = vld [vmem:[%s1 + $0x5c] sm:$0xf]
      %v253 = vld [vmem:[%s1 + $0x60] sm:$0xf]
      %v254 = vld [vmem:[%s1 + $0x64] sm:$0xf]
      %v255 = vld [vmem:[%s1 + $0x68] sm:$0xf]
      %v256 = vld [vmem:[%s1 + $0x6c] sm:$0xf]
      %v257 = vld [vmem:[%s1 + $0x70] sm:$0xf]
      %v258 = vld [vmem:[%s1 + $0x74] sm:$0xf]
      %v259 = vld [vmem:[%s1 + $0x78] sm:$0xf]
      %v260 = vld [vmem:[%s1 + $0x7c] sm:$0xf]
      %v261 = vld [vmem:[%s1 + $0x80] sm:$0xf]
      %v262 = vld [vmem:[%s1 + $0x84] sm:$0xf]
      %v263 = vld [vmem:[%s1 + $0x88] sm:$0xf]
      %v264 = vld [vmem:[%s1 + $0x8c] sm:$0xf]
      %v265 = vld [vmem:[%s1 + $0x90] sm:$0xf]
      %v266 = vld [vmem:[%s1 + $0x94] sm:$0xf]
      %v267 = vld [vmem:[%s1 + $0x98] sm:$0xf]
      %v268 = vld [vmem:[%s1 + $0x9c] sm:$0xf]
      %v269 = vld [vmem:[%s1 + $0xa0] sm:$0xf]
      %v270 = vld [vmem:[%s1 + $0xa4] sm:$0xf]
      %v271 = vld [vmem:[%s1 + $0xa8] sm:$0xf]
      %v272 = vld [vmem:[%s1 + $0xac] sm:$0xf]
      %v273 = vld [vmem:[%s1 + $0xb0] sm:$0xf]
      %v274 = vld [vmem:[%s1 + $0xb4] sm:$0xf]
      %v275 = vld [vmem:[%s1 + $0xb8] sm:$0xf]
      %v276 = vld [vmem:[%s1 + $0xbc] sm:$0xf]
      %v277 = vld [vmem:[%s1 + $0xc0] sm:$0xf]
      %v278 = vld [vmem:[%s1 + $0xc4] sm:$0xf]
      %v279 = vld [vmem:[%s1 + $0xc8] sm:$0xf]
      %v280 = vld [vmem:[%s1 + $0xcc] sm:$0xf]
      %v281 = vld [vmem:[%s1 + $0xd0] sm:$0xf]
      %v282 = vld [vmem:[%s1 + $0xd4] sm:$0xf]
      %v283 = vld [vmem:[%s1 + $0xd8] sm:$0xf]
      %v284 = vld [vmem:[%s1 + $0xdc] sm:$0xf]
      %v285 = vld [vmem:[%s1 + $0xe0] sm:$0xf]
      %v286 = vld [vmem:[%s1 + $0xe4] sm:$0xf]
      %v287 = vld [vmem:[%s1 + $0xe8] sm:$0xf]
      %v288 = vld [vmem:[%s1 + $0xec] sm:$0xf]
      %v289 = vld [vmem:[%s1 + $0xf0] sm:$0xf]
      %v290 = vld [vmem:[%s1 + $0xf4] sm:$0xf]
      %v291 = vld [vmem:[%s1 + $0xf8] sm:$0xf]
      %v292 = vld [vmem:[%s1 + $0xfc] sm:$0xf]
      %v293 = vld [vmem:[%s1 + $0x100] sm:$0xf]
      %v294 = vld [vmem:[%s1 + $0x104] sm:$0xf]
      %v295 = vld [vmem:[%s1 + $0x108] sm:$0xf]
      %v296 = vld [vmem:[%s1 + $0x10c] sm:$0xf]
      %v297 = vld [vmem:[%s1 + $0x110] sm:$0xf]
      %v298 = vld [vmem:[%s1 + $0x114] sm:$0xf]
      %v299 = vld [vmem:[%s1 + $0x118] sm:$0xf]
      %v300 = vld [vmem:[%s1 + $0x11c] sm:$0xf]
      %v325 = vunpack.c.l.b16 %v205
      %v326 = vunpack.c.h.b16 %v205
      %v327 = vunpack.c.l.b16 %v206
      %v328 = vunpack.c.h.b16 %v206
      %v329 = vunpack.c.l.b16 %v207
      %v330 = vunpack.c.l.b16 %v208
      %v331 = vunpack.c.h.b16 %v208
      %v332 = vunpack.c.l.b16 %v209
      %v333 = vunpack.c.h.b16 %v209
      %v334 = vunpack.c.l.b16 %v210
      %v335 = vunpack.c.l.b16 %v211
      %v336 = vunpack.c.h.b16 %v211
      %v337 = vunpack.c.l.b16 %v212
      %v338 = vunpack.c.h.b16 %v212
      %v339 = vunpack.c.l.b16 %v213
      %v340 = vunpack.c.l.b16 %v214
      %v341 = vunpack.c.h.b16 %v214
      %v342 = vunpack.c.l.b16 %v215
      %v343 = vunpack.c.h.b16 %v215
      %v344 = vunpack.c.l.b16 %v216
      %v345 = vunpack.c.l.b16 %v217
      %v346 = vunpack.c.h.b16 %v217
      %v347 = vunpack.c.l.b16 %v218
      %v348 = vunpack.c.h.b16 %v218
      %v349 = vunpack.c.l.b16 %v219
      %v350 = vunpack.c.l.b16 %v220
      %v351 = vunpack.c.h.b16 %v220
      %v352 = vunpack.c.l.b16 %v221
      %v353 = vunpack.c.h.b16 %v221
      %v354 = vunpack.c.l.b16 %v222
      %v355 = vunpack.c.l.b16 %v223
      %v356 = vunpack.c.h.b16 %v223
      %v357 = vunpack.c.l.b16 %v224
      %v358 = vunpack.c.h.b16 %v224
      %v359 = vunpack.c.l.b16 %v225
      %v360 = vunpack.c.l.b16 %v226
      %v361 = vunpack.c.h.b16 %v226
      %v362 = vunpack.c.l.b16 %v227
      %v363 = vunpack.c.h.b16 %v227
      %v364 = vunpack.c.l.b16 %v228
      %v365 = vpack.c.b16 %v330, %v325
      %v366 = vpack.c.b16 %v331, %v326
      %v367 = vpack.c.b16 %v332, %v327
      %v368 = vpack.c.b16 %v333, %v328
      %v369 = vpack.c.b16 %v334, %v329
      %v370 = vpack.c.b16 %v340, %v335
      %v371 = vpack.c.b16 %v341, %v336
      %v372 = vpack.c.b16 %v342, %v337
      %v373 = vpack.c.b16 %v343, %v338
      %v374 = vpack.c.b16 %v344, %v339
      %v375 = vpack.c.b16 %v350, %v345
      %v376 = vpack.c.b16 %v351, %v346
      %v377 = vpack.c.b16 %v352, %v347
      %v378 = vpack.c.b16 %v353, %v348
      %v379 = vpack.c.b16 %v354, %v349
      %v380 = vpack.c.b16 %v360, %v355
      %v381 = vpack.c.b16 %v361, %v356
      %v382 = vpack.c.b16 %v362, %v357
      %v383 = vpack.c.b16 %v363, %v358
      %v384 = vpack.c.b16 %v364, %v359
      %v473 = vunpack.c.l.b16 %v229
      %v474 = vunpack.c.l.b16 %v230
      %v475 = vunpack.c.l.b16 %v231
      %v476 = vunpack.c.l.b16 %v232
      %v477 = vunpack.c.l.b16 %v233
      %v478 = vunpack.c.l.b16 %v234
      %v479 = vunpack.c.l.b16 %v235
      %v480 = vunpack.c.l.b16 %v236
      %v481 = vunpack.c.l.b16 %v237
      %v482 = vunpack.c.l.b16 %v238
      %v483 = vunpack.c.l.b16 %v239
      %v484 = vunpack.c.l.b16 %v240
      %v485 = vunpack.c.l.b16 %v241
      %v486 = vunpack.c.l.b16 %v242
      %v487 = vunpack.c.l.b16 %v243
      %v488 = vunpack.c.l.b16 %v244
      %v489 = vunpack.c.l.b16 %v245
      %v490 = vunpack.c.l.b16 %v246
      %v491 = vunpack.c.l.b16 %v247
      %v492 = vunpack.c.l.b16 %v248
      %v493 = vunpack.c.l.b16 %v249
      %v494 = vunpack.c.l.b16 %v250
      %v495 = vunpack.c.l.b16 %v251
      %v496 = vunpack.c.l.b16 %v252
      %v497 = vunpack.c.l.b16 %v253
      %v498 = vunpack.c.l.b16 %v254
      %v499 = vunpack.c.l.b16 %v255
      %v500 = vunpack.c.l.b16 %v256
      %v501 = vunpack.c.l.b16 %v257
      %v502 = vunpack.c.l.b16 %v258
      %v503 = vunpack.c.l.b16 %v259
      %v504 = vunpack.c.l.b16 %v260
      %v505 = vunpack.c.l.b16 %v261
      %v506 = vunpack.c.l.b16 %v262
      %v507 = vunpack.c.l.b16 %v263
      %v508 = vunpack.c.l.b16 %v264
      %v509 = vunpack.c.l.b16 %v265
      %v510 = vunpack.c.l.b16 %v266
      %v511 = vunpack.c.l.b16 %v267
      %v512 = vunpack.c.l.b16 %v268
      %v513 = vunpack.c.l.b16 %v269
      %v514 = vunpack.c.l.b16 %v270
      %v515 = vunpack.c.l.b16 %v271
      %v516 = vunpack.c.l.b16 %v272
      %v517 = vunpack.c.l.b16 %v273
      %v518 = vunpack.c.l.b16 %v274
      %v519 = vunpack.c.l.b16 %v275
      %v520 = vunpack.c.l.b16 %v276
      %v521 = vunpack.c.l.b16 %v277
      %v522 = vunpack.c.l.b16 %v278
      %v523 = vunpack.c.l.b16 %v279
      %v524 = vunpack.c.l.b16 %v280
      %v525 = vunpack.c.l.b16 %v281
      %v526 = vunpack.c.l.b16 %v282
      %v527 = vunpack.c.l.b16 %v283
      %v528 = vunpack.c.l.b16 %v284
      %v529 = vunpack.c.l.b16 %v285
      %v530 = vunpack.c.l.b16 %v286
      %v531 = vunpack.c.l.b16 %v287
      %v532 = vunpack.c.l.b16 %v288
      %v533 = vunpack.c.l.b16 %v289
      %v534 = vunpack.c.l.b16 %v290
      %v535 = vunpack.c.l.b16 %v291
      %v536 = vunpack.c.l.b16 %v292
      %v537 = vunpack.c.l.b16 %v293
      %v538 = vunpack.c.l.b16 %v294
      %v539 = vunpack.c.l.b16 %v295
      %v540 = vunpack.c.l.b16 %v296
      %v541 = vunpack.c.l.b16 %v297
      %v542 = vunpack.c.l.b16 %v298
      %v543 = vunpack.c.l.b16 %v299
      %v544 = vunpack.c.l.b16 %v300
      %v545 = vpack.c.b16 %v474, %v473
      %v546 = vpack.c.b16 %v476, %v475
      %v547 = vpack.c.b16 %v478, %v477
      %v548 = vpack.c.b16 %v480, %v479
      %v549 = vpack.c.b16 %v482, %v481
      %v550 = vpack.c.b16 %v484, %v483
      %v551 = vpack.c.b16 %v486, %v485
      %v552 = vpack.c.b16 %v488, %v487
      %v553 = vpack.c.b16 %v490, %v489
      %v554 = vpack.c.b16 %v492, %v491
      %v555 = vpack.c.b16 %v494, %v493
      %v556 = vpack.c.b16 %v496, %v495
      %v557 = vpack.c.b16 %v498, %v497
      %v558 = vpack.c.b16 %v500, %v499
      %v559 = vpack.c.b16 %v502, %v501
      %v560 = vpack.c.b16 %v504, %v503
      %v561 = vpack.c.b16 %v506, %v505
      %v562 = vpack.c.b16 %v508, %v507
      %v563 = vpack.c.b16 %v510, %v509
      %v564 = vpack.c.b16 %v512, %v511
      %v565 = vpack.c.b16 %v514, %v513
      %v566 = vpack.c.b16 %v516, %v515
      %v567 = vpack.c.b16 %v518, %v517
      %v568 = vpack.c.b16 %v520, %v519
      %v569 = vpack.c.b16 %v522, %v521
      %v570 = vpack.c.b16 %v524, %v523
      %v571 = vpack.c.b16 %v526, %v525
      %v572 = vpack.c.b16 %v528, %v527
      %v573 = vpack.c.b16 %v530, %v529
      %v574 = vpack.c.b16 %v532, %v531
      %v575 = vpack.c.b16 %v534, %v533
      %v576 = vpack.c.b16 %v536, %v535
      %v577 = vpack.c.b16 %v538, %v537
      %v578 = vpack.c.b16 %v540, %v539
      %v579 = vpack.c.b16 %v542, %v541
      %v580 = vpack.c.b16 %v544, %v543
      %vm617 = vcmask 523264
      %v619 = vsel %vm617, %v369, 0
      %v622 = vsel %vm617, %v374, 0
      %v625 = vsel %vm617, %v379, 0
      %v628 = vsel %vm617, %v384, 0
      %630 = vmatprep.subr.bf16.mxu0 0
      %631 = vmatpush1.bf16.msra.mxu0 %v552
      %632 = vmatprep.subr.bf16.mxu0 0
      %633 = vmatpush1.bf16.msra.mxu0 %v551
      %634 = vmatprep.subr.bf16.mxu0 0
      %635 = vmatpush1.bf16.msra.mxu0 %v550
      %636 = vmatprep.subr.bf16.mxu0 0
      %637 = vmatpush1.bf16.msra.mxu0 %v549
      %638 = vmatprep.subr.bf16.mxu0 0
      %639 = vmatpush1.bf16.msra.mxu0 %v548
      %640 = vmatprep.subr.bf16.mxu0 0
      %641 = vmatpush1.bf16.msra.mxu0 %v547
      %642 = vmatprep.subr.bf16.mxu0 0
      %643 = vmatpush1.bf16.msra.mxu0 %v546
      %644 = vmatprep.subr.bf16.mxu0 0
      %645 = vmatpush1.bf16.msra.mxu0 %v545
      %646 = vmatprep.subr.bf16.mxu0 0
      %647 = vmatpush2.bf16.msra.mxu0 %v560
      %648 = vmatprep.subr.bf16.mxu0 0
      %649 = vmatpush2.bf16.msra.mxu0 %v559
      %650 = vmatprep.subr.bf16.mxu0 0
      %651 = vmatpush2.bf16.msra.mxu0 %v558
      %652 = vmatprep.subr.bf16.mxu0 0
      %653 = vmatpush2.bf16.msra.mxu0 %v557
      %654 = vmatprep.subr.bf16.mxu0 0
      %655 = vmatpush2.bf16.msra.mxu0 %v556
      %656 = vmatprep.subr.bf16.mxu0 0
      %657 = vmatpush2.bf16.msra.mxu0 %v555
      %658 = vmatprep.subr.bf16.mxu0 0
      %659 = vmatpush2.bf16.msra.mxu0 %v554
      %660 = vmatprep.subr.bf16.mxu0 0
      %661 = vmatpush2.bf16.msra.mxu0 %v553
      %662 = vmatprep.mubr.bf16.mxu0 %v366
      %663 = vmatmul.mubr.bf16.gmra.mxu0 %v365
      %v664 = vpop.f32.mrf.mxu0
      %v665 = vadd.f32 0.0, %v664
      %v666 = vpop.f32.mrf.mxu0
      %v667 = vpop.f32.mrf.mxu0
      %v668 = vadd.f32 0.0, %v667
      %v669 = vpop.f32.mrf.mxu0
      %670 = vmatprep.mubr.bf16.mxu0 %v371
      %671 = vmatmul.mubr.bf16.gmra.mxu0 %v370
      %v672 = vpop.f32.mrf.mxu0
      %v673 = vadd.f32 0.0, %v672
      %v674 = vpop.f32.mrf.mxu0
      %v675 = vpop.f32.mrf.mxu0
      %v676 = vadd.f32 0.0, %v675
      %v677 = vpop.f32.mrf.mxu0
      %678 = vmatprep.mubr.bf16.mxu0 %v376
      %679 = vmatmul.mubr.bf16.gmra.mxu0 %v375
      %v680 = vpop.f32.mrf.mxu0
      %v681 = vadd.f32 0.0, %v680
      %v682 = vpop.f32.mrf.mxu0
      %v683 = vpop.f32.mrf.mxu0
      %v684 = vadd.f32 0.0, %v683
      %v685 = vpop.f32.mrf.mxu0
      %686 = vmatprep.mubr.bf16.mxu0 %v381
      %687 = vmatmul.mubr.bf16.gmra.mxu0 %v380
      %v688 = vpop.f32.mrf.mxu0
      %v689 = vadd.f32 0.0, %v688
      %v690 = vpop.f32.mrf.mxu0
      %v691 = vpop.f32.mrf.mxu0
      %v692 = vadd.f32 0.0, %v691
      %v693 = vpop.f32.mrf.mxu0
      %694 = vdwg.mxu0
      %695 = vmatprep.subr.bf16.mxu0 0
      %696 = vmatpush1.bf16.msra.mxu0 %v568
      %697 = vmatprep.subr.bf16.mxu0 0
      %698 = vmatpush1.bf16.msra.mxu0 %v567
      %699 = vmatprep.subr.bf16.mxu0 0
      %700 = vmatpush1.bf16.msra.mxu0 %v566
      %701 = vmatprep.subr.bf16.mxu0 0
      %702 = vmatpush1.bf16.msra.mxu0 %v565
      %703 = vmatprep.subr.bf16.mxu0 0
      %704 = vmatpush1.bf16.msra.mxu0 %v564
      %705 = vmatprep.subr.bf16.mxu0 0
      %706 = vmatpush1.bf16.msra.mxu0 %v563
      %707 = vmatprep.subr.bf16.mxu0 0
      %708 = vmatpush1.bf16.msra.mxu0 %v562
      %709 = vmatprep.subr.bf16.mxu0 0
      %710 = vmatpush1.bf16.msra.mxu0 %v561
      %711 = vmatprep.subr.bf16.mxu0 0
      %712 = vmatpush2.bf16.msra.mxu0 %v576
      %713 = vmatprep.subr.bf16.mxu0 0
      %714 = vmatpush2.bf16.msra.mxu0 %v575
      %715 = vmatprep.subr.bf16.mxu0 0
      %716 = vmatpush2.bf16.msra.mxu0 %v574
      %717 = vmatprep.subr.bf16.mxu0 0
      %718 = vmatpush2.bf16.msra.mxu0 %v573
      %719 = vmatprep.subr.bf16.mxu0 0
      %720 = vmatpush2.bf16.msra.mxu0 %v572
      %721 = vmatprep.subr.bf16.mxu0 0
      %722 = vmatpush2.bf16.msra.mxu0 %v571
      %723 = vmatprep.subr.bf16.mxu0 0
      %724 = vmatpush2.bf16.msra.mxu0 %v570
      %725 = vmatprep.subr.bf16.mxu0 0
      %726 = vmatpush2.bf16.msra.mxu0 %v569
      %727 = vmatprep.mubr.bf16.mxu0 %v368
      %728 = vmatmul.mubr.bf16.gmra.mxu0 %v367
      %v729 = vpop.f32.mrf.mxu0
      %v730 = vadd.f32 %v665, %v729
      %v731 = vpop.f32.mrf.mxu0
      %v732 = vpop.f32.mrf.mxu0
      %v733 = vadd.f32 %v668, %v732
      %v734 = vpop.f32.mrf.mxu0
      %735 = vmatprep.mubr.bf16.mxu0 %v373
      %736 = vmatmul.mubr.bf16.gmra.mxu0 %v372
      %v737 = vpop.f32.mrf.mxu0
      %v738 = vadd.f32 %v673, %v737
      %v739 = vpop.f32.mrf.mxu0
      %v740 = vpop.f32.mrf.mxu0
      %v741 = vadd.f32 %v676, %v740
      %v742 = vpop.f32.mrf.mxu0
      %743 = vmatprep.mubr.bf16.mxu0 %v378
      %744 = vmatmul.mubr.bf16.gmra.mxu0 %v377
      %v745 = vpop.f32.mrf.mxu0
      %v746 = vadd.f32 %v681, %v745
      %v747 = vpop.f32.mrf.mxu0
      %v748 = vpop.f32.mrf.mxu0
      %v749 = vadd.f32 %v684, %v748
      %v750 = vpop.f32.mrf.mxu0
      %751 = vmatprep.mubr.bf16.mxu0 %v383
      %752 = vmatmul.mubr.bf16.gmra.mxu0 %v382
      %v753 = vpop.f32.mrf.mxu0
      %v754 = vadd.f32 %v689, %v753
      %v755 = vpop.f32.mrf.mxu0
      %v756 = vpop.f32.mrf.mxu0
      %v757 = vadd.f32 %v692, %v756
      %v758 = vpop.f32.mrf.mxu0
      %759 = vdwg.mxu0
      %760 = vmatprep.subr.bf16.mxu0 0
      %761 = vmatpush1.bf16.msra.mxu0 0
      %762 = vmatprep.subr.bf16.mxu0 0
      %763 = vmatpush1.bf16.msra.mxu0 0
      %764 = vmatprep.subr.bf16.mxu0 0
      %765 = vmatpush1.bf16.msra.mxu0 0
      %766 = vmatprep.subr.bf16.mxu0 0
      %767 = vmatpush1.bf16.msra.mxu0 0
      %768 = vmatprep.subr.bf16.mxu0 0
      %769 = vmatpush1.bf16.msra.mxu0 %v580
      %770 = vmatprep.subr.bf16.mxu0 0
      %771 = vmatpush1.bf16.msra.mxu0 %v579
      %772 = vmatprep.subr.bf16.mxu0 0
      %773 = vmatpush1.bf16.msra.mxu0 %v578
      %774 = vmatprep.subr.bf16.mxu0 0
      %775 = vmatpush1.bf16.msra.mxu0 %v577
      %776 = vmatprep.subr.bf16.mxu0 0
      %777 = vmatpush2.bf16.msra.mxu0 0
      %778 = vmatprep.subr.bf16.mxu0 0
      %779 = vmatpush2.bf16.msra.mxu0 0
      %780 = vmatprep.subr.bf16.mxu0 0
      %781 = vmatpush2.bf16.msra.mxu0 0
      %782 = vmatprep.subr.bf16.mxu0 0
      %783 = vmatpush2.bf16.msra.mxu0 0
      %784 = vmatprep.subr.bf16.mxu0 0
      %785 = vmatpush2.bf16.msra.mxu0 0
      %786 = vmatprep.subr.bf16.mxu0 0
      %787 = vmatpush2.bf16.msra.mxu0 0
      %788 = vmatprep.subr.bf16.mxu0 0
      %789 = vmatpush2.bf16.msra.mxu0 0
      %790 = vmatprep.subr.bf16.mxu0 0
      %791 = vmatpush2.bf16.msra.mxu0 0
      %792 = vmatprep.mubr.bf16.mxu0 0
      %793 = vmatmul.mubr.bf16.gmra.mxu0 %v619
      %v794 = vpop.f32.mrf.mxu0
      %v795 = vadd.f32 %v730, %v794
      %v796 = vpop.f32.mrf.mxu0
      %v797 = vpop.f32.mrf.mxu0
      %v798 = vadd.f32 %v733, %v797
      %v799 = vpop.f32.mrf.mxu0
      %800 = vmatprep.mubr.bf16.mxu0 0
      %801 = vmatmul.mubr.bf16.gmra.mxu0 %v622
      %v802 = vpop.f32.mrf.mxu0
      %v803 = vadd.f32 %v738, %v802
      %v804 = vpop.f32.mrf.mxu0
      %v805 = vpop.f32.mrf.mxu0
      %v806 = vadd.f32 %v741, %v805
      %v807 = vpop.f32.mrf.mxu0
      %808 = vmatprep.mubr.bf16.mxu0 0
      %809 = vmatmul.mubr.bf16.gmra.mxu0 %v625
      %v810 = vpop.f32.mrf.mxu0
      %v811 = vadd.f32 %v746, %v810
      %v812 = vpop.f32.mrf.mxu0
      %v813 = vpop.f32.mrf.mxu0
      %v814 = vadd.f32 %v749, %v813
      %v815 = vpop.f32.mrf.mxu0
      %816 = vmatprep.mubr.bf16.mxu0 0
      %817 = vmatmul.mubr.bf16.gmra.mxu0 %v628
      %v818 = vpop.f32.mrf.mxu0
      %v819 = vadd.f32 %v754, %v818
      %v820 = vpop.f32.mrf.mxu0
      %v821 = vpop.f32.mrf.mxu0
      %v822 = vadd.f32 %v757, %v821
      %v823 = vpop.f32.mrf.mxu0
      %824 = vdwg.mxu0
      %v825 = vld [vmem:[%s2] sm:$0x1]
      %v827 = vlaneseq
      %v828 = vshrl.u32 %v827, 7
      %v829 = vsub.s32 0, %v828
      %v830 = vrot.slane %v825, %v829
      %v832 = vmul.f32 %v795, %v830
      %v833 = vmul.f32 %v798, %v830
      %v834 = vmul.f32 %v803, %v830
      %v835 = vmul.f32 %v806, %v830
      %v836 = vmul.f32 %v811, %v830
      %v837 = vmul.f32 %v814, %v830
      %v838 = vmul.f32 %v819, %v830
      %v839 = vmul.f32 %v822, %v830
      %v840 = vld [vmem:[%s3] sm:$0x1]
      %v842 = vlaneseq
      %v843 = vshrl.u32 %v842, 7
      %v844 = vsub.s32 0, %v843
      %v845 = vrot.slane %v840, %v844
      %v847 = vadd.f32 %v832, %v845
      %v848 = vadd.f32 %v833, %v845
      %v849 = vadd.f32 %v834, %v845
      %v850 = vadd.f32 %v835, %v845
      %v851 = vadd.f32 %v836, %v845
      %v852 = vadd.f32 %v837, %v845
      %v853 = vadd.f32 %v838, %v845
      %v854 = vadd.f32 %v839, %v845
      %vm855 = vcmp.ge.f32.partialorder %v847, 0.0
      %vm856 = vcmp.ge.f32.partialorder %v848, 0.0
      %vm857 = vcmp.ge.f32.partialorder %v849, 0.0
      %vm858 = vcmp.ge.f32.partialorder %v850, 0.0
      %vm859 = vcmp.ge.f32.partialorder %v851, 0.0
      %vm860 = vcmp.ge.f32.partialorder %v852, 0.0
      %vm861 = vcmp.ge.f32.partialorder %v853, 0.0
      %vm862 = vcmp.ge.f32.partialorder %v854, 0.0
      %v863 = vmul.f32 %v847, 0.2
      %v864 = vmul.f32 %v848, 0.2
      %v865 = vmul.f32 %v849, 0.2
      %v866 = vmul.f32 %v850, 0.2
      %v867 = vmul.f32 %v851, 0.2
      %v868 = vmul.f32 %v852, 0.2
      %v869 = vmul.f32 %v853, 0.2
      %v870 = vmul.f32 %v854, 0.2
      %v871 = vsel %vm855, %v847, %v863
      %v872 = vsel %vm856, %v848, %v864
      %v873 = vsel %vm857, %v849, %v865
      %v874 = vsel %vm858, %v850, %v866
      %v875 = vsel %vm859, %v851, %v867
      %v876 = vsel %vm860, %v852, %v868
      %v877 = vsel %vm861, %v853, %v869
      %v878 = vsel %vm862, %v854, %v870
      %v879 = vpack.c.bf16 %v872, %v871
      %v880 = vpack.c.bf16 %v874, %v873
      %v881 = vpack.c.bf16 %v876, %v875
      %v882 = vpack.c.bf16 %v878, %v877
      %v887 = vunpack.c.l.b16 %v879
      %v888 = vunpack.c.h.b16 %v879
      %v889 = vunpack.c.l.b16 %v880
      %v890 = vunpack.c.h.b16 %v880
      %v891 = vunpack.c.l.b16 %v881
      %v892 = vunpack.c.h.b16 %v881
      %v893 = vunpack.c.l.b16 %v882
      %v894 = vunpack.c.h.b16 %v882
      %v895 = vpack.c.b16 %v887, %v887
      %v896 = vpack.c.b16 %v888, %v888
      %v897 = vpack.c.b16 %v889, %v889
      %v898 = vpack.c.b16 %v890, %v890
      %v899 = vpack.c.b16 %v891, %v891
      %v900 = vpack.c.b16 %v892, %v892
      %v901 = vpack.c.b16 %v893, %v893
      %v902 = vpack.c.b16 %v894, %v894
      %vm911 = vcmask 519168
      %912 = vst.msk [vmem:[%s202] sm:$0xf] %vm911, %v895
      %913 = vst.msk [vmem:[%s202 + $0x4] sm:$0xf] %vm911, %v896
      %914 = vst.msk [vmem:[%s202 + $0x8] sm:$0xf] %vm911, %v897
      %915 = vst.msk [vmem:[%s202 + $0xc] sm:$0xf] %vm911, %v898
      %916 = vst.msk [vmem:[%s202 + $0x10] sm:$0xf] %vm911, %v899
      %917 = vst.msk [vmem:[%s202 + $0x14] sm:$0xf] %vm911, %v900
      %918 = vst.msk [vmem:[%s202 + $0x18] sm:$0xf] %vm911, %v901
      %919 = vst.msk [vmem:[%s202 + $0x1c] sm:$0xf] %vm911, %v902
      %s920 = smul.u32 8, %s15
      %p921 = scmp.lt.s32.totalorder %s920, 15
      %s922 = scalar_select %p921, %s920, 15
      %s923 = smul.addr %s922, 4
      %s924 = scalar_lea.vmem %s4, %s923
      // Predicated region
      $region37: #{unet_forward.14} parent=35 // pred_check
        %p925 = pneg %p122
      $region38: #{unet_forward.14} parent=35 // pred_check_branch
        %927 = sbr.rel (%p925) target = $region40
      $region39: #{unet_forward.14} parent=35 // pred_region
        %s928 = smul.u32 8, %s15
      $region40: #{unet_forward.14} parent=35 // pred_fallthru
        _
    $region36: #{unet_forward.14} parent=5 // pred_fallthru
      _
    %p929 = scmp.le.s32.totalorder 2, %s10
    // Predicated region
    $region41: #{unet_forward.14} parent=5 // pred_check
      %p930 = pneg %p929
    $region42: #{unet_forward.14} parent=5 // pred_check_branch
      %932 = sbr.rel (%p930) target = $region44
    $region43: #{unet_forward.14} parent=5 // pred_region
      %s933 = ssub.s32 %s10, 2
      // Predicated region
      $region45: #{unet_forward.14} parent=43 // pred_check
        %p934 = pneg %p128
      $region46: #{unet_forward.14} parent=43 // pred_check_branch
        %936 = sbr.rel (%p934) target = $region48
      $region47: #{unet_forward.14} parent=43 // pred_region
        %s937 = smul.u32 8, %s16
        %p938 = scmp.lt.s32.totalorder %s937, 15
        %s939 = scalar_select %p938, %s937, 15
        %s940 = smul.addr %s939, 4
        %s941 = scalar_lea.vmem %s4, %s940
      $region48: #{unet_forward.14} parent=43 // pred_fallthru
        _
    $region44: #{unet_forward.14} parent=5 // pred_fallthru
      _
  $region6: #{unet_forward.14} parent=0 // loop_footer
    %s14 = sadd.s32 1, %s10
  $region7: #{unet_forward.14} parent=0 // loop_footer_branch
    %9 = sbr.rel target = $region3
  $region8: #{unet_forward.14} parent=0 // loop_exit
    _

// kernel: unet_forward.15
$region0: #{unet_forward.15}
  #allocation0 [shape = 'u32[]', space=smem, size = 0x4, offset = 0x4, fixed_abs, tag = 'smem constant byte address 0x4 - core index']
  #allocation1 [shape = 'u32[144,128]{1,0:T(1,128)}', space=vmem, size = 0x12000, scoped, tag = 'internal scratch']
  %s0 = inlined_call_operand.vmem [shape: bf16[32,576], index: 0, kind: input, shape index: {}]
  %s1 = inlined_call_operand.vmem [shape: bf16[576,128], index: 1, kind: input, shape index: {}]
  %s2 = inlined_call_operand.vmem [shape: f32[1,128], index: 2, kind: input, shape index: {}]
  %s3 = inlined_call_operand.vmem [shape: f32[1,128], index: 3, kind: input, shape index: {}]
  %s4 = inlined_call_operand.vmem [shape: bf16[32,128], index: 4, kind: output, shape index: {}]
  %s5 = sld [smem:[#allocation0]]
  $region49: #{unet_forward.15} parent=0
    _
  %s7 = ssub.s32 1, %s5
  %s8 = scalar_select 0, %s7, %s5
  loop: start=0, step=1, limit=4
  $region2: #{unet_forward.15} parent=0 // loop_pre_header
    _
  $region3: #{unet_forward.15} parent=0 // loop_header
    %s10 = sphi 0, %s14
    %p11 = scmp.ge.s32.totalorder %s10, 4
    %s20 = sphi 0, %s22
    %s23 = sphi 0, %s20
    %s24 = sphi 0, %s23
    %s40 = sphi 0, %s24
    %s44 = sphi 0, %s44
    %s46 = sphi 0, %s44
    %s47 = sphi 0, %s46
    %s61 = sphi 0, %s47
    %s65 = sphi 0, %s65
    %s67 = sphi 0, %s65
    %s68 = sphi 0, %s67
    %s82 = sphi 0, %s68
    %s86 = sphi 0, %s86
    %s88 = sphi 0, %s86
    %s89 = sphi 0, %s88
    %s103 = sphi 0, %s89
    %s109 = sphi 0, %s111
    %s112 = sphi 0, %s109
    %s113 = sphi 0, %s112
    %s129 = sphi 0, %s113
  $region4: #{unet_forward.15} parent=0 // loop_header_branch
    %13 = sbr.rel (%p11) target = $region8
  $region5: #{unet_forward.15} parent=0 // loop_body
    %s15 = ssub.s32 %s10, 1
    %s16 = ssub.s32 %s10, 2
    %s17 = sadd.s32 %s10, 1
    %s18 = ssub.s32 %s10, %s17
    %p19 = scmp.eq.s32.totalorder %s18, 0
    %s21 = sadd.s32 %s20, 1
    %s22 = scalar_select %p19, %s20, %s21
    %p25 = pneg %p19
    %p26 = scmp.eq.s32.totalorder %s10, 1
    %p27 = por %p25, %p26
    %p28 = scmp.ne.s32.totalorder %s20, %s23
    %p29 = scmp.eq.s32.totalorder %s10, 0
    %p30 = por %p28, %p29
    %p31 = scmp.ne.s32.totalorder %s20, %s23
    %p32 = scmp.eq.s32.totalorder %s15, 1
    %p33 = por %p31, %p32
    %p34 = scmp.ne.s32.totalorder %s23, %s24
    %p35 = scmp.eq.s32.totalorder %s15, 0
    %p36 = por %p34, %p35
    %p37 = scmp.ne.s32.totalorder %s23, %s24
    %p38 = scmp.eq.s32.totalorder %s16, 1
    %p39 = por %p37, %p38
    %p41 = scmp.ne.s32.totalorder %s24, %s40
    %p42 = scmp.eq.s32.totalorder %s16, 0
    %p43 = por %p41, %p42
    %s45 = sadd.s32 %s44, 1
    %p48 = scmp.eq.s32.totalorder %s10, 1
    %p49 = scmp.ne.s32.totalorder %s44, %s46
    %p50 = scmp.eq.s32.totalorder %s10, 0
    %p51 = por %p49, %p50
    %p52 = scmp.ne.s32.totalorder %s44, %s46
    %p53 = scmp.eq.s32.totalorder %s15, 1
    %p54 = por %p52, %p53
    %p55 = scmp.ne.s32.totalorder %s46, %s47
    %p56 = scmp.eq.s32.totalorder %s15, 0
    %p57 = por %p55, %p56
    %p58 = scmp.ne.s32.totalorder %s46, %s47
    %p59 = scmp.eq.s32.totalorder %s16, 1
    %p60 = por %p58, %p59
    %p62 = scmp.ne.s32.totalorder %s47, %s61
    %p63 = scmp.eq.s32.totalorder %s16, 0
    %p64 = por %p62, %p63
    %s66 = sadd.s32 %s65, 1
    %p69 = scmp.eq.s32.totalorder %s10, 1
    %p70 = scmp.ne.s32.totalorder %s65, %s67
    %p71 = scmp.eq.s32.totalorder %s10, 0
    %p72 = por %p70, %p71
    %p73 = scmp.ne.s32.totalorder %s65, %s67
    %p74 = scmp.eq.s32.totalorder %s15, 1
    %p75 = por %p73, %p74
    %p76 = scmp.ne.s32.totalorder %s67, %s68
    %p77 = scmp.eq.s32.totalorder %s15, 0
    %p78 = por %p76, %p77
    %p79 = scmp.ne.s32.totalorder %s67, %s68
    %p80 = scmp.eq.s32.totalorder %s16, 1
    %p81 = por %p79, %p80
    %p83 = scmp.ne.s32.totalorder %s68, %s82
    %p84 = scmp.eq.s32.totalorder %s16, 0
    %p85 = por %p83, %p84
    %s87 = sadd.s32 %s86, 1
    %p90 = scmp.eq.s32.totalorder %s10, 1
    %p91 = scmp.ne.s32.totalorder %s86, %s88
    %p92 = scmp.eq.s32.totalorder %s10, 0
    %p93 = por %p91, %p92
    %p94 = scmp.ne.s32.totalorder %s86, %s88
    %p95 = scmp.eq.s32.totalorder %s15, 1
    %p96 = por %p94, %p95
    %p97 = scmp.ne.s32.totalorder %s88, %s89
    %p98 = scmp.eq.s32.totalorder %s15, 0
    %p99 = por %p97, %p98
    %p100 = scmp.ne.s32.totalorder %s88, %s89
    %p101 = scmp.eq.s32.totalorder %s16, 1
    %p102 = por %p100, %p101
    %p104 = scmp.ne.s32.totalorder %s89, %s103
    %p105 = scmp.eq.s32.totalorder %s16, 0
    %p106 = por %p104, %p105
    %s107 = ssub.s32 %s10, %s17
    %p108 = scmp.eq.s32.totalorder %s107, 0
    %s110 = sadd.s32 %s109, 1
    %s111 = scalar_select %p108, %s109, %s110
    %p114 = pneg %p108
    %p115 = scmp.eq.s32.totalorder %s10, 1
    %p116 = por %p114, %p115
    %p117 = scmp.ne.s32.totalorder %s109, %s112
    %p118 = scmp.eq.s32.totalorder %s10, 0
    %p119 = por %p117, %p118
    %p120 = scmp.ne.s32.totalorder %s109, %s112
    %p121 = scmp.eq.s32.totalorder %s15, 1
    %p122 = por %p120, %p121
    %p123 = scmp.ne.s32.totalorder %s112, %s113
    %p124 = scmp.eq.s32.totalorder %s15, 0
    %p125 = por %p123, %p124
    %p126 = scmp.ne.s32.totalorder %s112, %s113
    %p127 = scmp.eq.s32.totalorder %s16, 1
    %p128 = por %p126, %p127
    %p130 = scmp.ne.s32.totalorder %s113, %s129
    %p131 = scmp.eq.s32.totalorder %s16, 0
    %p132 = por %p130, %p131
    %p133 = scmp.le.s32.totalorder 1, %s10
    %p134 = scmp.lt.s32.totalorder %s10, 3
    %p135 = pnand %p133, %p134
    %p136 = pneg %p135
    // Predicated region
    $region9: #{unet_forward.15} parent=5 // pred_check
      _
    $region10: #{unet_forward.15} parent=5 // pred_check_branch
      %138 = sbr.rel (%p135) target = $region12
    $region11: #{unet_forward.15} parent=5 // pred_region
      %s139 = ssub.s32 %s10, 1
      // Predicated region
      $region13: #{unet_forward.15} parent=11 // pred_check
        %p140 = pneg %p57
      $region14: #{unet_forward.15} parent=11 // pred_check_branch
        %142 = sbr.rel (%p140) target = $region16
      $region15: #{unet_forward.15} parent=11 // pred_region
        _
      $region16: #{unet_forward.15} parent=11 // pred_fallthru
        _
      // Predicated region
      $region17: #{unet_forward.15} parent=11 // pred_check
        %p143 = pneg %p78
      $region18: #{unet_forward.15} parent=11 // pred_check_branch
        %145 = sbr.rel (%p143) target = $region20
      $region19: #{unet_forward.15} parent=11 // pred_region
        _
      $region20: #{unet_forward.15} parent=11 // pred_fallthru
        _
      // Predicated region
      $region21: #{unet_forward.15} parent=11 // pred_check
        %p146 = pneg %p99
      $region22: #{unet_forward.15} parent=11 // pred_check_branch
        %148 = sbr.rel (%p146) target = $region24
      $region23: #{unet_forward.15} parent=11 // pred_region
        _
      $region24: #{unet_forward.15} parent=11 // pred_fallthru
        _
    $region12: #{unet_forward.15} parent=5 // pred_fallthru
      _
    %p149 = scmp.lt.s32.totalorder %s10, 2
    // Predicated region
    $region25: #{unet_forward.15} parent=5 // pred_check
      %p150 = pneg %p149
    $region26: #{unet_forward.15} parent=5 // pred_check_branch
      %152 = sbr.rel (%p150) target = $region28
    $region27: #{unet_forward.15} parent=5 // pred_region
      // Predicated region
      $region29: #{unet_forward.15} parent=27 // pred_check
        %p153 = pneg %p30
      $region30: #{unet_forward.15} parent=27 // pred_check_branch
        %155 = sbr.rel (%p153) target = $region32
      $region31: #{unet_forward.15} parent=27 // pred_region
        %s156 = smul.u32 2, %s10
        %p157 = scmp.lt.s32.totalorder %s156, 3
        %s158 = scalar_select %p157, %s156, 3
        %s159 = smul.addr %s158, 5
        %s160 = smul.addr %s159, 4
        %s161 = scalar_lea.vmem %s0, %s160
        %s162 = smul.u32 2, %s10
      $region32: #{unet_forward.15} parent=27 // pred_fallthru
        _
    $region28: #{unet_forward.15} parent=5 // pred_fallthru
      _
    %p163 = scmp.le.s32.totalorder 1, %s10
    %p164 = scmp.lt.s32.totalorder %s10, 3
    %p165 = pnand %p163, %p164
    %p166 = pneg %p165
    // Predicated region
    $region33: #{unet_forward.15} parent=5 // pred_check
      _
    $region34: #{unet_forward.15} parent=5 // pred_check_branch
      %168 = sbr.rel (%p165) target = $region36
    $region35: #{unet_forward.15} parent=5 // pred_region
      %s169 = ssub.s32 %s10, 1
      %s170 = smul.u32 2, %s15
      %p171 = scmp.lt.s32.totalorder %s170, 3
      %s172 = scalar_select %p171, %s170, 3
      %s173 = smul.addr %s172, 5
      %s174 = smul.addr %s173, 4
      %s175 = scalar_lea.vmem %s0, %s174
      %p176 = pneg %p36
      %p177 = pneg %p33
      %p178 = pneg %p57
      %p179 = pneg %p54
      %p180 = pneg %p78
      %p181 = pneg %p75
      %p182 = pneg %p99
      %p183 = pneg %p96
      %p184 = pneg %p125
      %p185 = pneg %p122
      %s186 = smul.u32 2, %s15
      %p187 = scmp.lt.s32.totalorder %s186, 3
      %s188 = scalar_select %p187, %s186, 3
      %s189 = smul.addr %s188, 4
      %s190 = scalar_lea.vmem %s4, %s189
      %s191 = smul.u32 2, %s15
      %p192 = scmp.lt.s32.totalorder %s191, 3
      %s193 = scalar_select %p192, %s191, 3
      %s194 = smul.addr %s193, 5
      %s195 = smul.addr %s194, 4
      %s196 = scalar_lea.vmem %s0, %s195
      %s197 = smul.u32 2, %s15
      %s198 = smul.u32 2, %s15
      %p199 = scmp.lt.s32.totalorder %s198, 3
      %s200 = scalar_select %p199, %s198, 3
      %s201 = smul.addr %s200, 4
      %s202 = scalar_lea.vmem %s4, %s201
      %s203 = smul.u32 2, %s15
      %v205 = vld [vmem:[%s196] sm:$0xff]
      %v206 = vld [vmem:[%s196 + $0x8] sm:$0xff]
      %v207 = vld [vmem:[%s196 + $0x10] sm:$0xf]
      %v208 = vld [vmem:[%s196 + $0x14] sm:$0xff]
      %v209 = vld [vmem:[%s196 + $0x1c] sm:$0xff]
      %v210 = vld [vmem:[%s196 + $0x24] sm:$0xf]
      %v211 = vld [vmem:[%s1] sm:$0xf]
      %v212 = vld [vmem:[%s1 + $0x4] sm:$0xf]
      %v213 = vld [vmem:[%s1 + $0x8] sm:$0xf]
      %v214 = vld [vmem:[%s1 + $0xc] sm:$0xf]
      %v215 = vld [vmem:[%s1 + $0x10] sm:$0xf]
      %v216 = vld [vmem:[%s1 + $0x14] sm:$0xf]
      %v217 = vld [vmem:[%s1 + $0x18] sm:$0xf]
      %v218 = vld [vmem:[%s1 + $0x1c] sm:$0xf]
      %v219 = vld [vmem:[%s1 + $0x20] sm:$0xf]
      %v220 = vld [vmem:[%s1 + $0x24] sm:$0xf]
      %v221 = vld [vmem:[%s1 + $0x28] sm:$0xf]
      %v222 = vld [vmem:[%s1 + $0x2c] sm:$0xf]
      %v223 = vld [vmem:[%s1 + $0x30] sm:$0xf]
      %v224 = vld [vmem:[%s1 + $0x34] sm:$0xf]
      %v225 = vld [vmem:[%s1 + $0x38] sm:$0xf]
      %v226 = vld [vmem:[%s1 + $0x3c] sm:$0xf]
      %v227 = vld [vmem:[%s1 + $0x40] sm:$0xf]
      %v228 = vld [vmem:[%s1 + $0x44] sm:$0xf]
      %v229 = vld [vmem:[%s1 + $0x48] sm:$0xf]
      %v230 = vld [vmem:[%s1 + $0x4c] sm:$0xf]
      %v231 = vld [vmem:[%s1 + $0x50] sm:$0xf]
      %v232 = vld [vmem:[%s1 + $0x54] sm:$0xf]
      %v233 = vld [vmem:[%s1 + $0x58] sm:$0xf]
      %v234 = vld [vmem:[%s1 + $0x5c] sm:$0xf]
      %v235 = vld [vmem:[%s1 + $0x60] sm:$0xf]
      %v236 = vld [vmem:[%s1 + $0x64] sm:$0xf]
      %v237 = vld [vmem:[%s1 + $0x68] sm:$0xf]
      %v238 = vld [vmem:[%s1 + $0x6c] sm:$0xf]
      %v239 = vld [vmem:[%s1 + $0x70] sm:$0xf]
      %v240 = vld [vmem:[%s1 + $0x74] sm:$0xf]
      %v241 = vld [vmem:[%s1 + $0x78] sm:$0xf]
      %v242 = vld [vmem:[%s1 + $0x7c] sm:$0xf]
      %v243 = vld [vmem:[%s1 + $0x80] sm:$0xf]
      %v244 = vld [vmem:[%s1 + $0x84] sm:$0xf]
      %v245 = vld [vmem:[%s1 + $0x88] sm:$0xf]
      %v246 = vld [vmem:[%s1 + $0x8c] sm:$0xf]
      %v247 = vld [vmem:[%s1 + $0x90] sm:$0xf]
      %v248 = vld [vmem:[%s1 + $0x94] sm:$0xf]
      %v249 = vld [vmem:[%s1 + $0x98] sm:$0xf]
      %v250 = vld [vmem:[%s1 + $0x9c] sm:$0xf]
      %v251 = vld [vmem:[%s1 + $0xa0] sm:$0xf]
      %v252 = vld [vmem:[%s1 + $0xa4] sm:$0xf]
      %v253 = vld [vmem:[%s1 + $0xa8] sm:$0xf]
      %v254 = vld [vmem:[%s1 + $0xac] sm:$0xf]
      %v255 = vld [vmem:[%s1 + $0xb0] sm:$0xf]
      %v256 = vld [vmem:[%s1 + $0xb4] sm:$0xf]
      %v257 = vld [vmem:[%s1 + $0xb8] sm:$0xf]
      %v258 = vld [vmem:[%s1 + $0xbc] sm:$0xf]
      %v259 = vld [vmem:[%s1 + $0xc0] sm:$0xf]
      %v260 = vld [vmem:[%s1 + $0xc4] sm:$0xf]
      %v261 = vld [vmem:[%s1 + $0xc8] sm:$0xf]
      %v262 = vld [vmem:[%s1 + $0xcc] sm:$0xf]
      %v263 = vld [vmem:[%s1 + $0xd0] sm:$0xf]
      %v264 = vld [vmem:[%s1 + $0xd4] sm:$0xf]
      %v265 = vld [vmem:[%s1 + $0xd8] sm:$0xf]
      %v266 = vld [vmem:[%s1 + $0xdc] sm:$0xf]
      %v267 = vld [vmem:[%s1 + $0xe0] sm:$0xf]
      %v268 = vld [vmem:[%s1 + $0xe4] sm:$0xf]
      %v269 = vld [vmem:[%s1 + $0xe8] sm:$0xf]
      %v270 = vld [vmem:[%s1 + $0xec] sm:$0xf]
      %v271 = vld [vmem:[%s1 + $0xf0] sm:$0xf]
      %v272 = vld [vmem:[%s1 + $0xf4] sm:$0xf]
      %v273 = vld [vmem:[%s1 + $0xf8] sm:$0xf]
      %v274 = vld [vmem:[%s1 + $0xfc] sm:$0xf]
      %v275 = vld [vmem:[%s1 + $0x100] sm:$0xf]
      %v276 = vld [vmem:[%s1 + $0x104] sm:$0xf]
      %v277 = vld [vmem:[%s1 + $0x108] sm:$0xf]
      %v278 = vld [vmem:[%s1 + $0x10c] sm:$0xf]
      %v279 = vld [vmem:[%s1 + $0x110] sm:$0xf]
      %v280 = vld [vmem:[%s1 + $0x114] sm:$0xf]
      %v281 = vld [vmem:[%s1 + $0x118] sm:$0xf]
      %v282 = vld [vmem:[%s1 + $0x11c] sm:$0xf]
      %v289 = vunpack.c.l.b16 %v205
      %v290 = vunpack.c.h.b16 %v205
      %v291 = vunpack.c.l.b16 %v206
      %v292 = vunpack.c.h.b16 %v206
      %v293 = vunpack.c.l.b16 %v207
      %v294 = vunpack.c.l.b16 %v208
      %v295 = vunpack.c.h.b16 %v208
      %v296 = vunpack.c.l.b16 %v209
      %v297 = vunpack.c.h.b16 %v209
      %v298 = vunpack.c.l.b16 %v210
      %v299 = vpack.c.b16 %v294, %v289
      %v300 = vpack.c.b16 %v295, %v290
      %v301 = vpack.c.b16 %v296, %v291
      %v302 = vpack.c.b16 %v297, %v292
      %v303 = vpack.c.b16 %v298, %v293
      %v380 = vunpack.c.l.b16 %v211
      %v381 = vunpack.c.l.b16 %v212
      %v382 = vunpack.c.l.b16 %v213
      %v383 = vunpack.c.l.b16 %v214
      %v384 = vunpack.c.l.b16 %v215
      %v385 = vunpack.c.l.b16 %v216
      %v386 = vunpack.c.l.b16 %v217
      %v387 = vunpack.c.l.b16 %v218
      %v388 = vunpack.c.l.b16 %v219
      %v389 = vunpack.c.l.b16 %v220
      %v390 = vunpack.c.l.b16 %v221
      %v391 = vunpack.c.l.b16 %v222
      %v392 = vunpack.c.l.b16 %v223
      %v393 = vunpack.c.l.b16 %v224
      %v394 = vunpack.c.l.b16 %v225
      %v395 = vunpack.c.l.b16 %v226
      %v396 = vunpack.c.l.b16 %v227
      %v397 = vunpack.c.l.b16 %v228
      %v398 = vunpack.c.l.b16 %v229
      %v399 = vunpack.c.l.b16 %v230
      %v400 = vunpack.c.l.b16 %v231
      %v401 = vunpack.c.l.b16 %v232
      %v402 = vunpack.c.l.b16 %v233
      %v403 = vunpack.c.l.b16 %v234
      %v404 = vunpack.c.l.b16 %v235
      %v405 = vunpack.c.l.b16 %v236
      %v406 = vunpack.c.l.b16 %v237
      %v407 = vunpack.c.l.b16 %v238
      %v408 = vunpack.c.l.b16 %v239
      %v409 = vunpack.c.l.b16 %v240
      %v410 = vunpack.c.l.b16 %v241
      %v411 = vunpack.c.l.b16 %v242
      %v412 = vunpack.c.l.b16 %v243
      %v413 = vunpack.c.l.b16 %v244
      %v414 = vunpack.c.l.b16 %v245
      %v415 = vunpack.c.l.b16 %v246
      %v416 = vunpack.c.l.b16 %v247
      %v417 = vunpack.c.l.b16 %v248
      %v418 = vunpack.c.l.b16 %v249
      %v419 = vunpack.c.l.b16 %v250
      %v420 = vunpack.c.l.b16 %v251
      %v421 = vunpack.c.l.b16 %v252
      %v422 = vunpack.c.l.b16 %v253
      %v423 = vunpack.c.l.b16 %v254
      %v424 = vunpack.c.l.b16 %v255
      %v425 = vunpack.c.l.b16 %v256
      %v426 = vunpack.c.l.b16 %v257
      %v427 = vunpack.c.l.b16 %v258
      %v428 = vunpack.c.l.b16 %v259
      %v429 = vunpack.c.l.b16 %v260
      %v430 = vunpack.c.l.b16 %v261
      %v431 = vunpack.c.l.b16 %v262
      %v432 = vunpack.c.l.b16 %v263
      %v433 = vunpack.c.l.b16 %v264
      %v434 = vunpack.c.l.b16 %v265
      %v435 = vunpack.c.l.b16 %v266
      %v436 = vunpack.c.l.b16 %v267
      %v437 = vunpack.c.l.b16 %v268
      %v438 = vunpack.c.l.b16 %v269
      %v439 = vunpack.c.l.b16 %v270
      %v440 = vunpack.c.l.b16 %v271
      %v441 = vunpack.c.l.b16 %v272
      %v442 = vunpack.c.l.b16 %v273
      %v443 = vunpack.c.l.b16 %v274
      %v444 = vunpack.c.l.b16 %v275
      %v445 = vunpack.c.l.b16 %v276
      %v446 = vunpack.c.l.b16 %v277
      %v447 = vunpack.c.l.b16 %v278
      %v448 = vunpack.c.l.b16 %v279
      %v449 = vunpack.c.l.b16 %v280
      %v450 = vunpack.c.l.b16 %v281
      %v451 = vunpack.c.l.b16 %v282
      %v452 = vpack.c.b16 %v381, %v380
      %v453 = vpack.c.b16 %v383, %v382
      %v454 = vpack.c.b16 %v385, %v384
      %v455 = vpack.c.b16 %v387, %v386
      %v456 = vpack.c.b16 %v389, %v388
      %v457 = vpack.c.b16 %v391, %v390
      %v458 = vpack.c.b16 %v393, %v392
      %v459 = vpack.c.b16 %v395, %v394
      %v460 = vpack.c.b16 %v397, %v396
      %v461 = vpack.c.b16 %v399, %v398
      %v462 = vpack.c.b16 %v401, %v400
      %v463 = vpack.c.b16 %v403, %v402
      %v464 = vpack.c.b16 %v405, %v404
      %v465 = vpack.c.b16 %v407, %v406
      %v466 = vpack.c.b16 %v409, %v408
      %v467 = vpack.c.b16 %v411, %v410
      %v468 = vpack.c.b16 %v413, %v412
      %v469 = vpack.c.b16 %v415, %v414
      %v470 = vpack.c.b16 %v417, %v416
      %v471 = vpack.c.b16 %v419, %v418
      %v472 = vpack.c.b16 %v421, %v420
      %v473 = vpack.c.b16 %v423, %v422
      %v474 = vpack.c.b16 %v425, %v424
      %v475 = vpack.c.b16 %v427, %v426
      %v476 = vpack.c.b16 %v429, %v428
      %v477 = vpack.c.b16 %v431, %v430
      %v478 = vpack.c.b16 %v433, %v432
      %v479 = vpack.c.b16 %v435, %v434
      %v480 = vpack.c.b16 %v437, %v436
      %v481 = vpack.c.b16 %v439, %v438
      %v482 = vpack.c.b16 %v441, %v440
      %v483 = vpack.c.b16 %v443, %v442
      %v484 = vpack.c.b16 %v445, %v444
      %v485 = vpack.c.b16 %v447, %v446
      %v486 = vpack.c.b16 %v449, %v448
      %v487 = vpack.c.b16 %v451, %v450
      %vm524 = vcmask 523264
      %v526 = vsel %vm524, %v303, 0
      %528 = vmatprep.subr.bf16.mxu0 0
      %529 = vmatpush1.bf16.msra.mxu0 %v459
      %530 = vmatprep.subr.bf16.mxu0 0
      %531 = vmatpush1.bf16.msra.mxu0 %v458
      %532 = vmatprep.subr.bf16.mxu0 0
      %533 = vmatpush1.bf16.msra.mxu0 %v457
      %534 = vmatprep.subr.bf16.mxu0 0
      %535 = vmatpush1.bf16.msra.mxu0 %v456
      %536 = vmatprep.subr.bf16.mxu0 0
      %537 = vmatpush1.bf16.msra.mxu0 %v455
      %538 = vmatprep.subr.bf16.mxu0 0
      %539 = vmatpush1.bf16.msra.mxu0 %v454
      %540 = vmatprep.subr.bf16.mxu0 0
      %541 = vmatpush1.bf16.msra.mxu0 %v453
      %542 = vmatprep.subr.bf16.mxu0 0
      %543 = vmatpush1.bf16.msra.mxu0 %v452
      %544 = vmatprep.subr.bf16.mxu0 0
      %545 = vmatpush2.bf16.msra.mxu0 %v467
      %546 = vmatprep.subr.bf16.mxu0 0
      %547 = vmatpush2.bf16.msra.mxu0 %v466
      %548 = vmatprep.subr.bf16.mxu0 0
      %549 = vmatpush2.bf16.msra.mxu0 %v465
      %550 = vmatprep.subr.bf16.mxu0 0
      %551 = vmatpush2.bf16.msra.mxu0 %v464
      %552 = vmatprep.subr.bf16.mxu0 0
      %553 = vmatpush2.bf16.msra.mxu0 %v463
      %554 = vmatprep.subr.bf16.mxu0 0
      %555 = vmatpush2.bf16.msra.mxu0 %v462
      %556 = vmatprep.subr.bf16.mxu0 0
      %557 = vmatpush2.bf16.msra.mxu0 %v461
      %558 = vmatprep.subr.bf16.mxu0 0
      %559 = vmatpush2.bf16.msra.mxu0 %v460
      %560 = vmatprep.mubr.bf16.mxu0 %v300
      %561 = vmatmul.mubr.bf16.gmra.mxu0 %v299
      %v562 = vpop.f32.mrf.mxu0
      %v563 = vadd.f32 0.0, %v562
      %v564 = vpop.f32.mrf.mxu0
      %v565 = vpop.f32.mrf.mxu0
      %v566 = vadd.f32 0.0, %v565
      %v567 = vpop.f32.mrf.mxu0
      %568 = vdwg.mxu0
      %569 = vmatprep.subr.bf16.mxu0 0
      %570 = vmatpush1.bf16.msra.mxu0 %v475
      %571 = vmatprep.subr.bf16.mxu0 0
      %572 = vmatpush1.bf16.msra.mxu0 %v474
      %573 = vmatprep.subr.bf16.mxu0 0
      %574 = vmatpush1.bf16.msra.mxu0 %v473
      %575 = vmatprep.subr.bf16.mxu0 0
      %576 = vmatpush1.bf16.msra.mxu0 %v472
      %577 = vmatprep.subr.bf16.mxu0 0
      %578 = vmatpush1.bf16.msra.mxu0 %v471
      %579 = vmatprep.subr.bf16.mxu0 0
      %580 = vmatpush1.bf16.msra.mxu0 %v470
      %581 = vmatprep.subr.bf16.mxu0 0
      %582 = vmatpush1.bf16.msra.mxu0 %v469
      %583 = vmatprep.subr.bf16.mxu0 0
      %584 = vmatpush1.bf16.msra.mxu0 %v468
      %585 = vmatprep.subr.bf16.mxu0 0
      %586 = vmatpush2.bf16.msra.mxu0 %v483
      %587 = vmatprep.subr.bf16.mxu0 0
      %588 = vmatpush2.bf16.msra.mxu0 %v482
      %589 = vmatprep.subr.bf16.mxu0 0
      %590 = vmatpush2.bf16.msra.mxu0 %v481
      %591 = vmatprep.subr.bf16.mxu0 0
      %592 = vmatpush2.bf16.msra.mxu0 %v480
      %593 = vmatprep.subr.bf16.mxu0 0
      %594 = vmatpush2.bf16.msra.mxu0 %v479
      %595 = vmatprep.subr.bf16.mxu0 0
      %596 = vmatpush2.bf16.msra.mxu0 %v478
      %597 = vmatprep.subr.bf16.mxu0 0
      %598 = vmatpush2.bf16.msra.mxu0 %v477
      %599 = vmatprep.subr.bf16.mxu0 0
      %600 = vmatpush2.bf16.msra.mxu0 %v476
      %601 = vmatprep.mubr.bf16.mxu0 %v302
      %602 = vmatmul.mubr.bf16.gmra.mxu0 %v301
      %v603 = vpop.f32.mrf.mxu0
      %v604 = vadd.f32 %v563, %v603
      %v605 = vpop.f32.mrf.mxu0
      %v606 = vpop.f32.mrf.mxu0
      %v607 = vadd.f32 %v566, %v606
      %v608 = vpop.f32.mrf.mxu0
      %609 = vdwg.mxu0
      %610 = vmatprep.subr.bf16.mxu0 0
      %611 = vmatpush1.bf16.msra.mxu0 0
      %612 = vmatprep.subr.bf16.mxu0 0
      %613 = vmatpush1.bf16.msra.mxu0 0
      %614 = vmatprep.subr.bf16.mxu0 0
      %615 = vmatpush1.bf16.msra.mxu0 0
      %616 = vmatprep.subr.bf16.mxu0 0
      %617 = vmatpush1.bf16.msra.mxu0 0
      %618 = vmatprep.subr.bf16.mxu0 0
      %619 = vmatpush1.bf16.msra.mxu0 %v487
      %620 = vmatprep.subr.bf16.mxu0 0
      %621 = vmatpush1.bf16.msra.mxu0 %v486
      %622 = vmatprep.subr.bf16.mxu0 0
      %623 = vmatpush1.bf16.msra.mxu0 %v485
      %624 = vmatprep.subr.bf16.mxu0 0
      %625 = vmatpush1.bf16.msra.mxu0 %v484
      %626 = vmatprep.subr.bf16.mxu0 0
      %627 = vmatpush2.bf16.msra.mxu0 0
      %628 = vmatprep.subr.bf16.mxu0 0
      %629 = vmatpush2.bf16.msra.mxu0 0
      %630 = vmatprep.subr.bf16.mxu0 0
      %631 = vmatpush2.bf16.msra.mxu0 0
      %632 = vmatprep.subr.bf16.mxu0 0
      %633 = vmatpush2.bf16.msra.mxu0 0
      %634 = vmatprep.subr.bf16.mxu0 0
      %635 = vmatpush2.bf16.msra.mxu0 0
      %636 = vmatprep.subr.bf16.mxu0 0
      %637 = vmatpush2.bf16.msra.mxu0 0
      %638 = vmatprep.subr.bf16.mxu0 0
      %639 = vmatpush2.bf16.msra.mxu0 0
      %640 = vmatprep.subr.bf16.mxu0 0
      %641 = vmatpush2.bf16.msra.mxu0 0
      %642 = vmatprep.mubr.bf16.mxu0 0
      %643 = vmatmul.mubr.bf16.gmra.mxu0 %v526
      %v644 = vpop.f32.mrf.mxu0
      %v645 = vadd.f32 %v604, %v644
      %v646 = vpop.f32.mrf.mxu0
      %v647 = vpop.f32.mrf.mxu0
      %v648 = vadd.f32 %v607, %v647
      %v649 = vpop.f32.mrf.mxu0
      %650 = vdwg.mxu0
      %v651 = vld [vmem:[%s2] sm:$0x1]
      %v653 = vlaneseq
      %v654 = vshrl.u32 %v653, 7
      %v655 = vsub.s32 0, %v654
      %v656 = vrot.slane %v651, %v655
      %v658 = vmul.f32 %v645, %v656
      %v659 = vmul.f32 %v648, %v656
      %v660 = vld [vmem:[%s3] sm:$0x1]
      %v662 = vlaneseq
      %v663 = vshrl.u32 %v662, 7
      %v664 = vsub.s32 0, %v663
      %v665 = vrot.slane %v660, %v664
      %v667 = vadd.f32 %v658, %v665
      %v668 = vadd.f32 %v659, %v665
      %vm669 = vcmp.ge.f32.partialorder %v667, 0.0
      %vm670 = vcmp.ge.f32.partialorder %v668, 0.0
      %v671 = vmul.f32 %v667, 0.2
      %v672 = vmul.f32 %v668, 0.2
      %v673 = vsel %vm669, %v667, %v671
      %v674 = vsel %vm670, %v668, %v672
      %v675 = vpack.c.bf16 %v674, %v673
      %v677 = vunpack.c.l.b16 %v675
      %v678 = vunpack.c.h.b16 %v675
      %v679 = vpack.c.b16 %v677, %v677
      %v680 = vpack.c.b16 %v678, %v678
      %683 = vst [vmem:[%s202] sm:$0xf] %v679
      %684 = vst [vmem:[%s202 + $0x4] sm:$0xf] %v680
      %s685 = smul.u32 2, %s15
      %p686 = scmp.lt.s32.totalorder %s685, 3
      %s687 = scalar_select %p686, %s685, 3
      %s688 = smul.addr %s687, 4
      %s689 = scalar_lea.vmem %s4, %s688
      // Predicated region
      $region37: #{unet_forward.15} parent=35 // pred_check
        %p690 = pneg %p122
      $region38: #{unet_forward.15} parent=35 // pred_check_branch
        %692 = sbr.rel (%p690) target = $region40
      $region39: #{unet_forward.15} parent=35 // pred_region
        %s693 = smul.u32 2, %s15
      $region40: #{unet_forward.15} parent=35 // pred_fallthru
        _
    $region36: #{unet_forward.15} parent=5 // pred_fallthru
      _
    %p694 = scmp.le.s32.totalorder 2, %s10
    // Predicated region
    $region41: #{unet_forward.15} parent=5 // pred_check
      %p695 = pneg %p694
    $region42: #{unet_forward.15} parent=5 // pred_check_branch
      %697 = sbr.rel (%p695) target = $region44
    $region43: #{unet_forward.15} parent=5 // pred_region
      %s698 = ssub.s32 %s10, 2
      // Predicated region
      $region45: #{unet_forward.15} parent=43 // pred_check
        %p699 = pneg %p128
      $region46: #{unet_forward.15} parent=43 // pred_check_branch
        %701 = sbr.rel (%p699) target = $region48
      $region47: #{unet_forward.15} parent=43 // pred_region
        %s702 = smul.u32 2, %s16
        %p703 = scmp.lt.s32.totalorder %s702, 3
        %s704 = scalar_select %p703, %s702, 3
        %s705 = smul.addr %s704, 4
        %s706 = scalar_lea.vmem %s4, %s705
      $region48: #{unet_forward.15} parent=43 // pred_fallthru
        _
    $region44: #{unet_forward.15} parent=5 // pred_fallthru
      _
  $region6: #{unet_forward.15} parent=0 // loop_footer
    %s14 = sadd.s32 1, %s10
  $region7: #{unet_forward.15} parent=0 // loop_footer_branch
    %9 = sbr.rel target = $region3
  $region8: #{unet_forward.15} parent=0 // loop_exit
    _

// kernel: unet_forward.16
$region0: #{unet_forward.16}
  #allocation0 [shape = 'u32[]', space=smem, size = 0x4, offset = 0x4, fixed_abs, tag = 'smem constant byte address 0x4 - core index']
  #allocation1 [shape = 'u32[144,128]{1,0:T(1,128)}', space=vmem, size = 0x12000, scoped, tag = 'internal scratch']
  %s0 = inlined_call_operand.vmem [shape: bf16[32,1152], index: 0, kind: input, shape index: {}]
  %s1 = inlined_call_operand.vmem [shape: bf16[1152,128], index: 1, kind: input, shape index: {}]
  %s2 = inlined_call_operand.vmem [shape: f32[1,128], index: 2, kind: input, shape index: {}]
  %s3 = inlined_call_operand.vmem [shape: f32[1,128], index: 3, kind: input, shape index: {}]
  %s4 = inlined_call_operand.vmem [shape: bf16[32,128], index: 4, kind: output, shape index: {}]
  %s5 = sld [smem:[#allocation0]]
  $region49: #{unet_forward.16} parent=0
    _
  %s7 = ssub.s32 1, %s5
  %s8 = scalar_select 0, %s7, %s5
  loop: start=0, step=1, limit=4
  $region2: #{unet_forward.16} parent=0 // loop_pre_header
    _
  $region3: #{unet_forward.16} parent=0 // loop_header
    %s10 = sphi 0, %s14
    %p11 = scmp.ge.s32.totalorder %s10, 4
    %s20 = sphi 0, %s22
    %s23 = sphi 0, %s20
    %s24 = sphi 0, %s23
    %s40 = sphi 0, %s24
    %s44 = sphi 0, %s44
    %s46 = sphi 0, %s44
    %s47 = sphi 0, %s46
    %s61 = sphi 0, %s47
    %s65 = sphi 0, %s65
    %s67 = sphi 0, %s65
    %s68 = sphi 0, %s67
    %s82 = sphi 0, %s68
    %s86 = sphi 0, %s86
    %s88 = sphi 0, %s86
    %s89 = sphi 0, %s88
    %s103 = sphi 0, %s89
    %s109 = sphi 0, %s111
    %s112 = sphi 0, %s109
    %s113 = sphi 0, %s112
    %s129 = sphi 0, %s113
  $region4: #{unet_forward.16} parent=0 // loop_header_branch
    %13 = sbr.rel (%p11) target = $region8
  $region5: #{unet_forward.16} parent=0 // loop_body
    %s15 = ssub.s32 %s10, 1
    %s16 = ssub.s32 %s10, 2
    %s17 = sadd.s32 %s10, 1
    %s18 = ssub.s32 %s10, %s17
    %p19 = scmp.eq.s32.totalorder %s18, 0
    %s21 = sadd.s32 %s20, 1
    %s22 = scalar_select %p19, %s20, %s21
    %p25 = pneg %p19
    %p26 = scmp.eq.s32.totalorder %s10, 1
    %p27 = por %p25, %p26
    %p28 = scmp.ne.s32.totalorder %s20, %s23
    %p29 = scmp.eq.s32.totalorder %s10, 0
    %p30 = por %p28, %p29
    %p31 = scmp.ne.s32.totalorder %s20, %s23
    %p32 = scmp.eq.s32.totalorder %s15, 1
    %p33 = por %p31, %p32
    %p34 = scmp.ne.s32.totalorder %s23, %s24
    %p35 = scmp.eq.s32.totalorder %s15, 0
    %p36 = por %p34, %p35
    %p37 = scmp.ne.s32.totalorder %s23, %s24
    %p38 = scmp.eq.s32.totalorder %s16, 1
    %p39 = por %p37, %p38
    %p41 = scmp.ne.s32.totalorder %s24, %s40
    %p42 = scmp.eq.s32.totalorder %s16, 0
    %p43 = por %p41, %p42
    %s45 = sadd.s32 %s44, 1
    %p48 = scmp.eq.s32.totalorder %s10, 1
    %p49 = scmp.ne.s32.totalorder %s44, %s46
    %p50 = scmp.eq.s32.totalorder %s10, 0
    %p51 = por %p49, %p50
    %p52 = scmp.ne.s32.totalorder %s44, %s46
    %p53 = scmp.eq.s32.totalorder %s15, 1
    %p54 = por %p52, %p53
    %p55 = scmp.ne.s32.totalorder %s46, %s47
    %p56 = scmp.eq.s32.totalorder %s15, 0
    %p57 = por %p55, %p56
    %p58 = scmp.ne.s32.totalorder %s46, %s47
    %p59 = scmp.eq.s32.totalorder %s16, 1
    %p60 = por %p58, %p59
    %p62 = scmp.ne.s32.totalorder %s47, %s61
    %p63 = scmp.eq.s32.totalorder %s16, 0
    %p64 = por %p62, %p63
    %s66 = sadd.s32 %s65, 1
    %p69 = scmp.eq.s32.totalorder %s10, 1
    %p70 = scmp.ne.s32.totalorder %s65, %s67
    %p71 = scmp.eq.s32.totalorder %s10, 0
    %p72 = por %p70, %p71
    %p73 = scmp.ne.s32.totalorder %s65, %s67
    %p74 = scmp.eq.s32.totalorder %s15, 1
    %p75 = por %p73, %p74
    %p76 = scmp.ne.s32.totalorder %s67, %s68
    %p77 = scmp.eq.s32.totalorder %s15, 0
    %p78 = por %p76, %p77
    %p79 = scmp.ne.s32.totalorder %s67, %s68
    %p80 = scmp.eq.s32.totalorder %s16, 1
    %p81 = por %p79, %p80
    %p83 = scmp.ne.s32.totalorder %s68, %s82
    %p84 = scmp.eq.s32.totalorder %s16, 0
    %p85 = por %p83, %p84
    %s87 = sadd.s32 %s86, 1
    %p90 = scmp.eq.s32.totalorder %s10, 1
    %p91 = scmp.ne.s32.totalorder %s86, %s88
    %p92 = scmp.eq.s32.totalorder %s10, 0
    %p93 = por %p91, %p92
    %p94 = scmp.ne.s32.totalorder %s86, %s88
    %p95 = scmp.eq.s32.totalorder %s15, 1
    %p96 = por %p94, %p95
    %p97 = scmp.ne.s32.totalorder %s88, %s89
    %p98 = scmp.eq.s32.totalorder %s15, 0
    %p99 = por %p97, %p98
    %p100 = scmp.ne.s32.totalorder %s88, %s89
    %p101 = scmp.eq.s32.totalorder %s16, 1
    %p102 = por %p100, %p101
    %p104 = scmp.ne.s32.totalorder %s89, %s103
    %p105 = scmp.eq.s32.totalorder %s16, 0
    %p106 = por %p104, %p105
    %s107 = ssub.s32 %s10, %s17
    %p108 = scmp.eq.s32.totalorder %s107, 0
    %s110 = sadd.s32 %s109, 1
    %s111 = scalar_select %p108, %s109, %s110
    %p114 = pneg %p108
    %p115 = scmp.eq.s32.totalorder %s10, 1
    %p116 = por %p114, %p115
    %p117 = scmp.ne.s32.totalorder %s109, %s112
    %p118 = scmp.eq.s32.totalorder %s10, 0
    %p119 = por %p117, %p118
    %p120 = scmp.ne.s32.totalorder %s109, %s112
    %p121 = scmp.eq.s32.totalorder %s15, 1
    %p122 = por %p120, %p121
    %p123 = scmp.ne.s32.totalorder %s112, %s113
    %p124 = scmp.eq.s32.totalorder %s15, 0
    %p125 = por %p123, %p124
    %p126 = scmp.ne.s32.totalorder %s112, %s113
    %p127 = scmp.eq.s32.totalorder %s16, 1
    %p128 = por %p126, %p127
    %p130 = scmp.ne.s32.totalorder %s113, %s129
    %p131 = scmp.eq.s32.totalorder %s16, 0
    %p132 = por %p130, %p131
    %p133 = scmp.le.s32.totalorder 1, %s10
    %p134 = scmp.lt.s32.totalorder %s10, 3
    %p135 = pnand %p133, %p134
    %p136 = pneg %p135
    // Predicated region
    $region9: #{unet_forward.16} parent=5 // pred_check
      _
    $region10: #{unet_forward.16} parent=5 // pred_check_branch
      %138 = sbr.rel (%p135) target = $region12
    $region11: #{unet_forward.16} parent=5 // pred_region
      %s139 = ssub.s32 %s10, 1
      // Predicated region
      $region13: #{unet_forward.16} parent=11 // pred_check
        %p140 = pneg %p57
      $region14: #{unet_forward.16} parent=11 // pred_check_branch
        %142 = sbr.rel (%p140) target = $region16
      $region15: #{unet_forward.16} parent=11 // pred_region
        _
      $region16: #{unet_forward.16} parent=11 // pred_fallthru
        _
      // Predicated region
      $region17: #{unet_forward.16} parent=11 // pred_check
        %p143 = pneg %p78
      $region18: #{unet_forward.16} parent=11 // pred_check_branch
        %145 = sbr.rel (%p143) target = $region20
      $region19: #{unet_forward.16} parent=11 // pred_region
        _
      $region20: #{unet_forward.16} parent=11 // pred_fallthru
        _
      // Predicated region
      $region21: #{unet_forward.16} parent=11 // pred_check
        %p146 = pneg %p99
      $region22: #{unet_forward.16} parent=11 // pred_check_branch
        %148 = sbr.rel (%p146) target = $region24
      $region23: #{unet_forward.16} parent=11 // pred_region
        _
      $region24: #{unet_forward.16} parent=11 // pred_fallthru
        _
    $region12: #{unet_forward.16} parent=5 // pred_fallthru
      _
    %p149 = scmp.lt.s32.totalorder %s10, 2
    // Predicated region
    $region25: #{unet_forward.16} parent=5 // pred_check
      %p150 = pneg %p149
    $region26: #{unet_forward.16} parent=5 // pred_check_branch
      %152 = sbr.rel (%p150) target = $region28
    $region27: #{unet_forward.16} parent=5 // pred_region
      // Predicated region
      $region29: #{unet_forward.16} parent=27 // pred_check
        %p153 = pneg %p30
      $region30: #{unet_forward.16} parent=27 // pred_check_branch
        %155 = sbr.rel (%p153) target = $region32
      $region31: #{unet_forward.16} parent=27 // pred_region
        %s156 = smul.u32 2, %s10
        %p157 = scmp.lt.s32.totalorder %s156, 3
        %s158 = scalar_select %p157, %s156, 3
        %s159 = smul.addr %s158, 9
        %s160 = smul.addr %s159, 4
        %s161 = scalar_lea.vmem %s0, %s160
        %s162 = smul.u32 2, %s10
      $region32: #{unet_forward.16} parent=27 // pred_fallthru
        _
    $region28: #{unet_forward.16} parent=5 // pred_fallthru
      _
    %p163 = scmp.le.s32.totalorder 1, %s10
    %p164 = scmp.lt.s32.totalorder %s10, 3
    %p165 = pnand %p163, %p164
    %p166 = pneg %p165
    // Predicated region
    $region33: #{unet_forward.16} parent=5 // pred_check
      _
    $region34: #{unet_forward.16} parent=5 // pred_check_branch
      %168 = sbr.rel (%p165) target = $region36
    $region35: #{unet_forward.16} parent=5 // pred_region
      %s169 = ssub.s32 %s10, 1
      %s170 = smul.u32 2, %s15
      %p171 = scmp.lt.s32.totalorder %s170, 3
      %s172 = scalar_select %p171, %s170, 3
      %s173 = smul.addr %s172, 9
      %s174 = smul.addr %s173, 4
      %s175 = scalar_lea.vmem %s0, %s174
      %p176 = pneg %p36
      %p177 = pneg %p33
      %p178 = pneg %p57
      %p179 = pneg %p54
      %p180 = pneg %p78
      %p181 = pneg %p75
      %p182 = pneg %p99
      %p183 = pneg %p96
      %p184 = pneg %p125
      %p185 = pneg %p122
      %s186 = smul.u32 2, %s15
      %p187 = scmp.lt.s32.totalorder %s186, 3
      %s188 = scalar_select %p187, %s186, 3
      %s189 = smul.addr %s188, 4
      %s190 = scalar_lea.vmem %s4, %s189
      %s191 = smul.u32 2, %s15
      %p192 = scmp.lt.s32.totalorder %s191, 3
      %s193 = scalar_select %p192, %s191, 3
      %s194 = smul.addr %s193, 9
      %s195 = smul.addr %s194, 4
      %s196 = scalar_lea.vmem %s0, %s195
      %s197 = smul.u32 2, %s15
      %s198 = smul.u32 2, %s15
      %p199 = scmp.lt.s32.totalorder %s198, 3
      %s200 = scalar_select %p199, %s198, 3
      %s201 = smul.addr %s200, 4
      %s202 = scalar_lea.vmem %s4, %s201
      %s203 = smul.u32 2, %s15
      %v205 = vld [vmem:[%s196] sm:$0xff]
      %v206 = vld [vmem:[%s196 + $0x8] sm:$0xff]
      %v207 = vld [vmem:[%s196 + $0x10] sm:$0xff]
      %v208 = vld [vmem:[%s196 + $0x18] sm:$0xff]
      %v209 = vld [vmem:[%s196 + $0x20] sm:$0xf]
      %v210 = vld [vmem:[%s196 + $0x24] sm:$0xff]
      %v211 = vld [vmem:[%s196 + $0x2c] sm:$0xff]
      %v212 = vld [vmem:[%s196 + $0x34] sm:$0xff]
      %v213 = vld [vmem:[%s196 + $0x3c] sm:$0xff]
      %v214 = vld [vmem:[%s196 + $0x44] sm:$0xf]
      %v215 = vld [vmem:[%s1] sm:$0xf]
      %v216 = vld [vmem:[%s1 + $0x4] sm:$0xf]
      %v217 = vld [vmem:[%s1 + $0x8] sm:$0xf]
      %v218 = vld [vmem:[%s1 + $0xc] sm:$0xf]
      %v219 = vld [vmem:[%s1 + $0x10] sm:$0xf]
      %v220 = vld [vmem:[%s1 + $0x14] sm:$0xf]
      %v221 = vld [vmem:[%s1 + $0x18] sm:$0xf]
      %v222 = vld [vmem:[%s1 + $0x1c] sm:$0xf]
      %v223 = vld [vmem:[%s1 + $0x20] sm:$0xf]
      %v224 = vld [vmem:[%s1 + $0x24] sm:$0xf]
      %v225 = vld [vmem:[%s1 + $0x28] sm:$0xf]
      %v226 = vld [vmem:[%s1 + $0x2c] sm:$0xf]
      %v227 = vld [vmem:[%s1 + $0x30] sm:$0xf]
      %v228 = vld [vmem:[%s1 + $0x34] sm:$0xf]
      %v229 = vld [vmem:[%s1 + $0x38] sm:$0xf]
      %v230 = vld [vmem:[%s1 + $0x3c] sm:$0xf]
      %v231 = vld [vmem:[%s1 + $0x40] sm:$0xf]
      %v232 = vld [vmem:[%s1 + $0x44] sm:$0xf]
      %v233 = vld [vmem:[%s1 + $0x48] sm:$0xf]
      %v234 = vld [vmem:[%s1 + $0x4c] sm:$0xf]
      %v235 = vld [vmem:[%s1 + $0x50] sm:$0xf]
      %v236 = vld [vmem:[%s1 + $0x54] sm:$0xf]
      %v237 = vld [vmem:[%s1 + $0x58] sm:$0xf]
      %v238 = vld [vmem:[%s1 + $0x5c] sm:$0xf]
      %v239 = vld [vmem:[%s1 + $0x60] sm:$0xf]
      %v240 = vld [vmem:[%s1 + $0x64] sm:$0xf]
      %v241 = vld [vmem:[%s1 + $0x68] sm:$0xf]
      %v242 = vld [vmem:[%s1 + $0x6c] sm:$0xf]
      %v243 = vld [vmem:[%s1 + $0x70] sm:$0xf]
      %v244 = vld [vmem:[%s1 + $0x74] sm:$0xf]
      %v245 = vld [vmem:[%s1 + $0x78] sm:$0xf]
      %v246 = vld [vmem:[%s1 + $0x7c] sm:$0xf]
      %v247 = vld [vmem:[%s1 + $0x80] sm:$0xf]
      %v248 = vld [vmem:[%s1 + $0x84] sm:$0xf]
      %v249 = vld [vmem:[%s1 + $0x88] sm:$0xf]
      %v250 = vld [vmem:[%s1 + $0x8c] sm:$0xf]
      %v251 = vld [vmem:[%s1 + $0x90] sm:$0xf]
      %v252 = vld [vmem:[%s1 + $0x94] sm:$0xf]
      %v253 = vld [vmem:[%s1 + $0x98] sm:$0xf]
      %v254 = vld [vmem:[%s1 + $0x9c] sm:$0xf]
      %v255 = vld [vmem:[%s1 + $0xa0] sm:$0xf]
      %v256 = vld [vmem:[%s1 + $0xa4] sm:$0xf]
      %v257 = vld [vmem:[%s1 + $0xa8] sm:$0xf]
      %v258 = vld [vmem:[%s1 + $0xac] sm:$0xf]
      %v259 = vld [vmem:[%s1 + $0xb0] sm:$0xf]
      %v260 = vld [vmem:[%s1 + $0xb4] sm:$0xf]
      %v261 = vld [vmem:[%s1 + $0xb8] sm:$0xf]
      %v262 = vld [vmem:[%s1 + $0xbc] sm:$0xf]
      %v263 = vld [vmem:[%s1 + $0xc0] sm:$0xf]
      %v264 = vld [vmem:[%s1 + $0xc4] sm:$0xf]
      %v265 = vld [vmem:[%s1 + $0xc8] sm:$0xf]
      %v266 = vld [vmem:[%s1 + $0xcc] sm:$0xf]
      %v267 = vld [vmem:[%s1 + $0xd0] sm:$0xf]
      %v268 = vld [vmem:[%s1 + $0xd4] sm:$0xf]
      %v269 = vld [vmem:[%s1 + $0xd8] sm:$0xf]
      %v270 = vld [vmem:[%s1 + $0xdc] sm:$0xf]
      %v271 = vld [vmem:[%s1 + $0xe0] sm:$0xf]
      %v272 = vld [vmem:[%s1 + $0xe4] sm:$0xf]
      %v273 = vld [vmem:[%s1 + $0xe8] sm:$0xf]
      %v274 = vld [vmem:[%s1 + $0xec] sm:$0xf]
      %v275 = vld [vmem:[%s1 + $0xf0] sm:$0xf]
      %v276 = vld [vmem:[%s1 + $0xf4] sm:$0xf]
      %v277 = vld [vmem:[%s1 + $0xf8] sm:$0xf]
      %v278 = vld [vmem:[%s1 + $0xfc] sm:$0xf]
      %v279 = vld [vmem:[%s1 + $0x100] sm:$0xf]
      %v280 = vld [vmem:[%s1 + $0x104] sm:$0xf]
      %v281 = vld [vmem:[%s1 + $0x108] sm:$0xf]
      %v282 = vld [vmem:[%s1 + $0x10c] sm:$0xf]
      %v283 = vld [vmem:[%s1 + $0x110] sm:$0xf]
      %v284 = vld [vmem:[%s1 + $0x114] sm:$0xf]
      %v285 = vld [vmem:[%s1 + $0x118] sm:$0xf]
      %v286 = vld [vmem:[%s1 + $0x11c] sm:$0xf]
      %v287 = vld [vmem:[%s1 + $0x120] sm:$0xf]
      %v288 = vld [vmem:[%s1 + $0x124] sm:$0xf]
      %v289 = vld [vmem:[%s1 + $0x128] sm:$0xf]
      %v290 = vld [vmem:[%s1 + $0x12c] sm:$0xf]
      %v291 = vld [vmem:[%s1 + $0x130] sm:$0xf]
      %v292 = vld [vmem:[%s1 + $0x134] sm:$0xf]
      %v293 = vld [vmem:[%s1 + $0x138] sm:$0xf]
      %v294 = vld [vmem:[%s1 + $0x13c] sm:$0xf]
      %v295 = vld [vmem:[%s1 + $0x140] sm:$0xf]
      %v296 = vld [vmem:[%s1 + $0x144] sm:$0xf]
      %v297 = vld [vmem:[%s1 + $0x148] sm:$0xf]
      %v298 = vld [vmem:[%s1 + $0x14c] sm:$0xf]
      %v299 = vld [vmem:[%s1 + $0x150] sm:$0xf]
      %v300 = vld [vmem:[%s1 + $0x154] sm:$0xf]
      %v301 = vld [vmem:[%s1 + $0x158] sm:$0xf]
      %v302 = vld [vmem:[%s1 + $0x15c] sm:$0xf]
      %v303 = vld [vmem:[%s1 + $0x160] sm:$0xf]
      %v304 = vld [vmem:[%s1 + $0x164] sm:$0xf]
      %v305 = vld [vmem:[%s1 + $0x168] sm:$0xf]
      %v306 = vld [vmem:[%s1 + $0x16c] sm:$0xf]
      %v307 = vld [vmem:[%s1 + $0x170] sm:$0xf]
      %v308 = vld [vmem:[%s1 + $0x174] sm:$0xf]
      %v309 = vld [vmem:[%s1 + $0x178] sm:$0xf]
      %v310 = vld [vmem:[%s1 + $0x17c] sm:$0xf]
      %v311 = vld [vmem:[%s1 + $0x180] sm:$0xf]
      %v312 = vld [vmem:[%s1 + $0x184] sm:$0xf]
      %v313 = vld [vmem:[%s1 + $0x188] sm:$0xf]
      %v314 = vld [vmem:[%s1 + $0x18c] sm:$0xf]
      %v315 = vld [vmem:[%s1 + $0x190] sm:$0xf]
      %v316 = vld [vmem:[%s1 + $0x194] sm:$0xf]
      %v317 = vld [vmem:[%s1 + $0x198] sm:$0xf]
      %v318 = vld [vmem:[%s1 + $0x19c] sm:$0xf]
      %v319 = vld [vmem:[%s1 + $0x1a0] sm:$0xf]
      %v320 = vld [vmem:[%s1 + $0x1a4] sm:$0xf]
      %v321 = vld [vmem:[%s1 + $0x1a8] sm:$0xf]
      %v322 = vld [vmem:[%s1 + $0x1ac] sm:$0xf]
      %v323 = vld [vmem:[%s1 + $0x1b0] sm:$0xf]
      %v324 = vld [vmem:[%s1 + $0x1b4] sm:$0xf]
      %v325 = vld [vmem:[%s1 + $0x1b8] sm:$0xf]
      %v326 = vld [vmem:[%s1 + $0x1bc] sm:$0xf]
      %v327 = vld [vmem:[%s1 + $0x1c0] sm:$0xf]
      %v328 = vld [vmem:[%s1 + $0x1c4] sm:$0xf]
      %v329 = vld [vmem:[%s1 + $0x1c8] sm:$0xf]
      %v330 = vld [vmem:[%s1 + $0x1cc] sm:$0xf]
      %v331 = vld [vmem:[%s1 + $0x1d0] sm:$0xf]
      %v332 = vld [vmem:[%s1 + $0x1d4] sm:$0xf]
      %v333 = vld [vmem:[%s1 + $0x1d8] sm:$0xf]
      %v334 = vld [vmem:[%s1 + $0x1dc] sm:$0xf]
      %v335 = vld [vmem:[%s1 + $0x1e0] sm:$0xf]
      %v336 = vld [vmem:[%s1 + $0x1e4] sm:$0xf]
      %v337 = vld [vmem:[%s1 + $0x1e8] sm:$0xf]
      %v338 = vld [vmem:[%s1 + $0x1ec] sm:$0xf]
      %v339 = vld [vmem:[%s1 + $0x1f0] sm:$0xf]
      %v340 = vld [vmem:[%s1 + $0x1f4] sm:$0xf]
      %v341 = vld [vmem:[%s1 + $0x1f8] sm:$0xf]
      %v342 = vld [vmem:[%s1 + $0x1fc] sm:$0xf]
      %v343 = vld [vmem:[%s1 + $0x200] sm:$0xf]
      %v344 = vld [vmem:[%s1 + $0x204] sm:$0xf]
      %v345 = vld [vmem:[%s1 + $0x208] sm:$0xf]
      %v346 = vld [vmem:[%s1 + $0x20c] sm:$0xf]
      %v347 = vld [vmem:[%s1 + $0x210] sm:$0xf]
      %v348 = vld [vmem:[%s1 + $0x214] sm:$0xf]
      %v349 = vld [vmem:[%s1 + $0x218] sm:$0xf]
      %v350 = vld [vmem:[%s1 + $0x21c] sm:$0xf]
      %v351 = vld [vmem:[%s1 + $0x220] sm:$0xf]
      %v352 = vld [vmem:[%s1 + $0x224] sm:$0xf]
      %v353 = vld [vmem:[%s1 + $0x228] sm:$0xf]
      %v354 = vld [vmem:[%s1 + $0x22c] sm:$0xf]
      %v355 = vld [vmem:[%s1 + $0x230] sm:$0xf]
      %v356 = vld [vmem:[%s1 + $0x234] sm:$0xf]
      %v357 = vld [vmem:[%s1 + $0x238] sm:$0xf]
      %v358 = vld [vmem:[%s1 + $0x23c] sm:$0xf]
      %v369 = vunpack.c.l.b16 %v205
      %v370 = vunpack.c.h.b16 %v205
      %v371 = vunpack.c.l.b16 %v206
      %v372 = vunpack.c.h.b16 %v206
      %v373 = vunpack.c.l.b16 %v207
      %v374 = vunpack.c.h.b16 %v207
      %v375 = vunpack.c.l.b16 %v208
      %v376 = vunpack.c.h.b16 %v208
      %v377 = vunpack.c.l.b16 %v209
      %v378 = vunpack.c.l.b16 %v210
      %v379 = vunpack.c.h.b16 %v210
      %v380 = vunpack.c.l.b16 %v211
      %v381 = vunpack.c.h.b16 %v211
      %v382 = vunpack.c.l.b16 %v212
      %v383 = vunpack.c.h.b16 %v212
      %v384 = vunpack.c.l.b16 %v213
      %v385 = vunpack.c.h.b16 %v213
      %v386 = vunpack.c.l.b16 %v214
      %v387 = vpack.c.b16 %v378, %v369
      %v388 = vpack.c.b16 %v379, %v370
      %v389 = vpack.c.b16 %v380, %v371
      %v390 = vpack.c.b16 %v381, %v372
      %v391 = vpack.c.b16 %v382, %v373
      %v392 = vpack.c.b16 %v383, %v374
      %v393 = vpack.c.b16 %v384, %v375
      %v394 = vpack.c.b16 %v385, %v376
      %v395 = vpack.c.b16 %v386, %v377
      %v549 = vunpack.c.l.b16 %v215
      %v550 = vunpack.c.l.b16 %v216
      %v551 = vunpack.c.l.b16 %v217
      %v552 = vunpack.c.l.b16 %v218
      %v553 = vunpack.c.l.b16 %v219
      %v554 = vunpack.c.l.b16 %v220
      %v555 = vunpack.c.l.b16 %v221
      %v556 = vunpack.c.l.b16 %v222
      %v557 = vunpack.c.l.b16 %v223
      %v558 = vunpack.c.l.b16 %v224
      %v559 = vunpack.c.l.b16 %v225
      %v560 = vunpack.c.l.b16 %v226
      %v561 = vunpack.c.l.b16 %v227
      %v562 = vunpack.c.l.b16 %v228
      %v563 = vunpack.c.l.b16 %v229
      %v564 = vunpack.c.l.b16 %v230
      %v565 = vunpack.c.l.b16 %v231
      %v566 = vunpack.c.l.b16 %v232
      %v567 = vunpack.c.l.b16 %v233
      %v568 = vunpack.c.l.b16 %v234
      %v569 = vunpack.c.l.b16 %v235
      %v570 = vunpack.c.l.b16 %v236
      %v571 = vunpack.c.l.b16 %v237
      %v572 = vunpack.c.l.b16 %v238
      %v573 = vunpack.c.l.b16 %v239
      %v574 = vunpack.c.l.b16 %v240
      %v575 = vunpack.c.l.b16 %v241
      %v576 = vunpack.c.l.b16 %v242
      %v577 = vunpack.c.l.b16 %v243
      %v578 = vunpack.c.l.b16 %v244
      %v579 = vunpack.c.l.b16 %v245
      %v580 = vunpack.c.l.b16 %v246
      %v581 = vunpack.c.l.b16 %v247
      %v582 = vunpack.c.l.b16 %v248
      %v583 = vunpack.c.l.b16 %v249
      %v584 = vunpack.c.l.b16 %v250
      %v585 = vunpack.c.l.b16 %v251
      %v586 = vunpack.c.l.b16 %v252
      %v587 = vunpack.c.l.b16 %v253
      %v588 = vunpack.c.l.b16 %v254
      %v589 = vunpack.c.l.b16 %v255
      %v590 = vunpack.c.l.b16 %v256
      %v591 = vunpack.c.l.b16 %v257
      %v592 = vunpack.c.l.b16 %v258
      %v593 = vunpack.c.l.b16 %v259
      %v594 = vunpack.c.l.b16 %v260
      %v595 = vunpack.c.l.b16 %v261
      %v596 = vunpack.c.l.b16 %v262
      %v597 = vunpack.c.l.b16 %v263
      %v598 = vunpack.c.l.b16 %v264
      %v599 = vunpack.c.l.b16 %v265
      %v600 = vunpack.c.l.b16 %v266
      %v601 = vunpack.c.l.b16 %v267
      %v602 = vunpack.c.l.b16 %v268
      %v603 = vunpack.c.l.b16 %v269
      %v604 = vunpack.c.l.b16 %v270
      %v605 = vunpack.c.l.b16 %v271
      %v606 = vunpack.c.l.b16 %v272
      %v607 = vunpack.c.l.b16 %v273
      %v608 = vunpack.c.l.b16 %v274
      %v609 = vunpack.c.l.b16 %v275
      %v610 = vunpack.c.l.b16 %v276
      %v611 = vunpack.c.l.b16 %v277
      %v612 = vunpack.c.l.b16 %v278
      %v613 = vunpack.c.l.b16 %v279
      %v614 = vunpack.c.l.b16 %v280
      %v615 = vunpack.c.l.b16 %v281
      %v616 = vunpack.c.l.b16 %v282
      %v617 = vunpack.c.l.b16 %v283
      %v618 = vunpack.c.l.b16 %v284
      %v619 = vunpack.c.l.b16 %v285
      %v620 = vunpack.c.l.b16 %v286
      %v621 = vunpack.c.l.b16 %v287
      %v622 = vunpack.c.l.b16 %v288
      %v623 = vunpack.c.l.b16 %v289
      %v624 = vunpack.c.l.b16 %v290
      %v625 = vunpack.c.l.b16 %v291
      %v626 = vunpack.c.l.b16 %v292
      %v627 = vunpack.c.l.b16 %v293
      %v628 = vunpack.c.l.b16 %v294
      %v629 = vunpack.c.l.b16 %v295
      %v630 = vunpack.c.l.b16 %v296
      %v631 = vunpack.c.l.b16 %v297
      %v632 = vunpack.c.l.b16 %v298
      %v633 = vunpack.c.l.b16 %v299
      %v634 = vunpack.c.l.b16 %v300
      %v635 = vunpack.c.l.b16 %v301
      %v636 = vunpack.c.l.b16 %v302
      %v637 = vunpack.c.l.b16 %v303
      %v638 = vunpack.c.l.b16 %v304
      %v639 = vunpack.c.l.b16 %v305
      %v640 = vunpack.c.l.b16 %v306
      %v641 = vunpack.c.l.b16 %v307
      %v642 = vunpack.c.l.b16 %v308
      %v643 = vunpack.c.l.b16 %v309
      %v644 = vunpack.c.l.b16 %v310
      %v645 = vunpack.c.l.b16 %v311
      %v646 = vunpack.c.l.b16 %v312
      %v647 = vunpack.c.l.b16 %v313
      %v648 = vunpack.c.l.b16 %v314
      %v649 = vunpack.c.l.b16 %v315
      %v650 = vunpack.c.l.b16 %v316
      %v651 = vunpack.c.l.b16 %v317
      %v652 = vunpack.c.l.b16 %v318
      %v653 = vunpack.c.l.b16 %v319
      %v654 = vunpack.c.l.b16 %v320
      %v655 = vunpack.c.l.b16 %v321
      %v656 = vunpack.c.l.b16 %v322
      %v657 = vunpack.c.l.b16 %v323
      %v658 = vunpack.c.l.b16 %v324
      %v659 = vunpack.c.l.b16 %v325
      %v660 = vunpack.c.l.b16 %v326
      %v661 = vunpack.c.l.b16 %v327
      %v662 = vunpack.c.l.b16 %v328
      %v663 = vunpack.c.l.b16 %v329
      %v664 = vunpack.c.l.b16 %v330
      %v665 = vunpack.c.l.b16 %v331
      %v666 = vunpack.c.l.b16 %v332
      %v667 = vunpack.c.l.b16 %v333
      %v668 = vunpack.c.l.b16 %v334
      %v669 = vunpack.c.l.b16 %v335
      %v670 = vunpack.c.l.b16 %v336
      %v671 = vunpack.c.l.b16 %v337
      %v672 = vunpack.c.l.b16 %v338
      %v673 = vunpack.c.l.b16 %v339
      %v674 = vunpack.c.l.b16 %v340
      %v675 = vunpack.c.l.b16 %v341
      %v676 = vunpack.c.l.b16 %v342
      %v677 = vunpack.c.l.b16 %v343
      %v678 = vunpack.c.l.b16 %v344
      %v679 = vunpack.c.l.b16 %v345
      %v680 = vunpack.c.l.b16 %v346
      %v681 = vunpack.c.l.b16 %v347
      %v682 = vunpack.c.l.b16 %v348
      %v683 = vunpack.c.l.b16 %v349
      %v684 = vunpack.c.l.b16 %v350
      %v685 = vunpack.c.l.b16 %v351
      %v686 = vunpack.c.l.b16 %v352
      %v687 = vunpack.c.l.b16 %v353
      %v688 = vunpack.c.l.b16 %v354
      %v689 = vunpack.c.l.b16 %v355
      %v690 = vunpack.c.l.b16 %v356
      %v691 = vunpack.c.l.b16 %v357
      %v692 = vunpack.c.l.b16 %v358
      %v693 = vpack.c.b16 %v550, %v549
      %v694 = vpack.c.b16 %v552, %v551
      %v695 = vpack.c.b16 %v554, %v553
      %v696 = vpack.c.b16 %v556, %v555
      %v697 = vpack.c.b16 %v558, %v557
      %v698 = vpack.c.b16 %v560, %v559
      %v699 = vpack.c.b16 %v562, %v561
      %v700 = vpack.c.b16 %v564, %v563
      %v701 = vpack.c.b16 %v566, %v565
      %v702 = vpack.c.b16 %v568, %v567
      %v703 = vpack.c.b16 %v570, %v569
      %v704 = vpack.c.b16 %v572, %v571
      %v705 = vpack.c.b16 %v574, %v573
      %v706 = vpack.c.b16 %v576, %v575
      %v707 = vpack.c.b16 %v578, %v577
      %v708 = vpack.c.b16 %v580, %v579
      %v709 = vpack.c.b16 %v582, %v581
      %v710 = vpack.c.b16 %v584, %v583
      %v711 = vpack.c.b16 %v586, %v585
      %v712 = vpack.c.b16 %v588, %v587
      %v713 = vpack.c.b16 %v590, %v589
      %v714 = vpack.c.b16 %v592, %v591
      %v715 = vpack.c.b16 %v594, %v593
      %v716 = vpack.c.b16 %v596, %v595
      %v717 = vpack.c.b16 %v598, %v597
      %v718 = vpack.c.b16 %v600, %v599
      %v719 = vpack.c.b16 %v602, %v601
      %v720 = vpack.c.b16 %v604, %v603
      %v721 = vpack.c.b16 %v606, %v605
      %v722 = vpack.c.b16 %v608, %v607
      %v723 = vpack.c.b16 %v610, %v609
      %v724 = vpack.c.b16 %v612, %v611
      %v725 = vpack.c.b16 %v614, %v613
      %v726 = vpack.c.b16 %v616, %v615
      %v727 = vpack.c.b16 %v618, %v617
      %v728 = vpack.c.b16 %v620, %v619
      %v729 = vpack.c.b16 %v622, %v621
      %v730 = vpack.c.b16 %v624, %v623
      %v731 = vpack.c.b16 %v626, %v625
      %v732 = vpack.c.b16 %v628, %v627
      %v733 = vpack.c.b16 %v630, %v629
      %v734 = vpack.c.b16 %v632, %v631
      %v735 = vpack.c.b16 %v634, %v633
      %v736 = vpack.c.b16 %v636, %v635
      %v737 = vpack.c.b16 %v638, %v637
      %v738 = vpack.c.b16 %v640, %v639
      %v739 = vpack.c.b16 %v642, %v641
      %v740 = vpack.c.b16 %v644, %v643
      %v741 = vpack.c.b16 %v646, %v645
      %v742 = vpack.c.b16 %v648, %v647
      %v743 = vpack.c.b16 %v650, %v649
      %v744 = vpack.c.b16 %v652, %v651
      %v745 = vpack.c.b16 %v654, %v653
      %v746 = vpack.c.b16 %v656, %v655
      %v747 = vpack.c.b16 %v658, %v657
      %v748 = vpack.c.b16 %v660, %v659
      %v749 = vpack.c.b16 %v662, %v661
      %v750 = vpack.c.b16 %v664, %v663
      %v751 = vpack.c.b16 %v666, %v665
      %v752 = vpack.c.b16 %v668, %v667
      %v753 = vpack.c.b16 %v670, %v669
      %v754 = vpack.c.b16 %v672, %v671
      %v755 = vpack.c.b16 %v674, %v673
      %v756 = vpack.c.b16 %v676, %v675
      %v757 = vpack.c.b16 %v678, %v677
      %v758 = vpack.c.b16 %v680, %v679
      %v759 = vpack.c.b16 %v682, %v681
      %v760 = vpack.c.b16 %v684, %v683
      %v761 = vpack.c.b16 %v686, %v685
      %v762 = vpack.c.b16 %v688, %v687
      %v763 = vpack.c.b16 %v690, %v689
      %v764 = vpack.c.b16 %v692, %v691
      %837 = vmatprep.subr.bf16.mxu0 0
      %838 = vmatpush1.bf16.msra.mxu0 %v700
      %839 = vmatprep.subr.bf16.mxu0 0
      %840 = vmatpush1.bf16.msra.mxu0 %v699
      %841 = vmatprep.subr.bf16.mxu0 0
      %842 = vmatpush1.bf16.msra.mxu0 %v698
      %843 = vmatprep.subr.bf16.mxu0 0
      %844 = vmatpush1.bf16.msra.mxu0 %v697
      %845 = vmatprep.subr.bf16.mxu0 0
      %846 = vmatpush1.bf16.msra.mxu0 %v696
      %847 = vmatprep.subr.bf16.mxu0 0
      %848 = vmatpush1.bf16.msra.mxu0 %v695
      %849 = vmatprep.subr.bf16.mxu0 0
      %850 = vmatpush1.bf16.msra.mxu0 %v694
      %851 = vmatprep.subr.bf16.mxu0 0
      %852 = vmatpush1.bf16.msra.mxu0 %v693
      %853 = vmatprep.subr.bf16.mxu0 0
      %854 = vmatpush2.bf16.msra.mxu0 %v708
      %855 = vmatprep.subr.bf16.mxu0 0
      %856 = vmatpush2.bf16.msra.mxu0 %v707
      %857 = vmatprep.subr.bf16.mxu0 0
      %858 = vmatpush2.bf16.msra.mxu0 %v706
      %859 = vmatprep.subr.bf16.mxu0 0
      %860 = vmatpush2.bf16.msra.mxu0 %v705
      %861 = vmatprep.subr.bf16.mxu0 0
      %862 = vmatpush2.bf16.msra.mxu0 %v704
      %863 = vmatprep.subr.bf16.mxu0 0
      %864 = vmatpush2.bf16.msra.mxu0 %v703
      %865 = vmatprep.subr.bf16.mxu0 0
      %866 = vmatpush2.bf16.msra.mxu0 %v702
      %867 = vmatprep.subr.bf16.mxu0 0
      %868 = vmatpush2.bf16.msra.mxu0 %v701
      %869 = vmatprep.mubr.bf16.mxu0 %v388
      %870 = vmatmul.mubr.bf16.gmra.mxu0 %v387
      %v871 = vpop.f32.mrf.mxu0
      %v872 = vadd.f32 0.0, %v871
      %v873 = vpop.f32.mrf.mxu0
      %v874 = vpop.f32.mrf.mxu0
      %v875 = vadd.f32 0.0, %v874
      %v876 = vpop.f32.mrf.mxu0
      %877 = vdwg.mxu0
      %878 = vmatprep.subr.bf16.mxu0 0
      %879 = vmatpush1.bf16.msra.mxu0 %v716
      %880 = vmatprep.subr.bf16.mxu0 0
      %881 = vmatpush1.bf16.msra.mxu0 %v715
      %882 = vmatprep.subr.bf16.mxu0 0
      %883 = vmatpush1.bf16.msra.mxu0 %v714
      %884 = vmatprep.subr.bf16.mxu0 0
      %885 = vmatpush1.bf16.msra.mxu0 %v713
      %886 = vmatprep.subr.bf16.mxu0 0
      %887 = vmatpush1.bf16.msra.mxu0 %v712
      %888 = vmatprep.subr.bf16.mxu0 0
      %889 = vmatpush1.bf16.msra.mxu0 %v711
      %890 = vmatprep.subr.bf16.mxu0 0
      %891 = vmatpush1.bf16.msra.mxu0 %v710
      %892 = vmatprep.subr.bf16.mxu0 0
      %893 = vmatpush1.bf16.msra.mxu0 %v709
      %894 = vmatprep.subr.bf16.mxu0 0
      %895 = vmatpush2.bf16.msra.mxu0 %v724
      %896 = vmatprep.subr.bf16.mxu0 0
      %897 = vmatpush2.bf16.msra.mxu0 %v723
      %898 = vmatprep.subr.bf16.mxu0 0
      %899 = vmatpush2.bf16.msra.mxu0 %v722
      %900 = vmatprep.subr.bf16.mxu0 0
      %901 = vmatpush2.bf16.msra.mxu0 %v721
      %902 = vmatprep.subr.bf16.mxu0 0
      %903 = vmatpush2.bf16.msra.mxu0 %v720
      %904 = vmatprep.subr.bf16.mxu0 0
      %905 = vmatpush2.bf16.msra.mxu0 %v719
      %906 = vmatprep.subr.bf16.mxu0 0
      %907 = vmatpush2.bf16.msra.mxu0 %v718
      %908 = vmatprep.subr.bf16.mxu0 0
      %909 = vmatpush2.bf16.msra.mxu0 %v717
      %910 = vmatprep.mubr.bf16.mxu0 %v390
      %911 = vmatmul.mubr.bf16.gmra.mxu0 %v389
      %v912 = vpop.f32.mrf.mxu0
      %v913 = vadd.f32 %v872, %v912
      %v914 = vpop.f32.mrf.mxu0
      %v915 = vpop.f32.mrf.mxu0
      %v916 = vadd.f32 %v875, %v915
      %v917 = vpop.f32.mrf.mxu0
      %918 = vdwg.mxu0
      %919 = vmatprep.subr.bf16.mxu0 0
      %920 = vmatpush1.bf16.msra.mxu0 %v732
      %921 = vmatprep.subr.bf16.mxu0 0
      %922 = vmatpush1.bf16.msra.mxu0 %v731
      %923 = vmatprep.subr.bf16.mxu0 0
      %924 = vmatpush1.bf16.msra.mxu0 %v730
      %925 = vmatprep.subr.bf16.mxu0 0
      %926 = vmatpush1.bf16.msra.mxu0 %v729
      %927 = vmatprep.subr.bf16.mxu0 0
      %928 = vmatpush1.bf16.msra.mxu0 %v728
      %929 = vmatprep.subr.bf16.mxu0 0
      %930 = vmatpush1.bf16.msra.mxu0 %v727
      %931 = vmatprep.subr.bf16.mxu0 0
      %932 = vmatpush1.bf16.msra.mxu0 %v726
      %933 = vmatprep.subr.bf16.mxu0 0
      %934 = vmatpush1.bf16.msra.mxu0 %v725
      %935 = vmatprep.subr.bf16.mxu0 0
      %936 = vmatpush2.bf16.msra.mxu0 %v740
      %937 = vmatprep.subr.bf16.mxu0 0
      %938 = vmatpush2.bf16.msra.mxu0 %v739
      %939 = vmatprep.subr.bf16.mxu0 0
      %940 = vmatpush2.bf16.msra.mxu0 %v738
      %941 = vmatprep.subr.bf16.mxu0 0
      %942 = vmatpush2.bf16.msra.mxu0 %v737
      %943 = vmatprep.subr.bf16.mxu0 0
      %944 = vmatpush2.bf16.msra.mxu0 %v736
      %945 = vmatprep.subr.bf16.mxu0 0
      %946 = vmatpush2.bf16.msra.mxu0 %v735
      %947 = vmatprep.subr.bf16.mxu0 0
      %948 = vmatpush2.bf16.msra.mxu0 %v734
      %949 = vmatprep.subr.bf16.mxu0 0
      %950 = vmatpush2.bf16.msra.mxu0 %v733
      %951 = vmatprep.mubr.bf16.mxu0 %v392
      %952 = vmatmul.mubr.bf16.gmra.mxu0 %v391
      %v953 = vpop.f32.mrf.mxu0
      %v954 = vadd.f32 %v913, %v953
      %v955 = vpop.f32.mrf.mxu0
      %v956 = vpop.f32.mrf.mxu0
      %v957 = vadd.f32 %v916, %v956
      %v958 = vpop.f32.mrf.mxu0
      %959 = vdwg.mxu0
      %960 = vmatprep.subr.bf16.mxu0 0
      %961 = vmatpush1.bf16.msra.mxu0 %v748
      %962 = vmatprep.subr.bf16.mxu0 0
      %963 = vmatpush1.bf16.msra.mxu0 %v747
      %964 = vmatprep.subr.bf16.mxu0 0
      %965 = vmatpush1.bf16.msra.mxu0 %v746
      %966 = vmatprep.subr.bf16.mxu0 0
      %967 = vmatpush1.bf16.msra.mxu0 %v745
      %968 = vmatprep.subr.bf16.mxu0 0
      %969 = vmatpush1.bf16.msra.mxu0 %v744
      %970 = vmatprep.subr.bf16.mxu0 0
      %971 = vmatpush1.bf16.msra.mxu0 %v743
      %972 = vmatprep.subr.bf16.mxu0 0
      %973 = vmatpush1.bf16.msra.mxu0 %v742
      %974 = vmatprep.subr.bf16.mxu0 0
      %975 = vmatpush1.bf16.msra.mxu0 %v741
      %976 = vmatprep.subr.bf16.mxu0 0
      %977 = vmatpush2.bf16.msra.mxu0 %v756
      %978 = vmatprep.subr.bf16.mxu0 0
      %979 = vmatpush2.bf16.msra.mxu0 %v755
      %980 = vmatprep.subr.bf16.mxu0 0
      %981 = vmatpush2.bf16.msra.mxu0 %v754
      %982 = vmatprep.subr.bf16.mxu0 0
      %983 = vmatpush2.bf16.msra.mxu0 %v753
      %984 = vmatprep.subr.bf16.mxu0 0
      %985 = vmatpush2.bf16.msra.mxu0 %v752
      %986 = vmatprep.subr.bf16.mxu0 0
      %987 = vmatpush2.bf16.msra.mxu0 %v751
      %988 = vmatprep.subr.bf16.mxu0 0
      %989 = vmatpush2.bf16.msra.mxu0 %v750
      %990 = vmatprep.subr.bf16.mxu0 0
      %991 = vmatpush2.bf16.msra.mxu0 %v749
      %992 = vmatprep.mubr.bf16.mxu0 %v394
      %993 = vmatmul.mubr.bf16.gmra.mxu0 %v393
      %v994 = vpop.f32.mrf.mxu0
      %v995 = vadd.f32 %v954, %v994
      %v996 = vpop.f32.mrf.mxu0
      %v997 = vpop.f32.mrf.mxu0
      %v998 = vadd.f32 %v957, %v997
      %v999 = vpop.f32.mrf.mxu0
      %1000 = vdwg.mxu0
      %1001 = vmatprep.subr.bf16.mxu0 0
      %1002 = vmatpush1.bf16.msra.mxu0 %v764
      %1003 = vmatprep.subr.bf16.mxu0 0
      %1004 = vmatpush1.bf16.msra.mxu0 %v763
      %1005 = vmatprep.subr.bf16.mxu0 0
      %1006 = vmatpush1.bf16.msra.mxu0 %v762
      %1007 = vmatprep.subr.bf16.mxu0 0
      %1008 = vmatpush1.bf16.msra.mxu0 %v761
      %1009 = vmatprep.subr.bf16.mxu0 0
      %1010 = vmatpush1.bf16.msra.mxu0 %v760
      %1011 = vmatprep.subr.bf16.mxu0 0
      %1012 = vmatpush1.bf16.msra.mxu0 %v759
      %1013 = vmatprep.subr.bf16.mxu0 0
      %1014 = vmatpush1.bf16.msra.mxu0 %v758
      %1015 = vmatprep.subr.bf16.mxu0 0
      %1016 = vmatpush1.bf16.msra.mxu0 %v757
      %1017 = vmatprep.subr.bf16.mxu0 0
      %1018 = vmatpush2.bf16.msra.mxu0 0
      %1019 = vmatprep.subr.bf16.mxu0 0
      %1020 = vmatpush2.bf16.msra.mxu0 0
      %1021 = vmatprep.subr.bf16.mxu0 0
      %1022 = vmatpush2.bf16.msra.mxu0 0
      %1023 = vmatprep.subr.bf16.mxu0 0
      %1024 = vmatpush2.bf16.msra.mxu0 0
      %1025 = vmatprep.subr.bf16.mxu0 0
      %1026 = vmatpush2.bf16.msra.mxu0 0
      %1027 = vmatprep.subr.bf16.mxu0 0
      %1028 = vmatpush2.bf16.msra.mxu0 0
      %1029 = vmatprep.subr.bf16.mxu0 0
      %1030 = vmatpush2.bf16.msra.mxu0 0
      %1031 = vmatprep.subr.bf16.mxu0 0
      %1032 = vmatpush2.bf16.msra.mxu0 0
      %1033 = vmatprep.mubr.bf16.mxu0 0
      %1034 = vmatmul.mubr.bf16.gmra.mxu0 %v395
      %v1035 = vpop.f32.mrf.mxu0
      %v1036 = vadd.f32 %v995, %v1035
      %v1037 = vpop.f32.mrf.mxu0
      %v1038 = vpop.f32.mrf.mxu0
      %v1039 = vadd.f32 %v998, %v1038
      %v1040 = vpop.f32.mrf.mxu0
      %1041 = vdwg.mxu0
      %v1042 = vld [vmem:[%s2] sm:$0x1]
      %v1044 = vlaneseq
      %v1045 = vshrl.u32 %v1044, 7
      %v1046 = vsub.s32 0, %v1045
      %v1047 = vrot.slane %v1042, %v1046
      %v1049 = vmul.f32 %v1036, %v1047
      %v1050 = vmul.f32 %v1039, %v1047
      %v1051 = vld [vmem:[%s3] sm:$0x1]
      %v1053 = vlaneseq
      %v1054 = vshrl.u32 %v1053, 7
      %v1055 = vsub.s32 0, %v1054
      %v1056 = vrot.slane %v1051, %v1055
      %v1058 = vadd.f32 %v1049, %v1056
      %v1059 = vadd.f32 %v1050, %v1056
      %vm1060 = vcmp.ge.f32.partialorder %v1058, 0.0
      %vm1061 = vcmp.ge.f32.partialorder %v1059, 0.0
      %v1062 = vmul.f32 %v1058, 0.2
      %v1063 = vmul.f32 %v1059, 0.2
      %v1064 = vsel %vm1060, %v1058, %v1062
      %v1065 = vsel %vm1061, %v1059, %v1063
      %v1066 = vpack.c.bf16 %v1065, %v1064
      %v1068 = vunpack.c.l.b16 %v1066
      %v1069 = vunpack.c.h.b16 %v1066
      %v1070 = vpack.c.b16 %v1068, %v1068
      %v1071 = vpack.c.b16 %v1069, %v1069
      %1074 = vst [vmem:[%s202] sm:$0xf] %v1070
      %1075 = vst [vmem:[%s202 + $0x4] sm:$0xf] %v1071
      %s1076 = smul.u32 2, %s15
      %p1077 = scmp.lt.s32.totalorder %s1076, 3
      %s1078 = scalar_select %p1077, %s1076, 3
      %s1079 = smul.addr %s1078, 4
      %s1080 = scalar_lea.vmem %s4, %s1079
      // Predicated region
      $region37: #{unet_forward.16} parent=35 // pred_check
        %p1081 = pneg %p122
      $region38: #{unet_forward.16} parent=35 // pred_check_branch
        %1083 = sbr.rel (%p1081) target = $region40
      $region39: #{unet_forward.16} parent=35 // pred_region
        %s1084 = smul.u32 2, %s15
      $region40: #{unet_forward.16} parent=35 // pred_fallthru
        _
    $region36: #{unet_forward.16} parent=5 // pred_fallthru
      _
    %p1085 = scmp.le.s32.totalorder 2, %s10
    // Predicated region
    $region41: #{unet_forward.16} parent=5 // pred_check
      %p1086 = pneg %p1085
    $region42: #{unet_forward.16} parent=5 // pred_check_branch
      %1088 = sbr.rel (%p1086) target = $region44
    $region43: #{unet_forward.16} parent=5 // pred_region
      %s1089 = ssub.s32 %s10, 2
      // Predicated region
      $region45: #{unet_forward.16} parent=43 // pred_check
        %p1090 = pneg %p128
      $region46: #{unet_forward.16} parent=43 // pred_check_branch
        %1092 = sbr.rel (%p1090) target = $region48
      $region47: #{unet_forward.16} parent=43 // pred_region
        %s1093 = smul.u32 2, %s16
        %p1094 = scmp.lt.s32.totalorder %s1093, 3
        %s1095 = scalar_select %p1094, %s1093, 3
        %s1096 = smul.addr %s1095, 4
        %s1097 = scalar_lea.vmem %s4, %s1096
      $region48: #{unet_forward.16} parent=43 // pred_fallthru
        _
    $region44: #{unet_forward.16} parent=5 // pred_fallthru
      _
  $region6: #{unet_forward.16} parent=0 // loop_footer
    %s14 = sadd.s32 1, %s10
  $region7: #{unet_forward.16} parent=0 // loop_footer_branch
    %9 = sbr.rel target = $region3
  $region8: #{unet_forward.16} parent=0 // loop_exit
    _

// kernel: unet_forward.19
$region0: #{unet_forward.19}
  #allocation0 [shape = 'u32[]', space=smem, size = 0x4, offset = 0x4, fixed_abs, tag = 'smem constant byte address 0x4 - core index']
  #allocation1 [shape = 'u32[144,128]{1,0:T(1,128)}', space=vmem, size = 0x12000, scoped, tag = 'internal scratch']
  %s0 = inlined_call_operand.vmem [shape: bf16[128,1728], index: 0, kind: input, shape index: {}]
  %s1 = inlined_call_operand.vmem [shape: bf16[1728,64], index: 1, kind: input, shape index: {}]
  %s2 = inlined_call_operand.vmem [shape: f32[1,64], index: 2, kind: input, shape index: {}]
  %s3 = inlined_call_operand.vmem [shape: f32[1,64], index: 3, kind: input, shape index: {}]
  %s4 = inlined_call_operand.vmem [shape: bf16[128,64], index: 4, kind: output, shape index: {}]
  %s5 = sld [smem:[#allocation0]]
  $region49: #{unet_forward.19} parent=0
    _
  %s7 = ssub.s32 1, %s5
  %s8 = scalar_select 0, %s7, %s5
  loop: start=0, step=1, limit=4
  $region2: #{unet_forward.19} parent=0 // loop_pre_header
    _
  $region3: #{unet_forward.19} parent=0 // loop_header
    %s10 = sphi 0, %s14
    %p11 = scmp.ge.s32.totalorder %s10, 4
    %s20 = sphi 0, %s22
    %s23 = sphi 0, %s20
    %s24 = sphi 0, %s23
    %s40 = sphi 0, %s24
    %s44 = sphi 0, %s44
    %s46 = sphi 0, %s44
    %s47 = sphi 0, %s46
    %s61 = sphi 0, %s47
    %s65 = sphi 0, %s65
    %s67 = sphi 0, %s65
    %s68 = sphi 0, %s67
    %s82 = sphi 0, %s68
    %s86 = sphi 0, %s86
    %s88 = sphi 0, %s86
    %s89 = sphi 0, %s88
    %s103 = sphi 0, %s89
    %s109 = sphi 0, %s111
    %s112 = sphi 0, %s109
    %s113 = sphi 0, %s112
    %s129 = sphi 0, %s113
  $region4: #{unet_forward.19} parent=0 // loop_header_branch
    %13 = sbr.rel (%p11) target = $region8
  $region5: #{unet_forward.19} parent=0 // loop_body
    %s15 = ssub.s32 %s10, 1
    %s16 = ssub.s32 %s10, 2
    %s17 = sadd.s32 %s10, 1
    %s18 = ssub.s32 %s10, %s17
    %p19 = scmp.eq.s32.totalorder %s18, 0
    %s21 = sadd.s32 %s20, 1
    %s22 = scalar_select %p19, %s20, %s21
    %p25 = pneg %p19
    %p26 = scmp.eq.s32.totalorder %s10, 1
    %p27 = por %p25, %p26
    %p28 = scmp.ne.s32.totalorder %s20, %s23
    %p29 = scmp.eq.s32.totalorder %s10, 0
    %p30 = por %p28, %p29
    %p31 = scmp.ne.s32.totalorder %s20, %s23
    %p32 = scmp.eq.s32.totalorder %s15, 1
    %p33 = por %p31, %p32
    %p34 = scmp.ne.s32.totalorder %s23, %s24
    %p35 = scmp.eq.s32.totalorder %s15, 0
    %p36 = por %p34, %p35
    %p37 = scmp.ne.s32.totalorder %s23, %s24
    %p38 = scmp.eq.s32.totalorder %s16, 1
    %p39 = por %p37, %p38
    %p41 = scmp.ne.s32.totalorder %s24, %s40
    %p42 = scmp.eq.s32.totalorder %s16, 0
    %p43 = por %p41, %p42
    %s45 = sadd.s32 %s44, 1
    %p48 = scmp.eq.s32.totalorder %s10, 1
    %p49 = scmp.ne.s32.totalorder %s44, %s46
    %p50 = scmp.eq.s32.totalorder %s10, 0
    %p51 = por %p49, %p50
    %p52 = scmp.ne.s32.totalorder %s44, %s46
    %p53 = scmp.eq.s32.totalorder %s15, 1
    %p54 = por %p52, %p53
    %p55 = scmp.ne.s32.totalorder %s46, %s47
    %p56 = scmp.eq.s32.totalorder %s15, 0
    %p57 = por %p55, %p56
    %p58 = scmp.ne.s32.totalorder %s46, %s47
    %p59 = scmp.eq.s32.totalorder %s16, 1
    %p60 = por %p58, %p59
    %p62 = scmp.ne.s32.totalorder %s47, %s61
    %p63 = scmp.eq.s32.totalorder %s16, 0
    %p64 = por %p62, %p63
    %s66 = sadd.s32 %s65, 1
    %p69 = scmp.eq.s32.totalorder %s10, 1
    %p70 = scmp.ne.s32.totalorder %s65, %s67
    %p71 = scmp.eq.s32.totalorder %s10, 0
    %p72 = por %p70, %p71
    %p73 = scmp.ne.s32.totalorder %s65, %s67
    %p74 = scmp.eq.s32.totalorder %s15, 1
    %p75 = por %p73, %p74
    %p76 = scmp.ne.s32.totalorder %s67, %s68
    %p77 = scmp.eq.s32.totalorder %s15, 0
    %p78 = por %p76, %p77
    %p79 = scmp.ne.s32.totalorder %s67, %s68
    %p80 = scmp.eq.s32.totalorder %s16, 1
    %p81 = por %p79, %p80
    %p83 = scmp.ne.s32.totalorder %s68, %s82
    %p84 = scmp.eq.s32.totalorder %s16, 0
    %p85 = por %p83, %p84
    %s87 = sadd.s32 %s86, 1
    %p90 = scmp.eq.s32.totalorder %s10, 1
    %p91 = scmp.ne.s32.totalorder %s86, %s88
    %p92 = scmp.eq.s32.totalorder %s10, 0
    %p93 = por %p91, %p92
    %p94 = scmp.ne.s32.totalorder %s86, %s88
    %p95 = scmp.eq.s32.totalorder %s15, 1
    %p96 = por %p94, %p95
    %p97 = scmp.ne.s32.totalorder %s88, %s89
    %p98 = scmp.eq.s32.totalorder %s15, 0
    %p99 = por %p97, %p98
    %p100 = scmp.ne.s32.totalorder %s88, %s89
    %p101 = scmp.eq.s32.totalorder %s16, 1
    %p102 = por %p100, %p101
    %p104 = scmp.ne.s32.totalorder %s89, %s103
    %p105 = scmp.eq.s32.totalorder %s16, 0
    %p106 = por %p104, %p105
    %s107 = ssub.s32 %s10, %s17
    %p108 = scmp.eq.s32.totalorder %s107, 0
    %s110 = sadd.s32 %s109, 1
    %s111 = scalar_select %p108, %s109, %s110
    %p114 = pneg %p108
    %p115 = scmp.eq.s32.totalorder %s10, 1
    %p116 = por %p114, %p115
    %p117 = scmp.ne.s32.totalorder %s109, %s112
    %p118 = scmp.eq.s32.totalorder %s10, 0
    %p119 = por %p117, %p118
    %p120 = scmp.ne.s32.totalorder %s109, %s112
    %p121 = scmp.eq.s32.totalorder %s15, 1
    %p122 = por %p120, %p121
    %p123 = scmp.ne.s32.totalorder %s112, %s113
    %p124 = scmp.eq.s32.totalorder %s15, 0
    %p125 = por %p123, %p124
    %p126 = scmp.ne.s32.totalorder %s112, %s113
    %p127 = scmp.eq.s32.totalorder %s16, 1
    %p128 = por %p126, %p127
    %p130 = scmp.ne.s32.totalorder %s113, %s129
    %p131 = scmp.eq.s32.totalorder %s16, 0
    %p132 = por %p130, %p131
    %p133 = scmp.le.s32.totalorder 1, %s10
    %p134 = scmp.lt.s32.totalorder %s10, 3
    %p135 = pnand %p133, %p134
    %p136 = pneg %p135
    // Predicated region
    $region9: #{unet_forward.19} parent=5 // pred_check
      _
    $region10: #{unet_forward.19} parent=5 // pred_check_branch
      %138 = sbr.rel (%p135) target = $region12
    $region11: #{unet_forward.19} parent=5 // pred_region
      %s139 = ssub.s32 %s10, 1
      // Predicated region
      $region13: #{unet_forward.19} parent=11 // pred_check
        %p140 = pneg %p57
      $region14: #{unet_forward.19} parent=11 // pred_check_branch
        %142 = sbr.rel (%p140) target = $region16
      $region15: #{unet_forward.19} parent=11 // pred_region
        _
      $region16: #{unet_forward.19} parent=11 // pred_fallthru
        _
      // Predicated region
      $region17: #{unet_forward.19} parent=11 // pred_check
        %p143 = pneg %p78
      $region18: #{unet_forward.19} parent=11 // pred_check_branch
        %145 = sbr.rel (%p143) target = $region20
      $region19: #{unet_forward.19} parent=11 // pred_region
        _
      $region20: #{unet_forward.19} parent=11 // pred_fallthru
        _
      // Predicated region
      $region21: #{unet_forward.19} parent=11 // pred_check
        %p146 = pneg %p99
      $region22: #{unet_forward.19} parent=11 // pred_check_branch
        %148 = sbr.rel (%p146) target = $region24
      $region23: #{unet_forward.19} parent=11 // pred_region
        _
      $region24: #{unet_forward.19} parent=11 // pred_fallthru
        _
    $region12: #{unet_forward.19} parent=5 // pred_fallthru
      _
    %p149 = scmp.lt.s32.totalorder %s10, 2
    // Predicated region
    $region25: #{unet_forward.19} parent=5 // pred_check
      %p150 = pneg %p149
    $region26: #{unet_forward.19} parent=5 // pred_check_branch
      %152 = sbr.rel (%p150) target = $region28
    $region27: #{unet_forward.19} parent=5 // pred_region
      // Predicated region
      $region29: #{unet_forward.19} parent=27 // pred_check
        %p153 = pneg %p30
      $region30: #{unet_forward.19} parent=27 // pred_check_branch
        %155 = sbr.rel (%p153) target = $region32
      $region31: #{unet_forward.19} parent=27 // pred_region
        %s156 = smul.u32 8, %s10
        %p157 = scmp.lt.s32.totalorder %s156, 15
        %s158 = scalar_select %p157, %s156, 15
        %s159 = smul.addr %s158, 14
        %s160 = smul.addr %s159, 4
        %s161 = scalar_lea.vmem %s0, %s160
        %s162 = smul.u32 8, %s10
      $region32: #{unet_forward.19} parent=27 // pred_fallthru
        _
    $region28: #{unet_forward.19} parent=5 // pred_fallthru
      _
    %p163 = scmp.le.s32.totalorder 1, %s10
    %p164 = scmp.lt.s32.totalorder %s10, 3
    %p165 = pnand %p163, %p164
    %p166 = pneg %p165
    // Predicated region
    $region33: #{unet_forward.19} parent=5 // pred_check
      _
    $region34: #{unet_forward.19} parent=5 // pred_check_branch
      %168 = sbr.rel (%p165) target = $region36
    $region35: #{unet_forward.19} parent=5 // pred_region
      %s169 = ssub.s32 %s10, 1
      %s170 = smul.u32 8, %s15
      %p171 = scmp.lt.s32.totalorder %s170, 15
      %s172 = scalar_select %p171, %s170, 15
      %s173 = smul.addr %s172, 14
      %s174 = smul.addr %s173, 4
      %s175 = scalar_lea.vmem %s0, %s174
      %p176 = pneg %p36
      %p177 = pneg %p33
      %p178 = pneg %p57
      %p179 = pneg %p54
      %p180 = pneg %p78
      %p181 = pneg %p75
      %p182 = pneg %p99
      %p183 = pneg %p96
      %p184 = pneg %p125
      %p185 = pneg %p122
      %s186 = smul.u32 8, %s15
      %p187 = scmp.lt.s32.totalorder %s186, 15
      %s188 = scalar_select %p187, %s186, 15
      %s189 = smul.addr %s188, 4
      %s190 = scalar_lea.vmem %s4, %s189
      %s191 = smul.u32 8, %s15
      %p192 = scmp.lt.s32.totalorder %s191, 15
      %s193 = scalar_select %p192, %s191, 15
      %s194 = smul.addr %s193, 14
      %s195 = smul.addr %s194, 4
      %s196 = scalar_lea.vmem %s0, %s195
      %s197 = smul.u32 8, %s15
      %s198 = smul.u32 8, %s15
      %p199 = scmp.lt.s32.totalorder %s198, 15
      %s200 = scalar_select %p199, %s198, 15
      %s201 = smul.addr %s200, 4
      %s202 = scalar_lea.vmem %s4, %s201
      %s203 = smul.u32 8, %s15
      %v205 = vld [vmem:[%s196] sm:$0xff]
      %v206 = vld [vmem:[%s196 + $0x8] sm:$0xff]
      %v207 = vld [vmem:[%s196 + $0x10] sm:$0xff]
      %v208 = vld [vmem:[%s196 + $0x18] sm:$0xff]
      %v209 = vld [vmem:[%s196 + $0x20] sm:$0xff]
      %v210 = vld [vmem:[%s196 + $0x28] sm:$0xff]
      %v211 = vld [vmem:[%s196 + $0x30] sm:$0xff]
      %v212 = vld [vmem:[%s196 + $0x38] sm:$0xff]
      %v213 = vld [vmem:[%s196 + $0x40] sm:$0xff]
      %v214 = vld [vmem:[%s196 + $0x48] sm:$0xff]
      %v215 = vld [vmem:[%s196 + $0x50] sm:$0xff]
      %v216 = vld [vmem:[%s196 + $0x58] sm:$0xff]
      %v217 = vld [vmem:[%s196 + $0x60] sm:$0xff]
      %v218 = vld [vmem:[%s196 + $0x68] sm:$0xff]
      %v219 = vld [vmem:[%s196 + $0x70] sm:$0xff]
      %v220 = vld [vmem:[%s196 + $0x78] sm:$0xff]
      %v221 = vld [vmem:[%s196 + $0x80] sm:$0xff]
      %v222 = vld [vmem:[%s196 + $0x88] sm:$0xff]
      %v223 = vld [vmem:[%s196 + $0x90] sm:$0xff]
      %v224 = vld [vmem:[%s196 + $0x98] sm:$0xff]
      %v225 = vld [vmem:[%s196 + $0xa0] sm:$0xff]
      %v226 = vld [vmem:[%s196 + $0xa8] sm:$0xff]
      %v227 = vld [vmem:[%s196 + $0xb0] sm:$0xff]
      %v228 = vld [vmem:[%s196 + $0xb8] sm:$0xff]
      %v229 = vld [vmem:[%s196 + $0xc0] sm:$0xff]
      %v230 = vld [vmem:[%s196 + $0xc8] sm:$0xff]
      %v231 = vld [vmem:[%s196 + $0xd0] sm:$0xff]
      %v232 = vld [vmem:[%s196 + $0xd8] sm:$0xff]
      %v233 = vld [vmem:[%s196 + $0xe0] sm:$0xff]
      %v234 = vld [vmem:[%s196 + $0xe8] sm:$0xff]
      %v235 = vld [vmem:[%s196 + $0xf0] sm:$0xff]
      %v236 = vld [vmem:[%s196 + $0xf8] sm:$0xff]
      %v237 = vld [vmem:[%s196 + $0x100] sm:$0xff]
      %v238 = vld [vmem:[%s196 + $0x108] sm:$0xff]
      %v239 = vld [vmem:[%s196 + $0x110] sm:$0xff]
      %v240 = vld [vmem:[%s196 + $0x118] sm:$0xff]
      %v241 = vld [vmem:[%s196 + $0x120] sm:$0xff]
      %v242 = vld [vmem:[%s196 + $0x128] sm:$0xff]
      %v243 = vld [vmem:[%s196 + $0x130] sm:$0xff]
      %v244 = vld [vmem:[%s196 + $0x138] sm:$0xff]
      %v245 = vld [vmem:[%s196 + $0x140] sm:$0xff]
      %v246 = vld [vmem:[%s196 + $0x148] sm:$0xff]
      %v247 = vld [vmem:[%s196 + $0x150] sm:$0xff]
      %v248 = vld [vmem:[%s196 + $0x158] sm:$0xff]
      %v249 = vld [vmem:[%s196 + $0x160] sm:$0xff]
      %v250 = vld [vmem:[%s196 + $0x168] sm:$0xff]
      %v251 = vld [vmem:[%s196 + $0x170] sm:$0xff]
      %v252 = vld [vmem:[%s196 + $0x178] sm:$0xff]
      %v253 = vld [vmem:[%s196 + $0x180] sm:$0xff]
      %v254 = vld [vmem:[%s196 + $0x188] sm:$0xff]
      %v255 = vld [vmem:[%s196 + $0x190] sm:$0xff]
      %v256 = vld [vmem:[%s196 + $0x198] sm:$0xff]
      %v257 = vld [vmem:[%s196 + $0x1a0] sm:$0xff]
      %v258 = vld [vmem:[%s196 + $0x1a8] sm:$0xff]
      %v259 = vld [vmem:[%s196 + $0x1b0] sm:$0xff]
      %v260 = vld [vmem:[%s196 + $0x1b8] sm:$0xff]
      %v261 = vld [vmem:[%s1] sm:$0xf]
      %v262 = vld [vmem:[%s1 + $0x4] sm:$0xf]
      %v263 = vld [vmem:[%s1 + $0x8] sm:$0xf]
      %v264 = vld [vmem:[%s1 + $0xc] sm:$0xf]
      %v265 = vld [vmem:[%s1 + $0x10] sm:$0xf]
      %v266 = vld [vmem:[%s1 + $0x14] sm:$0xf]
      %v267 = vld [vmem:[%s1 + $0x18] sm:$0xf]
      %v268 = vld [vmem:[%s1 + $0x1c] sm:$0xf]
      %v269 = vld [vmem:[%s1 + $0x20] sm:$0xf]
      %v270 = vld [vmem:[%s1 + $0x24] sm:$0xf]
      %v271 = vld [vmem:[%s1 + $0x28] sm:$0xf]
      %v272 = vld [vmem:[%s1 + $0x2c] sm:$0xf]
      %v273 = vld [vmem:[%s1 + $0x30] sm:$0xf]
      %v274 = vld [vmem:[%s1 + $0x34] sm:$0xf]
      %v275 = vld [vmem:[%s1 + $0x38] sm:$0xf]
      %v276 = vld [vmem:[%s1 + $0x3c] sm:$0xf]
      %v277 = vld [vmem:[%s1 + $0x40] sm:$0xf]
      %v278 = vld [vmem:[%s1 + $0x44] sm:$0xf]
      %v279 = vld [vmem:[%s1 + $0x48] sm:$0xf]
      %v280 = vld [vmem:[%s1 + $0x4c] sm:$0xf]
      %v281 = vld [vmem:[%s1 + $0x50] sm:$0xf]
      %v282 = vld [vmem:[%s1 + $0x54] sm:$0xf]
      %v283 = vld [vmem:[%s1 + $0x58] sm:$0xf]
      %v284 = vld [vmem:[%s1 + $0x5c] sm:$0xf]
      %v285 = vld [vmem:[%s1 + $0x60] sm:$0xf]
      %v286 = vld [vmem:[%s1 + $0x64] sm:$0xf]
      %v287 = vld [vmem:[%s1 + $0x68] sm:$0xf]
      %v288 = vld [vmem:[%s1 + $0x6c] sm:$0xf]
      %v289 = vld [vmem:[%s1 + $0x70] sm:$0xf]
      %v290 = vld [vmem:[%s1 + $0x74] sm:$0xf]
      %v291 = vld [vmem:[%s1 + $0x78] sm:$0xf]
      %v292 = vld [vmem:[%s1 + $0x7c] sm:$0xf]
      %v293 = vld [vmem:[%s1 + $0x80] sm:$0xf]
      %v294 = vld [vmem:[%s1 + $0x84] sm:$0xf]
      %v295 = vld [vmem:[%s1 + $0x88] sm:$0xf]
      %v296 = vld [vmem:[%s1 + $0x8c] sm:$0xf]
      %v297 = vld [vmem:[%s1 + $0x90] sm:$0xf]
      %v298 = vld [vmem:[%s1 + $0x94] sm:$0xf]
      %v299 = vld [vmem:[%s1 + $0x98] sm:$0xf]
      %v300 = vld [vmem:[%s1 + $0x9c] sm:$0xf]
      %v301 = vld [vmem:[%s1 + $0xa0] sm:$0xf]
      %v302 = vld [vmem:[%s1 + $0xa4] sm:$0xf]
      %v303 = vld [vmem:[%s1 + $0xa8] sm:$0xf]
      %v304 = vld [vmem:[%s1 + $0xac] sm:$0xf]
      %v305 = vld [vmem:[%s1 + $0xb0] sm:$0xf]
      %v306 = vld [vmem:[%s1 + $0xb4] sm:$0xf]
      %v307 = vld [vmem:[%s1 + $0xb8] sm:$0xf]
      %v308 = vld [vmem:[%s1 + $0xbc] sm:$0xf]
      %v309 = vld [vmem:[%s1 + $0xc0] sm:$0xf]
      %v310 = vld [vmem:[%s1 + $0xc4] sm:$0xf]
      %v311 = vld [vmem:[%s1 + $0xc8] sm:$0xf]
      %v312 = vld [vmem:[%s1 + $0xcc] sm:$0xf]
      %v313 = vld [vmem:[%s1 + $0xd0] sm:$0xf]
      %v314 = vld [vmem:[%s1 + $0xd4] sm:$0xf]
      %v315 = vld [vmem:[%s1 + $0xd8] sm:$0xf]
      %v316 = vld [vmem:[%s1 + $0xdc] sm:$0xf]
      %v317 = vld [vmem:[%s1 + $0xe0] sm:$0xf]
      %v318 = vld [vmem:[%s1 + $0xe4] sm:$0xf]
      %v319 = vld [vmem:[%s1 + $0xe8] sm:$0xf]
      %v320 = vld [vmem:[%s1 + $0xec] sm:$0xf]
      %v321 = vld [vmem:[%s1 + $0xf0] sm:$0xf]
      %v322 = vld [vmem:[%s1 + $0xf4] sm:$0xf]
      %v323 = vld [vmem:[%s1 + $0xf8] sm:$0xf]
      %v324 = vld [vmem:[%s1 + $0xfc] sm:$0xf]
      %v325 = vld [vmem:[%s1 + $0x100] sm:$0xf]
      %v326 = vld [vmem:[%s1 + $0x104] sm:$0xf]
      %v327 = vld [vmem:[%s1 + $0x108] sm:$0xf]
      %v328 = vld [vmem:[%s1 + $0x10c] sm:$0xf]
      %v329 = vld [vmem:[%s1 + $0x110] sm:$0xf]
      %v330 = vld [vmem:[%s1 + $0x114] sm:$0xf]
      %v331 = vld [vmem:[%s1 + $0x118] sm:$0xf]
      %v332 = vld [vmem:[%s1 + $0x11c] sm:$0xf]
      %v333 = vld [vmem:[%s1 + $0x120] sm:$0xf]
      %v334 = vld [vmem:[%s1 + $0x124] sm:$0xf]
      %v335 = vld [vmem:[%s1 + $0x128] sm:$0xf]
      %v336 = vld [vmem:[%s1 + $0x12c] sm:$0xf]
      %v337 = vld [vmem:[%s1 + $0x130] sm:$0xf]
      %v338 = vld [vmem:[%s1 + $0x134] sm:$0xf]
      %v339 = vld [vmem:[%s1 + $0x138] sm:$0xf]
      %v340 = vld [vmem:[%s1 + $0x13c] sm:$0xf]
      %v341 = vld [vmem:[%s1 + $0x140] sm:$0xf]
      %v342 = vld [vmem:[%s1 + $0x144] sm:$0xf]
      %v343 = vld [vmem:[%s1 + $0x148] sm:$0xf]
      %v344 = vld [vmem:[%s1 + $0x14c] sm:$0xf]
      %v345 = vld [vmem:[%s1 + $0x150] sm:$0xf]
      %v346 = vld [vmem:[%s1 + $0x154] sm:$0xf]
      %v347 = vld [vmem:[%s1 + $0x158] sm:$0xf]
      %v348 = vld [vmem:[%s1 + $0x15c] sm:$0xf]
      %v349 = vld [vmem:[%s1 + $0x160] sm:$0xf]
      %v350 = vld [vmem:[%s1 + $0x164] sm:$0xf]
      %v351 = vld [vmem:[%s1 + $0x168] sm:$0xf]
      %v352 = vld [vmem:[%s1 + $0x16c] sm:$0xf]
      %v353 = vld [vmem:[%s1 + $0x170] sm:$0xf]
      %v354 = vld [vmem:[%s1 + $0x174] sm:$0xf]
      %v355 = vld [vmem:[%s1 + $0x178] sm:$0xf]
      %v356 = vld [vmem:[%s1 + $0x17c] sm:$0xf]
      %v357 = vld [vmem:[%s1 + $0x180] sm:$0xf]
      %v358 = vld [vmem:[%s1 + $0x184] sm:$0xf]
      %v359 = vld [vmem:[%s1 + $0x188] sm:$0xf]
      %v360 = vld [vmem:[%s1 + $0x18c] sm:$0xf]
      %v361 = vld [vmem:[%s1 + $0x190] sm:$0xf]
      %v362 = vld [vmem:[%s1 + $0x194] sm:$0xf]
      %v363 = vld [vmem:[%s1 + $0x198] sm:$0xf]
      %v364 = vld [vmem:[%s1 + $0x19c] sm:$0xf]
      %v365 = vld [vmem:[%s1 + $0x1a0] sm:$0xf]
      %v366 = vld [vmem:[%s1 + $0x1a4] sm:$0xf]
      %v367 = vld [vmem:[%s1 + $0x1a8] sm:$0xf]
      %v368 = vld [vmem:[%s1 + $0x1ac] sm:$0xf]
      %v369 = vld [vmem:[%s1 + $0x1b0] sm:$0xf]
      %v370 = vld [vmem:[%s1 + $0x1b4] sm:$0xf]
      %v371 = vld [vmem:[%s1 + $0x1b8] sm:$0xf]
      %v372 = vld [vmem:[%s1 + $0x1bc] sm:$0xf]
      %v373 = vld [vmem:[%s1 + $0x1c0] sm:$0xf]
      %v374 = vld [vmem:[%s1 + $0x1c4] sm:$0xf]
      %v375 = vld [vmem:[%s1 + $0x1c8] sm:$0xf]
      %v376 = vld [vmem:[%s1 + $0x1cc] sm:$0xf]
      %v377 = vld [vmem:[%s1 + $0x1d0] sm:$0xf]
      %v378 = vld [vmem:[%s1 + $0x1d4] sm:$0xf]
      %v379 = vld [vmem:[%s1 + $0x1d8] sm:$0xf]
      %v380 = vld [vmem:[%s1 + $0x1dc] sm:$0xf]
      %v381 = vld [vmem:[%s1 + $0x1e0] sm:$0xf]
      %v382 = vld [vmem:[%s1 + $0x1e4] sm:$0xf]
      %v383 = vld [vmem:[%s1 + $0x1e8] sm:$0xf]
      %v384 = vld [vmem:[%s1 + $0x1ec] sm:$0xf]
      %v385 = vld [vmem:[%s1 + $0x1f0] sm:$0xf]
      %v386 = vld [vmem:[%s1 + $0x1f4] sm:$0xf]
      %v387 = vld [vmem:[%s1 + $0x1f8] sm:$0xf]
      %v388 = vld [vmem:[%s1 + $0x1fc] sm:$0xf]
      %v389 = vld [vmem:[%s1 + $0x200] sm:$0xf]
      %v390 = vld [vmem:[%s1 + $0x204] sm:$0xf]
      %v391 = vld [vmem:[%s1 + $0x208] sm:$0xf]
      %v392 = vld [vmem:[%s1 + $0x20c] sm:$0xf]
      %v393 = vld [vmem:[%s1 + $0x210] sm:$0xf]
      %v394 = vld [vmem:[%s1 + $0x214] sm:$0xf]
      %v395 = vld [vmem:[%s1 + $0x218] sm:$0xf]
      %v396 = vld [vmem:[%s1 + $0x21c] sm:$0xf]
      %v397 = vld [vmem:[%s1 + $0x220] sm:$0xf]
      %v398 = vld [vmem:[%s1 + $0x224] sm:$0xf]
      %v399 = vld [vmem:[%s1 + $0x228] sm:$0xf]
      %v400 = vld [vmem:[%s1 + $0x22c] sm:$0xf]
      %v401 = vld [vmem:[%s1 + $0x230] sm:$0xf]
      %v402 = vld [vmem:[%s1 + $0x234] sm:$0xf]
      %v403 = vld [vmem:[%s1 + $0x238] sm:$0xf]
      %v404 = vld [vmem:[%s1 + $0x23c] sm:$0xf]
      %v405 = vld [vmem:[%s1 + $0x240] sm:$0xf]
      %v406 = vld [vmem:[%s1 + $0x244] sm:$0xf]
      %v407 = vld [vmem:[%s1 + $0x248] sm:$0xf]
      %v408 = vld [vmem:[%s1 + $0x24c] sm:$0xf]
      %v409 = vld [vmem:[%s1 + $0x250] sm:$0xf]
      %v410 = vld [vmem:[%s1 + $0x254] sm:$0xf]
      %v411 = vld [vmem:[%s1 + $0x258] sm:$0xf]
      %v412 = vld [vmem:[%s1 + $0x25c] sm:$0xf]
      %v413 = vld [vmem:[%s1 + $0x260] sm:$0xf]
      %v414 = vld [vmem:[%s1 + $0x264] sm:$0xf]
      %v415 = vld [vmem:[%s1 + $0x268] sm:$0xf]
      %v416 = vld [vmem:[%s1 + $0x26c] sm:$0xf]
      %v417 = vld [vmem:[%s1 + $0x270] sm:$0xf]
      %v418 = vld [vmem:[%s1 + $0x274] sm:$0xf]
      %v419 = vld [vmem:[%s1 + $0x278] sm:$0xf]
      %v420 = vld [vmem:[%s1 + $0x27c] sm:$0xf]
      %v421 = vld [vmem:[%s1 + $0x280] sm:$0xf]
      %v422 = vld [vmem:[%s1 + $0x284] sm:$0xf]
      %v423 = vld [vmem:[%s1 + $0x288] sm:$0xf]
      %v424 = vld [vmem:[%s1 + $0x28c] sm:$0xf]
      %v425 = vld [vmem:[%s1 + $0x290] sm:$0xf]
      %v426 = vld [vmem:[%s1 + $0x294] sm:$0xf]
      %v427 = vld [vmem:[%s1 + $0x298] sm:$0xf]
      %v428 = vld [vmem:[%s1 + $0x29c] sm:$0xf]
      %v429 = vld [vmem:[%s1 + $0x2a0] sm:$0xf]
      %v430 = vld [vmem:[%s1 + $0x2a4] sm:$0xf]
      %v431 = vld [vmem:[%s1 + $0x2a8] sm:$0xf]
      %v432 = vld [vmem:[%s1 + $0x2ac] sm:$0xf]
      %v433 = vld [vmem:[%s1 + $0x2b0] sm:$0xf]
      %v434 = vld [vmem:[%s1 + $0x2b4] sm:$0xf]
      %v435 = vld [vmem:[%s1 + $0x2b8] sm:$0xf]
      %v436 = vld [vmem:[%s1 + $0x2bc] sm:$0xf]
      %v437 = vld [vmem:[%s1 + $0x2c0] sm:$0xf]
      %v438 = vld [vmem:[%s1 + $0x2c4] sm:$0xf]
      %v439 = vld [vmem:[%s1 + $0x2c8] sm:$0xf]
      %v440 = vld [vmem:[%s1 + $0x2cc] sm:$0xf]
      %v441 = vld [vmem:[%s1 + $0x2d0] sm:$0xf]
      %v442 = vld [vmem:[%s1 + $0x2d4] sm:$0xf]
      %v443 = vld [vmem:[%s1 + $0x2d8] sm:$0xf]
      %v444 = vld [vmem:[%s1 + $0x2dc] sm:$0xf]
      %v445 = vld [vmem:[%s1 + $0x2e0] sm:$0xf]
      %v446 = vld [vmem:[%s1 + $0x2e4] sm:$0xf]
      %v447 = vld [vmem:[%s1 + $0x2e8] sm:$0xf]
      %v448 = vld [vmem:[%s1 + $0x2ec] sm:$0xf]
      %v449 = vld [vmem:[%s1 + $0x2f0] sm:$0xf]
      %v450 = vld [vmem:[%s1 + $0x2f4] sm:$0xf]
      %v451 = vld [vmem:[%s1 + $0x2f8] sm:$0xf]
      %v452 = vld [vmem:[%s1 + $0x2fc] sm:$0xf]
      %v453 = vld [vmem:[%s1 + $0x300] sm:$0xf]
      %v454 = vld [vmem:[%s1 + $0x304] sm:$0xf]
      %v455 = vld [vmem:[%s1 + $0x308] sm:$0xf]
      %v456 = vld [vmem:[%s1 + $0x30c] sm:$0xf]
      %v457 = vld [vmem:[%s1 + $0x310] sm:$0xf]
      %v458 = vld [vmem:[%s1 + $0x314] sm:$0xf]
      %v459 = vld [vmem:[%s1 + $0x318] sm:$0xf]
      %v460 = vld [vmem:[%s1 + $0x31c] sm:$0xf]
      %v461 = vld [vmem:[%s1 + $0x320] sm:$0xf]
      %v462 = vld [vmem:[%s1 + $0x324] sm:$0xf]
      %v463 = vld [vmem:[%s1 + $0x328] sm:$0xf]
      %v464 = vld [vmem:[%s1 + $0x32c] sm:$0xf]
      %v465 = vld [vmem:[%s1 + $0x330] sm:$0xf]
      %v466 = vld [vmem:[%s1 + $0x334] sm:$0xf]
      %v467 = vld [vmem:[%s1 + $0x338] sm:$0xf]
      %v468 = vld [vmem:[%s1 + $0x33c] sm:$0xf]
      %v469 = vld [vmem:[%s1 + $0x340] sm:$0xf]
      %v470 = vld [vmem:[%s1 + $0x344] sm:$0xf]
      %v471 = vld [vmem:[%s1 + $0x348] sm:$0xf]
      %v472 = vld [vmem:[%s1 + $0x34c] sm:$0xf]
      %v473 = vld [vmem:[%s1 + $0x350] sm:$0xf]
      %v474 = vld [vmem:[%s1 + $0x354] sm:$0xf]
      %v475 = vld [vmem:[%s1 + $0x358] sm:$0xf]
      %v476 = vld [vmem:[%s1 + $0x35c] sm:$0xf]
      %v533 = vunpack.c.l.b16 %v205
      %v534 = vunpack.c.h.b16 %v205
      %v535 = vunpack.c.l.b16 %v206
      %v536 = vunpack.c.h.b16 %v206
      %v537 = vunpack.c.l.b16 %v207
      %v538 = vunpack.c.h.b16 %v207
      %v539 = vunpack.c.l.b16 %v208
      %v540 = vunpack.c.h.b16 %v208
      %v541 = vunpack.c.l.b16 %v209
      %v542 = vunpack.c.h.b16 %v209
      %v543 = vunpack.c.l.b16 %v210
      %v544 = vunpack.c.h.b16 %v210
      %v545 = vunpack.c.l.b16 %v211
      %v546 = vunpack.c.h.b16 %v211
      %v547 = vunpack.c.l.b16 %v212
      %v548 = vunpack.c.h.b16 %v212
      %v549 = vunpack.c.l.b16 %v213
      %v550 = vunpack.c.h.b16 %v213
      %v551 = vunpack.c.l.b16 %v214
      %v552 = vunpack.c.h.b16 %v214
      %v553 = vunpack.c.l.b16 %v215
      %v554 = vunpack.c.h.b16 %v215
      %v555 = vunpack.c.l.b16 %v216
      %v556 = vunpack.c.h.b16 %v216
      %v557 = vunpack.c.l.b16 %v217
      %v558 = vunpack.c.h.b16 %v217
      %v559 = vunpack.c.l.b16 %v218
      %v560 = vunpack.c.h.b16 %v218
      %v561 = vunpack.c.l.b16 %v219
      %v562 = vunpack.c.h.b16 %v219
      %v563 = vunpack.c.l.b16 %v220
      %v564 = vunpack.c.h.b16 %v220
      %v565 = vunpack.c.l.b16 %v221
      %v566 = vunpack.c.h.b16 %v221
      %v567 = vunpack.c.l.b16 %v222
      %v568 = vunpack.c.h.b16 %v222
      %v569 = vunpack.c.l.b16 %v223
      %v570 = vunpack.c.h.b16 %v223
      %v571 = vunpack.c.l.b16 %v224
      %v572 = vunpack.c.h.b16 %v224
      %v573 = vunpack.c.l.b16 %v225
      %v574 = vunpack.c.h.b16 %v225
      %v575 = vunpack.c.l.b16 %v226
      %v576 = vunpack.c.h.b16 %v226
      %v577 = vunpack.c.l.b16 %v227
      %v578 = vunpack.c.h.b16 %v227
      %v579 = vunpack.c.l.b16 %v228
      %v580 = vunpack.c.h.b16 %v228
      %v581 = vunpack.c.l.b16 %v229
      %v582 = vunpack.c.h.b16 %v229
      %v583 = vunpack.c.l.b16 %v230
      %v584 = vunpack.c.h.b16 %v230
      %v585 = vunpack.c.l.b16 %v231
      %v586 = vunpack.c.h.b16 %v231
      %v587 = vunpack.c.l.b16 %v232
      %v588 = vunpack.c.h.b16 %v232
      %v589 = vunpack.c.l.b16 %v233
      %v590 = vunpack.c.h.b16 %v233
      %v591 = vunpack.c.l.b16 %v234
      %v592 = vunpack.c.h.b16 %v234
      %v593 = vunpack.c.l.b16 %v235
      %v594 = vunpack.c.h.b16 %v235
      %v595 = vunpack.c.l.b16 %v236
      %v596 = vunpack.c.h.b16 %v236
      %v597 = vunpack.c.l.b16 %v237
      %v598 = vunpack.c.h.b16 %v237
      %v599 = vunpack.c.l.b16 %v238
      %v600 = vunpack.c.h.b16 %v238
      %v601 = vunpack.c.l.b16 %v239
      %v602 = vunpack.c.h.b16 %v239
      %v603 = vunpack.c.l.b16 %v240
      %v604 = vunpack.c.h.b16 %v240
      %v605 = vunpack.c.l.b16 %v241
      %v606 = vunpack.c.h.b16 %v241
      %v607 = vunpack.c.l.b16 %v242
      %v608 = vunpack.c.h.b16 %v242
      %v609 = vunpack.c.l.b16 %v243
      %v610 = vunpack.c.h.b16 %v243
      %v611 = vunpack.c.l.b16 %v244
      %v612 = vunpack.c.h.b16 %v244
      %v613 = vunpack.c.l.b16 %v245
      %v614 = vunpack.c.h.b16 %v245
      %v615 = vunpack.c.l.b16 %v246
      %v616 = vunpack.c.h.b16 %v246
      %v617 = vunpack.c.l.b16 %v247
      %v618 = vunpack.c.h.b16 %v247
      %v619 = vunpack.c.l.b16 %v248
      %v620 = vunpack.c.h.b16 %v248
      %v621 = vunpack.c.l.b16 %v249
      %v622 = vunpack.c.h.b16 %v249
      %v623 = vunpack.c.l.b16 %v250
      %v624 = vunpack.c.h.b16 %v250
      %v625 = vunpack.c.l.b16 %v251
      %v626 = vunpack.c.h.b16 %v251
      %v627 = vunpack.c.l.b16 %v252
      %v628 = vunpack.c.h.b16 %v252
      %v629 = vunpack.c.l.b16 %v253
      %v630 = vunpack.c.h.b16 %v253
      %v631 = vunpack.c.l.b16 %v254
      %v632 = vunpack.c.h.b16 %v254
      %v633 = vunpack.c.l.b16 %v255
      %v634 = vunpack.c.h.b16 %v255
      %v635 = vunpack.c.l.b16 %v256
      %v636 = vunpack.c.h.b16 %v256
      %v637 = vunpack.c.l.b16 %v257
      %v638 = vunpack.c.h.b16 %v257
      %v639 = vunpack.c.l.b16 %v258
      %v640 = vunpack.c.h.b16 %v258
      %v641 = vunpack.c.l.b16 %v259
      %v642 = vunpack.c.h.b16 %v259
      %v643 = vunpack.c.l.b16 %v260
      %v644 = vunpack.c.h.b16 %v260
      %v645 = vpack.c.b16 %v547, %v533
      %v646 = vpack.c.b16 %v548, %v534
      %v647 = vpack.c.b16 %v549, %v535
      %v648 = vpack.c.b16 %v550, %v536
      %v649 = vpack.c.b16 %v551, %v537
      %v650 = vpack.c.b16 %v552, %v538
      %v651 = vpack.c.b16 %v553, %v539
      %v652 = vpack.c.b16 %v554, %v540
      %v653 = vpack.c.b16 %v555, %v541
      %v654 = vpack.c.b16 %v556, %v542
      %v655 = vpack.c.b16 %v557, %v543
      %v656 = vpack.c.b16 %v558, %v544
      %v657 = vpack.c.b16 %v559, %v545
      %v658 = vpack.c.b16 %v560, %v546
      %v659 = vpack.c.b16 %v575, %v561
      %v660 = vpack.c.b16 %v576, %v562
      %v661 = vpack.c.b16 %v577, %v563
      %v662 = vpack.c.b16 %v578, %v564
      %v663 = vpack.c.b16 %v579, %v565
      %v664 = vpack.c.b16 %v580, %v566
      %v665 = vpack.c.b16 %v581, %v567
      %v666 = vpack.c.b16 %v582, %v568
      %v667 = vpack.c.b16 %v583, %v569
      %v668 = vpack.c.b16 %v584, %v570
      %v669 = vpack.c.b16 %v585, %v571
      %v670 = vpack.c.b16 %v586, %v572
      %v671 = vpack.c.b16 %v587, %v573
      %v672 = vpack.c.b16 %v588, %v574
      %v673 = vpack.c.b16 %v603, %v589
      %v674 = vpack.c.b16 %v604, %v590
      %v675 = vpack.c.b16 %v605, %v591
      %v676 = vpack.c.b16 %v606, %v592
      %v677 = vpack.c.b16 %v607, %v593
      %v678 = vpack.c.b16 %v608, %v594
      %v679 = vpack.c.b16 %v609, %v595
      %v680 = vpack.c.b16 %v610, %v596
      %v681 = vpack.c.b16 %v611, %v597
      %v682 = vpack.c.b16 %v612, %v598
      %v683 = vpack.c.b16 %v613, %v599
      %v684 = vpack.c.b16 %v614, %v600
      %v685 = vpack.c.b16 %v615, %v601
      %v686 = vpack.c.b16 %v616, %v602
      %v687 = vpack.c.b16 %v631, %v617
      %v688 = vpack.c.b16 %v632, %v618
      %v689 = vpack.c.b16 %v633, %v619
      %v690 = vpack.c.b16 %v634, %v620
      %v691 = vpack.c.b16 %v635, %v621
      %v692 = vpack.c.b16 %v636, %v622
      %v693 = vpack.c.b16 %v637, %v623
      %v694 = vpack.c.b16 %v638, %v624
      %v695 = vpack.c.b16 %v639, %v625
      %v696 = vpack.c.b16 %v640, %v626
      %v697 = vpack.c.b16 %v641, %v627
      %v698 = vpack.c.b16 %v642, %v628
      %v699 = vpack.c.b16 %v643, %v629
      %v700 = vpack.c.b16 %v644, %v630
      %v969 = vunpack.c.l.b16 %v261
      %v970 = vunpack.c.l.b16 %v262
      %v971 = vunpack.c.l.b16 %v263
      %v972 = vunpack.c.l.b16 %v264
      %v973 = vunpack.c.l.b16 %v265
      %v974 = vunpack.c.l.b16 %v266
      %v975 = vunpack.c.l.b16 %v267
      %v976 = vunpack.c.l.b16 %v268
      %v977 = vunpack.c.l.b16 %v269
      %v978 = vunpack.c.l.b16 %v270
      %v979 = vunpack.c.l.b16 %v271
      %v980 = vunpack.c.l.b16 %v272
      %v981 = vunpack.c.l.b16 %v273
      %v982 = vunpack.c.l.b16 %v274
      %v983 = vunpack.c.l.b16 %v275
      %v984 = vunpack.c.l.b16 %v276
      %v985 = vunpack.c.l.b16 %v277
      %v986 = vunpack.c.l.b16 %v278
      %v987 = vunpack.c.l.b16 %v279
      %v988 = vunpack.c.l.b16 %v280
      %v989 = vunpack.c.l.b16 %v281
      %v990 = vunpack.c.l.b16 %v282
      %v991 = vunpack.c.l.b16 %v283
      %v992 = vunpack.c.l.b16 %v284
      %v993 = vunpack.c.l.b16 %v285
      %v994 = vunpack.c.l.b16 %v286
      %v995 = vunpack.c.l.b16 %v287
      %v996 = vunpack.c.l.b16 %v288
      %v997 = vunpack.c.l.b16 %v289
      %v998 = vunpack.c.l.b16 %v290
      %v999 = vunpack.c.l.b16 %v291
      %v1000 = vunpack.c.l.b16 %v292
      %v1001 = vunpack.c.l.b16 %v293
      %v1002 = vunpack.c.l.b16 %v294
      %v1003 = vunpack.c.l.b16 %v295
      %v1004 = vunpack.c.l.b16 %v296
      %v1005 = vunpack.c.l.b16 %v297
      %v1006 = vunpack.c.l.b16 %v298
      %v1007 = vunpack.c.l.b16 %v299
      %v1008 = vunpack.c.l.b16 %v300
      %v1009 = vunpack.c.l.b16 %v301
      %v1010 = vunpack.c.l.b16 %v302
      %v1011 = vunpack.c.l.b16 %v303
      %v1012 = vunpack.c.l.b16 %v304
      %v1013 = vunpack.c.l.b16 %v305
      %v1014 = vunpack.c.l.b16 %v306
      %v1015 = vunpack.c.l.b16 %v307
      %v1016 = vunpack.c.l.b16 %v308
      %v1017 = vunpack.c.l.b16 %v309
      %v1018 = vunpack.c.l.b16 %v310
      %v1019 = vunpack.c.l.b16 %v311
      %v1020 = vunpack.c.l.b16 %v312
      %v1021 = vunpack.c.l.b16 %v313
      %v1022 = vunpack.c.l.b16 %v314
      %v1023 = vunpack.c.l.b16 %v315
      %v1024 = vunpack.c.l.b16 %v316
      %v1025 = vunpack.c.l.b16 %v317
      %v1026 = vunpack.c.l.b16 %v318
      %v1027 = vunpack.c.l.b16 %v319
      %v1028 = vunpack.c.l.b16 %v320
      %v1029 = vunpack.c.l.b16 %v321
      %v1030 = vunpack.c.l.b16 %v322
      %v1031 = vunpack.c.l.b16 %v323
      %v1032 = vunpack.c.l.b16 %v324
      %v1033 = vunpack.c.l.b16 %v325
      %v1034 = vunpack.c.l.b16 %v326
      %v1035 = vunpack.c.l.b16 %v327
      %v1036 = vunpack.c.l.b16 %v328
      %v1037 = vunpack.c.l.b16 %v329
      %v1038 = vunpack.c.l.b16 %v330
      %v1039 = vunpack.c.l.b16 %v331
      %v1040 = vunpack.c.l.b16 %v332
      %v1041 = vunpack.c.l.b16 %v333
      %v1042 = vunpack.c.l.b16 %v334
      %v1043 = vunpack.c.l.b16 %v335
      %v1044 = vunpack.c.l.b16 %v336
      %v1045 = vunpack.c.l.b16 %v337
      %v1046 = vunpack.c.l.b16 %v338
      %v1047 = vunpack.c.l.b16 %v339
      %v1048 = vunpack.c.l.b16 %v340
      %v1049 = vunpack.c.l.b16 %v341
      %v1050 = vunpack.c.l.b16 %v342
      %v1051 = vunpack.c.l.b16 %v343
      %v1052 = vunpack.c.l.b16 %v344
      %v1053 = vunpack.c.l.b16 %v345
      %v1054 = vunpack.c.l.b16 %v346
      %v1055 = vunpack.c.l.b16 %v347
      %v1056 = vunpack.c.l.b16 %v348
      %v1057 = vunpack.c.l.b16 %v349
      %v1058 = vunpack.c.l.b16 %v350
      %v1059 = vunpack.c.l.b16 %v351
      %v1060 = vunpack.c.l.b16 %v352
      %v1061 = vunpack.c.l.b16 %v353
      %v1062 = vunpack.c.l.b16 %v354
      %v1063 = vunpack.c.l.b16 %v355
      %v1064 = vunpack.c.l.b16 %v356
      %v1065 = vunpack.c.l.b16 %v357
      %v1066 = vunpack.c.l.b16 %v358
      %v1067 = vunpack.c.l.b16 %v359
      %v1068 = vunpack.c.l.b16 %v360
      %v1069 = vunpack.c.l.b16 %v361
      %v1070 = vunpack.c.l.b16 %v362
      %v1071 = vunpack.c.l.b16 %v363
      %v1072 = vunpack.c.l.b16 %v364
      %v1073 = vunpack.c.l.b16 %v365
      %v1074 = vunpack.c.l.b16 %v366
      %v1075 = vunpack.c.l.b16 %v367
      %v1076 = vunpack.c.l.b16 %v368
      %v1077 = vunpack.c.l.b16 %v369
      %v1078 = vunpack.c.l.b16 %v370
      %v1079 = vunpack.c.l.b16 %v371
      %v1080 = vunpack.c.l.b16 %v372
      %v1081 = vunpack.c.l.b16 %v373
      %v1082 = vunpack.c.l.b16 %v374
      %v1083 = vunpack.c.l.b16 %v375
      %v1084 = vunpack.c.l.b16 %v376
      %v1085 = vunpack.c.l.b16 %v377
      %v1086 = vunpack.c.l.b16 %v378
      %v1087 = vunpack.c.l.b16 %v379
      %v1088 = vunpack.c.l.b16 %v380
      %v1089 = vunpack.c.l.b16 %v381
      %v1090 = vunpack.c.l.b16 %v382
      %v1091 = vunpack.c.l.b16 %v383
      %v1092 = vunpack.c.l.b16 %v384
      %v1093 = vunpack.c.l.b16 %v385
      %v1094 = vunpack.c.l.b16 %v386
      %v1095 = vunpack.c.l.b16 %v387
      %v1096 = vunpack.c.l.b16 %v388
      %v1097 = vunpack.c.l.b16 %v389
      %v1098 = vunpack.c.l.b16 %v390
      %v1099 = vunpack.c.l.b16 %v391
      %v1100 = vunpack.c.l.b16 %v392
      %v1101 = vunpack.c.l.b16 %v393
      %v1102 = vunpack.c.l.b16 %v394
      %v1103 = vunpack.c.l.b16 %v395
      %v1104 = vunpack.c.l.b16 %v396
      %v1105 = vunpack.c.l.b16 %v397
      %v1106 = vunpack.c.l.b16 %v398
      %v1107 = vunpack.c.l.b16 %v399
      %v1108 = vunpack.c.l.b16 %v400
      %v1109 = vunpack.c.l.b16 %v401
      %v1110 = vunpack.c.l.b16 %v402
      %v1111 = vunpack.c.l.b16 %v403
      %v1112 = vunpack.c.l.b16 %v404
      %v1113 = vunpack.c.l.b16 %v405
      %v1114 = vunpack.c.l.b16 %v406
      %v1115 = vunpack.c.l.b16 %v407
      %v1116 = vunpack.c.l.b16 %v408
      %v1117 = vunpack.c.l.b16 %v409
      %v1118 = vunpack.c.l.b16 %v410
      %v1119 = vunpack.c.l.b16 %v411
      %v1120 = vunpack.c.l.b16 %v412
      %v1121 = vunpack.c.l.b16 %v413
      %v1122 = vunpack.c.l.b16 %v414
      %v1123 = vunpack.c.l.b16 %v415
      %v1124 = vunpack.c.l.b16 %v416
      %v1125 = vunpack.c.l.b16 %v417
      %v1126 = vunpack.c.l.b16 %v418
      %v1127 = vunpack.c.l.b16 %v419
      %v1128 = vunpack.c.l.b16 %v420
      %v1129 = vunpack.c.l.b16 %v421
      %v1130 = vunpack.c.l.b16 %v422
      %v1131 = vunpack.c.l.b16 %v423
      %v1132 = vunpack.c.l.b16 %v424
      %v1133 = vunpack.c.l.b16 %v425
      %v1134 = vunpack.c.l.b16 %v426
      %v1135 = vunpack.c.l.b16 %v427
      %v1136 = vunpack.c.l.b16 %v428
      %v1137 = vunpack.c.l.b16 %v429
      %v1138 = vunpack.c.l.b16 %v430
      %v1139 = vunpack.c.l.b16 %v431
      %v1140 = vunpack.c.l.b16 %v432
      %v1141 = vunpack.c.l.b16 %v433
      %v1142 = vunpack.c.l.b16 %v434
      %v1143 = vunpack.c.l.b16 %v435
      %v1144 = vunpack.c.l.b16 %v436
      %v1145 = vunpack.c.l.b16 %v437
      %v1146 = vunpack.c.l.b16 %v438
      %v1147 = vunpack.c.l.b16 %v439
      %v1148 = vunpack.c.l.b16 %v440
      %v1149 = vunpack.c.l.b16 %v441
      %v1150 = vunpack.c.l.b16 %v442
      %v1151 = vunpack.c.l.b16 %v443
      %v1152 = vunpack.c.l.b16 %v444
      %v1153 = vunpack.c.l.b16 %v445
      %v1154 = vunpack.c.l.b16 %v446
      %v1155 = vunpack.c.l.b16 %v447
      %v1156 = vunpack.c.l.b16 %v448
      %v1157 = vunpack.c.l.b16 %v449
      %v1158 = vunpack.c.l.b16 %v450
      %v1159 = vunpack.c.l.b16 %v451
      %v1160 = vunpack.c.l.b16 %v452
      %v1161 = vunpack.c.l.b16 %v453
      %v1162 = vunpack.c.l.b16 %v454
      %v1163 = vunpack.c.l.b16 %v455
      %v1164 = vunpack.c.l.b16 %v456
      %v1165 = vunpack.c.l.b16 %v457
      %v1166 = vunpack.c.l.b16 %v458
      %v1167 = vunpack.c.l.b16 %v459
      %v1168 = vunpack.c.l.b16 %v460
      %v1169 = vunpack.c.l.b16 %v461
      %v1170 = vunpack.c.l.b16 %v462
      %v1171 = vunpack.c.l.b16 %v463
      %v1172 = vunpack.c.l.b16 %v464
      %v1173 = vunpack.c.l.b16 %v465
      %v1174 = vunpack.c.l.b16 %v466
      %v1175 = vunpack.c.l.b16 %v467
      %v1176 = vunpack.c.l.b16 %v468
      %v1177 = vunpack.c.l.b16 %v469
      %v1178 = vunpack.c.l.b16 %v470
      %v1179 = vunpack.c.l.b16 %v471
      %v1180 = vunpack.c.l.b16 %v472
      %v1181 = vunpack.c.l.b16 %v473
      %v1182 = vunpack.c.l.b16 %v474
      %v1183 = vunpack.c.l.b16 %v475
      %v1184 = vunpack.c.l.b16 %v476
      %v1185 = vpack.c.b16 %v970, %v969
      %v1186 = vpack.c.b16 %v972, %v971
      %v1187 = vpack.c.b16 %v974, %v973
      %v1188 = vpack.c.b16 %v976, %v975
      %v1189 = vpack.c.b16 %v978, %v977
      %v1190 = vpack.c.b16 %v980, %v979
      %v1191 = vpack.c.b16 %v982, %v981
      %v1192 = vpack.c.b16 %v984, %v983
      %v1193 = vpack.c.b16 %v986, %v985
      %v1194 = vpack.c.b16 %v988, %v987
      %v1195 = vpack.c.b16 %v990, %v989
      %v1196 = vpack.c.b16 %v992, %v991
      %v1197 = vpack.c.b16 %v994, %v993
      %v1198 = vpack.c.b16 %v996, %v995
      %v1199 = vpack.c.b16 %v998, %v997
      %v1200 = vpack.c.b16 %v1000, %v999
      %v1201 = vpack.c.b16 %v1002, %v1001
      %v1202 = vpack.c.b16 %v1004, %v1003
      %v1203 = vpack.c.b16 %v1006, %v1005
      %v1204 = vpack.c.b16 %v1008, %v1007
      %v1205 = vpack.c.b16 %v1010, %v1009
      %v1206 = vpack.c.b16 %v1012, %v1011
      %v1207 = vpack.c.b16 %v1014, %v1013
      %v1208 = vpack.c.b16 %v1016, %v1015
      %v1209 = vpack.c.b16 %v1018, %v1017
      %v1210 = vpack.c.b16 %v1020, %v1019
      %v1211 = vpack.c.b16 %v1022, %v1021
      %v1212 = vpack.c.b16 %v1024, %v1023
      %v1213 = vpack.c.b16 %v1026, %v1025
      %v1214 = vpack.c.b16 %v1028, %v1027
      %v1215 = vpack.c.b16 %v1030, %v1029
      %v1216 = vpack.c.b16 %v1032, %v1031
      %v1217 = vpack.c.b16 %v1034, %v1033
      %v1218 = vpack.c.b16 %v1036, %v1035
      %v1219 = vpack.c.b16 %v1038, %v1037
      %v1220 = vpack.c.b16 %v1040, %v1039
      %v1221 = vpack.c.b16 %v1042, %v1041
      %v1222 = vpack.c.b16 %v1044, %v1043
      %v1223 = vpack.c.b16 %v1046, %v1045
      %v1224 = vpack.c.b16 %v1048, %v1047
      %v1225 = vpack.c.b16 %v1050, %v1049
      %v1226 = vpack.c.b16 %v1052, %v1051
      %v1227 = vpack.c.b16 %v1054, %v1053
      %v1228 = vpack.c.b16 %v1056, %v1055
      %v1229 = vpack.c.b16 %v1058, %v1057
      %v1230 = vpack.c.b16 %v1060, %v1059
      %v1231 = vpack.c.b16 %v1062, %v1061
      %v1232 = vpack.c.b16 %v1064, %v1063
      %v1233 = vpack.c.b16 %v1066, %v1065
      %v1234 = vpack.c.b16 %v1068, %v1067
      %v1235 = vpack.c.b16 %v1070, %v1069
      %v1236 = vpack.c.b16 %v1072, %v1071
      %v1237 = vpack.c.b16 %v1074, %v1073
      %v1238 = vpack.c.b16 %v1076, %v1075
      %v1239 = vpack.c.b16 %v1078, %v1077
      %v1240 = vpack.c.b16 %v1080, %v1079
      %v1241 = vpack.c.b16 %v1082, %v1081
      %v1242 = vpack.c.b16 %v1084, %v1083
      %v1243 = vpack.c.b16 %v1086, %v1085
      %v1244 = vpack.c.b16 %v1088, %v1087
      %v1245 = vpack.c.b16 %v1090, %v1089
      %v1246 = vpack.c.b16 %v1092, %v1091
      %v1247 = vpack.c.b16 %v1094, %v1093
      %v1248 = vpack.c.b16 %v1096, %v1095
      %v1249 = vpack.c.b16 %v1098, %v1097
      %v1250 = vpack.c.b16 %v1100, %v1099
      %v1251 = vpack.c.b16 %v1102, %v1101
      %v1252 = vpack.c.b16 %v1104, %v1103
      %v1253 = vpack.c.b16 %v1106, %v1105
      %v1254 = vpack.c.b16 %v1108, %v1107
      %v1255 = vpack.c.b16 %v1110, %v1109
      %v1256 = vpack.c.b16 %v1112, %v1111
      %v1257 = vpack.c.b16 %v1114, %v1113
      %v1258 = vpack.c.b16 %v1116, %v1115
      %v1259 = vpack.c.b16 %v1118, %v1117
      %v1260 = vpack.c.b16 %v1120, %v1119
      %v1261 = vpack.c.b16 %v1122, %v1121
      %v1262 = vpack.c.b16 %v1124, %v1123
      %v1263 = vpack.c.b16 %v1126, %v1125
      %v1264 = vpack.c.b16 %v1128, %v1127
      %v1265 = vpack.c.b16 %v1130, %v1129
      %v1266 = vpack.c.b16 %v1132, %v1131
      %v1267 = vpack.c.b16 %v1134, %v1133
      %v1268 = vpack.c.b16 %v1136, %v1135
      %v1269 = vpack.c.b16 %v1138, %v1137
      %v1270 = vpack.c.b16 %v1140, %v1139
      %v1271 = vpack.c.b16 %v1142, %v1141
      %v1272 = vpack.c.b16 %v1144, %v1143
      %v1273 = vpack.c.b16 %v1146, %v1145
      %v1274 = vpack.c.b16 %v1148, %v1147
      %v1275 = vpack.c.b16 %v1150, %v1149
      %v1276 = vpack.c.b16 %v1152, %v1151
      %v1277 = vpack.c.b16 %v1154, %v1153
      %v1278 = vpack.c.b16 %v1156, %v1155
      %v1279 = vpack.c.b16 %v1158, %v1157
      %v1280 = vpack.c.b16 %v1160, %v1159
      %v1281 = vpack.c.b16 %v1162, %v1161
      %v1282 = vpack.c.b16 %v1164, %v1163
      %v1283 = vpack.c.b16 %v1166, %v1165
      %v1284 = vpack.c.b16 %v1168, %v1167
      %v1285 = vpack.c.b16 %v1170, %v1169
      %v1286 = vpack.c.b16 %v1172, %v1171
      %v1287 = vpack.c.b16 %v1174, %v1173
      %v1288 = vpack.c.b16 %v1176, %v1175
      %v1289 = vpack.c.b16 %v1178, %v1177
      %v1290 = vpack.c.b16 %v1180, %v1179
      %v1291 = vpack.c.b16 %v1182, %v1181
      %v1292 = vpack.c.b16 %v1184, %v1183
      %vm1401 = vcmask 523264
      %v1403 = vsel %vm1401, %v658, 0
      %v1406 = vsel %vm1401, %v672, 0
      %v1409 = vsel %vm1401, %v686, 0
      %v1412 = vsel %vm1401, %v700, 0
      %1414 = vmatprep.subr.bf16.mxu0 0
      %1415 = vmatpush1.bf16.msra.mxu0 %v1192
      %1416 = vmatprep.subr.bf16.mxu0 0
      %1417 = vmatpush1.bf16.msra.mxu0 %v1191
      %1418 = vmatprep.subr.bf16.mxu0 0
      %1419 = vmatpush1.bf16.msra.mxu0 %v1190
      %1420 = vmatprep.subr.bf16.mxu0 0
      %1421 = vmatpush1.bf16.msra.mxu0 %v1189
      %1422 = vmatprep.subr.bf16.mxu0 0
      %1423 = vmatpush1.bf16.msra.mxu0 %v1188
      %1424 = vmatprep.subr.bf16.mxu0 0
      %1425 = vmatpush1.bf16.msra.mxu0 %v1187
      %1426 = vmatprep.subr.bf16.mxu0 0
      %1427 = vmatpush1.bf16.msra.mxu0 %v1186
      %1428 = vmatprep.subr.bf16.mxu0 0
      %1429 = vmatpush1.bf16.msra.mxu0 %v1185
      %1430 = vmatprep.subr.bf16.mxu0 0
      %1431 = vmatpush2.bf16.msra.mxu0 %v1200
      %1432 = vmatprep.subr.bf16.mxu0 0
      %1433 = vmatpush2.bf16.msra.mxu0 %v1199
      %1434 = vmatprep.subr.bf16.mxu0 0
      %1435 = vmatpush2.bf16.msra.mxu0 %v1198
      %1436 = vmatprep.subr.bf16.mxu0 0
      %1437 = vmatpush2.bf16.msra.mxu0 %v1197
      %1438 = vmatprep.subr.bf16.mxu0 0
      %1439 = vmatpush2.bf16.msra.mxu0 %v1196
      %1440 = vmatprep.subr.bf16.mxu0 0
      %1441 = vmatpush2.bf16.msra.mxu0 %v1195
      %1442 = vmatprep.subr.bf16.mxu0 0
      %1443 = vmatpush2.bf16.msra.mxu0 %v1194
      %1444 = vmatprep.subr.bf16.mxu0 0
      %1445 = vmatpush2.bf16.msra.mxu0 %v1193
      %1446 = vmatprep.mubr.bf16.mxu0 %v646
      %1447 = vmatmul.mubr.bf16.gmra.mxu0 %v645
      %v1448 = vpop.f32.mrf.mxu0
      %v1449 = vadd.f32 0.0, %v1448
      %v1450 = vpop.f32.mrf.mxu0
      %v1451 = vpop.f32.mrf.mxu0
      %v1452 = vadd.f32 0.0, %v1451
      %v1453 = vpop.f32.mrf.mxu0
      %1454 = vmatprep.mubr.bf16.mxu0 %v660
      %1455 = vmatmul.mubr.bf16.gmra.mxu0 %v659
      %v1456 = vpop.f32.mrf.mxu0
      %v1457 = vadd.f32 0.0, %v1456
      %v1458 = vpop.f32.mrf.mxu0
      %v1459 = vpop.f32.mrf.mxu0
      %v1460 = vadd.f32 0.0, %v1459
      %v1461 = vpop.f32.mrf.mxu0
      %1462 = vmatprep.mubr.bf16.mxu0 %v674
      %1463 = vmatmul.mubr.bf16.gmra.mxu0 %v673
      %v1464 = vpop.f32.mrf.mxu0
      %v1465 = vadd.f32 0.0, %v1464
      %v1466 = vpop.f32.mrf.mxu0
      %v1467 = vpop.f32.mrf.mxu0
      %v1468 = vadd.f32 0.0, %v1467
      %v1469 = vpop.f32.mrf.mxu0
      %1470 = vmatprep.mubr.bf16.mxu0 %v688
      %1471 = vmatmul.mubr.bf16.gmra.mxu0 %v687
      %v1472 = vpop.f32.mrf.mxu0
      %v1473 = vadd.f32 0.0, %v1472
      %v1474 = vpop.f32.mrf.mxu0
      %v1475 = vpop.f32.mrf.mxu0
      %v1476 = vadd.f32 0.0, %v1475
      %v1477 = vpop.f32.mrf.mxu0
      %1478 = vdwg.mxu0
      %1479 = vmatprep.subr.bf16.mxu0 0
      %1480 = vmatpush1.bf16.msra.mxu0 %v1208
      %1481 = vmatprep.subr.bf16.mxu0 0
      %1482 = vmatpush1.bf16.msra.mxu0 %v1207
      %1483 = vmatprep.subr.bf16.mxu0 0
      %1484 = vmatpush1.bf16.msra.mxu0 %v1206
      %1485 = vmatprep.subr.bf16.mxu0 0
      %1486 = vmatpush1.bf16.msra.mxu0 %v1205
      %1487 = vmatprep.subr.bf16.mxu0 0
      %1488 = vmatpush1.bf16.msra.mxu0 %v1204
      %1489 = vmatprep.subr.bf16.mxu0 0
      %1490 = vmatpush1.bf16.msra.mxu0 %v1203
      %1491 = vmatprep.subr.bf16.mxu0 0
      %1492 = vmatpush1.bf16.msra.mxu0 %v1202
      %1493 = vmatprep.subr.bf16.mxu0 0
      %1494 = vmatpush1.bf16.msra.mxu0 %v1201
      %1495 = vmatprep.subr.bf16.mxu0 0
      %1496 = vmatpush2.bf16.msra.mxu0 %v1216
      %1497 = vmatprep.subr.bf16.mxu0 0
      %1498 = vmatpush2.bf16.msra.mxu0 %v1215
      %1499 = vmatprep.subr.bf16.mxu0 0
      %1500 = vmatpush2.bf16.msra.mxu0 %v1214
      %1501 = vmatprep.subr.bf16.mxu0 0
      %1502 = vmatpush2.bf16.msra.mxu0 %v1213
      %1503 = vmatprep.subr.bf16.mxu0 0
      %1504 = vmatpush2.bf16.msra.mxu0 %v1212
      %1505 = vmatprep.subr.bf16.mxu0 0
      %1506 = vmatpush2.bf16.msra.mxu0 %v1211
      %1507 = vmatprep.subr.bf16.mxu0 0
      %1508 = vmatpush2.bf16.msra.mxu0 %v1210
      %1509 = vmatprep.subr.bf16.mxu0 0
      %1510 = vmatpush2.bf16.msra.mxu0 %v1209
      %1511 = vmatprep.mubr.bf16.mxu0 %v648
      %1512 = vmatmul.mubr.bf16.gmra.mxu0 %v647
      %v1513 = vpop.f32.mrf.mxu0
      %v1514 = vadd.f32 %v1449, %v1513
      %v1515 = vpop.f32.mrf.mxu0
      %v1516 = vpop.f32.mrf.mxu0
      %v1517 = vadd.f32 %v1452, %v1516
      %v1518 = vpop.f32.mrf.mxu0
      %1519 = vmatprep.mubr.bf16.mxu0 %v662
      %1520 = vmatmul.mubr.bf16.gmra.mxu0 %v661
      %v1521 = vpop.f32.mrf.mxu0
      %v1522 = vadd.f32 %v1457, %v1521
      %v1523 = vpop.f32.mrf.mxu0
      %v1524 = vpop.f32.mrf.mxu0
      %v1525 = vadd.f32 %v1460, %v1524
      %v1526 = vpop.f32.mrf.mxu0
      %1527 = vmatprep.mubr.bf16.mxu0 %v676
      %1528 = vmatmul.mubr.bf16.gmra.mxu0 %v675
      %v1529 = vpop.f32.mrf.mxu0
      %v1530 = vadd.f32 %v1465, %v1529
      %v1531 = vpop.f32.mrf.mxu0
      %v1532 = vpop.f32.mrf.mxu0
      %v1533 = vadd.f32 %v1468, %v1532
      %v1534 = vpop.f32.mrf.mxu0
      %1535 = vmatprep.mubr.bf16.mxu0 %v690
      %1536 = vmatmul.mubr.bf16.gmra.mxu0 %v689
      %v1537 = vpop.f32.mrf.mxu0
      %v1538 = vadd.f32 %v1473, %v1537
      %v1539 = vpop.f32.mrf.mxu0
      %v1540 = vpop.f32.mrf.mxu0
      %v1541 = vadd.f32 %v1476, %v1540
      %v1542 = vpop.f32.mrf.mxu0
      %1543 = vdwg.mxu0
      %1544 = vmatprep.subr.bf16.mxu0 0
      %1545 = vmatpush1.bf16.msra.mxu0 %v1224
      %1546 = vmatprep.subr.bf16.mxu0 0
      %1547 = vmatpush1.bf16.msra.mxu0 %v1223
      %1548 = vmatprep.subr.bf16.mxu0 0
      %1549 = vmatpush1.bf16.msra.mxu0 %v1222
      %1550 = vmatprep.subr.bf16.mxu0 0
      %1551 = vmatpush1.bf16.msra.mxu0 %v1221
      %1552 = vmatprep.subr.bf16.mxu0 0
      %1553 = vmatpush1.bf16.msra.mxu0 %v1220
      %1554 = vmatprep.subr.bf16.mxu0 0
      %1555 = vmatpush1.bf16.msra.mxu0 %v1219
      %1556 = vmatprep.subr.bf16.mxu0 0
      %1557 = vmatpush1.bf16.msra.mxu0 %v1218
      %1558 = vmatprep.subr.bf16.mxu0 0
      %1559 = vmatpush1.bf16.msra.mxu0 %v1217
      %1560 = vmatprep.subr.bf16.mxu0 0
      %1561 = vmatpush2.bf16.msra.mxu0 %v1232
      %1562 = vmatprep.subr.bf16.mxu0 0
      %1563 = vmatpush2.bf16.msra.mxu0 %v1231
      %1564 = vmatprep.subr.bf16.mxu0 0
      %1565 = vmatpush2.bf16.msra.mxu0 %v1230
      %1566 = vmatprep.subr.bf16.mxu0 0
      %1567 = vmatpush2.bf16.msra.mxu0 %v1229
      %1568 = vmatprep.subr.bf16.mxu0 0
      %1569 = vmatpush2.bf16.msra.mxu0 %v1228
      %1570 = vmatprep.subr.bf16.mxu0 0
      %1571 = vmatpush2.bf16.msra.mxu0 %v1227
      %1572 = vmatprep.subr.bf16.mxu0 0
      %1573 = vmatpush2.bf16.msra.mxu0 %v1226
      %1574 = vmatprep.subr.bf16.mxu0 0
      %1575 = vmatpush2.bf16.msra.mxu0 %v1225
      %1576 = vmatprep.mubr.bf16.mxu0 %v650
      %1577 = vmatmul.mubr.bf16.gmra.mxu0 %v649
      %v1578 = vpop.f32.mrf.mxu0
      %v1579 = vadd.f32 %v1514, %v1578
      %v1580 = vpop.f32.mrf.mxu0
      %v1581 = vpop.f32.mrf.mxu0
      %v1582 = vadd.f32 %v1517, %v1581
      %v1583 = vpop.f32.mrf.mxu0
      %1584 = vmatprep.mubr.bf16.mxu0 %v664
      %1585 = vmatmul.mubr.bf16.gmra.mxu0 %v663
      %v1586 = vpop.f32.mrf.mxu0
      %v1587 = vadd.f32 %v1522, %v1586
      %v1588 = vpop.f32.mrf.mxu0
      %v1589 = vpop.f32.mrf.mxu0
      %v1590 = vadd.f32 %v1525, %v1589
      %v1591 = vpop.f32.mrf.mxu0
      %1592 = vmatprep.mubr.bf16.mxu0 %v678
      %1593 = vmatmul.mubr.bf16.gmra.mxu0 %v677
      %v1594 = vpop.f32.mrf.mxu0
      %v1595 = vadd.f32 %v1530, %v1594
      %v1596 = vpop.f32.mrf.mxu0
      %v1597 = vpop.f32.mrf.mxu0
      %v1598 = vadd.f32 %v1533, %v1597
      %v1599 = vpop.f32.mrf.mxu0
      %1600 = vmatprep.mubr.bf16.mxu0 %v692
      %1601 = vmatmul.mubr.bf16.gmra.mxu0 %v691
      %v1602 = vpop.f32.mrf.mxu0
      %v1603 = vadd.f32 %v1538, %v1602
      %v1604 = vpop.f32.mrf.mxu0
      %v1605 = vpop.f32.mrf.mxu0
      %v1606 = vadd.f32 %v1541, %v1605
      %v1607 = vpop.f32.mrf.mxu0
      %1608 = vdwg.mxu0
      %1609 = vmatprep.subr.bf16.mxu0 0
      %1610 = vmatpush1.bf16.msra.mxu0 %v1240
      %1611 = vmatprep.subr.bf16.mxu0 0
      %1612 = vmatpush1.bf16.msra.mxu0 %v1239
      %1613 = vmatprep.subr.bf16.mxu0 0
      %1614 = vmatpush1.bf16.msra.mxu0 %v1238
      %1615 = vmatprep.subr.bf16.mxu0 0
      %1616 = vmatpush1.bf16.msra.mxu0 %v1237
      %1617 = vmatprep.subr.bf16.mxu0 0
      %1618 = vmatpush1.bf16.msra.mxu0 %v1236
      %1619 = vmatprep.subr.bf16.mxu0 0
      %1620 = vmatpush1.bf16.msra.mxu0 %v1235
      %1621 = vmatprep.subr.bf16.mxu0 0
      %1622 = vmatpush1.bf16.msra.mxu0 %v1234
      %1623 = vmatprep.subr.bf16.mxu0 0
      %1624 = vmatpush1.bf16.msra.mxu0 %v1233
      %1625 = vmatprep.subr.bf16.mxu0 0
      %1626 = vmatpush2.bf16.msra.mxu0 %v1248
      %1627 = vmatprep.subr.bf16.mxu0 0
      %1628 = vmatpush2.bf16.msra.mxu0 %v1247
      %1629 = vmatprep.subr.bf16.mxu0 0
      %1630 = vmatpush2.bf16.msra.mxu0 %v1246
      %1631 = vmatprep.subr.bf16.mxu0 0
      %1632 = vmatpush2.bf16.msra.mxu0 %v1245
      %1633 = vmatprep.subr.bf16.mxu0 0
      %1634 = vmatpush2.bf16.msra.mxu0 %v1244
      %1635 = vmatprep.subr.bf16.mxu0 0
      %1636 = vmatpush2.bf16.msra.mxu0 %v1243
      %1637 = vmatprep.subr.bf16.mxu0 0
      %1638 = vmatpush2.bf16.msra.mxu0 %v1242
      %1639 = vmatprep.subr.bf16.mxu0 0
      %1640 = vmatpush2.bf16.msra.mxu0 %v1241
      %1641 = vmatprep.mubr.bf16.mxu0 %v652
      %1642 = vmatmul.mubr.bf16.gmra.mxu0 %v651
      %v1643 = vpop.f32.mrf.mxu0
      %v1644 = vadd.f32 %v1579, %v1643
      %v1645 = vpop.f32.mrf.mxu0
      %v1646 = vpop.f32.mrf.mxu0
      %v1647 = vadd.f32 %v1582, %v1646
      %v1648 = vpop.f32.mrf.mxu0
      %1649 = vmatprep.mubr.bf16.mxu0 %v666
      %1650 = vmatmul.mubr.bf16.gmra.mxu0 %v665
      %v1651 = vpop.f32.mrf.mxu0
      %v1652 = vadd.f32 %v1587, %v1651
      %v1653 = vpop.f32.mrf.mxu0
      %v1654 = vpop.f32.mrf.mxu0
      %v1655 = vadd.f32 %v1590, %v1654
      %v1656 = vpop.f32.mrf.mxu0
      %1657 = vmatprep.mubr.bf16.mxu0 %v680
      %1658 = vmatmul.mubr.bf16.gmra.mxu0 %v679
      %v1659 = vpop.f32.mrf.mxu0
      %v1660 = vadd.f32 %v1595, %v1659
      %v1661 = vpop.f32.mrf.mxu0
      %v1662 = vpop.f32.mrf.mxu0
      %v1663 = vadd.f32 %v1598, %v1662
      %v1664 = vpop.f32.mrf.mxu0
      %1665 = vmatprep.mubr.bf16.mxu0 %v694
      %1666 = vmatmul.mubr.bf16.gmra.mxu0 %v693
      %v1667 = vpop.f32.mrf.mxu0
      %v1668 = vadd.f32 %v1603, %v1667
      %v1669 = vpop.f32.mrf.mxu0
      %v1670 = vpop.f32.mrf.mxu0
      %v1671 = vadd.f32 %v1606, %v1670
      %v1672 = vpop.f32.mrf.mxu0
      %1673 = vdwg.mxu0
      %1674 = vmatprep.subr.bf16.mxu0 0
      %1675 = vmatpush1.bf16.msra.mxu0 %v1256
      %1676 = vmatprep.subr.bf16.mxu0 0
      %1677 = vmatpush1.bf16.msra.mxu0 %v1255
      %1678 = vmatprep.subr.bf16.mxu0 0
      %1679 = vmatpush1.bf16.msra.mxu0 %v1254
      %1680 = vmatprep.subr.bf16.mxu0 0
      %1681 = vmatpush1.bf16.msra.mxu0 %v1253
      %1682 = vmatprep.subr.bf16.mxu0 0
      %1683 = vmatpush1.bf16.msra.mxu0 %v1252
      %1684 = vmatprep.subr.bf16.mxu0 0
      %1685 = vmatpush1.bf16.msra.mxu0 %v1251
      %1686 = vmatprep.subr.bf16.mxu0 0
      %1687 = vmatpush1.bf16.msra.mxu0 %v1250
      %1688 = vmatprep.subr.bf16.mxu0 0
      %1689 = vmatpush1.bf16.msra.mxu0 %v1249
      %1690 = vmatprep.subr.bf16.mxu0 0
      %1691 = vmatpush2.bf16.msra.mxu0 %v1264
      %1692 = vmatprep.subr.bf16.mxu0 0
      %1693 = vmatpush2.bf16.msra.mxu0 %v1263
      %1694 = vmatprep.subr.bf16.mxu0 0
      %1695 = vmatpush2.bf16.msra.mxu0 %v1262
      %1696 = vmatprep.subr.bf16.mxu0 0
      %1697 = vmatpush2.bf16.msra.mxu0 %v1261
      %1698 = vmatprep.subr.bf16.mxu0 0
      %1699 = vmatpush2.bf16.msra.mxu0 %v1260
      %1700 = vmatprep.subr.bf16.mxu0 0
      %1701 = vmatpush2.bf16.msra.mxu0 %v1259
      %1702 = vmatprep.subr.bf16.mxu0 0
      %1703 = vmatpush2.bf16.msra.mxu0 %v1258
      %1704 = vmatprep.subr.bf16.mxu0 0
      %1705 = vmatpush2.bf16.msra.mxu0 %v1257
      %1706 = vmatprep.mubr.bf16.mxu0 %v654
      %1707 = vmatmul.mubr.bf16.gmra.mxu0 %v653
      %v1708 = vpop.f32.mrf.mxu0
      %v1709 = vadd.f32 %v1644, %v1708
      %v1710 = vpop.f32.mrf.mxu0
      %v1711 = vpop.f32.mrf.mxu0
      %v1712 = vadd.f32 %v1647, %v1711
      %v1713 = vpop.f32.mrf.mxu0
      %1714 = vmatprep.mubr.bf16.mxu0 %v668
      %1715 = vmatmul.mubr.bf16.gmra.mxu0 %v667
      %v1716 = vpop.f32.mrf.mxu0
      %v1717 = vadd.f32 %v1652, %v1716
      %v1718 = vpop.f32.mrf.mxu0
      %v1719 = vpop.f32.mrf.mxu0
      %v1720 = vadd.f32 %v1655, %v1719
      %v1721 = vpop.f32.mrf.mxu0
      %1722 = vmatprep.mubr.bf16.mxu0 %v682
      %1723 = vmatmul.mubr.bf16.gmra.mxu0 %v681
      %v1724 = vpop.f32.mrf.mxu0
      %v1725 = vadd.f32 %v1660, %v1724
      %v1726 = vpop.f32.mrf.mxu0
      %v1727 = vpop.f32.mrf.mxu0
      %v1728 = vadd.f32 %v1663, %v1727
      %v1729 = vpop.f32.mrf.mxu0
      %1730 = vmatprep.mubr.bf16.mxu0 %v696
      %1731 = vmatmul.mubr.bf16.gmra.mxu0 %v695
      %v1732 = vpop.f32.mrf.mxu0
      %v1733 = vadd.f32 %v1668, %v1732
      %v1734 = vpop.f32.mrf.mxu0
      %v1735 = vpop.f32.mrf.mxu0
      %v1736 = vadd.f32 %v1671, %v1735
      %v1737 = vpop.f32.mrf.mxu0
      %1738 = vdwg.mxu0
      %1739 = vmatprep.subr.bf16.mxu0 0
      %1740 = vmatpush1.bf16.msra.mxu0 %v1272
      %1741 = vmatprep.subr.bf16.mxu0 0
      %1742 = vmatpush1.bf16.msra.mxu0 %v1271
      %1743 = vmatprep.subr.bf16.mxu0 0
      %1744 = vmatpush1.bf16.msra.mxu0 %v1270
      %1745 = vmatprep.subr.bf16.mxu0 0
      %1746 = vmatpush1.bf16.msra.mxu0 %v1269
      %1747 = vmatprep.subr.bf16.mxu0 0
      %1748 = vmatpush1.bf16.msra.mxu0 %v1268
      %1749 = vmatprep.subr.bf16.mxu0 0
      %1750 = vmatpush1.bf16.msra.mxu0 %v1267
      %1751 = vmatprep.subr.bf16.mxu0 0
      %1752 = vmatpush1.bf16.msra.mxu0 %v1266
      %1753 = vmatprep.subr.bf16.mxu0 0
      %1754 = vmatpush1.bf16.msra.mxu0 %v1265
      %1755 = vmatprep.subr.bf16.mxu0 0
      %1756 = vmatpush2.bf16.msra.mxu0 %v1280
      %1757 = vmatprep.subr.bf16.mxu0 0
      %1758 = vmatpush2.bf16.msra.mxu0 %v1279
      %1759 = vmatprep.subr.bf16.mxu0 0
      %1760 = vmatpush2.bf16.msra.mxu0 %v1278
      %1761 = vmatprep.subr.bf16.mxu0 0
      %1762 = vmatpush2.bf16.msra.mxu0 %v1277
      %1763 = vmatprep.subr.bf16.mxu0 0
      %1764 = vmatpush2.bf16.msra.mxu0 %v1276
      %1765 = vmatprep.subr.bf16.mxu0 0
      %1766 = vmatpush2.bf16.msra.mxu0 %v1275
      %1767 = vmatprep.subr.bf16.mxu0 0
      %1768 = vmatpush2.bf16.msra.mxu0 %v1274
      %1769 = vmatprep.subr.bf16.mxu0 0
      %1770 = vmatpush2.bf16.msra.mxu0 %v1273
      %1771 = vmatprep.mubr.bf16.mxu0 %v656
      %1772 = vmatmul.mubr.bf16.gmra.mxu0 %v655
      %v1773 = vpop.f32.mrf.mxu0
      %v1774 = vadd.f32 %v1709, %v1773
      %v1775 = vpop.f32.mrf.mxu0
      %v1776 = vpop.f32.mrf.mxu0
      %v1777 = vadd.f32 %v1712, %v1776
      %v1778 = vpop.f32.mrf.mxu0
      %1779 = vmatprep.mubr.bf16.mxu0 %v670
      %1780 = vmatmul.mubr.bf16.gmra.mxu0 %v669
      %v1781 = vpop.f32.mrf.mxu0
      %v1782 = vadd.f32 %v1717, %v1781
      %v1783 = vpop.f32.mrf.mxu0
      %v1784 = vpop.f32.mrf.mxu0
      %v1785 = vadd.f32 %v1720, %v1784
      %v1786 = vpop.f32.mrf.mxu0
      %1787 = vmatprep.mubr.bf16.mxu0 %v684
      %1788 = vmatmul.mubr.bf16.gmra.mxu0 %v683
      %v1789 = vpop.f32.mrf.mxu0
      %v1790 = vadd.f32 %v1725, %v1789
      %v1791 = vpop.f32.mrf.mxu0
      %v1792 = vpop.f32.mrf.mxu0
      %v1793 = vadd.f32 %v1728, %v1792
      %v1794 = vpop.f32.mrf.mxu0
      %1795 = vmatprep.mubr.bf16.mxu0 %v698
      %1796 = vmatmul.mubr.bf16.gmra.mxu0 %v697
      %v1797 = vpop.f32.mrf.mxu0
      %v1798 = vadd.f32 %v1733, %v1797
      %v1799 = vpop.f32.mrf.mxu0
      %v1800 = vpop.f32.mrf.mxu0
      %v1801 = vadd.f32 %v1736, %v1800
      %v1802 = vpop.f32.mrf.mxu0
      %1803 = vdwg.mxu0
      %1804 = vmatprep.subr.bf16.mxu0 0
      %1805 = vmatpush1.bf16.msra.mxu0 %v1288
      %1806 = vmatprep.subr.bf16.mxu0 0
      %1807 = vmatpush1.bf16.msra.mxu0 %v1287
      %1808 = vmatprep.subr.bf16.mxu0 0
      %1809 = vmatpush1.bf16.msra.mxu0 %v1286
      %1810 = vmatprep.subr.bf16.mxu0 0
      %1811 = vmatpush1.bf16.msra.mxu0 %v1285
      %1812 = vmatprep.subr.bf16.mxu0 0
      %1813 = vmatpush1.bf16.msra.mxu0 %v1284
      %1814 = vmatprep.subr.bf16.mxu0 0
      %1815 = vmatpush1.bf16.msra.mxu0 %v1283
      %1816 = vmatprep.subr.bf16.mxu0 0
      %1817 = vmatpush1.bf16.msra.mxu0 %v1282
      %1818 = vmatprep.subr.bf16.mxu0 0
      %1819 = vmatpush1.bf16.msra.mxu0 %v1281
      %1820 = vmatprep.subr.bf16.mxu0 0
      %1821 = vmatpush2.bf16.msra.mxu0 0
      %1822 = vmatprep.subr.bf16.mxu0 0
      %1823 = vmatpush2.bf16.msra.mxu0 0
      %1824 = vmatprep.subr.bf16.mxu0 0
      %1825 = vmatpush2.bf16.msra.mxu0 0
      %1826 = vmatprep.subr.bf16.mxu0 0
      %1827 = vmatpush2.bf16.msra.mxu0 0
      %1828 = vmatprep.subr.bf16.mxu0 0
      %1829 = vmatpush2.bf16.msra.mxu0 %v1292
      %1830 = vmatprep.subr.bf16.mxu0 0
      %1831 = vmatpush2.bf16.msra.mxu0 %v1291
      %1832 = vmatprep.subr.bf16.mxu0 0
      %1833 = vmatpush2.bf16.msra.mxu0 %v1290
      %1834 = vmatprep.subr.bf16.mxu0 0
      %1835 = vmatpush2.bf16.msra.mxu0 %v1289
      %1836 = vmatprep.mubr.bf16.mxu0 %v1403
      %1837 = vmatmul.mubr.bf16.gmra.mxu0 %v657
      %v1838 = vpop.f32.mrf.mxu0
      %v1839 = vadd.f32 %v1774, %v1838
      %v1840 = vpop.f32.mrf.mxu0
      %v1841 = vpop.f32.mrf.mxu0
      %v1842 = vadd.f32 %v1777, %v1841
      %v1843 = vpop.f32.mrf.mxu0
      %1844 = vmatprep.mubr.bf16.mxu0 %v1406
      %1845 = vmatmul.mubr.bf16.gmra.mxu0 %v671
      %v1846 = vpop.f32.mrf.mxu0
      %v1847 = vadd.f32 %v1782, %v1846
      %v1848 = vpop.f32.mrf.mxu0
      %v1849 = vpop.f32.mrf.mxu0
      %v1850 = vadd.f32 %v1785, %v1849
      %v1851 = vpop.f32.mrf.mxu0
      %1852 = vmatprep.mubr.bf16.mxu0 %v1409
      %1853 = vmatmul.mubr.bf16.gmra.mxu0 %v685
      %v1854 = vpop.f32.mrf.mxu0
      %v1855 = vadd.f32 %v1790, %v1854
      %v1856 = vpop.f32.mrf.mxu0
      %v1857 = vpop.f32.mrf.mxu0
      %v1858 = vadd.f32 %v1793, %v1857
      %v1859 = vpop.f32.mrf.mxu0
      %1860 = vmatprep.mubr.bf16.mxu0 %v1412
      %1861 = vmatmul.mubr.bf16.gmra.mxu0 %v699
      %v1862 = vpop.f32.mrf.mxu0
      %v1863 = vadd.f32 %v1798, %v1862
      %v1864 = vpop.f32.mrf.mxu0
      %v1865 = vpop.f32.mrf.mxu0
      %v1866 = vadd.f32 %v1801, %v1865
      %v1867 = vpop.f32.mrf.mxu0
      %1868 = vdwg.mxu0
      %v1869 = vld [vmem:[%s2] sm:$0x1]
      %v1871 = vlaneseq
      %v1872 = vshrl.u32 %v1871, 7
      %v1873 = vsub.s32 0, %v1872
      %v1874 = vrot.slane %v1869, %v1873
      %v1876 = vmul.f32 %v1839, %v1874
      %v1877 = vmul.f32 %v1842, %v1874
      %v1878 = vmul.f32 %v1847, %v1874
      %v1879 = vmul.f32 %v1850, %v1874
      %v1880 = vmul.f32 %v1855, %v1874
      %v1881 = vmul.f32 %v1858, %v1874
      %v1882 = vmul.f32 %v1863, %v1874
      %v1883 = vmul.f32 %v1866, %v1874
      %v1884 = vld [vmem:[%s3] sm:$0x1]
      %v1886 = vlaneseq
      %v1887 = vshrl.u32 %v1886, 7
      %v1888 = vsub.s32 0, %v1887
      %v1889 = vrot.slane %v1884, %v1888
      %v1891 = vadd.f32 %v1876, %v1889
      %v1892 = vadd.f32 %v1877, %v1889
      %v1893 = vadd.f32 %v1878, %v1889
      %v1894 = vadd.f32 %v1879, %v1889
      %v1895 = vadd.f32 %v1880, %v1889
      %v1896 = vadd.f32 %v1881, %v1889
      %v1897 = vadd.f32 %v1882, %v1889
      %v1898 = vadd.f32 %v1883, %v1889
      %vm1899 = vcmp.ge.f32.partialorder %v1891, 0.0
      %vm1900 = vcmp.ge.f32.partialorder %v1892, 0.0
      %vm1901 = vcmp.ge.f32.partialorder %v1893, 0.0
      %vm1902 = vcmp.ge.f32.partialorder %v1894, 0.0
      %vm1903 = vcmp.ge.f32.partialorder %v1895, 0.0
      %vm1904 = vcmp.ge.f32.partialorder %v1896, 0.0
      %vm1905 = vcmp.ge.f32.partialorder %v1897, 0.0
      %vm1906 = vcmp.ge.f32.partialorder %v1898, 0.0
      %v1907 = vmul.f32 %v1891, 0.2
      %v1908 = vmul.f32 %v1892, 0.2
      %v1909 = vmul.f32 %v1893, 0.2
      %v1910 = vmul.f32 %v1894, 0.2
      %v1911 = vmul.f32 %v1895, 0.2
      %v1912 = vmul.f32 %v1896, 0.2
      %v1913 = vmul.f32 %v1897, 0.2
      %v1914 = vmul.f32 %v1898, 0.2
      %v1915 = vsel %vm1899, %v1891, %v1907
      %v1916 = vsel %vm1900, %v1892, %v1908
      %v1917 = vsel %vm1901, %v1893, %v1909
      %v1918 = vsel %vm1902, %v1894, %v1910
      %v1919 = vsel %vm1903, %v1895, %v1911
      %v1920 = vsel %vm1904, %v1896, %v1912
      %v1921 = vsel %vm1905, %v1897, %v1913
      %v1922 = vsel %vm1906, %v1898, %v1914
      %v1923 = vpack.c.bf16 %v1916, %v1915
      %v1924 = vpack.c.bf16 %v1918, %v1917
      %v1925 = vpack.c.bf16 %v1920, %v1919
      %v1926 = vpack.c.bf16 %v1922, %v1921
      %v1931 = vunpack.c.l.b16 %v1923
      %v1932 = vunpack.c.h.b16 %v1923
      %v1933 = vunpack.c.l.b16 %v1924
      %v1934 = vunpack.c.h.b16 %v1924
      %v1935 = vunpack.c.l.b16 %v1925
      %v1936 = vunpack.c.h.b16 %v1925
      %v1937 = vunpack.c.l.b16 %v1926
      %v1938 = vunpack.c.h.b16 %v1926
      %v1939 = vpack.c.b16 %v1931, %v1931
      %v1940 = vpack.c.b16 %v1932, %v1932
      %v1941 = vpack.c.b16 %v1933, %v1933
      %v1942 = vpack.c.b16 %v1934, %v1934
      %v1943 = vpack.c.b16 %v1935, %v1935
      %v1944 = vpack.c.b16 %v1936, %v1936
      %v1945 = vpack.c.b16 %v1937, %v1937
      %v1946 = vpack.c.b16 %v1938, %v1938
      %vm1955 = vcmask 519168
      %1956 = vst.msk [vmem:[%s202] sm:$0xf] %vm1955, %v1939
      %1957 = vst.msk [vmem:[%s202 + $0x4] sm:$0xf] %vm1955, %v1940
      %1958 = vst.msk [vmem:[%s202 + $0x8] sm:$0xf] %vm1955, %v1941
      %1959 = vst.msk [vmem:[%s202 + $0xc] sm:$0xf] %vm1955, %v1942
      %1960 = vst.msk [vmem:[%s202 + $0x10] sm:$0xf] %vm1955, %v1943
      %1961 = vst.msk [vmem:[%s202 + $0x14] sm:$0xf] %vm1955, %v1944
      %1962 = vst.msk [vmem:[%s202 + $0x18] sm:$0xf] %vm1955, %v1945
      %1963 = vst.msk [vmem:[%s202 + $0x1c] sm:$0xf] %vm1955, %v1946
      %s1964 = smul.u32 8, %s15
      %p1965 = scmp.lt.s32.totalorder %s1964, 15
      %s1966 = scalar_select %p1965, %s1964, 15
      %s1967 = smul.addr %s1966, 4
      %s1968 = scalar_lea.vmem %s4, %s1967
      // Predicated region
      $region37: #{unet_forward.19} parent=35 // pred_check
        %p1969 = pneg %p122
      $region38: #{unet_forward.19} parent=35 // pred_check_branch
        %1971 = sbr.rel (%p1969) target = $region40
      $region39: #{unet_forward.19} parent=35 // pred_region
        %s1972 = smul.u32 8, %s15
      $region40: #{unet_forward.19} parent=35 // pred_fallthru
        _
    $region36: #{unet_forward.19} parent=5 // pred_fallthru
      _
    %p1973 = scmp.le.s32.totalorder 2, %s10
    // Predicated region
    $region41: #{unet_forward.19} parent=5 // pred_check
      %p1974 = pneg %p1973
    $region42: #{unet_forward.19} parent=5 // pred_check_branch
      %1976 = sbr.rel (%p1974) target = $region44
    $region43: #{unet_forward.19} parent=5 // pred_region
      %s1977 = ssub.s32 %s10, 2
      // Predicated region
      $region45: #{unet_forward.19} parent=43 // pred_check
        %p1978 = pneg %p128
      $region46: #{unet_forward.19} parent=43 // pred_check_branch
        %1980 = sbr.rel (%p1978) target = $region48
      $region47: #{unet_forward.19} parent=43 // pred_region
        %s1981 = smul.u32 8, %s16
        %p1982 = scmp.lt.s32.totalorder %s1981, 15
        %s1983 = scalar_select %p1982, %s1981, 15
        %s1984 = smul.addr %s1983, 4
        %s1985 = scalar_lea.vmem %s4, %s1984
      $region48: #{unet_forward.19} parent=43 // pred_fallthru
        _
    $region44: #{unet_forward.19} parent=5 // pred_fallthru
      _
  $region6: #{unet_forward.19} parent=0 // loop_footer
    %s14 = sadd.s32 1, %s10
  $region7: #{unet_forward.19} parent=0 // loop_footer_branch
    %9 = sbr.rel target = $region3
  $region8: #{unet_forward.19} parent=0 // loop_exit
    _

// kernel: unet_forward.21
$region0: #{unet_forward.21}
  #allocation0 [shape = 'u32[]', space=smem, size = 0x4, offset = 0x4, fixed_abs, tag = 'smem constant byte address 0x4 - core index']
  #allocation1 [shape = 'u32[144,128]{1,0:T(1,128)}', space=vmem, size = 0x12000, scoped, tag = 'internal scratch']
  %s0 = inlined_call_operand.vmem [shape: bf16[512,864], index: 0, kind: input, shape index: {}]
  %s1 = inlined_call_operand.vmem [shape: bf16[864,32], index: 1, kind: input, shape index: {}]
  %s2 = inlined_call_operand.vmem [shape: f32[1,32], index: 2, kind: input, shape index: {}]
  %s3 = inlined_call_operand.vmem [shape: f32[1,32], index: 3, kind: input, shape index: {}]
  %s4 = inlined_call_operand.vmem [shape: bf16[512,32], index: 4, kind: output, shape index: {}]
  %s5 = sld [smem:[#allocation0]]
  $region49: #{unet_forward.21} parent=0
    _
  %s7 = ssub.s32 1, %s5
  %s8 = scalar_select 0, %s7, %s5
  loop: start=0, step=1, limit=4
  $region2: #{unet_forward.21} parent=0 // loop_pre_header
    _
  $region3: #{unet_forward.21} parent=0 // loop_header
    %s10 = sphi 0, %s14
    %p11 = scmp.ge.s32.totalorder %s10, 4
    %s20 = sphi 0, %s22
    %s23 = sphi 0, %s20
    %s24 = sphi 0, %s23
    %s40 = sphi 0, %s24
    %s44 = sphi 0, %s44
    %s46 = sphi 0, %s44
    %s47 = sphi 0, %s46
    %s61 = sphi 0, %s47
    %s65 = sphi 0, %s65
    %s67 = sphi 0, %s65
    %s68 = sphi 0, %s67
    %s82 = sphi 0, %s68
    %s86 = sphi 0, %s86
    %s88 = sphi 0, %s86
    %s89 = sphi 0, %s88
    %s103 = sphi 0, %s89
    %s109 = sphi 0, %s111
    %s112 = sphi 0, %s109
    %s113 = sphi 0, %s112
    %s129 = sphi 0, %s113
  $region4: #{unet_forward.21} parent=0 // loop_header_branch
    %13 = sbr.rel (%p11) target = $region8
  $region5: #{unet_forward.21} parent=0 // loop_body
    %s15 = ssub.s32 %s10, 1
    %s16 = ssub.s32 %s10, 2
    %s17 = sadd.s32 %s10, 1
    %s18 = ssub.s32 %s10, %s17
    %p19 = scmp.eq.s32.totalorder %s18, 0
    %s21 = sadd.s32 %s20, 1
    %s22 = scalar_select %p19, %s20, %s21
    %p25 = pneg %p19
    %p26 = scmp.eq.s32.totalorder %s10, 1
    %p27 = por %p25, %p26
    %p28 = scmp.ne.s32.totalorder %s20, %s23
    %p29 = scmp.eq.s32.totalorder %s10, 0
    %p30 = por %p28, %p29
    %p31 = scmp.ne.s32.totalorder %s20, %s23
    %p32 = scmp.eq.s32.totalorder %s15, 1
    %p33 = por %p31, %p32
    %p34 = scmp.ne.s32.totalorder %s23, %s24
    %p35 = scmp.eq.s32.totalorder %s15, 0
    %p36 = por %p34, %p35
    %p37 = scmp.ne.s32.totalorder %s23, %s24
    %p38 = scmp.eq.s32.totalorder %s16, 1
    %p39 = por %p37, %p38
    %p41 = scmp.ne.s32.totalorder %s24, %s40
    %p42 = scmp.eq.s32.totalorder %s16, 0
    %p43 = por %p41, %p42
    %s45 = sadd.s32 %s44, 1
    %p48 = scmp.eq.s32.totalorder %s10, 1
    %p49 = scmp.ne.s32.totalorder %s44, %s46
    %p50 = scmp.eq.s32.totalorder %s10, 0
    %p51 = por %p49, %p50
    %p52 = scmp.ne.s32.totalorder %s44, %s46
    %p53 = scmp.eq.s32.totalorder %s15, 1
    %p54 = por %p52, %p53
    %p55 = scmp.ne.s32.totalorder %s46, %s47
    %p56 = scmp.eq.s32.totalorder %s15, 0
    %p57 = por %p55, %p56
    %p58 = scmp.ne.s32.totalorder %s46, %s47
    %p59 = scmp.eq.s32.totalorder %s16, 1
    %p60 = por %p58, %p59
    %p62 = scmp.ne.s32.totalorder %s47, %s61
    %p63 = scmp.eq.s32.totalorder %s16, 0
    %p64 = por %p62, %p63
    %s66 = sadd.s32 %s65, 1
    %p69 = scmp.eq.s32.totalorder %s10, 1
    %p70 = scmp.ne.s32.totalorder %s65, %s67
    %p71 = scmp.eq.s32.totalorder %s10, 0
    %p72 = por %p70, %p71
    %p73 = scmp.ne.s32.totalorder %s65, %s67
    %p74 = scmp.eq.s32.totalorder %s15, 1
    %p75 = por %p73, %p74
    %p76 = scmp.ne.s32.totalorder %s67, %s68
    %p77 = scmp.eq.s32.totalorder %s15, 0
    %p78 = por %p76, %p77
    %p79 = scmp.ne.s32.totalorder %s67, %s68
    %p80 = scmp.eq.s32.totalorder %s16, 1
    %p81 = por %p79, %p80
    %p83 = scmp.ne.s32.totalorder %s68, %s82
    %p84 = scmp.eq.s32.totalorder %s16, 0
    %p85 = por %p83, %p84
    %s87 = sadd.s32 %s86, 1
    %p90 = scmp.eq.s32.totalorder %s10, 1
    %p91 = scmp.ne.s32.totalorder %s86, %s88
    %p92 = scmp.eq.s32.totalorder %s10, 0
    %p93 = por %p91, %p92
    %p94 = scmp.ne.s32.totalorder %s86, %s88
    %p95 = scmp.eq.s32.totalorder %s15, 1
    %p96 = por %p94, %p95
    %p97 = scmp.ne.s32.totalorder %s88, %s89
    %p98 = scmp.eq.s32.totalorder %s15, 0
    %p99 = por %p97, %p98
    %p100 = scmp.ne.s32.totalorder %s88, %s89
    %p101 = scmp.eq.s32.totalorder %s16, 1
    %p102 = por %p100, %p101
    %p104 = scmp.ne.s32.totalorder %s89, %s103
    %p105 = scmp.eq.s32.totalorder %s16, 0
    %p106 = por %p104, %p105
    %s107 = ssub.s32 %s10, %s17
    %p108 = scmp.eq.s32.totalorder %s107, 0
    %s110 = sadd.s32 %s109, 1
    %s111 = scalar_select %p108, %s109, %s110
    %p114 = pneg %p108
    %p115 = scmp.eq.s32.totalorder %s10, 1
    %p116 = por %p114, %p115
    %p117 = scmp.ne.s32.totalorder %s109, %s112
    %p118 = scmp.eq.s32.totalorder %s10, 0
    %p119 = por %p117, %p118
    %p120 = scmp.ne.s32.totalorder %s109, %s112
    %p121 = scmp.eq.s32.totalorder %s15, 1
    %p122 = por %p120, %p121
    %p123 = scmp.ne.s32.totalorder %s112, %s113
    %p124 = scmp.eq.s32.totalorder %s15, 0
    %p125 = por %p123, %p124
    %p126 = scmp.ne.s32.totalorder %s112, %s113
    %p127 = scmp.eq.s32.totalorder %s16, 1
    %p128 = por %p126, %p127
    %p130 = scmp.ne.s32.totalorder %s113, %s129
    %p131 = scmp.eq.s32.totalorder %s16, 0
    %p132 = por %p130, %p131
    %p133 = scmp.le.s32.totalorder 1, %s10
    %p134 = scmp.lt.s32.totalorder %s10, 3
    %p135 = pnand %p133, %p134
    %p136 = pneg %p135
    // Predicated region
    $region9: #{unet_forward.21} parent=5 // pred_check
      _
    $region10: #{unet_forward.21} parent=5 // pred_check_branch
      %138 = sbr.rel (%p135) target = $region12
    $region11: #{unet_forward.21} parent=5 // pred_region
      %s139 = ssub.s32 %s10, 1
      // Predicated region
      $region13: #{unet_forward.21} parent=11 // pred_check
        %p140 = pneg %p57
      $region14: #{unet_forward.21} parent=11 // pred_check_branch
        %142 = sbr.rel (%p140) target = $region16
      $region15: #{unet_forward.21} parent=11 // pred_region
        _
      $region16: #{unet_forward.21} parent=11 // pred_fallthru
        _
      // Predicated region
      $region17: #{unet_forward.21} parent=11 // pred_check
        %p143 = pneg %p78
      $region18: #{unet_forward.21} parent=11 // pred_check_branch
        %145 = sbr.rel (%p143) target = $region20
      $region19: #{unet_forward.21} parent=11 // pred_region
        _
      $region20: #{unet_forward.21} parent=11 // pred_fallthru
        _
      // Predicated region
      $region21: #{unet_forward.21} parent=11 // pred_check
        %p146 = pneg %p99
      $region22: #{unet_forward.21} parent=11 // pred_check_branch
        %148 = sbr.rel (%p146) target = $region24
      $region23: #{unet_forward.21} parent=11 // pred_region
        _
      $region24: #{unet_forward.21} parent=11 // pred_fallthru
        _
    $region12: #{unet_forward.21} parent=5 // pred_fallthru
      _
    %p149 = scmp.lt.s32.totalorder %s10, 2
    // Predicated region
    $region25: #{unet_forward.21} parent=5 // pred_check
      %p150 = pneg %p149
    $region26: #{unet_forward.21} parent=5 // pred_check_branch
      %152 = sbr.rel (%p150) target = $region28
    $region27: #{unet_forward.21} parent=5 // pred_region
      // Predicated region
      $region29: #{unet_forward.21} parent=27 // pred_check
        %p153 = pneg %p30
      $region30: #{unet_forward.21} parent=27 // pred_check_branch
        %155 = sbr.rel (%p153) target = $region32
      $region31: #{unet_forward.21} parent=27 // pred_region
        %s156 = smul.u32 32, %s10
        %p157 = scmp.lt.s32.totalorder %s156, 63
        %s158 = scalar_select %p157, %s156, 63
        %s159 = smul.addr %s158, 7
        %s160 = smul.addr %s159, 4
        %s161 = scalar_lea.vmem %s0, %s160
        %s162 = smul.u32 32, %s10
      $region32: #{unet_forward.21} parent=27 // pred_fallthru
        _
    $region28: #{unet_forward.21} parent=5 // pred_fallthru
      _
    %p163 = scmp.le.s32.totalorder 1, %s10
    %p164 = scmp.lt.s32.totalorder %s10, 3
    %p165 = pnand %p163, %p164
    %p166 = pneg %p165
    // Predicated region
    $region33: #{unet_forward.21} parent=5 // pred_check
      _
    $region34: #{unet_forward.21} parent=5 // pred_check_branch
      %168 = sbr.rel (%p165) target = $region36
    $region35: #{unet_forward.21} parent=5 // pred_region
      %s169 = ssub.s32 %s10, 1
      %s170 = smul.u32 32, %s15
      %p171 = scmp.lt.s32.totalorder %s170, 63
      %s172 = scalar_select %p171, %s170, 63
      %s173 = smul.addr %s172, 7
      %s174 = smul.addr %s173, 4
      %s175 = scalar_lea.vmem %s0, %s174
      %p176 = pneg %p36
      %p177 = pneg %p33
      %p178 = pneg %p57
      %p179 = pneg %p54
      %p180 = pneg %p78
      %p181 = pneg %p75
      %p182 = pneg %p99
      %p183 = pneg %p96
      %p184 = pneg %p125
      %p185 = pneg %p122
      %s186 = smul.u32 32, %s15
      %p187 = scmp.lt.s32.totalorder %s186, 63
      %s188 = scalar_select %p187, %s186, 63
      %s189 = smul.addr %s188, 4
      %s190 = scalar_lea.vmem %s4, %s189
      %s191 = smul.u32 32, %s15
      %p192 = scmp.lt.s32.totalorder %s191, 63
      %s193 = scalar_select %p192, %s191, 63
      %s194 = smul.addr %s193, 7
      %s195 = smul.addr %s194, 4
      %s196 = scalar_lea.vmem %s0, %s195
      %s197 = smul.u32 32, %s15
      %s198 = smul.u32 32, %s15
      %p199 = scmp.lt.s32.totalorder %s198, 63
      %s200 = scalar_select %p199, %s198, 63
      %s201 = smul.addr %s200, 4
      %s202 = scalar_lea.vmem %s4, %s201
      %s203 = smul.u32 32, %s15
      %v205 = vld [vmem:[%s196] sm:$0xff]
      %v206 = vld [vmem:[%s196 + $0x8] sm:$0xff]
      %v207 = vld [vmem:[%s196 + $0x10] sm:$0xff]
      %v208 = vld [vmem:[%s196 + $0x18] sm:$0xf]
      %v209 = vld [vmem:[%s196 + $0x1c] sm:$0xff]
      %v210 = vld [vmem:[%s196 + $0x24] sm:$0xff]
      %v211 = vld [vmem:[%s196 + $0x2c] sm:$0xff]
      %v212 = vld [vmem:[%s196 + $0x34] sm:$0xf]
      %v213 = vld [vmem:[%s196 + $0x38] sm:$0xff]
      %v214 = vld [vmem:[%s196 + $0x40] sm:$0xff]
      %v215 = vld [vmem:[%s196 + $0x48] sm:$0xff]
      %v216 = vld [vmem:[%s196 + $0x50] sm:$0xf]
      %v217 = vld [vmem:[%s196 + $0x54] sm:$0xff]
      %v218 = vld [vmem:[%s196 + $0x5c] sm:$0xff]
      %v219 = vld [vmem:[%s196 + $0x64] sm:$0xff]
      %v220 = vld [vmem:[%s196 + $0x6c] sm:$0xf]
      %v221 = vld [vmem:[%s196 + $0x70] sm:$0xff]
      %v222 = vld [vmem:[%s196 + $0x78] sm:$0xff]
      %v223 = vld [vmem:[%s196 + $0x80] sm:$0xff]
      %v224 = vld [vmem:[%s196 + $0x88] sm:$0xf]
      %v225 = vld [vmem:[%s196 + $0x8c] sm:$0xff]
      %v226 = vld [vmem:[%s196 + $0x94] sm:$0xff]
      %v227 = vld [vmem:[%s196 + $0x9c] sm:$0xff]
      %v228 = vld [vmem:[%s196 + $0xa4] sm:$0xf]
      %v229 = vld [vmem:[%s196 + $0xa8] sm:$0xff]
      %v230 = vld [vmem:[%s196 + $0xb0] sm:$0xff]
      %v231 = vld [vmem:[%s196 + $0xb8] sm:$0xff]
      %v232 = vld [vmem:[%s196 + $0xc0] sm:$0xf]
      %v233 = vld [vmem:[%s196 + $0xc4] sm:$0xff]
      %v234 = vld [vmem:[%s196 + $0xcc] sm:$0xff]
      %v235 = vld [vmem:[%s196 + $0xd4] sm:$0xff]
      %v236 = vld [vmem:[%s196 + $0xdc] sm:$0xf]
      %v237 = vld [vmem:[%s196 + $0xe0] sm:$0xff]
      %v238 = vld [vmem:[%s196 + $0xe8] sm:$0xff]
      %v239 = vld [vmem:[%s196 + $0xf0] sm:$0xff]
      %v240 = vld [vmem:[%s196 + $0xf8] sm:$0xf]
      %v241 = vld [vmem:[%s196 + $0xfc] sm:$0xff]
      %v242 = vld [vmem:[%s196 + $0x104] sm:$0xff]
      %v243 = vld [vmem:[%s196 + $0x10c] sm:$0xff]
      %v244 = vld [vmem:[%s196 + $0x114] sm:$0xf]
      %v245 = vld [vmem:[%s196 + $0x118] sm:$0xff]
      %v246 = vld [vmem:[%s196 + $0x120] sm:$0xff]
      %v247 = vld [vmem:[%s196 + $0x128] sm:$0xff]
      %v248 = vld [vmem:[%s196 + $0x130] sm:$0xf]
      %v249 = vld [vmem:[%s196 + $0x134] sm:$0xff]
      %v250 = vld [vmem:[%s196 + $0x13c] sm:$0xff]
      %v251 = vld [vmem:[%s196 + $0x144] sm:$0xff]
      %v252 = vld [vmem:[%s196 + $0x14c] sm:$0xf]
      %v253 = vld [vmem:[%s196 + $0x150] sm:$0xff]
      %v254 = vld [vmem:[%s196 + $0x158] sm:$0xff]
      %v255 = vld [vmem:[%s196 + $0x160] sm:$0xff]
      %v256 = vld [vmem:[%s196 + $0x168] sm:$0xf]
      %v257 = vld [vmem:[%s196 + $0x16c] sm:$0xff]
      %v258 = vld [vmem:[%s196 + $0x174] sm:$0xff]
      %v259 = vld [vmem:[%s196 + $0x17c] sm:$0xff]
      %v260 = vld [vmem:[%s196 + $0x184] sm:$0xf]
      %v261 = vld [vmem:[%s196 + $0x188] sm:$0xff]
      %v262 = vld [vmem:[%s196 + $0x190] sm:$0xff]
      %v263 = vld [vmem:[%s196 + $0x198] sm:$0xff]
      %v264 = vld [vmem:[%s196 + $0x1a0] sm:$0xf]
      %v265 = vld [vmem:[%s196 + $0x1a4] sm:$0xff]
      %v266 = vld [vmem:[%s196 + $0x1ac] sm:$0xff]
      %v267 = vld [vmem:[%s196 + $0x1b4] sm:$0xff]
      %v268 = vld [vmem:[%s196 + $0x1bc] sm:$0xf]
      %v269 = vld [vmem:[%s196 + $0x1c0] sm:$0xff]
      %v270 = vld [vmem:[%s196 + $0x1c8] sm:$0xff]
      %v271 = vld [vmem:[%s196 + $0x1d0] sm:$0xff]
      %v272 = vld [vmem:[%s196 + $0x1d8] sm:$0xf]
      %v273 = vld [vmem:[%s196 + $0x1dc] sm:$0xff]
      %v274 = vld [vmem:[%s196 + $0x1e4] sm:$0xff]
      %v275 = vld [vmem:[%s196 + $0x1ec] sm:$0xff]
      %v276 = vld [vmem:[%s196 + $0x1f4] sm:$0xf]
      %v277 = vld [vmem:[%s196 + $0x1f8] sm:$0xff]
      %v278 = vld [vmem:[%s196 + $0x200] sm:$0xff]
      %v279 = vld [vmem:[%s196 + $0x208] sm:$0xff]
      %v280 = vld [vmem:[%s196 + $0x210] sm:$0xf]
      %v281 = vld [vmem:[%s196 + $0x214] sm:$0xff]
      %v282 = vld [vmem:[%s196 + $0x21c] sm:$0xff]
      %v283 = vld [vmem:[%s196 + $0x224] sm:$0xff]
      %v284 = vld [vmem:[%s196 + $0x22c] sm:$0xf]
      %v285 = vld [vmem:[%s196 + $0x230] sm:$0xff]
      %v286 = vld [vmem:[%s196 + $0x238] sm:$0xff]
      %v287 = vld [vmem:[%s196 + $0x240] sm:$0xff]
      %v288 = vld [vmem:[%s196 + $0x248] sm:$0xf]
      %v289 = vld [vmem:[%s196 + $0x24c] sm:$0xff]
      %v290 = vld [vmem:[%s196 + $0x254] sm:$0xff]
      %v291 = vld [vmem:[%s196 + $0x25c] sm:$0xff]
      %v292 = vld [vmem:[%s196 + $0x264] sm:$0xf]
      %v293 = vld [vmem:[%s196 + $0x268] sm:$0xff]
      %v294 = vld [vmem:[%s196 + $0x270] sm:$0xff]
      %v295 = vld [vmem:[%s196 + $0x278] sm:$0xff]
      %v296 = vld [vmem:[%s196 + $0x280] sm:$0xf]
      %v297 = vld [vmem:[%s196 + $0x284] sm:$0xff]
      %v298 = vld [vmem:[%s196 + $0x28c] sm:$0xff]
      %v299 = vld [vmem:[%s196 + $0x294] sm:$0xff]
      %v300 = vld [vmem:[%s196 + $0x29c] sm:$0xf]
      %v301 = vld [vmem:[%s196 + $0x2a0] sm:$0xff]
      %v302 = vld [vmem:[%s196 + $0x2a8] sm:$0xff]
      %v303 = vld [vmem:[%s196 + $0x2b0] sm:$0xff]
      %v304 = vld [vmem:[%s196 + $0x2b8] sm:$0xf]
      %v305 = vld [vmem:[%s196 + $0x2bc] sm:$0xff]
      %v306 = vld [vmem:[%s196 + $0x2c4] sm:$0xff]
      %v307 = vld [vmem:[%s196 + $0x2cc] sm:$0xff]
      %v308 = vld [vmem:[%s196 + $0x2d4] sm:$0xf]
      %v309 = vld [vmem:[%s196 + $0x2d8] sm:$0xff]
      %v310 = vld [vmem:[%s196 + $0x2e0] sm:$0xff]
      %v311 = vld [vmem:[%s196 + $0x2e8] sm:$0xff]
      %v312 = vld [vmem:[%s196 + $0x2f0] sm:$0xf]
      %v313 = vld [vmem:[%s196 + $0x2f4] sm:$0xff]
      %v314 = vld [vmem:[%s196 + $0x2fc] sm:$0xff]
      %v315 = vld [vmem:[%s196 + $0x304] sm:$0xff]
      %v316 = vld [vmem:[%s196 + $0x30c] sm:$0xf]
      %v317 = vld [vmem:[%s196 + $0x310] sm:$0xff]
      %v318 = vld [vmem:[%s196 + $0x318] sm:$0xff]
      %v319 = vld [vmem:[%s196 + $0x320] sm:$0xff]
      %v320 = vld [vmem:[%s196 + $0x328] sm:$0xf]
      %v321 = vld [vmem:[%s196 + $0x32c] sm:$0xff]
      %v322 = vld [vmem:[%s196 + $0x334] sm:$0xff]
      %v323 = vld [vmem:[%s196 + $0x33c] sm:$0xff]
      %v324 = vld [vmem:[%s196 + $0x344] sm:$0xf]
      %v325 = vld [vmem:[%s196 + $0x348] sm:$0xff]
      %v326 = vld [vmem:[%s196 + $0x350] sm:$0xff]
      %v327 = vld [vmem:[%s196 + $0x358] sm:$0xff]
      %v328 = vld [vmem:[%s196 + $0x360] sm:$0xf]
      %v329 = vld [vmem:[%s196 + $0x364] sm:$0xff]
      %v330 = vld [vmem:[%s196 + $0x36c] sm:$0xff]
      %v331 = vld [vmem:[%s196 + $0x374] sm:$0xff]
      %v332 = vld [vmem:[%s196 + $0x37c] sm:$0xf]
      %v333 = vld [vmem:[%s1] sm:$0xf]
      %v334 = vld [vmem:[%s1 + $0x4] sm:$0xf]
      %v335 = vld [vmem:[%s1 + $0x8] sm:$0xf]
      %v336 = vld [vmem:[%s1 + $0xc] sm:$0xf]
      %v337 = vld [vmem:[%s1 + $0x10] sm:$0xf]
      %v338 = vld [vmem:[%s1 + $0x14] sm:$0xf]
      %v339 = vld [vmem:[%s1 + $0x18] sm:$0xf]
      %v340 = vld [vmem:[%s1 + $0x1c] sm:$0xf]
      %v341 = vld [vmem:[%s1 + $0x20] sm:$0xf]
      %v342 = vld [vmem:[%s1 + $0x24] sm:$0xf]
      %v343 = vld [vmem:[%s1 + $0x28] sm:$0xf]
      %v344 = vld [vmem:[%s1 + $0x2c] sm:$0xf]
      %v345 = vld [vmem:[%s1 + $0x30] sm:$0xf]
      %v346 = vld [vmem:[%s1 + $0x34] sm:$0xf]
      %v347 = vld [vmem:[%s1 + $0x38] sm:$0xf]
      %v348 = vld [vmem:[%s1 + $0x3c] sm:$0xf]
      %v349 = vld [vmem:[%s1 + $0x40] sm:$0xf]
      %v350 = vld [vmem:[%s1 + $0x44] sm:$0xf]
      %v351 = vld [vmem:[%s1 + $0x48] sm:$0xf]
      %v352 = vld [vmem:[%s1 + $0x4c] sm:$0xf]
      %v353 = vld [vmem:[%s1 + $0x50] sm:$0xf]
      %v354 = vld [vmem:[%s1 + $0x54] sm:$0xf]
      %v355 = vld [vmem:[%s1 + $0x58] sm:$0xf]
      %v356 = vld [vmem:[%s1 + $0x5c] sm:$0xf]
      %v357 = vld [vmem:[%s1 + $0x60] sm:$0xf]
      %v358 = vld [vmem:[%s1 + $0x64] sm:$0xf]
      %v359 = vld [vmem:[%s1 + $0x68] sm:$0xf]
      %v360 = vld [vmem:[%s1 + $0x6c] sm:$0xf]
      %v361 = vld [vmem:[%s1 + $0x70] sm:$0xf]
      %v362 = vld [vmem:[%s1 + $0x74] sm:$0xf]
      %v363 = vld [vmem:[%s1 + $0x78] sm:$0xf]
      %v364 = vld [vmem:[%s1 + $0x7c] sm:$0xf]
      %v365 = vld [vmem:[%s1 + $0x80] sm:$0xf]
      %v366 = vld [vmem:[%s1 + $0x84] sm:$0xf]
      %v367 = vld [vmem:[%s1 + $0x88] sm:$0xf]
      %v368 = vld [vmem:[%s1 + $0x8c] sm:$0xf]
      %v369 = vld [vmem:[%s1 + $0x90] sm:$0xf]
      %v370 = vld [vmem:[%s1 + $0x94] sm:$0xf]
      %v371 = vld [vmem:[%s1 + $0x98] sm:$0xf]
      %v372 = vld [vmem:[%s1 + $0x9c] sm:$0xf]
      %v373 = vld [vmem:[%s1 + $0xa0] sm:$0xf]
      %v374 = vld [vmem:[%s1 + $0xa4] sm:$0xf]
      %v375 = vld [vmem:[%s1 + $0xa8] sm:$0xf]
      %v376 = vld [vmem:[%s1 + $0xac] sm:$0xf]
      %v377 = vld [vmem:[%s1 + $0xb0] sm:$0xf]
      %v378 = vld [vmem:[%s1 + $0xb4] sm:$0xf]
      %v379 = vld [vmem:[%s1 + $0xb8] sm:$0xf]
      %v380 = vld [vmem:[%s1 + $0xbc] sm:$0xf]
      %v381 = vld [vmem:[%s1 + $0xc0] sm:$0xf]
      %v382 = vld [vmem:[%s1 + $0xc4] sm:$0xf]
      %v383 = vld [vmem:[%s1 + $0xc8] sm:$0xf]
      %v384 = vld [vmem:[%s1 + $0xcc] sm:$0xf]
      %v385 = vld [vmem:[%s1 + $0xd0] sm:$0xf]
      %v386 = vld [vmem:[%s1 + $0xd4] sm:$0xf]
      %v387 = vld [vmem:[%s1 + $0xd8] sm:$0xf]
      %v388 = vld [vmem:[%s1 + $0xdc] sm:$0xf]
      %v389 = vld [vmem:[%s1 + $0xe0] sm:$0xf]
      %v390 = vld [vmem:[%s1 + $0xe4] sm:$0xf]
      %v391 = vld [vmem:[%s1 + $0xe8] sm:$0xf]
      %v392 = vld [vmem:[%s1 + $0xec] sm:$0xf]
      %v393 = vld [vmem:[%s1 + $0xf0] sm:$0xf]
      %v394 = vld [vmem:[%s1 + $0xf4] sm:$0xf]
      %v395 = vld [vmem:[%s1 + $0xf8] sm:$0xf]
      %v396 = vld [vmem:[%s1 + $0xfc] sm:$0xf]
      %v397 = vld [vmem:[%s1 + $0x100] sm:$0xf]
      %v398 = vld [vmem:[%s1 + $0x104] sm:$0xf]
      %v399 = vld [vmem:[%s1 + $0x108] sm:$0xf]
      %v400 = vld [vmem:[%s1 + $0x10c] sm:$0xf]
      %v401 = vld [vmem:[%s1 + $0x110] sm:$0xf]
      %v402 = vld [vmem:[%s1 + $0x114] sm:$0xf]
      %v403 = vld [vmem:[%s1 + $0x118] sm:$0xf]
      %v404 = vld [vmem:[%s1 + $0x11c] sm:$0xf]
      %v405 = vld [vmem:[%s1 + $0x120] sm:$0xf]
      %v406 = vld [vmem:[%s1 + $0x124] sm:$0xf]
      %v407 = vld [vmem:[%s1 + $0x128] sm:$0xf]
      %v408 = vld [vmem:[%s1 + $0x12c] sm:$0xf]
      %v409 = vld [vmem:[%s1 + $0x130] sm:$0xf]
      %v410 = vld [vmem:[%s1 + $0x134] sm:$0xf]
      %v411 = vld [vmem:[%s1 + $0x138] sm:$0xf]
      %v412 = vld [vmem:[%s1 + $0x13c] sm:$0xf]
      %v413 = vld [vmem:[%s1 + $0x140] sm:$0xf]
      %v414 = vld [vmem:[%s1 + $0x144] sm:$0xf]
      %v415 = vld [vmem:[%s1 + $0x148] sm:$0xf]
      %v416 = vld [vmem:[%s1 + $0x14c] sm:$0xf]
      %v417 = vld [vmem:[%s1 + $0x150] sm:$0xf]
      %v418 = vld [vmem:[%s1 + $0x154] sm:$0xf]
      %v419 = vld [vmem:[%s1 + $0x158] sm:$0xf]
      %v420 = vld [vmem:[%s1 + $0x15c] sm:$0xf]
      %v421 = vld [vmem:[%s1 + $0x160] sm:$0xf]
      %v422 = vld [vmem:[%s1 + $0x164] sm:$0xf]
      %v423 = vld [vmem:[%s1 + $0x168] sm:$0xf]
      %v424 = vld [vmem:[%s1 + $0x16c] sm:$0xf]
      %v425 = vld [vmem:[%s1 + $0x170] sm:$0xf]
      %v426 = vld [vmem:[%s1 + $0x174] sm:$0xf]
      %v427 = vld [vmem:[%s1 + $0x178] sm:$0xf]
      %v428 = vld [vmem:[%s1 + $0x17c] sm:$0xf]
      %v429 = vld [vmem:[%s1 + $0x180] sm:$0xf]
      %v430 = vld [vmem:[%s1 + $0x184] sm:$0xf]
      %v431 = vld [vmem:[%s1 + $0x188] sm:$0xf]
      %v432 = vld [vmem:[%s1 + $0x18c] sm:$0xf]
      %v433 = vld [vmem:[%s1 + $0x190] sm:$0xf]
      %v434 = vld [vmem:[%s1 + $0x194] sm:$0xf]
      %v435 = vld [vmem:[%s1 + $0x198] sm:$0xf]
      %v436 = vld [vmem:[%s1 + $0x19c] sm:$0xf]
      %v437 = vld [vmem:[%s1 + $0x1a0] sm:$0xf]
      %v438 = vld [vmem:[%s1 + $0x1a4] sm:$0xf]
      %v439 = vld [vmem:[%s1 + $0x1a8] sm:$0xf]
      %v440 = vld [vmem:[%s1 + $0x1ac] sm:$0xf]
      %v569 = vunpack.c.l.b16 %v205
      %v570 = vunpack.c.h.b16 %v205
      %v571 = vunpack.c.l.b16 %v206
      %v572 = vunpack.c.h.b16 %v206
      %v573 = vunpack.c.l.b16 %v207
      %v574 = vunpack.c.h.b16 %v207
      %v575 = vunpack.c.l.b16 %v208
      %v576 = vunpack.c.l.b16 %v209
      %v577 = vunpack.c.h.b16 %v209
      %v578 = vunpack.c.l.b16 %v210
      %v579 = vunpack.c.h.b16 %v210
      %v580 = vunpack.c.l.b16 %v211
      %v581 = vunpack.c.h.b16 %v211
      %v582 = vunpack.c.l.b16 %v212
      %v583 = vunpack.c.l.b16 %v213
      %v584 = vunpack.c.h.b16 %v213
      %v585 = vunpack.c.l.b16 %v214
      %v586 = vunpack.c.h.b16 %v214
      %v587 = vunpack.c.l.b16 %v215
      %v588 = vunpack.c.h.b16 %v215
      %v589 = vunpack.c.l.b16 %v216
      %v590 = vunpack.c.l.b16 %v217
      %v591 = vunpack.c.h.b16 %v217
      %v592 = vunpack.c.l.b16 %v218
      %v593 = vunpack.c.h.b16 %v218
      %v594 = vunpack.c.l.b16 %v219
      %v595 = vunpack.c.h.b16 %v219
      %v596 = vunpack.c.l.b16 %v220
      %v597 = vunpack.c.l.b16 %v221
      %v598 = vunpack.c.h.b16 %v221
      %v599 = vunpack.c.l.b16 %v222
      %v600 = vunpack.c.h.b16 %v222
      %v601 = vunpack.c.l.b16 %v223
      %v602 = vunpack.c.h.b16 %v223
      %v603 = vunpack.c.l.b16 %v224
      %v604 = vunpack.c.l.b16 %v225
      %v605 = vunpack.c.h.b16 %v225
      %v606 = vunpack.c.l.b16 %v226
      %v607 = vunpack.c.h.b16 %v226
      %v608 = vunpack.c.l.b16 %v227
      %v609 = vunpack.c.h.b16 %v227
      %v610 = vunpack.c.l.b16 %v228
      %v611 = vunpack.c.l.b16 %v229
      %v612 = vunpack.c.h.b16 %v229
      %v613 = vunpack.c.l.b16 %v230
      %v614 = vunpack.c.h.b16 %v230
      %v615 = vunpack.c.l.b16 %v231
      %v616 = vunpack.c.h.b16 %v231
      %v617 = vunpack.c.l.b16 %v232
      %v618 = vunpack.c.l.b16 %v233
      %v619 = vunpack.c.h.b16 %v233
      %v620 = vunpack.c.l.b16 %v234
      %v621 = vunpack.c.h.b16 %v234
      %v622 = vunpack.c.l.b16 %v235
      %v623 = vunpack.c.h.b16 %v235
      %v624 = vunpack.c.l.b16 %v236
      %v625 = vunpack.c.l.b16 %v237
      %v626 = vunpack.c.h.b16 %v237
      %v627 = vunpack.c.l.b16 %v238
      %v628 = vunpack.c.h.b16 %v238
      %v629 = vunpack.c.l.b16 %v239
      %v630 = vunpack.c.h.b16 %v239
      %v631 = vunpack.c.l.b16 %v240
      %v632 = vunpack.c.l.b16 %v241
      %v633 = vunpack.c.h.b16 %v241
      %v634 = vunpack.c.l.b16 %v242
      %v635 = vunpack.c.h.b16 %v242
      %v636 = vunpack.c.l.b16 %v243
      %v637 = vunpack.c.h.b16 %v243
      %v638 = vunpack.c.l.b16 %v244
      %v639 = vunpack.c.l.b16 %v245
      %v640 = vunpack.c.h.b16 %v245
      %v641 = vunpack.c.l.b16 %v246
      %v642 = vunpack.c.h.b16 %v246
      %v643 = vunpack.c.l.b16 %v247
      %v644 = vunpack.c.h.b16 %v247
      %v645 = vunpack.c.l.b16 %v248
      %v646 = vunpack.c.l.b16 %v249
      %v647 = vunpack.c.h.b16 %v249
      %v648 = vunpack.c.l.b16 %v250
      %v649 = vunpack.c.h.b16 %v250
      %v650 = vunpack.c.l.b16 %v251
      %v651 = vunpack.c.h.b16 %v251
      %v652 = vunpack.c.l.b16 %v252
      %v653 = vunpack.c.l.b16 %v253
      %v654 = vunpack.c.h.b16 %v253
      %v655 = vunpack.c.l.b16 %v254
      %v656 = vunpack.c.h.b16 %v254
      %v657 = vunpack.c.l.b16 %v255
      %v658 = vunpack.c.h.b16 %v255
      %v659 = vunpack.c.l.b16 %v256
      %v660 = vunpack.c.l.b16 %v257
      %v661 = vunpack.c.h.b16 %v257
      %v662 = vunpack.c.l.b16 %v258
      %v663 = vunpack.c.h.b16 %v258
      %v664 = vunpack.c.l.b16 %v259
      %v665 = vunpack.c.h.b16 %v259
      %v666 = vunpack.c.l.b16 %v260
      %v667 = vunpack.c.l.b16 %v261
      %v668 = vunpack.c.h.b16 %v261
      %v669 = vunpack.c.l.b16 %v262
      %v670 = vunpack.c.h.b16 %v262
      %v671 = vunpack.c.l.b16 %v263
      %v672 = vunpack.c.h.b16 %v263
      %v673 = vunpack.c.l.b16 %v264
      %v674 = vunpack.c.l.b16 %v265
      %v675 = vunpack.c.h.b16 %v265
      %v676 = vunpack.c.l.b16 %v266
      %v677 = vunpack.c.h.b16 %v266
      %v678 = vunpack.c.l.b16 %v267
      %v679 = vunpack.c.h.b16 %v267
      %v680 = vunpack.c.l.b16 %v268
      %v681 = vunpack.c.l.b16 %v269
      %v682 = vunpack.c.h.b16 %v269
      %v683 = vunpack.c.l.b16 %v270
      %v684 = vunpack.c.h.b16 %v270
      %v685 = vunpack.c.l.b16 %v271
      %v686 = vunpack.c.h.b16 %v271
      %v687 = vunpack.c.l.b16 %v272
      %v688 = vunpack.c.l.b16 %v273
      %v689 = vunpack.c.h.b16 %v273
      %v690 = vunpack.c.l.b16 %v274
      %v691 = vunpack.c.h.b16 %v274
      %v692 = vunpack.c.l.b16 %v275
      %v693 = vunpack.c.h.b16 %v275
      %v694 = vunpack.c.l.b16 %v276
      %v695 = vunpack.c.l.b16 %v277
      %v696 = vunpack.c.h.b16 %v277
      %v697 = vunpack.c.l.b16 %v278
      %v698 = vunpack.c.h.b16 %v278
      %v699 = vunpack.c.l.b16 %v279
      %v700 = vunpack.c.h.b16 %v279
      %v701 = vunpack.c.l.b16 %v280
      %v702 = vunpack.c.l.b16 %v281
      %v703 = vunpack.c.h.b16 %v281
      %v704 = vunpack.c.l.b16 %v282
      %v705 = vunpack.c.h.b16 %v282
      %v706 = vunpack.c.l.b16 %v283
      %v707 = vunpack.c.h.b16 %v283
      %v708 = vunpack.c.l.b16 %v284
      %v709 = vunpack.c.l.b16 %v285
      %v710 = vunpack.c.h.b16 %v285
      %v711 = vunpack.c.l.b16 %v286
      %v712 = vunpack.c.h.b16 %v286
      %v713 = vunpack.c.l.b16 %v287
      %v714 = vunpack.c.h.b16 %v287
      %v715 = vunpack.c.l.b16 %v288
      %v716 = vunpack.c.l.b16 %v289
      %v717 = vunpack.c.h.b16 %v289
      %v718 = vunpack.c.l.b16 %v290
      %v719 = vunpack.c.h.b16 %v290
      %v720 = vunpack.c.l.b16 %v291
      %v721 = vunpack.c.h.b16 %v291
      %v722 = vunpack.c.l.b16 %v292
      %v723 = vunpack.c.l.b16 %v293
      %v724 = vunpack.c.h.b16 %v293
      %v725 = vunpack.c.l.b16 %v294
      %v726 = vunpack.c.h.b16 %v294
      %v727 = vunpack.c.l.b16 %v295
      %v728 = vunpack.c.h.b16 %v295
      %v729 = vunpack.c.l.b16 %v296
      %v730 = vunpack.c.l.b16 %v297
      %v731 = vunpack.c.h.b16 %v297
      %v732 = vunpack.c.l.b16 %v298
      %v733 = vunpack.c.h.b16 %v298
      %v734 = vunpack.c.l.b16 %v299
      %v735 = vunpack.c.h.b16 %v299
      %v736 = vunpack.c.l.b16 %v300
      %v737 = vunpack.c.l.b16 %v301
      %v738 = vunpack.c.h.b16 %v301
      %v739 = vunpack.c.l.b16 %v302
      %v740 = vunpack.c.h.b16 %v302
      %v741 = vunpack.c.l.b16 %v303
      %v742 = vunpack.c.h.b16 %v303
      %v743 = vunpack.c.l.b16 %v304
      %v744 = vunpack.c.l.b16 %v305
      %v745 = vunpack.c.h.b16 %v305
      %v746 = vunpack.c.l.b16 %v306
      %v747 = vunpack.c.h.b16 %v306
      %v748 = vunpack.c.l.b16 %v307
      %v749 = vunpack.c.h.b16 %v307
      %v750 = vunpack.c.l.b16 %v308
      %v751 = vunpack.c.l.b16 %v309
      %v752 = vunpack.c.h.b16 %v309
      %v753 = vunpack.c.l.b16 %v310
      %v754 = vunpack.c.h.b16 %v310
      %v755 = vunpack.c.l.b16 %v311
      %v756 = vunpack.c.h.b16 %v311
      %v757 = vunpack.c.l.b16 %v312
      %v758 = vunpack.c.l.b16 %v313
      %v759 = vunpack.c.h.b16 %v313
      %v760 = vunpack.c.l.b16 %v314
      %v761 = vunpack.c.h.b16 %v314
      %v762 = vunpack.c.l.b16 %v315
      %v763 = vunpack.c.h.b16 %v315
      %v764 = vunpack.c.l.b16 %v316
      %v765 = vunpack.c.l.b16 %v317
      %v766 = vunpack.c.h.b16 %v317
      %v767 = vunpack.c.l.b16 %v318
      %v768 = vunpack.c.h.b16 %v318
      %v769 = vunpack.c.l.b16 %v319
      %v770 = vunpack.c.h.b16 %v319
      %v771 = vunpack.c.l.b16 %v320
      %v772 = vunpack.c.l.b16 %v321
      %v773 = vunpack.c.h.b16 %v321
      %v774 = vunpack.c.l.b16 %v322
      %v775 = vunpack.c.h.b16 %v322
      %v776 = vunpack.c.l.b16 %v323
      %v777 = vunpack.c.h.b16 %v323
      %v778 = vunpack.c.l.b16 %v324
      %v779 = vunpack.c.l.b16 %v325
      %v780 = vunpack.c.h.b16 %v325
      %v781 = vunpack.c.l.b16 %v326
      %v782 = vunpack.c.h.b16 %v326
      %v783 = vunpack.c.l.b16 %v327
      %v784 = vunpack.c.h.b16 %v327
      %v785 = vunpack.c.l.b16 %v328
      %v786 = vunpack.c.l.b16 %v329
      %v787 = vunpack.c.h.b16 %v329
      %v788 = vunpack.c.l.b16 %v330
      %v789 = vunpack.c.h.b16 %v330
      %v790 = vunpack.c.l.b16 %v331
      %v791 = vunpack.c.h.b16 %v331
      %v792 = vunpack.c.l.b16 %v332
      %v793 = vpack.c.b16 %v576, %v569
      %v794 = vpack.c.b16 %v577, %v570
      %v795 = vpack.c.b16 %v578, %v571
      %v796 = vpack.c.b16 %v579, %v572
      %v797 = vpack.c.b16 %v580, %v573
      %v798 = vpack.c.b16 %v581, %v574
      %v799 = vpack.c.b16 %v582, %v575
      %v800 = vpack.c.b16 %v590, %v583
      %v801 = vpack.c.b16 %v591, %v584
      %v802 = vpack.c.b16 %v592, %v585
      %v803 = vpack.c.b16 %v593, %v586
      %v804 = vpack.c.b16 %v594, %v587
      %v805 = vpack.c.b16 %v595, %v588
      %v806 = vpack.c.b16 %v596, %v589
      %v807 = vpack.c.b16 %v604, %v597
      %v808 = vpack.c.b16 %v605, %v598
      %v809 = vpack.c.b16 %v606, %v599
      %v810 = vpack.c.b16 %v607, %v600
      %v811 = vpack.c.b16 %v608, %v601
      %v812 = vpack.c.b16 %v609, %v602
      %v813 = vpack.c.b16 %v610, %v603
      %v814 = vpack.c.b16 %v618, %v611
      %v815 = vpack.c.b16 %v619, %v612
      %v816 = vpack.c.b16 %v620, %v613
      %v817 = vpack.c.b16 %v621, %v614
      %v818 = vpack.c.b16 %v622, %v615
      %v819 = vpack.c.b16 %v623, %v616
      %v820 = vpack.c.b16 %v624, %v617
      %v821 = vpack.c.b16 %v632, %v625
      %v822 = vpack.c.b16 %v633, %v626
      %v823 = vpack.c.b16 %v634, %v627
      %v824 = vpack.c.b16 %v635, %v628
      %v825 = vpack.c.b16 %v636, %v629
      %v826 = vpack.c.b16 %v637, %v630
      %v827 = vpack.c.b16 %v638, %v631
      %v828 = vpack.c.b16 %v646, %v639
      %v829 = vpack.c.b16 %v647, %v640
      %v830 = vpack.c.b16 %v648, %v641
      %v831 = vpack.c.b16 %v649, %v642
      %v832 = vpack.c.b16 %v650, %v643
      %v833 = vpack.c.b16 %v651, %v644
      %v834 = vpack.c.b16 %v652, %v645
      %v835 = vpack.c.b16 %v660, %v653
      %v836 = vpack.c.b16 %v661, %v654
      %v837 = vpack.c.b16 %v662, %v655
      %v838 = vpack.c.b16 %v663, %v656
      %v839 = vpack.c.b16 %v664, %v657
      %v840 = vpack.c.b16 %v665, %v658
      %v841 = vpack.c.b16 %v666, %v659
      %v842 = vpack.c.b16 %v674, %v667
      %v843 = vpack.c.b16 %v675, %v668
      %v844 = vpack.c.b16 %v676, %v669
      %v845 = vpack.c.b16 %v677, %v670
      %v846 = vpack.c.b16 %v678, %v671
      %v847 = vpack.c.b16 %v679, %v672
      %v848 = vpack.c.b16 %v680, %v673
      %v849 = vpack.c.b16 %v688, %v681
      %v850 = vpack.c.b16 %v689, %v682
      %v851 = vpack.c.b16 %v690, %v683
      %v852 = vpack.c.b16 %v691, %v684
      %v853 = vpack.c.b16 %v692, %v685
      %v854 = vpack.c.b16 %v693, %v686
      %v855 = vpack.c.b16 %v694, %v687
      %v856 = vpack.c.b16 %v702, %v695
      %v857 = vpack.c.b16 %v703, %v696
      %v858 = vpack.c.b16 %v704, %v697
      %v859 = vpack.c.b16 %v705, %v698
      %v860 = vpack.c.b16 %v706, %v699
      %v861 = vpack.c.b16 %v707, %v700
      %v862 = vpack.c.b16 %v708, %v701
      %v863 = vpack.c.b16 %v716, %v709
      %v864 = vpack.c.b16 %v717, %v710
      %v865 = vpack.c.b16 %v718, %v711
      %v866 = vpack.c.b16 %v719, %v712
      %v867 = vpack.c.b16 %v720, %v713
      %v868 = vpack.c.b16 %v721, %v714
      %v869 = vpack.c.b16 %v722, %v715
      %v870 = vpack.c.b16 %v730, %v723
      %v871 = vpack.c.b16 %v731, %v724
      %v872 = vpack.c.b16 %v732, %v725
      %v873 = vpack.c.b16 %v733, %v726
      %v874 = vpack.c.b16 %v734, %v727
      %v875 = vpack.c.b16 %v735, %v728
      %v876 = vpack.c.b16 %v736, %v729
      %v877 = vpack.c.b16 %v744, %v737
      %v878 = vpack.c.b16 %v745, %v738
      %v879 = vpack.c.b16 %v746, %v739
      %v880 = vpack.c.b16 %v747, %v740
      %v881 = vpack.c.b16 %v748, %v741
      %v882 = vpack.c.b16 %v749, %v742
      %v883 = vpack.c.b16 %v750, %v743
      %v884 = vpack.c.b16 %v758, %v751
      %v885 = vpack.c.b16 %v759, %v752
      %v886 = vpack.c.b16 %v760, %v753
      %v887 = vpack.c.b16 %v761, %v754
      %v888 = vpack.c.b16 %v762, %v755
      %v889 = vpack.c.b16 %v763, %v756
      %v890 = vpack.c.b16 %v764, %v757
      %v891 = vpack.c.b16 %v772, %v765
      %v892 = vpack.c.b16 %v773, %v766
      %v893 = vpack.c.b16 %v774, %v767
      %v894 = vpack.c.b16 %v775, %v768
      %v895 = vpack.c.b16 %v776, %v769
      %v896 = vpack.c.b16 %v777, %v770
      %v897 = vpack.c.b16 %v778, %v771
      %v898 = vpack.c.b16 %v786, %v779
      %v899 = vpack.c.b16 %v787, %v780
      %v900 = vpack.c.b16 %v788, %v781
      %v901 = vpack.c.b16 %v789, %v782
      %v902 = vpack.c.b16 %v790, %v783
      %v903 = vpack.c.b16 %v791, %v784
      %v904 = vpack.c.b16 %v792, %v785
      %v1109 = vunpack.c.l.b16 %v333
      %v1110 = vunpack.c.l.b16 %v334
      %v1111 = vunpack.c.l.b16 %v335
      %v1112 = vunpack.c.l.b16 %v336
      %v1113 = vunpack.c.l.b16 %v337
      %v1114 = vunpack.c.l.b16 %v338
      %v1115 = vunpack.c.l.b16 %v339
      %v1116 = vunpack.c.l.b16 %v340
      %v1117 = vunpack.c.l.b16 %v341
      %v1118 = vunpack.c.l.b16 %v342
      %v1119 = vunpack.c.l.b16 %v343
      %v1120 = vunpack.c.l.b16 %v344
      %v1121 = vunpack.c.l.b16 %v345
      %v1122 = vunpack.c.l.b16 %v346
      %v1123 = vunpack.c.l.b16 %v347
      %v1124 = vunpack.c.l.b16 %v348
      %v1125 = vunpack.c.l.b16 %v349
      %v1126 = vunpack.c.l.b16 %v350
      %v1127 = vunpack.c.l.b16 %v351
      %v1128 = vunpack.c.l.b16 %v352
      %v1129 = vunpack.c.l.b16 %v353
      %v1130 = vunpack.c.l.b16 %v354
      %v1131 = vunpack.c.l.b16 %v355
      %v1132 = vunpack.c.l.b16 %v356
      %v1133 = vunpack.c.l.b16 %v357
      %v1134 = vunpack.c.l.b16 %v358
      %v1135 = vunpack.c.l.b16 %v359
      %v1136 = vunpack.c.l.b16 %v360
      %v1137 = vunpack.c.l.b16 %v361
      %v1138 = vunpack.c.l.b16 %v362
      %v1139 = vunpack.c.l.b16 %v363
      %v1140 = vunpack.c.l.b16 %v364
      %v1141 = vunpack.c.l.b16 %v365
      %v1142 = vunpack.c.l.b16 %v366
      %v1143 = vunpack.c.l.b16 %v367
      %v1144 = vunpack.c.l.b16 %v368
      %v1145 = vunpack.c.l.b16 %v369
      %v1146 = vunpack.c.l.b16 %v370
      %v1147 = vunpack.c.l.b16 %v371
      %v1148 = vunpack.c.l.b16 %v372
      %v1149 = vunpack.c.l.b16 %v373
      %v1150 = vunpack.c.l.b16 %v374
      %v1151 = vunpack.c.l.b16 %v375
      %v1152 = vunpack.c.l.b16 %v376
      %v1153 = vunpack.c.l.b16 %v377
      %v1154 = vunpack.c.l.b16 %v378
      %v1155 = vunpack.c.l.b16 %v379
      %v1156 = vunpack.c.l.b16 %v380
      %v1157 = vunpack.c.l.b16 %v381
      %v1158 = vunpack.c.l.b16 %v382
      %v1159 = vunpack.c.l.b16 %v383
      %v1160 = vunpack.c.l.b16 %v384
      %v1161 = vunpack.c.l.b16 %v385
      %v1162 = vunpack.c.l.b16 %v386
      %v1163 = vunpack.c.l.b16 %v387
      %v1164 = vunpack.c.l.b16 %v388
      %v1165 = vunpack.c.l.b16 %v389
      %v1166 = vunpack.c.l.b16 %v390
      %v1167 = vunpack.c.l.b16 %v391
      %v1168 = vunpack.c.l.b16 %v392
      %v1169 = vunpack.c.l.b16 %v393
      %v1170 = vunpack.c.l.b16 %v394
      %v1171 = vunpack.c.l.b16 %v395
      %v1172 = vunpack.c.l.b16 %v396
      %v1173 = vunpack.c.l.b16 %v397
      %v1174 = vunpack.c.l.b16 %v398
      %v1175 = vunpack.c.l.b16 %v399
      %v1176 = vunpack.c.l.b16 %v400
      %v1177 = vunpack.c.l.b16 %v401
      %v1178 = vunpack.c.l.b16 %v402
      %v1179 = vunpack.c.l.b16 %v403
      %v1180 = vunpack.c.l.b16 %v404
      %v1181 = vunpack.c.l.b16 %v405
      %v1182 = vunpack.c.l.b16 %v406
      %v1183 = vunpack.c.l.b16 %v407
      %v1184 = vunpack.c.l.b16 %v408
      %v1185 = vunpack.c.l.b16 %v409
      %v1186 = vunpack.c.l.b16 %v410
      %v1187 = vunpack.c.l.b16 %v411
      %v1188 = vunpack.c.l.b16 %v412
      %v1189 = vunpack.c.l.b16 %v413
      %v1190 = vunpack.c.l.b16 %v414
      %v1191 = vunpack.c.l.b16 %v415
      %v1192 = vunpack.c.l.b16 %v416
      %v1193 = vunpack.c.l.b16 %v417
      %v1194 = vunpack.c.l.b16 %v418
      %v1195 = vunpack.c.l.b16 %v419
      %v1196 = vunpack.c.l.b16 %v420
      %v1197 = vunpack.c.l.b16 %v421
      %v1198 = vunpack.c.l.b16 %v422
      %v1199 = vunpack.c.l.b16 %v423
      %v1200 = vunpack.c.l.b16 %v424
      %v1201 = vunpack.c.l.b16 %v425
      %v1202 = vunpack.c.l.b16 %v426
      %v1203 = vunpack.c.l.b16 %v427
      %v1204 = vunpack.c.l.b16 %v428
      %v1205 = vunpack.c.l.b16 %v429
      %v1206 = vunpack.c.l.b16 %v430
      %v1207 = vunpack.c.l.b16 %v431
      %v1208 = vunpack.c.l.b16 %v432
      %v1209 = vunpack.c.l.b16 %v433
      %v1210 = vunpack.c.l.b16 %v434
      %v1211 = vunpack.c.l.b16 %v435
      %v1212 = vunpack.c.l.b16 %v436
      %v1213 = vunpack.c.l.b16 %v437
      %v1214 = vunpack.c.l.b16 %v438
      %v1215 = vunpack.c.l.b16 %v439
      %v1216 = vunpack.c.l.b16 %v440
      %v1217 = vpack.c.b16 %v1110, %v1109
      %v1218 = vpack.c.b16 %v1112, %v1111
      %v1219 = vpack.c.b16 %v1114, %v1113
      %v1220 = vpack.c.b16 %v1116, %v1115
      %v1221 = vpack.c.b16 %v1118, %v1117
      %v1222 = vpack.c.b16 %v1120, %v1119
      %v1223 = vpack.c.b16 %v1122, %v1121
      %v1224 = vpack.c.b16 %v1124, %v1123
      %v1225 = vpack.c.b16 %v1126, %v1125
      %v1226 = vpack.c.b16 %v1128, %v1127
      %v1227 = vpack.c.b16 %v1130, %v1129
      %v1228 = vpack.c.b16 %v1132, %v1131
      %v1229 = vpack.c.b16 %v1134, %v1133
      %v1230 = vpack.c.b16 %v1136, %v1135
      %v1231 = vpack.c.b16 %v1138, %v1137
      %v1232 = vpack.c.b16 %v1140, %v1139
      %v1233 = vpack.c.b16 %v1142, %v1141
      %v1234 = vpack.c.b16 %v1144, %v1143
      %v1235 = vpack.c.b16 %v1146, %v1145
      %v1236 = vpack.c.b16 %v1148, %v1147
      %v1237 = vpack.c.b16 %v1150, %v1149
      %v1238 = vpack.c.b16 %v1152, %v1151
      %v1239 = vpack.c.b16 %v1154, %v1153
      %v1240 = vpack.c.b16 %v1156, %v1155
      %v1241 = vpack.c.b16 %v1158, %v1157
      %v1242 = vpack.c.b16 %v1160, %v1159
      %v1243 = vpack.c.b16 %v1162, %v1161
      %v1244 = vpack.c.b16 %v1164, %v1163
      %v1245 = vpack.c.b16 %v1166, %v1165
      %v1246 = vpack.c.b16 %v1168, %v1167
      %v1247 = vpack.c.b16 %v1170, %v1169
      %v1248 = vpack.c.b16 %v1172, %v1171
      %v1249 = vpack.c.b16 %v1174, %v1173
      %v1250 = vpack.c.b16 %v1176, %v1175
      %v1251 = vpack.c.b16 %v1178, %v1177
      %v1252 = vpack.c.b16 %v1180, %v1179
      %v1253 = vpack.c.b16 %v1182, %v1181
      %v1254 = vpack.c.b16 %v1184, %v1183
      %v1255 = vpack.c.b16 %v1186, %v1185
      %v1256 = vpack.c.b16 %v1188, %v1187
      %v1257 = vpack.c.b16 %v1190, %v1189
      %v1258 = vpack.c.b16 %v1192, %v1191
      %v1259 = vpack.c.b16 %v1194, %v1193
      %v1260 = vpack.c.b16 %v1196, %v1195
      %v1261 = vpack.c.b16 %v1198, %v1197
      %v1262 = vpack.c.b16 %v1200, %v1199
      %v1263 = vpack.c.b16 %v1202, %v1201
      %v1264 = vpack.c.b16 %v1204, %v1203
      %v1265 = vpack.c.b16 %v1206, %v1205
      %v1266 = vpack.c.b16 %v1208, %v1207
      %v1267 = vpack.c.b16 %v1210, %v1209
      %v1268 = vpack.c.b16 %v1212, %v1211
      %v1269 = vpack.c.b16 %v1214, %v1213
      %v1270 = vpack.c.b16 %v1216, %v1215
      %vm1325 = vcmask 785408
      %v1327 = vsel %vm1325, %v799, 0
      %v1330 = vsel %vm1325, %v806, 0
      %v1333 = vsel %vm1325, %v813, 0
      %v1336 = vsel %vm1325, %v820, 0
      %v1339 = vsel %vm1325, %v827, 0
      %v1342 = vsel %vm1325, %v834, 0
      %v1345 = vsel %vm1325, %v841, 0
      %v1348 = vsel %vm1325, %v848, 0
      %v1351 = vsel %vm1325, %v855, 0
      %v1354 = vsel %vm1325, %v862, 0
      %v1357 = vsel %vm1325, %v869, 0
      %v1360 = vsel %vm1325, %v876, 0
      %v1363 = vsel %vm1325, %v883, 0
      %v1366 = vsel %vm1325, %v890, 0
      %v1369 = vsel %vm1325, %v897, 0
      %v1372 = vsel %vm1325, %v904, 0
      %1374 = vmatprep.subr.bf16.mxu0 0
      %1375 = vmatpush1.bf16.msra.mxu0 %v1224
      %1376 = vmatprep.subr.bf16.mxu0 0
      %1377 = vmatpush1.bf16.msra.mxu0 %v1223
      %1378 = vmatprep.subr.bf16.mxu0 0
      %1379 = vmatpush1.bf16.msra.mxu0 %v1222
      %1380 = vmatprep.subr.bf16.mxu0 0
      %1381 = vmatpush1.bf16.msra.mxu0 %v1221
      %1382 = vmatprep.subr.bf16.mxu0 0
      %1383 = vmatpush1.bf16.msra.mxu0 %v1220
      %1384 = vmatprep.subr.bf16.mxu0 0
      %1385 = vmatpush1.bf16.msra.mxu0 %v1219
      %1386 = vmatprep.subr.bf16.mxu0 0
      %1387 = vmatpush1.bf16.msra.mxu0 %v1218
      %1388 = vmatprep.subr.bf16.mxu0 0
      %1389 = vmatpush1.bf16.msra.mxu0 %v1217
      %1390 = vmatprep.subr.bf16.mxu0 0
      %1391 = vmatpush2.bf16.msra.mxu0 %v1232
      %1392 = vmatprep.subr.bf16.mxu0 0
      %1393 = vmatpush2.bf16.msra.mxu0 %v1231
      %1394 = vmatprep.subr.bf16.mxu0 0
      %1395 = vmatpush2.bf16.msra.mxu0 %v1230
      %1396 = vmatprep.subr.bf16.mxu0 0
      %1397 = vmatpush2.bf16.msra.mxu0 %v1229
      %1398 = vmatprep.subr.bf16.mxu0 0
      %1399 = vmatpush2.bf16.msra.mxu0 %v1228
      %1400 = vmatprep.subr.bf16.mxu0 0
      %1401 = vmatpush2.bf16.msra.mxu0 %v1227
      %1402 = vmatprep.subr.bf16.mxu0 0
      %1403 = vmatpush2.bf16.msra.mxu0 %v1226
      %1404 = vmatprep.subr.bf16.mxu0 0
      %1405 = vmatpush2.bf16.msra.mxu0 %v1225
      %1406 = vmatprep.mubr.bf16.mxu0 %v794
      %1407 = vmatmul.mubr.bf16.gmra.mxu0 %v793
      %v1408 = vpop.f32.mrf.mxu0
      %v1409 = vadd.f32 0.0, %v1408
      %v1410 = vpop.f32.mrf.mxu0
      %v1411 = vpop.f32.mrf.mxu0
      %v1412 = vadd.f32 0.0, %v1411
      %v1413 = vpop.f32.mrf.mxu0
      %1414 = vmatprep.mubr.bf16.mxu0 %v801
      %1415 = vmatmul.mubr.bf16.gmra.mxu0 %v800
      %v1416 = vpop.f32.mrf.mxu0
      %v1417 = vadd.f32 0.0, %v1416
      %v1418 = vpop.f32.mrf.mxu0
      %v1419 = vpop.f32.mrf.mxu0
      %v1420 = vadd.f32 0.0, %v1419
      %v1421 = vpop.f32.mrf.mxu0
      %1422 = vmatprep.mubr.bf16.mxu0 %v808
      %1423 = vmatmul.mubr.bf16.gmra.mxu0 %v807
      %v1424 = vpop.f32.mrf.mxu0
      %v1425 = vadd.f32 0.0, %v1424
      %v1426 = vpop.f32.mrf.mxu0
      %v1427 = vpop.f32.mrf.mxu0
      %v1428 = vadd.f32 0.0, %v1427
      %v1429 = vpop.f32.mrf.mxu0
      %1430 = vmatprep.mubr.bf16.mxu0 %v815
      %1431 = vmatmul.mubr.bf16.gmra.mxu0 %v814
      %v1432 = vpop.f32.mrf.mxu0
      %v1433 = vadd.f32 0.0, %v1432
      %v1434 = vpop.f32.mrf.mxu0
      %v1435 = vpop.f32.mrf.mxu0
      %v1436 = vadd.f32 0.0, %v1435
      %v1437 = vpop.f32.mrf.mxu0
      %1438 = vmatprep.mubr.bf16.mxu0 %v822
      %1439 = vmatmul.mubr.bf16.gmra.mxu0 %v821
      %v1440 = vpop.f32.mrf.mxu0
      %v1441 = vadd.f32 0.0, %v1440
      %v1442 = vpop.f32.mrf.mxu0
      %v1443 = vpop.f32.mrf.mxu0
      %v1444 = vadd.f32 0.0, %v1443
      %v1445 = vpop.f32.mrf.mxu0
      %1446 = vmatprep.mubr.bf16.mxu0 %v829
      %1447 = vmatmul.mubr.bf16.gmra.mxu0 %v828
      %v1448 = vpop.f32.mrf.mxu0
      %v1449 = vadd.f32 0.0, %v1448
      %v1450 = vpop.f32.mrf.mxu0
      %v1451 = vpop.f32.mrf.mxu0
      %v1452 = vadd.f32 0.0, %v1451
      %v1453 = vpop.f32.mrf.mxu0
      %1454 = vmatprep.mubr.bf16.mxu0 %v836
      %1455 = vmatmul.mubr.bf16.gmra.mxu0 %v835
      %v1456 = vpop.f32.mrf.mxu0
      %v1457 = vadd.f32 0.0, %v1456
      %v1458 = vpop.f32.mrf.mxu0
      %v1459 = vpop.f32.mrf.mxu0
      %v1460 = vadd.f32 0.0, %v1459
      %v1461 = vpop.f32.mrf.mxu0
      %1462 = vmatprep.mubr.bf16.mxu0 %v843
      %1463 = vmatmul.mubr.bf16.gmra.mxu0 %v842
      %v1464 = vpop.f32.mrf.mxu0
      %v1465 = vadd.f32 0.0, %v1464
      %v1466 = vpop.f32.mrf.mxu0
      %v1467 = vpop.f32.mrf.mxu0
      %v1468 = vadd.f32 0.0, %v1467
      %v1469 = vpop.f32.mrf.mxu0
      %1470 = vmatprep.mubr.bf16.mxu0 %v850
      %1471 = vmatmul.mubr.bf16.gmra.mxu0 %v849
      %v1472 = vpop.f32.mrf.mxu0
      %v1473 = vadd.f32 0.0, %v1472
      %v1474 = vpop.f32.mrf.mxu0
      %v1475 = vpop.f32.mrf.mxu0
      %v1476 = vadd.f32 0.0, %v1475
      %v1477 = vpop.f32.mrf.mxu0
      %1478 = vmatprep.mubr.bf16.mxu0 %v857
      %1479 = vmatmul.mubr.bf16.gmra.mxu0 %v856
      %v1480 = vpop.f32.mrf.mxu0
      %v1481 = vadd.f32 0.0, %v1480
      %v1482 = vpop.f32.mrf.mxu0
      %v1483 = vpop.f32.mrf.mxu0
      %v1484 = vadd.f32 0.0, %v1483
      %v1485 = vpop.f32.mrf.mxu0
      %1486 = vmatprep.mubr.bf16.mxu0 %v864
      %1487 = vmatmul.mubr.bf16.gmra.mxu0 %v863
      %v1488 = vpop.f32.mrf.mxu0
      %v1489 = vadd.f32 0.0, %v1488
      %v1490 = vpop.f32.mrf.mxu0
      %v1491 = vpop.f32.mrf.mxu0
      %v1492 = vadd.f32 0.0, %v1491
      %v1493 = vpop.f32.mrf.mxu0
      %1494 = vmatprep.mubr.bf16.mxu0 %v871
      %1495 = vmatmul.mubr.bf16.gmra.mxu0 %v870
      %v1496 = vpop.f32.mrf.mxu0
      %v1497 = vadd.f32 0.0, %v1496
      %v1498 = vpop.f32.mrf.mxu0
      %v1499 = vpop.f32.mrf.mxu0
      %v1500 = vadd.f32 0.0, %v1499
      %v1501 = vpop.f32.mrf.mxu0
      %1502 = vmatprep.mubr.bf16.mxu0 %v878
      %1503 = vmatmul.mubr.bf16.gmra.mxu0 %v877
      %v1504 = vpop.f32.mrf.mxu0
      %v1505 = vadd.f32 0.0, %v1504
      %v1506 = vpop.f32.mrf.mxu0
      %v1507 = vpop.f32.mrf.mxu0
      %v1508 = vadd.f32 0.0, %v1507
      %v1509 = vpop.f32.mrf.mxu0
      %1510 = vmatprep.mubr.bf16.mxu0 %v885
      %1511 = vmatmul.mubr.bf16.gmra.mxu0 %v884
      %v1512 = vpop.f32.mrf.mxu0
      %v1513 = vadd.f32 0.0, %v1512
      %v1514 = vpop.f32.mrf.mxu0
      %v1515 = vpop.f32.mrf.mxu0
      %v1516 = vadd.f32 0.0, %v1515
      %v1517 = vpop.f32.mrf.mxu0
      %1518 = vmatprep.mubr.bf16.mxu0 %v892
      %1519 = vmatmul.mubr.bf16.gmra.mxu0 %v891
      %v1520 = vpop.f32.mrf.mxu0
      %v1521 = vadd.f32 0.0, %v1520
      %v1522 = vpop.f32.mrf.mxu0
      %v1523 = vpop.f32.mrf.mxu0
      %v1524 = vadd.f32 0.0, %v1523
      %v1525 = vpop.f32.mrf.mxu0
      %1526 = vmatprep.mubr.bf16.mxu0 %v899
      %1527 = vmatmul.mubr.bf16.gmra.mxu0 %v898
      %v1528 = vpop.f32.mrf.mxu0
      %v1529 = vadd.f32 0.0, %v1528
      %v1530 = vpop.f32.mrf.mxu0
      %v1531 = vpop.f32.mrf.mxu0
      %v1532 = vadd.f32 0.0, %v1531
      %v1533 = vpop.f32.mrf.mxu0
      %1534 = vdwg.mxu0
      %1535 = vmatprep.subr.bf16.mxu0 0
      %1536 = vmatpush1.bf16.msra.mxu0 %v1240
      %1537 = vmatprep.subr.bf16.mxu0 0
      %1538 = vmatpush1.bf16.msra.mxu0 %v1239
      %1539 = vmatprep.subr.bf16.mxu0 0
      %1540 = vmatpush1.bf16.msra.mxu0 %v1238
      %1541 = vmatprep.subr.bf16.mxu0 0
      %1542 = vmatpush1.bf16.msra.mxu0 %v1237
      %1543 = vmatprep.subr.bf16.mxu0 0
      %1544 = vmatpush1.bf16.msra.mxu0 %v1236
      %1545 = vmatprep.subr.bf16.mxu0 0
      %1546 = vmatpush1.bf16.msra.mxu0 %v1235
      %1547 = vmatprep.subr.bf16.mxu0 0
      %1548 = vmatpush1.bf16.msra.mxu0 %v1234
      %1549 = vmatprep.subr.bf16.mxu0 0
      %1550 = vmatpush1.bf16.msra.mxu0 %v1233
      %1551 = vmatprep.subr.bf16.mxu0 0
      %1552 = vmatpush2.bf16.msra.mxu0 %v1248
      %1553 = vmatprep.subr.bf16.mxu0 0
      %1554 = vmatpush2.bf16.msra.mxu0 %v1247
      %1555 = vmatprep.subr.bf16.mxu0 0
      %1556 = vmatpush2.bf16.msra.mxu0 %v1246
      %1557 = vmatprep.subr.bf16.mxu0 0
      %1558 = vmatpush2.bf16.msra.mxu0 %v1245
      %1559 = vmatprep.subr.bf16.mxu0 0
      %1560 = vmatpush2.bf16.msra.mxu0 %v1244
      %1561 = vmatprep.subr.bf16.mxu0 0
      %1562 = vmatpush2.bf16.msra.mxu0 %v1243
      %1563 = vmatprep.subr.bf16.mxu0 0
      %1564 = vmatpush2.bf16.msra.mxu0 %v1242
      %1565 = vmatprep.subr.bf16.mxu0 0
      %1566 = vmatpush2.bf16.msra.mxu0 %v1241
      %1567 = vmatprep.mubr.bf16.mxu0 %v796
      %1568 = vmatmul.mubr.bf16.gmra.mxu0 %v795
      %v1569 = vpop.f32.mrf.mxu0
      %v1570 = vadd.f32 %v1409, %v1569
      %v1571 = vpop.f32.mrf.mxu0
      %v1572 = vpop.f32.mrf.mxu0
      %v1573 = vadd.f32 %v1412, %v1572
      %v1574 = vpop.f32.mrf.mxu0
      %1575 = vmatprep.mubr.bf16.mxu0 %v803
      %1576 = vmatmul.mubr.bf16.gmra.mxu0 %v802
      %v1577 = vpop.f32.mrf.mxu0
      %v1578 = vadd.f32 %v1417, %v1577
      %v1579 = vpop.f32.mrf.mxu0
      %v1580 = vpop.f32.mrf.mxu0
      %v1581 = vadd.f32 %v1420, %v1580
      %v1582 = vpop.f32.mrf.mxu0
      %1583 = vmatprep.mubr.bf16.mxu0 %v810
      %1584 = vmatmul.mubr.bf16.gmra.mxu0 %v809
      %v1585 = vpop.f32.mrf.mxu0
      %v1586 = vadd.f32 %v1425, %v1585
      %v1587 = vpop.f32.mrf.mxu0
      %v1588 = vpop.f32.mrf.mxu0
      %v1589 = vadd.f32 %v1428, %v1588
      %v1590 = vpop.f32.mrf.mxu0
      %1591 = vmatprep.mubr.bf16.mxu0 %v817
      %1592 = vmatmul.mubr.bf16.gmra.mxu0 %v816
      %v1593 = vpop.f32.mrf.mxu0
      %v1594 = vadd.f32 %v1433, %v1593
      %v1595 = vpop.f32.mrf.mxu0
      %v1596 = vpop.f32.mrf.mxu0
      %v1597 = vadd.f32 %v1436, %v1596
      %v1598 = vpop.f32.mrf.mxu0
      %1599 = vmatprep.mubr.bf16.mxu0 %v824
      %1600 = vmatmul.mubr.bf16.gmra.mxu0 %v823
      %v1601 = vpop.f32.mrf.mxu0
      %v1602 = vadd.f32 %v1441, %v1601
      %v1603 = vpop.f32.mrf.mxu0
      %v1604 = vpop.f32.mrf.mxu0
      %v1605 = vadd.f32 %v1444, %v1604
      %v1606 = vpop.f32.mrf.mxu0
      %1607 = vmatprep.mubr.bf16.mxu0 %v831
      %1608 = vmatmul.mubr.bf16.gmra.mxu0 %v830
      %v1609 = vpop.f32.mrf.mxu0
      %v1610 = vadd.f32 %v1449, %v1609
      %v1611 = vpop.f32.mrf.mxu0
      %v1612 = vpop.f32.mrf.mxu0
      %v1613 = vadd.f32 %v1452, %v1612
      %v1614 = vpop.f32.mrf.mxu0
      %1615 = vmatprep.mubr.bf16.mxu0 %v838
      %1616 = vmatmul.mubr.bf16.gmra.mxu0 %v837
      %v1617 = vpop.f32.mrf.mxu0
      %v1618 = vadd.f32 %v1457, %v1617
      %v1619 = vpop.f32.mrf.mxu0
      %v1620 = vpop.f32.mrf.mxu0
      %v1621 = vadd.f32 %v1460, %v1620
      %v1622 = vpop.f32.mrf.mxu0
      %1623 = vmatprep.mubr.bf16.mxu0 %v845
      %1624 = vmatmul.mubr.bf16.gmra.mxu0 %v844
      %v1625 = vpop.f32.mrf.mxu0
      %v1626 = vadd.f32 %v1465, %v1625
      %v1627 = vpop.f32.mrf.mxu0
      %v1628 = vpop.f32.mrf.mxu0
      %v1629 = vadd.f32 %v1468, %v1628
      %v1630 = vpop.f32.mrf.mxu0
      %1631 = vmatprep.mubr.bf16.mxu0 %v852
      %1632 = vmatmul.mubr.bf16.gmra.mxu0 %v851
      %v1633 = vpop.f32.mrf.mxu0
      %v1634 = vadd.f32 %v1473, %v1633
      %v1635 = vpop.f32.mrf.mxu0
      %v1636 = vpop.f32.mrf.mxu0
      %v1637 = vadd.f32 %v1476, %v1636
      %v1638 = vpop.f32.mrf.mxu0
      %1639 = vmatprep.mubr.bf16.mxu0 %v859
      %1640 = vmatmul.mubr.bf16.gmra.mxu0 %v858
      %v1641 = vpop.f32.mrf.mxu0
      %v1642 = vadd.f32 %v1481, %v1641
      %v1643 = vpop.f32.mrf.mxu0
      %v1644 = vpop.f32.mrf.mxu0
      %v1645 = vadd.f32 %v1484, %v1644
      %v1646 = vpop.f32.mrf.mxu0
      %1647 = vmatprep.mubr.bf16.mxu0 %v866
      %1648 = vmatmul.mubr.bf16.gmra.mxu0 %v865
      %v1649 = vpop.f32.mrf.mxu0
      %v1650 = vadd.f32 %v1489, %v1649
      %v1651 = vpop.f32.mrf.mxu0
      %v1652 = vpop.f32.mrf.mxu0
      %v1653 = vadd.f32 %v1492, %v1652
      %v1654 = vpop.f32.mrf.mxu0
      %1655 = vmatprep.mubr.bf16.mxu0 %v873
      %1656 = vmatmul.mubr.bf16.gmra.mxu0 %v872
      %v1657 = vpop.f32.mrf.mxu0
      %v1658 = vadd.f32 %v1497, %v1657
      %v1659 = vpop.f32.mrf.mxu0
      %v1660 = vpop.f32.mrf.mxu0
      %v1661 = vadd.f32 %v1500, %v1660
      %v1662 = vpop.f32.mrf.mxu0
      %1663 = vmatprep.mubr.bf16.mxu0 %v880
      %1664 = vmatmul.mubr.bf16.gmra.mxu0 %v879
      %v1665 = vpop.f32.mrf.mxu0
      %v1666 = vadd.f32 %v1505, %v1665
      %v1667 = vpop.f32.mrf.mxu0
      %v1668 = vpop.f32.mrf.mxu0
      %v1669 = vadd.f32 %v1508, %v1668
      %v1670 = vpop.f32.mrf.mxu0
      %1671 = vmatprep.mubr.bf16.mxu0 %v887
      %1672 = vmatmul.mubr.bf16.gmra.mxu0 %v886
      %v1673 = vpop.f32.mrf.mxu0
      %v1674 = vadd.f32 %v1513, %v1673
      %v1675 = vpop.f32.mrf.mxu0
      %v1676 = vpop.f32.mrf.mxu0
      %v1677 = vadd.f32 %v1516, %v1676
      %v1678 = vpop.f32.mrf.mxu0
      %1679 = vmatprep.mubr.bf16.mxu0 %v894
      %1680 = vmatmul.mubr.bf16.gmra.mxu0 %v893
      %v1681 = vpop.f32.mrf.mxu0
      %v1682 = vadd.f32 %v1521, %v1681
      %v1683 = vpop.f32.mrf.mxu0
      %v1684 = vpop.f32.mrf.mxu0
      %v1685 = vadd.f32 %v1524, %v1684
      %v1686 = vpop.f32.mrf.mxu0
      %1687 = vmatprep.mubr.bf16.mxu0 %v901
      %1688 = vmatmul.mubr.bf16.gmra.mxu0 %v900
      %v1689 = vpop.f32.mrf.mxu0
      %v1690 = vadd.f32 %v1529, %v1689
      %v1691 = vpop.f32.mrf.mxu0
      %v1692 = vpop.f32.mrf.mxu0
      %v1693 = vadd.f32 %v1532, %v1692
      %v1694 = vpop.f32.mrf.mxu0
      %1695 = vdwg.mxu0
      %1696 = vmatprep.subr.bf16.mxu0 0
      %1697 = vmatpush1.bf16.msra.mxu0 %v1256
      %1698 = vmatprep.subr.bf16.mxu0 0
      %1699 = vmatpush1.bf16.msra.mxu0 %v1255
      %1700 = vmatprep.subr.bf16.mxu0 0
      %1701 = vmatpush1.bf16.msra.mxu0 %v1254
      %1702 = vmatprep.subr.bf16.mxu0 0
      %1703 = vmatpush1.bf16.msra.mxu0 %v1253
      %1704 = vmatprep.subr.bf16.mxu0 0
      %1705 = vmatpush1.bf16.msra.mxu0 %v1252
      %1706 = vmatprep.subr.bf16.mxu0 0
      %1707 = vmatpush1.bf16.msra.mxu0 %v1251
      %1708 = vmatprep.subr.bf16.mxu0 0
      %1709 = vmatpush1.bf16.msra.mxu0 %v1250
      %1710 = vmatprep.subr.bf16.mxu0 0
      %1711 = vmatpush1.bf16.msra.mxu0 %v1249
      %1712 = vmatprep.subr.bf16.mxu0 0
      %1713 = vmatpush2.bf16.msra.mxu0 %v1264
      %1714 = vmatprep.subr.bf16.mxu0 0
      %1715 = vmatpush2.bf16.msra.mxu0 %v1263
      %1716 = vmatprep.subr.bf16.mxu0 0
      %1717 = vmatpush2.bf16.msra.mxu0 %v1262
      %1718 = vmatprep.subr.bf16.mxu0 0
      %1719 = vmatpush2.bf16.msra.mxu0 %v1261
      %1720 = vmatprep.subr.bf16.mxu0 0
      %1721 = vmatpush2.bf16.msra.mxu0 %v1260
      %1722 = vmatprep.subr.bf16.mxu0 0
      %1723 = vmatpush2.bf16.msra.mxu0 %v1259
      %1724 = vmatprep.subr.bf16.mxu0 0
      %1725 = vmatpush2.bf16.msra.mxu0 %v1258
      %1726 = vmatprep.subr.bf16.mxu0 0
      %1727 = vmatpush2.bf16.msra.mxu0 %v1257
      %1728 = vmatprep.mubr.bf16.mxu0 %v798
      %1729 = vmatmul.mubr.bf16.gmra.mxu0 %v797
      %v1730 = vpop.f32.mrf.mxu0
      %v1731 = vadd.f32 %v1570, %v1730
      %v1732 = vpop.f32.mrf.mxu0
      %v1733 = vpop.f32.mrf.mxu0
      %v1734 = vadd.f32 %v1573, %v1733
      %v1735 = vpop.f32.mrf.mxu0
      %1736 = vmatprep.mubr.bf16.mxu0 %v805
      %1737 = vmatmul.mubr.bf16.gmra.mxu0 %v804
      %v1738 = vpop.f32.mrf.mxu0
      %v1739 = vadd.f32 %v1578, %v1738
      %v1740 = vpop.f32.mrf.mxu0
      %v1741 = vpop.f32.mrf.mxu0
      %v1742 = vadd.f32 %v1581, %v1741
      %v1743 = vpop.f32.mrf.mxu0
      %1744 = vmatprep.mubr.bf16.mxu0 %v812
      %1745 = vmatmul.mubr.bf16.gmra.mxu0 %v811
      %v1746 = vpop.f32.mrf.mxu0
      %v1747 = vadd.f32 %v1586, %v1746
      %v1748 = vpop.f32.mrf.mxu0
      %v1749 = vpop.f32.mrf.mxu0
      %v1750 = vadd.f32 %v1589, %v1749
      %v1751 = vpop.f32.mrf.mxu0
      %1752 = vmatprep.mubr.bf16.mxu0 %v819
      %1753 = vmatmul.mubr.bf16.gmra.mxu0 %v818
      %v1754 = vpop.f32.mrf.mxu0
      %v1755 = vadd.f32 %v1594, %v1754
      %v1756 = vpop.f32.mrf.mxu0
      %v1757 = vpop.f32.mrf.mxu0
      %v1758 = vadd.f32 %v1597, %v1757
      %v1759 = vpop.f32.mrf.mxu0
      %1760 = vmatprep.mubr.bf16.mxu0 %v826
      %1761 = vmatmul.mubr.bf16.gmra.mxu0 %v825
      %v1762 = vpop.f32.mrf.mxu0
      %v1763 = vadd.f32 %v1602, %v1762
      %v1764 = vpop.f32.mrf.mxu0
      %v1765 = vpop.f32.mrf.mxu0
      %v1766 = vadd.f32 %v1605, %v1765
      %v1767 = vpop.f32.mrf.mxu0
      %1768 = vmatprep.mubr.bf16.mxu0 %v833
      %1769 = vmatmul.mubr.bf16.gmra.mxu0 %v832
      %v1770 = vpop.f32.mrf.mxu0
      %v1771 = vadd.f32 %v1610, %v1770
      %v1772 = vpop.f32.mrf.mxu0
      %v1773 = vpop.f32.mrf.mxu0
      %v1774 = vadd.f32 %v1613, %v1773
      %v1775 = vpop.f32.mrf.mxu0
      %1776 = vmatprep.mubr.bf16.mxu0 %v840
      %1777 = vmatmul.mubr.bf16.gmra.mxu0 %v839
      %v1778 = vpop.f32.mrf.mxu0
      %v1779 = vadd.f32 %v1618, %v1778
      %v1780 = vpop.f32.mrf.mxu0
      %v1781 = vpop.f32.mrf.mxu0
      %v1782 = vadd.f32 %v1621, %v1781
      %v1783 = vpop.f32.mrf.mxu0
      %1784 = vmatprep.mubr.bf16.mxu0 %v847
      %1785 = vmatmul.mubr.bf16.gmra.mxu0 %v846
      %v1786 = vpop.f32.mrf.mxu0
      %v1787 = vadd.f32 %v1626, %v1786
      %v1788 = vpop.f32.mrf.mxu0
      %v1789 = vpop.f32.mrf.mxu0
      %v1790 = vadd.f32 %v1629, %v1789
      %v1791 = vpop.f32.mrf.mxu0
      %1792 = vmatprep.mubr.bf16.mxu0 %v854
      %1793 = vmatmul.mubr.bf16.gmra.mxu0 %v853
      %v1794 = vpop.f32.mrf.mxu0
      %v1795 = vadd.f32 %v1634, %v1794
      %v1796 = vpop.f32.mrf.mxu0
      %v1797 = vpop.f32.mrf.mxu0
      %v1798 = vadd.f32 %v1637, %v1797
      %v1799 = vpop.f32.mrf.mxu0
      %1800 = vmatprep.mubr.bf16.mxu0 %v861
      %1801 = vmatmul.mubr.bf16.gmra.mxu0 %v860
      %v1802 = vpop.f32.mrf.mxu0
      %v1803 = vadd.f32 %v1642, %v1802
      %v1804 = vpop.f32.mrf.mxu0
      %v1805 = vpop.f32.mrf.mxu0
      %v1806 = vadd.f32 %v1645, %v1805
      %v1807 = vpop.f32.mrf.mxu0
      %1808 = vmatprep.mubr.bf16.mxu0 %v868
      %1809 = vmatmul.mubr.bf16.gmra.mxu0 %v867
      %v1810 = vpop.f32.mrf.mxu0
      %v1811 = vadd.f32 %v1650, %v1810
      %v1812 = vpop.f32.mrf.mxu0
      %v1813 = vpop.f32.mrf.mxu0
      %v1814 = vadd.f32 %v1653, %v1813
      %v1815 = vpop.f32.mrf.mxu0
      %1816 = vmatprep.mubr.bf16.mxu0 %v875
      %1817 = vmatmul.mubr.bf16.gmra.mxu0 %v874
      %v1818 = vpop.f32.mrf.mxu0
      %v1819 = vadd.f32 %v1658, %v1818
      %v1820 = vpop.f32.mrf.mxu0
      %v1821 = vpop.f32.mrf.mxu0
      %v1822 = vadd.f32 %v1661, %v1821
      %v1823 = vpop.f32.mrf.mxu0
      %1824 = vmatprep.mubr.bf16.mxu0 %v882
      %1825 = vmatmul.mubr.bf16.gmra.mxu0 %v881
      %v1826 = vpop.f32.mrf.mxu0
      %v1827 = vadd.f32 %v1666, %v1826
      %v1828 = vpop.f32.mrf.mxu0
      %v1829 = vpop.f32.mrf.mxu0
      %v1830 = vadd.f32 %v1669, %v1829
      %v1831 = vpop.f32.mrf.mxu0
      %1832 = vmatprep.mubr.bf16.mxu0 %v889
      %1833 = vmatmul.mubr.bf16.gmra.mxu0 %v888
      %v1834 = vpop.f32.mrf.mxu0
      %v1835 = vadd.f32 %v1674, %v1834
      %v1836 = vpop.f32.mrf.mxu0
      %v1837 = vpop.f32.mrf.mxu0
      %v1838 = vadd.f32 %v1677, %v1837
      %v1839 = vpop.f32.mrf.mxu0
      %1840 = vmatprep.mubr.bf16.mxu0 %v896
      %1841 = vmatmul.mubr.bf16.gmra.mxu0 %v895
      %v1842 = vpop.f32.mrf.mxu0
      %v1843 = vadd.f32 %v1682, %v1842
      %v1844 = vpop.f32.mrf.mxu0
      %v1845 = vpop.f32.mrf.mxu0
      %v1846 = vadd.f32 %v1685, %v1845
      %v1847 = vpop.f32.mrf.mxu0
      %1848 = vmatprep.mubr.bf16.mxu0 %v903
      %1849 = vmatmul.mubr.bf16.gmra.mxu0 %v902
      %v1850 = vpop.f32.mrf.mxu0
      %v1851 = vadd.f32 %v1690, %v1850
      %v1852 = vpop.f32.mrf.mxu0
      %v1853 = vpop.f32.mrf.mxu0
      %v1854 = vadd.f32 %v1693, %v1853
      %v1855 = vpop.f32.mrf.mxu0
      %1856 = vdwg.mxu0
      %1857 = vmatprep.subr.bf16.mxu0 0
      %1858 = vmatpush1.bf16.msra.mxu0 0
      %1859 = vmatprep.subr.bf16.mxu0 0
      %1860 = vmatpush1.bf16.msra.mxu0 0
      %1861 = vmatprep.subr.bf16.mxu0 0
      %1862 = vmatpush1.bf16.msra.mxu0 %v1270
      %1863 = vmatprep.subr.bf16.mxu0 0
      %1864 = vmatpush1.bf16.msra.mxu0 %v1269
      %1865 = vmatprep.subr.bf16.mxu0 0
      %1866 = vmatpush1.bf16.msra.mxu0 %v1268
      %1867 = vmatprep.subr.bf16.mxu0 0
      %1868 = vmatpush1.bf16.msra.mxu0 %v1267
      %1869 = vmatprep.subr.bf16.mxu0 0
      %1870 = vmatpush1.bf16.msra.mxu0 %v1266
      %1871 = vmatprep.subr.bf16.mxu0 0
      %1872 = vmatpush1.bf16.msra.mxu0 %v1265
      %1873 = vmatprep.subr.bf16.mxu0 0
      %1874 = vmatpush2.bf16.msra.mxu0 0
      %1875 = vmatprep.subr.bf16.mxu0 0
      %1876 = vmatpush2.bf16.msra.mxu0 0
      %1877 = vmatprep.subr.bf16.mxu0 0
      %1878 = vmatpush2.bf16.msra.mxu0 0
      %1879 = vmatprep.subr.bf16.mxu0 0
      %1880 = vmatpush2.bf16.msra.mxu0 0
      %1881 = vmatprep.subr.bf16.mxu0 0
      %1882 = vmatpush2.bf16.msra.mxu0 0
      %1883 = vmatprep.subr.bf16.mxu0 0
      %1884 = vmatpush2.bf16.msra.mxu0 0
      %1885 = vmatprep.subr.bf16.mxu0 0
      %1886 = vmatpush2.bf16.msra.mxu0 0
      %1887 = vmatprep.subr.bf16.mxu0 0
      %1888 = vmatpush2.bf16.msra.mxu0 0
      %1889 = vmatprep.mubr.bf16.mxu0 0
      %1890 = vmatmul.mubr.bf16.gmra.mxu0 %v1327
      %v1891 = vpop.f32.mrf.mxu0
      %v1892 = vadd.f32 %v1731, %v1891
      %v1893 = vpop.f32.mrf.mxu0
      %v1894 = vpop.f32.mrf.mxu0
      %v1895 = vadd.f32 %v1734, %v1894
      %v1896 = vpop.f32.mrf.mxu0
      %1897 = vmatprep.mubr.bf16.mxu0 0
      %1898 = vmatmul.mubr.bf16.gmra.mxu0 %v1330
      %v1899 = vpop.f32.mrf.mxu0
      %v1900 = vadd.f32 %v1739, %v1899
      %v1901 = vpop.f32.mrf.mxu0
      %v1902 = vpop.f32.mrf.mxu0
      %v1903 = vadd.f32 %v1742, %v1902
      %v1904 = vpop.f32.mrf.mxu0
      %1905 = vmatprep.mubr.bf16.mxu0 0
      %1906 = vmatmul.mubr.bf16.gmra.mxu0 %v1333
      %v1907 = vpop.f32.mrf.mxu0
      %v1908 = vadd.f32 %v1747, %v1907
      %v1909 = vpop.f32.mrf.mxu0
      %v1910 = vpop.f32.mrf.mxu0
      %v1911 = vadd.f32 %v1750, %v1910
      %v1912 = vpop.f32.mrf.mxu0
      %1913 = vmatprep.mubr.bf16.mxu0 0
      %1914 = vmatmul.mubr.bf16.gmra.mxu0 %v1336
      %v1915 = vpop.f32.mrf.mxu0
      %v1916 = vadd.f32 %v1755, %v1915
      %v1917 = vpop.f32.mrf.mxu0
      %v1918 = vpop.f32.mrf.mxu0
      %v1919 = vadd.f32 %v1758, %v1918
      %v1920 = vpop.f32.mrf.mxu0
      %1921 = vmatprep.mubr.bf16.mxu0 0
      %1922 = vmatmul.mubr.bf16.gmra.mxu0 %v1339
      %v1923 = vpop.f32.mrf.mxu0
      %v1924 = vadd.f32 %v1763, %v1923
      %v1925 = vpop.f32.mrf.mxu0
      %v1926 = vpop.f32.mrf.mxu0
      %v1927 = vadd.f32 %v1766, %v1926
      %v1928 = vpop.f32.mrf.mxu0
      %1929 = vmatprep.mubr.bf16.mxu0 0
      %1930 = vmatmul.mubr.bf16.gmra.mxu0 %v1342
      %v1931 = vpop.f32.mrf.mxu0
      %v1932 = vadd.f32 %v1771, %v1931
      %v1933 = vpop.f32.mrf.mxu0
      %v1934 = vpop.f32.mrf.mxu0
      %v1935 = vadd.f32 %v1774, %v1934
      %v1936 = vpop.f32.mrf.mxu0
      %1937 = vmatprep.mubr.bf16.mxu0 0
      %1938 = vmatmul.mubr.bf16.gmra.mxu0 %v1345
      %v1939 = vpop.f32.mrf.mxu0
      %v1940 = vadd.f32 %v1779, %v1939
      %v1941 = vpop.f32.mrf.mxu0
      %v1942 = vpop.f32.mrf.mxu0
      %v1943 = vadd.f32 %v1782, %v1942
      %v1944 = vpop.f32.mrf.mxu0
      %1945 = vmatprep.mubr.bf16.mxu0 0
      %1946 = vmatmul.mubr.bf16.gmra.mxu0 %v1348
      %v1947 = vpop.f32.mrf.mxu0
      %v1948 = vadd.f32 %v1787, %v1947
      %v1949 = vpop.f32.mrf.mxu0
      %v1950 = vpop.f32.mrf.mxu0
      %v1951 = vadd.f32 %v1790, %v1950
      %v1952 = vpop.f32.mrf.mxu0
      %1953 = vmatprep.mubr.bf16.mxu0 0
      %1954 = vmatmul.mubr.bf16.gmra.mxu0 %v1351
      %v1955 = vpop.f32.mrf.mxu0
      %v1956 = vadd.f32 %v1795, %v1955
      %v1957 = vpop.f32.mrf.mxu0
      %v1958 = vpop.f32.mrf.mxu0
      %v1959 = vadd.f32 %v1798, %v1958
      %v1960 = vpop.f32.mrf.mxu0
      %1961 = vmatprep.mubr.bf16.mxu0 0
      %1962 = vmatmul.mubr.bf16.gmra.mxu0 %v1354
      %v1963 = vpop.f32.mrf.mxu0
      %v1964 = vadd.f32 %v1803, %v1963
      %v1965 = vpop.f32.mrf.mxu0
      %v1966 = vpop.f32.mrf.mxu0
      %v1967 = vadd.f32 %v1806, %v1966
      %v1968 = vpop.f32.mrf.mxu0
      %1969 = vmatprep.mubr.bf16.mxu0 0
      %1970 = vmatmul.mubr.bf16.gmra.mxu0 %v1357
      %v1971 = vpop.f32.mrf.mxu0
      %v1972 = vadd.f32 %v1811, %v1971
      %v1973 = vpop.f32.mrf.mxu0
      %v1974 = vpop.f32.mrf.mxu0
      %v1975 = vadd.f32 %v1814, %v1974
      %v1976 = vpop.f32.mrf.mxu0
      %1977 = vmatprep.mubr.bf16.mxu0 0
      %1978 = vmatmul.mubr.bf16.gmra.mxu0 %v1360
      %v1979 = vpop.f32.mrf.mxu0
      %v1980 = vadd.f32 %v1819, %v1979
      %v1981 = vpop.f32.mrf.mxu0
      %v1982 = vpop.f32.mrf.mxu0
      %v1983 = vadd.f32 %v1822, %v1982
      %v1984 = vpop.f32.mrf.mxu0
      %1985 = vmatprep.mubr.bf16.mxu0 0
      %1986 = vmatmul.mubr.bf16.gmra.mxu0 %v1363
      %v1987 = vpop.f32.mrf.mxu0
      %v1988 = vadd.f32 %v1827, %v1987
      %v1989 = vpop.f32.mrf.mxu0
      %v1990 = vpop.f32.mrf.mxu0
      %v1991 = vadd.f32 %v1830, %v1990
      %v1992 = vpop.f32.mrf.mxu0
      %1993 = vmatprep.mubr.bf16.mxu0 0
      %1994 = vmatmul.mubr.bf16.gmra.mxu0 %v1366
      %v1995 = vpop.f32.mrf.mxu0
      %v1996 = vadd.f32 %v1835, %v1995
      %v1997 = vpop.f32.mrf.mxu0
      %v1998 = vpop.f32.mrf.mxu0
      %v1999 = vadd.f32 %v1838, %v1998
      %v2000 = vpop.f32.mrf.mxu0
      %2001 = vmatprep.mubr.bf16.mxu0 0
      %2002 = vmatmul.mubr.bf16.gmra.mxu0 %v1369
      %v2003 = vpop.f32.mrf.mxu0
      %v2004 = vadd.f32 %v1843, %v2003
      %v2005 = vpop.f32.mrf.mxu0
      %v2006 = vpop.f32.mrf.mxu0
      %v2007 = vadd.f32 %v1846, %v2006
      %v2008 = vpop.f32.mrf.mxu0
      %2009 = vmatprep.mubr.bf16.mxu0 0
      %2010 = vmatmul.mubr.bf16.gmra.mxu0 %v1372
      %v2011 = vpop.f32.mrf.mxu0
      %v2012 = vadd.f32 %v1851, %v2011
      %v2013 = vpop.f32.mrf.mxu0
      %v2014 = vpop.f32.mrf.mxu0
      %v2015 = vadd.f32 %v1854, %v2014
      %v2016 = vpop.f32.mrf.mxu0
      %2017 = vdwg.mxu0
      %v2018 = vld [vmem:[%s2] sm:$0x1]
      %v2020 = vlaneseq
      %v2021 = vshrl.u32 %v2020, 7
      %v2022 = vsub.s32 0, %v2021
      %v2023 = vrot.slane %v2018, %v2022
      %v2025 = vmul.f32 %v1892, %v2023
      %v2026 = vmul.f32 %v1895, %v2023
      %v2027 = vmul.f32 %v1900, %v2023
      %v2028 = vmul.f32 %v1903, %v2023
      %v2029 = vmul.f32 %v1908, %v2023
      %v2030 = vmul.f32 %v1911, %v2023
      %v2031 = vmul.f32 %v1916, %v2023
      %v2032 = vmul.f32 %v1919, %v2023
      %v2033 = vmul.f32 %v1924, %v2023
      %v2034 = vmul.f32 %v1927, %v2023
      %v2035 = vmul.f32 %v1932, %v2023
      %v2036 = vmul.f32 %v1935, %v2023
      %v2037 = vmul.f32 %v1940, %v2023
      %v2038 = vmul.f32 %v1943, %v2023
      %v2039 = vmul.f32 %v1948, %v2023
      %v2040 = vmul.f32 %v1951, %v2023
      %v2041 = vmul.f32 %v1956, %v2023
      %v2042 = vmul.f32 %v1959, %v2023
      %v2043 = vmul.f32 %v1964, %v2023
      %v2044 = vmul.f32 %v1967, %v2023
      %v2045 = vmul.f32 %v1972, %v2023
      %v2046 = vmul.f32 %v1975, %v2023
      %v2047 = vmul.f32 %v1980, %v2023
      %v2048 = vmul.f32 %v1983, %v2023
      %v2049 = vmul.f32 %v1988, %v2023
      %v2050 = vmul.f32 %v1991, %v2023
      %v2051 = vmul.f32 %v1996, %v2023
      %v2052 = vmul.f32 %v1999, %v2023
      %v2053 = vmul.f32 %v2004, %v2023
      %v2054 = vmul.f32 %v2007, %v2023
      %v2055 = vmul.f32 %v2012, %v2023
      %v2056 = vmul.f32 %v2015, %v2023
      %v2057 = vld [vmem:[%s3] sm:$0x1]
      %v2059 = vlaneseq
      %v2060 = vshrl.u32 %v2059, 7
      %v2061 = vsub.s32 0, %v2060
      %v2062 = vrot.slane %v2057, %v2061
      %v2064 = vadd.f32 %v2025, %v2062
      %v2065 = vadd.f32 %v2026, %v2062
      %v2066 = vadd.f32 %v2027, %v2062
      %v2067 = vadd.f32 %v2028, %v2062
      %v2068 = vadd.f32 %v2029, %v2062
      %v2069 = vadd.f32 %v2030, %v2062
      %v2070 = vadd.f32 %v2031, %v2062
      %v2071 = vadd.f32 %v2032, %v2062
      %v2072 = vadd.f32 %v2033, %v2062
      %v2073 = vadd.f32 %v2034, %v2062
      %v2074 = vadd.f32 %v2035, %v2062
      %v2075 = vadd.f32 %v2036, %v2062
      %v2076 = vadd.f32 %v2037, %v2062
      %v2077 = vadd.f32 %v2038, %v2062
      %v2078 = vadd.f32 %v2039, %v2062
      %v2079 = vadd.f32 %v2040, %v2062
      %v2080 = vadd.f32 %v2041, %v2062
      %v2081 = vadd.f32 %v2042, %v2062
      %v2082 = vadd.f32 %v2043, %v2062
      %v2083 = vadd.f32 %v2044, %v2062
      %v2084 = vadd.f32 %v2045, %v2062
      %v2085 = vadd.f32 %v2046, %v2062
      %v2086 = vadd.f32 %v2047, %v2062
      %v2087 = vadd.f32 %v2048, %v2062
      %v2088 = vadd.f32 %v2049, %v2062
      %v2089 = vadd.f32 %v2050, %v2062
      %v2090 = vadd.f32 %v2051, %v2062
      %v2091 = vadd.f32 %v2052, %v2062
      %v2092 = vadd.f32 %v2053, %v2062
      %v2093 = vadd.f32 %v2054, %v2062
      %v2094 = vadd.f32 %v2055, %v2062
      %v2095 = vadd.f32 %v2056, %v2062
      %vm2096 = vcmp.ge.f32.partialorder %v2064, 0.0
      %vm2097 = vcmp.ge.f32.partialorder %v2065, 0.0
      %vm2098 = vcmp.ge.f32.partialorder %v2066, 0.0
      %vm2099 = vcmp.ge.f32.partialorder %v2067, 0.0
      %vm2100 = vcmp.ge.f32.partialorder %v2068, 0.0
      %vm2101 = vcmp.ge.f32.partialorder %v2069, 0.0
      %vm2102 = vcmp.ge.f32.partialorder %v2070, 0.0
      %vm2103 = vcmp.ge.f32.partialorder %v2071, 0.0
      %vm2104 = vcmp.ge.f32.partialorder %v2072, 0.0
      %vm2105 = vcmp.ge.f32.partialorder %v2073, 0.0
      %vm2106 = vcmp.ge.f32.partialorder %v2074, 0.0
      %vm2107 = vcmp.ge.f32.partialorder %v2075, 0.0
      %vm2108 = vcmp.ge.f32.partialorder %v2076, 0.0
      %vm2109 = vcmp.ge.f32.partialorder %v2077, 0.0
      %vm2110 = vcmp.ge.f32.partialorder %v2078, 0.0
      %vm2111 = vcmp.ge.f32.partialorder %v2079, 0.0
      %vm2112 = vcmp.ge.f32.partialorder %v2080, 0.0
      %vm2113 = vcmp.ge.f32.partialorder %v2081, 0.0
      %vm2114 = vcmp.ge.f32.partialorder %v2082, 0.0
      %vm2115 = vcmp.ge.f32.partialorder %v2083, 0.0
      %vm2116 = vcmp.ge.f32.partialorder %v2084, 0.0
      %vm2117 = vcmp.ge.f32.partialorder %v2085, 0.0
      %vm2118 = vcmp.ge.f32.partialorder %v2086, 0.0
      %vm2119 = vcmp.ge.f32.partialorder %v2087, 0.0
      %vm2120 = vcmp.ge.f32.partialorder %v2088, 0.0
      %vm2121 = vcmp.ge.f32.partialorder %v2089, 0.0
      %vm2122 = vcmp.ge.f32.partialorder %v2090, 0.0
      %vm2123 = vcmp.ge.f32.partialorder %v2091, 0.0
      %vm2124 = vcmp.ge.f32.partialorder %v2092, 0.0
      %vm2125 = vcmp.ge.f32.partialorder %v2093, 0.0
      %vm2126 = vcmp.ge.f32.partialorder %v2094, 0.0
      %vm2127 = vcmp.ge.f32.partialorder %v2095, 0.0
      %v2128 = vmul.f32 %v2064, 0.2
      %v2129 = vmul.f32 %v2065, 0.2
      %v2130 = vmul.f32 %v2066, 0.2
      %v2131 = vmul.f32 %v2067, 0.2
      %v2132 = vmul.f32 %v2068, 0.2
      %v2133 = vmul.f32 %v2069, 0.2
      %v2134 = vmul.f32 %v2070, 0.2
      %v2135 = vmul.f32 %v2071, 0.2
      %v2136 = vmul.f32 %v2072, 0.2
      %v2137 = vmul.f32 %v2073, 0.2
      %v2138 = vmul.f32 %v2074, 0.2
      %v2139 = vmul.f32 %v2075, 0.2
      %v2140 = vmul.f32 %v2076, 0.2
      %v2141 = vmul.f32 %v2077, 0.2
      %v2142 = vmul.f32 %v2078, 0.2
      %v2143 = vmul.f32 %v2079, 0.2
      %v2144 = vmul.f32 %v2080, 0.2
      %v2145 = vmul.f32 %v2081, 0.2
      %v2146 = vmul.f32 %v2082, 0.2
      %v2147 = vmul.f32 %v2083, 0.2
      %v2148 = vmul.f32 %v2084, 0.2
      %v2149 = vmul.f32 %v2085, 0.2
      %v2150 = vmul.f32 %v2086, 0.2
      %v2151 = vmul.f32 %v2087, 0.2
      %v2152 = vmul.f32 %v2088, 0.2
      %v2153 = vmul.f32 %v2089, 0.2
      %v2154 = vmul.f32 %v2090, 0.2
      %v2155 = vmul.f32 %v2091, 0.2
      %v2156 = vmul.f32 %v2092, 0.2
      %v2157 = vmul.f32 %v2093, 0.2
      %v2158 = vmul.f32 %v2094, 0.2
      %v2159 = vmul.f32 %v2095, 0.2
      %v2160 = vsel %vm2096, %v2064, %v2128
      %v2161 = vsel %vm2097, %v2065, %v2129
      %v2162 = vsel %vm2098, %v2066, %v2130
      %v2163 = vsel %vm2099, %v2067, %v2131
      %v2164 = vsel %vm2100, %v2068, %v2132
      %v2165 = vsel %vm2101, %v2069, %v2133
      %v2166 = vsel %vm2102, %v2070, %v2134
      %v2167 = vsel %vm2103, %v2071, %v2135
      %v2168 = vsel %vm2104, %v2072, %v2136
      %v2169 = vsel %vm2105, %v2073, %v2137
      %v2170 = vsel %vm2106, %v2074, %v2138
      %v2171 = vsel %vm2107, %v2075, %v2139
      %v2172 = vsel %vm2108, %v2076, %v2140
      %v2173 = vsel %vm2109, %v2077, %v2141
      %v2174 = vsel %vm2110, %v2078, %v2142
      %v2175 = vsel %vm2111, %v2079, %v2143
      %v2176 = vsel %vm2112, %v2080, %v2144
      %v2177 = vsel %vm2113, %v2081, %v2145
      %v2178 = vsel %vm2114, %v2082, %v2146
      %v2179 = vsel %vm2115, %v2083, %v2147
      %v2180 = vsel %vm2116, %v2084, %v2148
      %v2181 = vsel %vm2117, %v2085, %v2149
      %v2182 = vsel %vm2118, %v2086, %v2150
      %v2183 = vsel %vm2119, %v2087, %v2151
      %v2184 = vsel %vm2120, %v2088, %v2152
      %v2185 = vsel %vm2121, %v2089, %v2153
      %v2186 = vsel %vm2122, %v2090, %v2154
      %v2187 = vsel %vm2123, %v2091, %v2155
      %v2188 = vsel %vm2124, %v2092, %v2156
      %v2189 = vsel %vm2125, %v2093, %v2157
      %v2190 = vsel %vm2126, %v2094, %v2158
      %v2191 = vsel %vm2127, %v2095, %v2159
      %v2192 = vpack.c.bf16 %v2161, %v2160
      %v2193 = vpack.c.bf16 %v2163, %v2162
      %v2194 = vpack.c.bf16 %v2165, %v2164
      %v2195 = vpack.c.bf16 %v2167, %v2166
      %v2196 = vpack.c.bf16 %v2169, %v2168
      %v2197 = vpack.c.bf16 %v2171, %v2170
      %v2198 = vpack.c.bf16 %v2173, %v2172
      %v2199 = vpack.c.bf16 %v2175, %v2174
      %v2200 = vpack.c.bf16 %v2177, %v2176
      %v2201 = vpack.c.bf16 %v2179, %v2178
      %v2202 = vpack.c.bf16 %v2181, %v2180
      %v2203 = vpack.c.bf16 %v2183, %v2182
      %v2204 = vpack.c.bf16 %v2185, %v2184
      %v2205 = vpack.c.bf16 %v2187, %v2186
      %v2206 = vpack.c.bf16 %v2189, %v2188
      %v2207 = vpack.c.bf16 %v2191, %v2190
      %v2224 = vunpack.c.l.b16 %v2192
      %v2225 = vunpack.c.h.b16 %v2192
      %v2226 = vunpack.c.l.b16 %v2193
      %v2227 = vunpack.c.h.b16 %v2193
      %v2228 = vunpack.c.l.b16 %v2194
      %v2229 = vunpack.c.h.b16 %v2194
      %v2230 = vunpack.c.l.b16 %v2195
      %v2231 = vunpack.c.h.b16 %v2195
      %v2232 = vunpack.c.l.b16 %v2196
      %v2233 = vunpack.c.h.b16 %v2196
      %v2234 = vunpack.c.l.b16 %v2197
      %v2235 = vunpack.c.h.b16 %v2197
      %v2236 = vunpack.c.l.b16 %v2198
      %v2237 = vunpack.c.h.b16 %v2198
      %v2238 = vunpack.c.l.b16 %v2199
      %v2239 = vunpack.c.h.b16 %v2199
      %v2240 = vunpack.c.l.b16 %v2200
      %v2241 = vunpack.c.h.b16 %v2200
      %v2242 = vunpack.c.l.b16 %v2201
      %v2243 = vunpack.c.h.b16 %v2201
      %v2244 = vunpack.c.l.b16 %v2202
      %v2245 = vunpack.c.h.b16 %v2202
      %v2246 = vunpack.c.l.b16 %v2203
      %v2247 = vunpack.c.h.b16 %v2203
      %v2248 = vunpack.c.l.b16 %v2204
      %v2249 = vunpack.c.h.b16 %v2204
      %v2250 = vunpack.c.l.b16 %v2205
      %v2251 = vunpack.c.h.b16 %v2205
      %v2252 = vunpack.c.l.b16 %v2206
      %v2253 = vunpack.c.h.b16 %v2206
      %v2254 = vunpack.c.l.b16 %v2207
      %v2255 = vunpack.c.h.b16 %v2207
      %v2256 = vpack.c.b16 %v2224, %v2224
      %v2257 = vpack.c.b16 %v2225, %v2225
      %v2258 = vpack.c.b16 %v2226, %v2226
      %v2259 = vpack.c.b16 %v2227, %v2227
      %v2260 = vpack.c.b16 %v2228, %v2228
      %v2261 = vpack.c.b16 %v2229, %v2229
      %v2262 = vpack.c.b16 %v2230, %v2230
      %v2263 = vpack.c.b16 %v2231, %v2231
      %v2264 = vpack.c.b16 %v2232, %v2232
      %v2265 = vpack.c.b16 %v2233, %v2233
      %v2266 = vpack.c.b16 %v2234, %v2234
      %v2267 = vpack.c.b16 %v2235, %v2235
      %v2268 = vpack.c.b16 %v2236, %v2236
      %v2269 = vpack.c.b16 %v2237, %v2237
      %v2270 = vpack.c.b16 %v2238, %v2238
      %v2271 = vpack.c.b16 %v2239, %v2239
      %v2272 = vpack.c.b16 %v2240, %v2240
      %v2273 = vpack.c.b16 %v2241, %v2241
      %v2274 = vpack.c.b16 %v2242, %v2242
      %v2275 = vpack.c.b16 %v2243, %v2243
      %v2276 = vpack.c.b16 %v2244, %v2244
      %v2277 = vpack.c.b16 %v2245, %v2245
      %v2278 = vpack.c.b16 %v2246, %v2246
      %v2279 = vpack.c.b16 %v2247, %v2247
      %v2280 = vpack.c.b16 %v2248, %v2248
      %v2281 = vpack.c.b16 %v2249, %v2249
      %v2282 = vpack.c.b16 %v2250, %v2250
      %v2283 = vpack.c.b16 %v2251, %v2251
      %v2284 = vpack.c.b16 %v2252, %v2252
      %v2285 = vpack.c.b16 %v2253, %v2253
      %v2286 = vpack.c.b16 %v2254, %v2254
      %v2287 = vpack.c.b16 %v2255, %v2255
      %vm2320 = vcmask 257024
      %2321 = vst.msk [vmem:[%s202] sm:$0xf] %vm2320, %v2256
      %2322 = vst.msk [vmem:[%s202 + $0x4] sm:$0xf] %vm2320, %v2257
      %2323 = vst.msk [vmem:[%s202 + $0x8] sm:$0xf] %vm2320, %v2258
      %2324 = vst.msk [vmem:[%s202 + $0xc] sm:$0xf] %vm2320, %v2259
      %2325 = vst.msk [vmem:[%s202 + $0x10] sm:$0xf] %vm2320, %v2260
      %2326 = vst.msk [vmem:[%s202 + $0x14] sm:$0xf] %vm2320, %v2261
      %2327 = vst.msk [vmem:[%s202 + $0x18] sm:$0xf] %vm2320, %v2262
      %2328 = vst.msk [vmem:[%s202 + $0x1c] sm:$0xf] %vm2320, %v2263
      %2329 = vst.msk [vmem:[%s202 + $0x20] sm:$0xf] %vm2320, %v2264
      %2330 = vst.msk [vmem:[%s202 + $0x24] sm:$0xf] %vm2320, %v2265
      %2331 = vst.msk [vmem:[%s202 + $0x28] sm:$0xf] %vm2320, %v2266
      %2332 = vst.msk [vmem:[%s202 + $0x2c] sm:$0xf] %vm2320, %v2267
      %2333 = vst.msk [vmem:[%s202 + $0x30] sm:$0xf] %vm2320, %v2268
      %2334 = vst.msk [vmem:[%s202 + $0x34] sm:$0xf] %vm2320, %v2269
      %2335 = vst.msk [vmem:[%s202 + $0x38] sm:$0xf] %vm2320, %v2270
      %2336 = vst.msk [vmem:[%s202 + $0x3c] sm:$0xf] %vm2320, %v2271
      %2337 = vst.msk [vmem:[%s202 + $0x40] sm:$0xf] %vm2320, %v2272
      %2338 = vst.msk [vmem:[%s202 + $0x44] sm:$0xf] %vm2320, %v2273
      %2339 = vst.msk [vmem:[%s202 + $0x48] sm:$0xf] %vm2320, %v2274
      %2340 = vst.msk [vmem:[%s202 + $0x4c] sm:$0xf] %vm2320, %v2275
      %2341 = vst.msk [vmem:[%s202 + $0x50] sm:$0xf] %vm2320, %v2276
      %2342 = vst.msk [vmem:[%s202 + $0x54] sm:$0xf] %vm2320, %v2277
      %2343 = vst.msk [vmem:[%s202 + $0x58] sm:$0xf] %vm2320, %v2278
      %2344 = vst.msk [vmem:[%s202 + $0x5c] sm:$0xf] %vm2320, %v2279
      %2345 = vst.msk [vmem:[%s202 + $0x60] sm:$0xf] %vm2320, %v2280
      %2346 = vst.msk [vmem:[%s202 + $0x64] sm:$0xf] %vm2320, %v2281
      %2347 = vst.msk [vmem:[%s202 + $0x68] sm:$0xf] %vm2320, %v2282
      %2348 = vst.msk [vmem:[%s202 + $0x6c] sm:$0xf] %vm2320, %v2283
      %2349 = vst.msk [vmem:[%s202 + $0x70] sm:$0xf] %vm2320, %v2284
      %2350 = vst.msk [vmem:[%s202 + $0x74] sm:$0xf] %vm2320, %v2285
      %2351 = vst.msk [vmem:[%s202 + $0x78] sm:$0xf] %vm2320, %v2286
      %2352 = vst.msk [vmem:[%s202 + $0x7c] sm:$0xf] %vm2320, %v2287
      %s2353 = smul.u32 32, %s15
      %p2354 = scmp.lt.s32.totalorder %s2353, 63
      %s2355 = scalar_select %p2354, %s2353, 63
      %s2356 = smul.addr %s2355, 4
      %s2357 = scalar_lea.vmem %s4, %s2356
      // Predicated region
      $region37: #{unet_forward.21} parent=35 // pred_check
        %p2358 = pneg %p122
      $region38: #{unet_forward.21} parent=35 // pred_check_branch
        %2360 = sbr.rel (%p2358) target = $region40
      $region39: #{unet_forward.21} parent=35 // pred_region
        %s2361 = smul.u32 32, %s15
      $region40: #{unet_forward.21} parent=35 // pred_fallthru
        _
    $region36: #{unet_forward.21} parent=5 // pred_fallthru
      _
    %p2362 = scmp.le.s32.totalorder 2, %s10
    // Predicated region
    $region41: #{unet_forward.21} parent=5 // pred_check
      %p2363 = pneg %p2362
    $region42: #{unet_forward.21} parent=5 // pred_check_branch
      %2365 = sbr.rel (%p2363) target = $region44
    $region43: #{unet_forward.21} parent=5 // pred_region
      %s2366 = ssub.s32 %s10, 2
      // Predicated region
      $region45: #{unet_forward.21} parent=43 // pred_check
        %p2367 = pneg %p128
      $region46: #{unet_forward.21} parent=43 // pred_check_branch
        %2369 = sbr.rel (%p2367) target = $region48
      $region47: #{unet_forward.21} parent=43 // pred_region
        %s2370 = smul.u32 32, %s16
        %p2371 = scmp.lt.s32.totalorder %s2370, 63
        %s2372 = scalar_select %p2371, %s2370, 63
        %s2373 = smul.addr %s2372, 4
        %s2374 = scalar_lea.vmem %s4, %s2373
      $region48: #{unet_forward.21} parent=43 // pred_fallthru
        _
    $region44: #{unet_forward.21} parent=5 // pred_fallthru
      _
  $region6: #{unet_forward.21} parent=0 // loop_footer
    %s14 = sadd.s32 1, %s10
  $region7: #{unet_forward.21} parent=0 // loop_footer_branch
    %9 = sbr.rel target = $region3
  $region8: #{unet_forward.21} parent=0 // loop_exit
    _

// kernel: unet_forward.22
$region0: #{unet_forward.22}
  #allocation0 [shape = 'u32[]', space=smem, size = 0x4, offset = 0x4, fixed_abs, tag = 'smem constant byte address 0x4 - core index']
  #allocation1 [shape = 'u32[144,128]{1,0:T(1,128)}', space=vmem, size = 0x12000, scoped, tag = 'internal scratch']
  %s0 = inlined_call_operand.vmem [shape: bf16[512,288], index: 0, kind: input, shape index: {}]
  %s1 = inlined_call_operand.vmem [shape: bf16[288,32], index: 1, kind: input, shape index: {}]
  %s2 = inlined_call_operand.vmem [shape: f32[1,32], index: 2, kind: input, shape index: {}]
  %s3 = inlined_call_operand.vmem [shape: f32[1,32], index: 3, kind: input, shape index: {}]
  %s4 = inlined_call_operand.vmem [shape: bf16[512,32], index: 4, kind: output, shape index: {}]
  %s5 = sld [smem:[#allocation0]]
  $region49: #{unet_forward.22} parent=0
    _
  %s7 = ssub.s32 1, %s5
  %s8 = scalar_select 0, %s7, %s5
  loop: start=0, step=1, limit=4
  $region2: #{unet_forward.22} parent=0 // loop_pre_header
    _
  $region3: #{unet_forward.22} parent=0 // loop_header
    %s10 = sphi 0, %s14
    %p11 = scmp.ge.s32.totalorder %s10, 4
    %s20 = sphi 0, %s22
    %s23 = sphi 0, %s20
    %s24 = sphi 0, %s23
    %s40 = sphi 0, %s24
    %s44 = sphi 0, %s44
    %s46 = sphi 0, %s44
    %s47 = sphi 0, %s46
    %s61 = sphi 0, %s47
    %s65 = sphi 0, %s65
    %s67 = sphi 0, %s65
    %s68 = sphi 0, %s67
    %s82 = sphi 0, %s68
    %s86 = sphi 0, %s86
    %s88 = sphi 0, %s86
    %s89 = sphi 0, %s88
    %s103 = sphi 0, %s89
    %s109 = sphi 0, %s111
    %s112 = sphi 0, %s109
    %s113 = sphi 0, %s112
    %s129 = sphi 0, %s113
  $region4: #{unet_forward.22} parent=0 // loop_header_branch
    %13 = sbr.rel (%p11) target = $region8
  $region5: #{unet_forward.22} parent=0 // loop_body
    %s15 = ssub.s32 %s10, 1
    %s16 = ssub.s32 %s10, 2
    %s17 = sadd.s32 %s10, 1
    %s18 = ssub.s32 %s10, %s17
    %p19 = scmp.eq.s32.totalorder %s18, 0
    %s21 = sadd.s32 %s20, 1
    %s22 = scalar_select %p19, %s20, %s21
    %p25 = pneg %p19
    %p26 = scmp.eq.s32.totalorder %s10, 1
    %p27 = por %p25, %p26
    %p28 = scmp.ne.s32.totalorder %s20, %s23
    %p29 = scmp.eq.s32.totalorder %s10, 0
    %p30 = por %p28, %p29
    %p31 = scmp.ne.s32.totalorder %s20, %s23
    %p32 = scmp.eq.s32.totalorder %s15, 1
    %p33 = por %p31, %p32
    %p34 = scmp.ne.s32.totalorder %s23, %s24
    %p35 = scmp.eq.s32.totalorder %s15, 0
    %p36 = por %p34, %p35
    %p37 = scmp.ne.s32.totalorder %s23, %s24
    %p38 = scmp.eq.s32.totalorder %s16, 1
    %p39 = por %p37, %p38
    %p41 = scmp.ne.s32.totalorder %s24, %s40
    %p42 = scmp.eq.s32.totalorder %s16, 0
    %p43 = por %p41, %p42
    %s45 = sadd.s32 %s44, 1
    %p48 = scmp.eq.s32.totalorder %s10, 1
    %p49 = scmp.ne.s32.totalorder %s44, %s46
    %p50 = scmp.eq.s32.totalorder %s10, 0
    %p51 = por %p49, %p50
    %p52 = scmp.ne.s32.totalorder %s44, %s46
    %p53 = scmp.eq.s32.totalorder %s15, 1
    %p54 = por %p52, %p53
    %p55 = scmp.ne.s32.totalorder %s46, %s47
    %p56 = scmp.eq.s32.totalorder %s15, 0
    %p57 = por %p55, %p56
    %p58 = scmp.ne.s32.totalorder %s46, %s47
    %p59 = scmp.eq.s32.totalorder %s16, 1
    %p60 = por %p58, %p59
    %p62 = scmp.ne.s32.totalorder %s47, %s61
    %p63 = scmp.eq.s32.totalorder %s16, 0
    %p64 = por %p62, %p63
    %s66 = sadd.s32 %s65, 1
    %p69 = scmp.eq.s32.totalorder %s10, 1
    %p70 = scmp.ne.s32.totalorder %s65, %s67
    %p71 = scmp.eq.s32.totalorder %s10, 0
    %p72 = por %p70, %p71
    %p73 = scmp.ne.s32.totalorder %s65, %s67
    %p74 = scmp.eq.s32.totalorder %s15, 1
    %p75 = por %p73, %p74
    %p76 = scmp.ne.s32.totalorder %s67, %s68
    %p77 = scmp.eq.s32.totalorder %s15, 0
    %p78 = por %p76, %p77
    %p79 = scmp.ne.s32.totalorder %s67, %s68
    %p80 = scmp.eq.s32.totalorder %s16, 1
    %p81 = por %p79, %p80
    %p83 = scmp.ne.s32.totalorder %s68, %s82
    %p84 = scmp.eq.s32.totalorder %s16, 0
    %p85 = por %p83, %p84
    %s87 = sadd.s32 %s86, 1
    %p90 = scmp.eq.s32.totalorder %s10, 1
    %p91 = scmp.ne.s32.totalorder %s86, %s88
    %p92 = scmp.eq.s32.totalorder %s10, 0
    %p93 = por %p91, %p92
    %p94 = scmp.ne.s32.totalorder %s86, %s88
    %p95 = scmp.eq.s32.totalorder %s15, 1
    %p96 = por %p94, %p95
    %p97 = scmp.ne.s32.totalorder %s88, %s89
    %p98 = scmp.eq.s32.totalorder %s15, 0
    %p99 = por %p97, %p98
    %p100 = scmp.ne.s32.totalorder %s88, %s89
    %p101 = scmp.eq.s32.totalorder %s16, 1
    %p102 = por %p100, %p101
    %p104 = scmp.ne.s32.totalorder %s89, %s103
    %p105 = scmp.eq.s32.totalorder %s16, 0
    %p106 = por %p104, %p105
    %s107 = ssub.s32 %s10, %s17
    %p108 = scmp.eq.s32.totalorder %s107, 0
    %s110 = sadd.s32 %s109, 1
    %s111 = scalar_select %p108, %s109, %s110
    %p114 = pneg %p108
    %p115 = scmp.eq.s32.totalorder %s10, 1
    %p116 = por %p114, %p115
    %p117 = scmp.ne.s32.totalorder %s109, %s112
    %p118 = scmp.eq.s32.totalorder %s10, 0
    %p119 = por %p117, %p118
    %p120 = scmp.ne.s32.totalorder %s109, %s112
    %p121 = scmp.eq.s32.totalorder %s15, 1
    %p122 = por %p120, %p121
    %p123 = scmp.ne.s32.totalorder %s112, %s113
    %p124 = scmp.eq.s32.totalorder %s15, 0
    %p125 = por %p123, %p124
    %p126 = scmp.ne.s32.totalorder %s112, %s113
    %p127 = scmp.eq.s32.totalorder %s16, 1
    %p128 = por %p126, %p127
    %p130 = scmp.ne.s32.totalorder %s113, %s129
    %p131 = scmp.eq.s32.totalorder %s16, 0
    %p132 = por %p130, %p131
    %p133 = scmp.le.s32.totalorder 1, %s10
    %p134 = scmp.lt.s32.totalorder %s10, 3
    %p135 = pnand %p133, %p134
    %p136 = pneg %p135
    // Predicated region
    $region9: #{unet_forward.22} parent=5 // pred_check
      _
    $region10: #{unet_forward.22} parent=5 // pred_check_branch
      %138 = sbr.rel (%p135) target = $region12
    $region11: #{unet_forward.22} parent=5 // pred_region
      %s139 = ssub.s32 %s10, 1
      // Predicated region
      $region13: #{unet_forward.22} parent=11 // pred_check
        %p140 = pneg %p57
      $region14: #{unet_forward.22} parent=11 // pred_check_branch
        %142 = sbr.rel (%p140) target = $region16
      $region15: #{unet_forward.22} parent=11 // pred_region
        _
      $region16: #{unet_forward.22} parent=11 // pred_fallthru
        _
      // Predicated region
      $region17: #{unet_forward.22} parent=11 // pred_check
        %p143 = pneg %p78
      $region18: #{unet_forward.22} parent=11 // pred_check_branch
        %145 = sbr.rel (%p143) target = $region20
      $region19: #{unet_forward.22} parent=11 // pred_region
        _
      $region20: #{unet_forward.22} parent=11 // pred_fallthru
        _
      // Predicated region
      $region21: #{unet_forward.22} parent=11 // pred_check
        %p146 = pneg %p99
      $region22: #{unet_forward.22} parent=11 // pred_check_branch
        %148 = sbr.rel (%p146) target = $region24
      $region23: #{unet_forward.22} parent=11 // pred_region
        _
      $region24: #{unet_forward.22} parent=11 // pred_fallthru
        _
    $region12: #{unet_forward.22} parent=5 // pred_fallthru
      _
    %p149 = scmp.lt.s32.totalorder %s10, 2
    // Predicated region
    $region25: #{unet_forward.22} parent=5 // pred_check
      %p150 = pneg %p149
    $region26: #{unet_forward.22} parent=5 // pred_check_branch
      %152 = sbr.rel (%p150) target = $region28
    $region27: #{unet_forward.22} parent=5 // pred_region
      // Predicated region
      $region29: #{unet_forward.22} parent=27 // pred_check
        %p153 = pneg %p30
      $region30: #{unet_forward.22} parent=27 // pred_check_branch
        %155 = sbr.rel (%p153) target = $region32
      $region31: #{unet_forward.22} parent=27 // pred_region
        %s156 = smul.u32 32, %s10
        %p157 = scmp.lt.s32.totalorder %s156, 63
        %s158 = scalar_select %p157, %s156, 63
        %s159 = smul.addr %s158, 3
        %s160 = smul.addr %s159, 4
        %s161 = scalar_lea.vmem %s0, %s160
        %s162 = smul.u32 32, %s10
      $region32: #{unet_forward.22} parent=27 // pred_fallthru
        _
    $region28: #{unet_forward.22} parent=5 // pred_fallthru
      _
    %p163 = scmp.le.s32.totalorder 1, %s10
    %p164 = scmp.lt.s32.totalorder %s10, 3
    %p165 = pnand %p163, %p164
    %p166 = pneg %p165
    // Predicated region
    $region33: #{unet_forward.22} parent=5 // pred_check
      _
    $region34: #{unet_forward.22} parent=5 // pred_check_branch
      %168 = sbr.rel (%p165) target = $region36
    $region35: #{unet_forward.22} parent=5 // pred_region
      %s169 = ssub.s32 %s10, 1
      %s170 = smul.u32 32, %s15
      %p171 = scmp.lt.s32.totalorder %s170, 63
      %s172 = scalar_select %p171, %s170, 63
      %s173 = smul.addr %s172, 3
      %s174 = smul.addr %s173, 4
      %s175 = scalar_lea.vmem %s0, %s174
      %p176 = pneg %p36
      %p177 = pneg %p33
      %p178 = pneg %p57
      %p179 = pneg %p54
      %p180 = pneg %p78
      %p181 = pneg %p75
      %p182 = pneg %p99
      %p183 = pneg %p96
      %p184 = pneg %p125
      %p185 = pneg %p122
      %s186 = smul.u32 32, %s15
      %p187 = scmp.lt.s32.totalorder %s186, 63
      %s188 = scalar_select %p187, %s186, 63
      %s189 = smul.addr %s188, 4
      %s190 = scalar_lea.vmem %s4, %s189
      %s191 = smul.u32 32, %s15
      %p192 = scmp.lt.s32.totalorder %s191, 63
      %s193 = scalar_select %p192, %s191, 63
      %s194 = smul.addr %s193, 3
      %s195 = smul.addr %s194, 4
      %s196 = scalar_lea.vmem %s0, %s195
      %s197 = smul.u32 32, %s15
      %s198 = smul.u32 32, %s15
      %p199 = scmp.lt.s32.totalorder %s198, 63
      %s200 = scalar_select %p199, %s198, 63
      %s201 = smul.addr %s200, 4
      %s202 = scalar_lea.vmem %s4, %s201
      %s203 = smul.u32 32, %s15
      %v205 = vld [vmem:[%s196] sm:$0xff]
      %v206 = vld [vmem:[%s196 + $0x8] sm:$0xf]
      %v207 = vld [vmem:[%s196 + $0xc] sm:$0xff]
      %v208 = vld [vmem:[%s196 + $0x14] sm:$0xf]
      %v209 = vld [vmem:[%s196 + $0x18] sm:$0xff]
      %v210 = vld [vmem:[%s196 + $0x20] sm:$0xf]
      %v211 = vld [vmem:[%s196 + $0x24] sm:$0xff]
      %v212 = vld [vmem:[%s196 + $0x2c] sm:$0xf]
      %v213 = vld [vmem:[%s196 + $0x30] sm:$0xff]
      %v214 = vld [vmem:[%s196 + $0x38] sm:$0xf]
      %v215 = vld [vmem:[%s196 + $0x3c] sm:$0xff]
      %v216 = vld [vmem:[%s196 + $0x44] sm:$0xf]
      %v217 = vld [vmem:[%s196 + $0x48] sm:$0xff]
      %v218 = vld [vmem:[%s196 + $0x50] sm:$0xf]
      %v219 = vld [vmem:[%s196 + $0x54] sm:$0xff]
      %v220 = vld [vmem:[%s196 + $0x5c] sm:$0xf]
      %v221 = vld [vmem:[%s196 + $0x60] sm:$0xff]
      %v222 = vld [vmem:[%s196 + $0x68] sm:$0xf]
      %v223 = vld [vmem:[%s196 + $0x6c] sm:$0xff]
      %v224 = vld [vmem:[%s196 + $0x74] sm:$0xf]
      %v225 = vld [vmem:[%s196 + $0x78] sm:$0xff]
      %v226 = vld [vmem:[%s196 + $0x80] sm:$0xf]
      %v227 = vld [vmem:[%s196 + $0x84] sm:$0xff]
      %v228 = vld [vmem:[%s196 + $0x8c] sm:$0xf]
      %v229 = vld [vmem:[%s196 + $0x90] sm:$0xff]
      %v230 = vld [vmem:[%s196 + $0x98] sm:$0xf]
      %v231 = vld [vmem:[%s196 + $0x9c] sm:$0xff]
      %v232 = vld [vmem:[%s196 + $0xa4] sm:$0xf]
      %v233 = vld [vmem:[%s196 + $0xa8] sm:$0xff]
      %v234 = vld [vmem:[%s196 + $0xb0] sm:$0xf]
      %v235 = vld [vmem:[%s196 + $0xb4] sm:$0xff]
      %v236 = vld [vmem:[%s196 + $0xbc] sm:$0xf]
      %v237 = vld [vmem:[%s196 + $0xc0] sm:$0xff]
      %v238 = vld [vmem:[%s196 + $0xc8] sm:$0xf]
      %v239 = vld [vmem:[%s196 + $0xcc] sm:$0xff]
      %v240 = vld [vmem:[%s196 + $0xd4] sm:$0xf]
      %v241 = vld [vmem:[%s196 + $0xd8] sm:$0xff]
      %v242 = vld [vmem:[%s196 + $0xe0] sm:$0xf]
      %v243 = vld [vmem:[%s196 + $0xe4] sm:$0xff]
      %v244 = vld [vmem:[%s196 + $0xec] sm:$0xf]
      %v245 = vld [vmem:[%s196 + $0xf0] sm:$0xff]
      %v246 = vld [vmem:[%s196 + $0xf8] sm:$0xf]
      %v247 = vld [vmem:[%s196 + $0xfc] sm:$0xff]
      %v248 = vld [vmem:[%s196 + $0x104] sm:$0xf]
      %v249 = vld [vmem:[%s196 + $0x108] sm:$0xff]
      %v250 = vld [vmem:[%s196 + $0x110] sm:$0xf]
      %v251 = vld [vmem:[%s196 + $0x114] sm:$0xff]
      %v252 = vld [vmem:[%s196 + $0x11c] sm:$0xf]
      %v253 = vld [vmem:[%s196 + $0x120] sm:$0xff]
      %v254 = vld [vmem:[%s196 + $0x128] sm:$0xf]
      %v255 = vld [vmem:[%s196 + $0x12c] sm:$0xff]
      %v256 = vld [vmem:[%s196 + $0x134] sm:$0xf]
      %v257 = vld [vmem:[%s196 + $0x138] sm:$0xff]
      %v258 = vld [vmem:[%s196 + $0x140] sm:$0xf]
      %v259 = vld [vmem:[%s196 + $0x144] sm:$0xff]
      %v260 = vld [vmem:[%s196 + $0x14c] sm:$0xf]
      %v261 = vld [vmem:[%s196 + $0x150] sm:$0xff]
      %v262 = vld [vmem:[%s196 + $0x158] sm:$0xf]
      %v263 = vld [vmem:[%s196 + $0x15c] sm:$0xff]
      %v264 = vld [vmem:[%s196 + $0x164] sm:$0xf]
      %v265 = vld [vmem:[%s196 + $0x168] sm:$0xff]
      %v266 = vld [vmem:[%s196 + $0x170] sm:$0xf]
      %v267 = vld [vmem:[%s196 + $0x174] sm:$0xff]
      %v268 = vld [vmem:[%s196 + $0x17c] sm:$0xf]
      %v269 = vld [vmem:[%s1] sm:$0xf]
      %v270 = vld [vmem:[%s1 + $0x4] sm:$0xf]
      %v271 = vld [vmem:[%s1 + $0x8] sm:$0xf]
      %v272 = vld [vmem:[%s1 + $0xc] sm:$0xf]
      %v273 = vld [vmem:[%s1 + $0x10] sm:$0xf]
      %v274 = vld [vmem:[%s1 + $0x14] sm:$0xf]
      %v275 = vld [vmem:[%s1 + $0x18] sm:$0xf]
      %v276 = vld [vmem:[%s1 + $0x1c] sm:$0xf]
      %v277 = vld [vmem:[%s1 + $0x20] sm:$0xf]
      %v278 = vld [vmem:[%s1 + $0x24] sm:$0xf]
      %v279 = vld [vmem:[%s1 + $0x28] sm:$0xf]
      %v280 = vld [vmem:[%s1 + $0x2c] sm:$0xf]
      %v281 = vld [vmem:[%s1 + $0x30] sm:$0xf]
      %v282 = vld [vmem:[%s1 + $0x34] sm:$0xf]
      %v283 = vld [vmem:[%s1 + $0x38] sm:$0xf]
      %v284 = vld [vmem:[%s1 + $0x3c] sm:$0xf]
      %v285 = vld [vmem:[%s1 + $0x40] sm:$0xf]
      %v286 = vld [vmem:[%s1 + $0x44] sm:$0xf]
      %v287 = vld [vmem:[%s1 + $0x48] sm:$0xf]
      %v288 = vld [vmem:[%s1 + $0x4c] sm:$0xf]
      %v289 = vld [vmem:[%s1 + $0x50] sm:$0xf]
      %v290 = vld [vmem:[%s1 + $0x54] sm:$0xf]
      %v291 = vld [vmem:[%s1 + $0x58] sm:$0xf]
      %v292 = vld [vmem:[%s1 + $0x5c] sm:$0xf]
      %v293 = vld [vmem:[%s1 + $0x60] sm:$0xf]
      %v294 = vld [vmem:[%s1 + $0x64] sm:$0xf]
      %v295 = vld [vmem:[%s1 + $0x68] sm:$0xf]
      %v296 = vld [vmem:[%s1 + $0x6c] sm:$0xf]
      %v297 = vld [vmem:[%s1 + $0x70] sm:$0xf]
      %v298 = vld [vmem:[%s1 + $0x74] sm:$0xf]
      %v299 = vld [vmem:[%s1 + $0x78] sm:$0xf]
      %v300 = vld [vmem:[%s1 + $0x7c] sm:$0xf]
      %v301 = vld [vmem:[%s1 + $0x80] sm:$0xf]
      %v302 = vld [vmem:[%s1 + $0x84] sm:$0xf]
      %v303 = vld [vmem:[%s1 + $0x88] sm:$0xf]
      %v304 = vld [vmem:[%s1 + $0x8c] sm:$0xf]
      %v369 = vunpack.c.l.b16 %v205
      %v370 = vunpack.c.h.b16 %v205
      %v371 = vunpack.c.l.b16 %v206
      %v372 = vunpack.c.l.b16 %v207
      %v373 = vunpack.c.h.b16 %v207
      %v374 = vunpack.c.l.b16 %v208
      %v375 = vunpack.c.l.b16 %v209
      %v376 = vunpack.c.h.b16 %v209
      %v377 = vunpack.c.l.b16 %v210
      %v378 = vunpack.c.l.b16 %v211
      %v379 = vunpack.c.h.b16 %v211
      %v380 = vunpack.c.l.b16 %v212
      %v381 = vunpack.c.l.b16 %v213
      %v382 = vunpack.c.h.b16 %v213
      %v383 = vunpack.c.l.b16 %v214
      %v384 = vunpack.c.l.b16 %v215
      %v385 = vunpack.c.h.b16 %v215
      %v386 = vunpack.c.l.b16 %v216
      %v387 = vunpack.c.l.b16 %v217
      %v388 = vunpack.c.h.b16 %v217
      %v389 = vunpack.c.l.b16 %v218
      %v390 = vunpack.c.l.b16 %v219
      %v391 = vunpack.c.h.b16 %v219
      %v392 = vunpack.c.l.b16 %v220
      %v393 = vunpack.c.l.b16 %v221
      %v394 = vunpack.c.h.b16 %v221
      %v395 = vunpack.c.l.b16 %v222
      %v396 = vunpack.c.l.b16 %v223
      %v397 = vunpack.c.h.b16 %v223
      %v398 = vunpack.c.l.b16 %v224
      %v399 = vunpack.c.l.b16 %v225
      %v400 = vunpack.c.h.b16 %v225
      %v401 = vunpack.c.l.b16 %v226
      %v402 = vunpack.c.l.b16 %v227
      %v403 = vunpack.c.h.b16 %v227
      %v404 = vunpack.c.l.b16 %v228
      %v405 = vunpack.c.l.b16 %v229
      %v406 = vunpack.c.h.b16 %v229
      %v407 = vunpack.c.l.b16 %v230
      %v408 = vunpack.c.l.b16 %v231
      %v409 = vunpack.c.h.b16 %v231
      %v410 = vunpack.c.l.b16 %v232
      %v411 = vunpack.c.l.b16 %v233
      %v412 = vunpack.c.h.b16 %v233
      %v413 = vunpack.c.l.b16 %v234
      %v414 = vunpack.c.l.b16 %v235
      %v415 = vunpack.c.h.b16 %v235
      %v416 = vunpack.c.l.b16 %v236
      %v417 = vunpack.c.l.b16 %v237
      %v418 = vunpack.c.h.b16 %v237
      %v419 = vunpack.c.l.b16 %v238
      %v420 = vunpack.c.l.b16 %v239
      %v421 = vunpack.c.h.b16 %v239
      %v422 = vunpack.c.l.b16 %v240
      %v423 = vunpack.c.l.b16 %v241
      %v424 = vunpack.c.h.b16 %v241
      %v425 = vunpack.c.l.b16 %v242
      %v426 = vunpack.c.l.b16 %v243
      %v427 = vunpack.c.h.b16 %v243
      %v428 = vunpack.c.l.b16 %v244
      %v429 = vunpack.c.l.b16 %v245
      %v430 = vunpack.c.h.b16 %v245
      %v431 = vunpack.c.l.b16 %v246
      %v432 = vunpack.c.l.b16 %v247
      %v433 = vunpack.c.h.b16 %v247
      %v434 = vunpack.c.l.b16 %v248
      %v435 = vunpack.c.l.b16 %v249
      %v436 = vunpack.c.h.b16 %v249
      %v437 = vunpack.c.l.b16 %v250
      %v438 = vunpack.c.l.b16 %v251
      %v439 = vunpack.c.h.b16 %v251
      %v440 = vunpack.c.l.b16 %v252
      %v441 = vunpack.c.l.b16 %v253
      %v442 = vunpack.c.h.b16 %v253
      %v443 = vunpack.c.l.b16 %v254
      %v444 = vunpack.c.l.b16 %v255
      %v445 = vunpack.c.h.b16 %v255
      %v446 = vunpack.c.l.b16 %v256
      %v447 = vunpack.c.l.b16 %v257
      %v448 = vunpack.c.h.b16 %v257
      %v449 = vunpack.c.l.b16 %v258
      %v450 = vunpack.c.l.b16 %v259
      %v451 = vunpack.c.h.b16 %v259
      %v452 = vunpack.c.l.b16 %v260
      %v453 = vunpack.c.l.b16 %v261
      %v454 = vunpack.c.h.b16 %v261
      %v455 = vunpack.c.l.b16 %v262
      %v456 = vunpack.c.l.b16 %v263
      %v457 = vunpack.c.h.b16 %v263
      %v458 = vunpack.c.l.b16 %v264
      %v459 = vunpack.c.l.b16 %v265
      %v460 = vunpack.c.h.b16 %v265
      %v461 = vunpack.c.l.b16 %v266
      %v462 = vunpack.c.l.b16 %v267
      %v463 = vunpack.c.h.b16 %v267
      %v464 = vunpack.c.l.b16 %v268
      %v465 = vpack.c.b16 %v372, %v369
      %v466 = vpack.c.b16 %v373, %v370
      %v467 = vpack.c.b16 %v374, %v371
      %v468 = vpack.c.b16 %v378, %v375
      %v469 = vpack.c.b16 %v379, %v376
      %v470 = vpack.c.b16 %v380, %v377
      %v471 = vpack.c.b16 %v384, %v381
      %v472 = vpack.c.b16 %v385, %v382
      %v473 = vpack.c.b16 %v386, %v383
      %v474 = vpack.c.b16 %v390, %v387
      %v475 = vpack.c.b16 %v391, %v388
      %v476 = vpack.c.b16 %v392, %v389
      %v477 = vpack.c.b16 %v396, %v393
      %v478 = vpack.c.b16 %v397, %v394
      %v479 = vpack.c.b16 %v398, %v395
      %v480 = vpack.c.b16 %v402, %v399
      %v481 = vpack.c.b16 %v403, %v400
      %v482 = vpack.c.b16 %v404, %v401
      %v483 = vpack.c.b16 %v408, %v405
      %v484 = vpack.c.b16 %v409, %v406
      %v485 = vpack.c.b16 %v410, %v407
      %v486 = vpack.c.b16 %v414, %v411
      %v487 = vpack.c.b16 %v415, %v412
      %v488 = vpack.c.b16 %v416, %v413
      %v489 = vpack.c.b16 %v420, %v417
      %v490 = vpack.c.b16 %v421, %v418
      %v491 = vpack.c.b16 %v422, %v419
      %v492 = vpack.c.b16 %v426, %v423
      %v493 = vpack.c.b16 %v427, %v424
      %v494 = vpack.c.b16 %v428, %v425
      %v495 = vpack.c.b16 %v432, %v429
      %v496 = vpack.c.b16 %v433, %v430
      %v497 = vpack.c.b16 %v434, %v431
      %v498 = vpack.c.b16 %v438, %v435
      %v499 = vpack.c.b16 %v439, %v436
      %v500 = vpack.c.b16 %v440, %v437
      %v501 = vpack.c.b16 %v444, %v441
      %v502 = vpack.c.b16 %v445, %v442
      %v503 = vpack.c.b16 %v446, %v443
      %v504 = vpack.c.b16 %v450, %v447
      %v505 = vpack.c.b16 %v451, %v448
      %v506 = vpack.c.b16 %v452, %v449
      %v507 = vpack.c.b16 %v456, %v453
      %v508 = vpack.c.b16 %v457, %v454
      %v509 = vpack.c.b16 %v458, %v455
      %v510 = vpack.c.b16 %v462, %v459
      %v511 = vpack.c.b16 %v463, %v460
      %v512 = vpack.c.b16 %v464, %v461
      %v581 = vunpack.c.l.b16 %v269
      %v582 = vunpack.c.l.b16 %v270
      %v583 = vunpack.c.l.b16 %v271
      %v584 = vunpack.c.l.b16 %v272
      %v585 = vunpack.c.l.b16 %v273
      %v586 = vunpack.c.l.b16 %v274
      %v587 = vunpack.c.l.b16 %v275
      %v588 = vunpack.c.l.b16 %v276
      %v589 = vunpack.c.l.b16 %v277
      %v590 = vunpack.c.l.b16 %v278
      %v591 = vunpack.c.l.b16 %v279
      %v592 = vunpack.c.l.b16 %v280
      %v593 = vunpack.c.l.b16 %v281
      %v594 = vunpack.c.l.b16 %v282
      %v595 = vunpack.c.l.b16 %v283
      %v596 = vunpack.c.l.b16 %v284
      %v597 = vunpack.c.l.b16 %v285
      %v598 = vunpack.c.l.b16 %v286
      %v599 = vunpack.c.l.b16 %v287
      %v600 = vunpack.c.l.b16 %v288
      %v601 = vunpack.c.l.b16 %v289
      %v602 = vunpack.c.l.b16 %v290
      %v603 = vunpack.c.l.b16 %v291
      %v604 = vunpack.c.l.b16 %v292
      %v605 = vunpack.c.l.b16 %v293
      %v606 = vunpack.c.l.b16 %v294
      %v607 = vunpack.c.l.b16 %v295
      %v608 = vunpack.c.l.b16 %v296
      %v609 = vunpack.c.l.b16 %v297
      %v610 = vunpack.c.l.b16 %v298
      %v611 = vunpack.c.l.b16 %v299
      %v612 = vunpack.c.l.b16 %v300
      %v613 = vunpack.c.l.b16 %v301
      %v614 = vunpack.c.l.b16 %v302
      %v615 = vunpack.c.l.b16 %v303
      %v616 = vunpack.c.l.b16 %v304
      %v617 = vpack.c.b16 %v582, %v581
      %v618 = vpack.c.b16 %v584, %v583
      %v619 = vpack.c.b16 %v586, %v585
      %v620 = vpack.c.b16 %v588, %v587
      %v621 = vpack.c.b16 %v590, %v589
      %v622 = vpack.c.b16 %v592, %v591
      %v623 = vpack.c.b16 %v594, %v593
      %v624 = vpack.c.b16 %v596, %v595
      %v625 = vpack.c.b16 %v598, %v597
      %v626 = vpack.c.b16 %v600, %v599
      %v627 = vpack.c.b16 %v602, %v601
      %v628 = vpack.c.b16 %v604, %v603
      %v629 = vpack.c.b16 %v606, %v605
      %v630 = vpack.c.b16 %v608, %v607
      %v631 = vpack.c.b16 %v610, %v609
      %v632 = vpack.c.b16 %v612, %v611
      %v633 = vpack.c.b16 %v614, %v613
      %v634 = vpack.c.b16 %v616, %v615
      %vm653 = vcmask 261120
      %v655 = vsel %vm653, %v467, 0
      %v658 = vsel %vm653, %v470, 0
      %v661 = vsel %vm653, %v473, 0
      %v664 = vsel %vm653, %v476, 0
      %v667 = vsel %vm653, %v479, 0
      %v670 = vsel %vm653, %v482, 0
      %v673 = vsel %vm653, %v485, 0
      %v676 = vsel %vm653, %v488, 0
      %v679 = vsel %vm653, %v491, 0
      %v682 = vsel %vm653, %v494, 0
      %v685 = vsel %vm653, %v497, 0
      %v688 = vsel %vm653, %v500, 0
      %v691 = vsel %vm653, %v503, 0
      %v694 = vsel %vm653, %v506, 0
      %v697 = vsel %vm653, %v509, 0
      %v700 = vsel %vm653, %v512, 0
      %702 = vmatprep.subr.bf16.mxu0 0
      %703 = vmatpush1.bf16.msra.mxu0 %v624
      %704 = vmatprep.subr.bf16.mxu0 0
      %705 = vmatpush1.bf16.msra.mxu0 %v623
      %706 = vmatprep.subr.bf16.mxu0 0
      %707 = vmatpush1.bf16.msra.mxu0 %v622
      %708 = vmatprep.subr.bf16.mxu0 0
      %709 = vmatpush1.bf16.msra.mxu0 %v621
      %710 = vmatprep.subr.bf16.mxu0 0
      %711 = vmatpush1.bf16.msra.mxu0 %v620
      %712 = vmatprep.subr.bf16.mxu0 0
      %713 = vmatpush1.bf16.msra.mxu0 %v619
      %714 = vmatprep.subr.bf16.mxu0 0
      %715 = vmatpush1.bf16.msra.mxu0 %v618
      %716 = vmatprep.subr.bf16.mxu0 0
      %717 = vmatpush1.bf16.msra.mxu0 %v617
      %718 = vmatprep.subr.bf16.mxu0 0
      %719 = vmatpush2.bf16.msra.mxu0 %v632
      %720 = vmatprep.subr.bf16.mxu0 0
      %721 = vmatpush2.bf16.msra.mxu0 %v631
      %722 = vmatprep.subr.bf16.mxu0 0
      %723 = vmatpush2.bf16.msra.mxu0 %v630
      %724 = vmatprep.subr.bf16.mxu0 0
      %725 = vmatpush2.bf16.msra.mxu0 %v629
      %726 = vmatprep.subr.bf16.mxu0 0
      %727 = vmatpush2.bf16.msra.mxu0 %v628
      %728 = vmatprep.subr.bf16.mxu0 0
      %729 = vmatpush2.bf16.msra.mxu0 %v627
      %730 = vmatprep.subr.bf16.mxu0 0
      %731 = vmatpush2.bf16.msra.mxu0 %v626
      %732 = vmatprep.subr.bf16.mxu0 0
      %733 = vmatpush2.bf16.msra.mxu0 %v625
      %734 = vmatprep.mubr.bf16.mxu0 %v466
      %735 = vmatmul.mubr.bf16.gmra.mxu0 %v465
      %v736 = vpop.f32.mrf.mxu0
      %v737 = vadd.f32 0.0, %v736
      %v738 = vpop.f32.mrf.mxu0
      %v739 = vpop.f32.mrf.mxu0
      %v740 = vadd.f32 0.0, %v739
      %v741 = vpop.f32.mrf.mxu0
      %742 = vmatprep.mubr.bf16.mxu0 %v469
      %743 = vmatmul.mubr.bf16.gmra.mxu0 %v468
      %v744 = vpop.f32.mrf.mxu0
      %v745 = vadd.f32 0.0, %v744
      %v746 = vpop.f32.mrf.mxu0
      %v747 = vpop.f32.mrf.mxu0
      %v748 = vadd.f32 0.0, %v747
      %v749 = vpop.f32.mrf.mxu0
      %750 = vmatprep.mubr.bf16.mxu0 %v472
      %751 = vmatmul.mubr.bf16.gmra.mxu0 %v471
      %v752 = vpop.f32.mrf.mxu0
      %v753 = vadd.f32 0.0, %v752
      %v754 = vpop.f32.mrf.mxu0
      %v755 = vpop.f32.mrf.mxu0
      %v756 = vadd.f32 0.0, %v755
      %v757 = vpop.f32.mrf.mxu0
      %758 = vmatprep.mubr.bf16.mxu0 %v475
      %759 = vmatmul.mubr.bf16.gmra.mxu0 %v474
      %v760 = vpop.f32.mrf.mxu0
      %v761 = vadd.f32 0.0, %v760
      %v762 = vpop.f32.mrf.mxu0
      %v763 = vpop.f32.mrf.mxu0
      %v764 = vadd.f32 0.0, %v763
      %v765 = vpop.f32.mrf.mxu0
      %766 = vmatprep.mubr.bf16.mxu0 %v478
      %767 = vmatmul.mubr.bf16.gmra.mxu0 %v477
      %v768 = vpop.f32.mrf.mxu0
      %v769 = vadd.f32 0.0, %v768
      %v770 = vpop.f32.mrf.mxu0
      %v771 = vpop.f32.mrf.mxu0
      %v772 = vadd.f32 0.0, %v771
      %v773 = vpop.f32.mrf.mxu0
      %774 = vmatprep.mubr.bf16.mxu0 %v481
      %775 = vmatmul.mubr.bf16.gmra.mxu0 %v480
      %v776 = vpop.f32.mrf.mxu0
      %v777 = vadd.f32 0.0, %v776
      %v778 = vpop.f32.mrf.mxu0
      %v779 = vpop.f32.mrf.mxu0
      %v780 = vadd.f32 0.0, %v779
      %v781 = vpop.f32.mrf.mxu0
      %782 = vmatprep.mubr.bf16.mxu0 %v484
      %783 = vmatmul.mubr.bf16.gmra.mxu0 %v483
      %v784 = vpop.f32.mrf.mxu0
      %v785 = vadd.f32 0.0, %v784
      %v786 = vpop.f32.mrf.mxu0
      %v787 = vpop.f32.mrf.mxu0
      %v788 = vadd.f32 0.0, %v787
      %v789 = vpop.f32.mrf.mxu0
      %790 = vmatprep.mubr.bf16.mxu0 %v487
      %791 = vmatmul.mubr.bf16.gmra.mxu0 %v486
      %v792 = vpop.f32.mrf.mxu0
      %v793 = vadd.f32 0.0, %v792
      %v794 = vpop.f32.mrf.mxu0
      %v795 = vpop.f32.mrf.mxu0
      %v796 = vadd.f32 0.0, %v795
      %v797 = vpop.f32.mrf.mxu0
      %798 = vmatprep.mubr.bf16.mxu0 %v490
      %799 = vmatmul.mubr.bf16.gmra.mxu0 %v489
      %v800 = vpop.f32.mrf.mxu0
      %v801 = vadd.f32 0.0, %v800
      %v802 = vpop.f32.mrf.mxu0
      %v803 = vpop.f32.mrf.mxu0
      %v804 = vadd.f32 0.0, %v803
      %v805 = vpop.f32.mrf.mxu0
      %806 = vmatprep.mubr.bf16.mxu0 %v493
      %807 = vmatmul.mubr.bf16.gmra.mxu0 %v492
      %v808 = vpop.f32.mrf.mxu0
      %v809 = vadd.f32 0.0, %v808
      %v810 = vpop.f32.mrf.mxu0
      %v811 = vpop.f32.mrf.mxu0
      %v812 = vadd.f32 0.0, %v811
      %v813 = vpop.f32.mrf.mxu0
      %814 = vmatprep.mubr.bf16.mxu0 %v496
      %815 = vmatmul.mubr.bf16.gmra.mxu0 %v495
      %v816 = vpop.f32.mrf.mxu0
      %v817 = vadd.f32 0.0, %v816
      %v818 = vpop.f32.mrf.mxu0
      %v819 = vpop.f32.mrf.mxu0
      %v820 = vadd.f32 0.0, %v819
      %v821 = vpop.f32.mrf.mxu0
      %822 = vmatprep.mubr.bf16.mxu0 %v499
      %823 = vmatmul.mubr.bf16.gmra.mxu0 %v498
      %v824 = vpop.f32.mrf.mxu0
      %v825 = vadd.f32 0.0, %v824
      %v826 = vpop.f32.mrf.mxu0
      %v827 = vpop.f32.mrf.mxu0
      %v828 = vadd.f32 0.0, %v827
      %v829 = vpop.f32.mrf.mxu0
      %830 = vmatprep.mubr.bf16.mxu0 %v502
      %831 = vmatmul.mubr.bf16.gmra.mxu0 %v501
      %v832 = vpop.f32.mrf.mxu0
      %v833 = vadd.f32 0.0, %v832
      %v834 = vpop.f32.mrf.mxu0
      %v835 = vpop.f32.mrf.mxu0
      %v836 = vadd.f32 0.0, %v835
      %v837 = vpop.f32.mrf.mxu0
      %838 = vmatprep.mubr.bf16.mxu0 %v505
      %839 = vmatmul.mubr.bf16.gmra.mxu0 %v504
      %v840 = vpop.f32.mrf.mxu0
      %v841 = vadd.f32 0.0, %v840
      %v842 = vpop.f32.mrf.mxu0
      %v843 = vpop.f32.mrf.mxu0
      %v844 = vadd.f32 0.0, %v843
      %v845 = vpop.f32.mrf.mxu0
      %846 = vmatprep.mubr.bf16.mxu0 %v508
      %847 = vmatmul.mubr.bf16.gmra.mxu0 %v507
      %v848 = vpop.f32.mrf.mxu0
      %v849 = vadd.f32 0.0, %v848
      %v850 = vpop.f32.mrf.mxu0
      %v851 = vpop.f32.mrf.mxu0
      %v852 = vadd.f32 0.0, %v851
      %v853 = vpop.f32.mrf.mxu0
      %854 = vmatprep.mubr.bf16.mxu0 %v511
      %855 = vmatmul.mubr.bf16.gmra.mxu0 %v510
      %v856 = vpop.f32.mrf.mxu0
      %v857 = vadd.f32 0.0, %v856
      %v858 = vpop.f32.mrf.mxu0
      %v859 = vpop.f32.mrf.mxu0
      %v860 = vadd.f32 0.0, %v859
      %v861 = vpop.f32.mrf.mxu0
      %862 = vdwg.mxu0
      %863 = vmatprep.subr.bf16.mxu0 0
      %864 = vmatpush1.bf16.msra.mxu0 0
      %865 = vmatprep.subr.bf16.mxu0 0
      %866 = vmatpush1.bf16.msra.mxu0 0
      %867 = vmatprep.subr.bf16.mxu0 0
      %868 = vmatpush1.bf16.msra.mxu0 0
      %869 = vmatprep.subr.bf16.mxu0 0
      %870 = vmatpush1.bf16.msra.mxu0 0
      %871 = vmatprep.subr.bf16.mxu0 0
      %872 = vmatpush1.bf16.msra.mxu0 0
      %873 = vmatprep.subr.bf16.mxu0 0
      %874 = vmatpush1.bf16.msra.mxu0 0
      %875 = vmatprep.subr.bf16.mxu0 0
      %876 = vmatpush1.bf16.msra.mxu0 %v634
      %877 = vmatprep.subr.bf16.mxu0 0
      %878 = vmatpush1.bf16.msra.mxu0 %v633
      %879 = vmatprep.subr.bf16.mxu0 0
      %880 = vmatpush2.bf16.msra.mxu0 0
      %881 = vmatprep.subr.bf16.mxu0 0
      %882 = vmatpush2.bf16.msra.mxu0 0
      %883 = vmatprep.subr.bf16.mxu0 0
      %884 = vmatpush2.bf16.msra.mxu0 0
      %885 = vmatprep.subr.bf16.mxu0 0
      %886 = vmatpush2.bf16.msra.mxu0 0
      %887 = vmatprep.subr.bf16.mxu0 0
      %888 = vmatpush2.bf16.msra.mxu0 0
      %889 = vmatprep.subr.bf16.mxu0 0
      %890 = vmatpush2.bf16.msra.mxu0 0
      %891 = vmatprep.subr.bf16.mxu0 0
      %892 = vmatpush2.bf16.msra.mxu0 0
      %893 = vmatprep.subr.bf16.mxu0 0
      %894 = vmatpush2.bf16.msra.mxu0 0
      %895 = vmatprep.mubr.bf16.mxu0 0
      %896 = vmatmul.mubr.bf16.gmra.mxu0 %v655
      %v897 = vpop.f32.mrf.mxu0
      %v898 = vadd.f32 %v737, %v897
      %v899 = vpop.f32.mrf.mxu0
      %v900 = vpop.f32.mrf.mxu0
      %v901 = vadd.f32 %v740, %v900
      %v902 = vpop.f32.mrf.mxu0
      %903 = vmatprep.mubr.bf16.mxu0 0
      %904 = vmatmul.mubr.bf16.gmra.mxu0 %v658
      %v905 = vpop.f32.mrf.mxu0
      %v906 = vadd.f32 %v745, %v905
      %v907 = vpop.f32.mrf.mxu0
      %v908 = vpop.f32.mrf.mxu0
      %v909 = vadd.f32 %v748, %v908
      %v910 = vpop.f32.mrf.mxu0
      %911 = vmatprep.mubr.bf16.mxu0 0
      %912 = vmatmul.mubr.bf16.gmra.mxu0 %v661
      %v913 = vpop.f32.mrf.mxu0
      %v914 = vadd.f32 %v753, %v913
      %v915 = vpop.f32.mrf.mxu0
      %v916 = vpop.f32.mrf.mxu0
      %v917 = vadd.f32 %v756, %v916
      %v918 = vpop.f32.mrf.mxu0
      %919 = vmatprep.mubr.bf16.mxu0 0
      %920 = vmatmul.mubr.bf16.gmra.mxu0 %v664
      %v921 = vpop.f32.mrf.mxu0
      %v922 = vadd.f32 %v761, %v921
      %v923 = vpop.f32.mrf.mxu0
      %v924 = vpop.f32.mrf.mxu0
      %v925 = vadd.f32 %v764, %v924
      %v926 = vpop.f32.mrf.mxu0
      %927 = vmatprep.mubr.bf16.mxu0 0
      %928 = vmatmul.mubr.bf16.gmra.mxu0 %v667
      %v929 = vpop.f32.mrf.mxu0
      %v930 = vadd.f32 %v769, %v929
      %v931 = vpop.f32.mrf.mxu0
      %v932 = vpop.f32.mrf.mxu0
      %v933 = vadd.f32 %v772, %v932
      %v934 = vpop.f32.mrf.mxu0
      %935 = vmatprep.mubr.bf16.mxu0 0
      %936 = vmatmul.mubr.bf16.gmra.mxu0 %v670
      %v937 = vpop.f32.mrf.mxu0
      %v938 = vadd.f32 %v777, %v937
      %v939 = vpop.f32.mrf.mxu0
      %v940 = vpop.f32.mrf.mxu0
      %v941 = vadd.f32 %v780, %v940
      %v942 = vpop.f32.mrf.mxu0
      %943 = vmatprep.mubr.bf16.mxu0 0
      %944 = vmatmul.mubr.bf16.gmra.mxu0 %v673
      %v945 = vpop.f32.mrf.mxu0
      %v946 = vadd.f32 %v785, %v945
      %v947 = vpop.f32.mrf.mxu0
      %v948 = vpop.f32.mrf.mxu0
      %v949 = vadd.f32 %v788, %v948
      %v950 = vpop.f32.mrf.mxu0
      %951 = vmatprep.mubr.bf16.mxu0 0
      %952 = vmatmul.mubr.bf16.gmra.mxu0 %v676
      %v953 = vpop.f32.mrf.mxu0
      %v954 = vadd.f32 %v793, %v953
      %v955 = vpop.f32.mrf.mxu0
      %v956 = vpop.f32.mrf.mxu0
      %v957 = vadd.f32 %v796, %v956
      %v958 = vpop.f32.mrf.mxu0
      %959 = vmatprep.mubr.bf16.mxu0 0
      %960 = vmatmul.mubr.bf16.gmra.mxu0 %v679
      %v961 = vpop.f32.mrf.mxu0
      %v962 = vadd.f32 %v801, %v961
      %v963 = vpop.f32.mrf.mxu0
      %v964 = vpop.f32.mrf.mxu0
      %v965 = vadd.f32 %v804, %v964
      %v966 = vpop.f32.mrf.mxu0
      %967 = vmatprep.mubr.bf16.mxu0 0
      %968 = vmatmul.mubr.bf16.gmra.mxu0 %v682
      %v969 = vpop.f32.mrf.mxu0
      %v970 = vadd.f32 %v809, %v969
      %v971 = vpop.f32.mrf.mxu0
      %v972 = vpop.f32.mrf.mxu0
      %v973 = vadd.f32 %v812, %v972
      %v974 = vpop.f32.mrf.mxu0
      %975 = vmatprep.mubr.bf16.mxu0 0
      %976 = vmatmul.mubr.bf16.gmra.mxu0 %v685
      %v977 = vpop.f32.mrf.mxu0
      %v978 = vadd.f32 %v817, %v977
      %v979 = vpop.f32.mrf.mxu0
      %v980 = vpop.f32.mrf.mxu0
      %v981 = vadd.f32 %v820, %v980
      %v982 = vpop.f32.mrf.mxu0
      %983 = vmatprep.mubr.bf16.mxu0 0
      %984 = vmatmul.mubr.bf16.gmra.mxu0 %v688
      %v985 = vpop.f32.mrf.mxu0
      %v986 = vadd.f32 %v825, %v985
      %v987 = vpop.f32.mrf.mxu0
      %v988 = vpop.f32.mrf.mxu0
      %v989 = vadd.f32 %v828, %v988
      %v990 = vpop.f32.mrf.mxu0
      %991 = vmatprep.mubr.bf16.mxu0 0
      %992 = vmatmul.mubr.bf16.gmra.mxu0 %v691
      %v993 = vpop.f32.mrf.mxu0
      %v994 = vadd.f32 %v833, %v993
      %v995 = vpop.f32.mrf.mxu0
      %v996 = vpop.f32.mrf.mxu0
      %v997 = vadd.f32 %v836, %v996
      %v998 = vpop.f32.mrf.mxu0
      %999 = vmatprep.mubr.bf16.mxu0 0
      %1000 = vmatmul.mubr.bf16.gmra.mxu0 %v694
      %v1001 = vpop.f32.mrf.mxu0
      %v1002 = vadd.f32 %v841, %v1001
      %v1003 = vpop.f32.mrf.mxu0
      %v1004 = vpop.f32.mrf.mxu0
      %v1005 = vadd.f32 %v844, %v1004
      %v1006 = vpop.f32.mrf.mxu0
      %1007 = vmatprep.mubr.bf16.mxu0 0
      %1008 = vmatmul.mubr.bf16.gmra.mxu0 %v697
      %v1009 = vpop.f32.mrf.mxu0
      %v1010 = vadd.f32 %v849, %v1009
      %v1011 = vpop.f32.mrf.mxu0
      %v1012 = vpop.f32.mrf.mxu0
      %v1013 = vadd.f32 %v852, %v1012
      %v1014 = vpop.f32.mrf.mxu0
      %1015 = vmatprep.mubr.bf16.mxu0 0
      %1016 = vmatmul.mubr.bf16.gmra.mxu0 %v700
      %v1017 = vpop.f32.mrf.mxu0
      %v1018 = vadd.f32 %v857, %v1017
      %v1019 = vpop.f32.mrf.mxu0
      %v1020 = vpop.f32.mrf.mxu0
      %v1021 = vadd.f32 %v860, %v1020
      %v1022 = vpop.f32.mrf.mxu0
      %1023 = vdwg.mxu0
      %v1024 = vld [vmem:[%s2] sm:$0x1]
      %v1026 = vlaneseq
      %v1027 = vshrl.u32 %v1026, 7
      %v1028 = vsub.s32 0, %v1027
      %v1029 = vrot.slane %v1024, %v1028
      %v1031 = vmul.f32 %v898, %v1029
      %v1032 = vmul.f32 %v901, %v1029
      %v1033 = vmul.f32 %v906, %v1029
      %v1034 = vmul.f32 %v909, %v1029
      %v1035 = vmul.f32 %v914, %v1029
      %v1036 = vmul.f32 %v917, %v1029
      %v1037 = vmul.f32 %v922, %v1029
      %v1038 = vmul.f32 %v925, %v1029
      %v1039 = vmul.f32 %v930, %v1029
      %v1040 = vmul.f32 %v933, %v1029
      %v1041 = vmul.f32 %v938, %v1029
      %v1042 = vmul.f32 %v941, %v1029
      %v1043 = vmul.f32 %v946, %v1029
      %v1044 = vmul.f32 %v949, %v1029
      %v1045 = vmul.f32 %v954, %v1029
      %v1046 = vmul.f32 %v957, %v1029
      %v1047 = vmul.f32 %v962, %v1029
      %v1048 = vmul.f32 %v965, %v1029
      %v1049 = vmul.f32 %v970, %v1029
      %v1050 = vmul.f32 %v973, %v1029
      %v1051 = vmul.f32 %v978, %v1029
      %v1052 = vmul.f32 %v981, %v1029
      %v1053 = vmul.f32 %v986, %v1029
      %v1054 = vmul.f32 %v989, %v1029
      %v1055 = vmul.f32 %v994, %v1029
      %v1056 = vmul.f32 %v997, %v1029
      %v1057 = vmul.f32 %v1002, %v1029
      %v1058 = vmul.f32 %v1005, %v1029
      %v1059 = vmul.f32 %v1010, %v1029
      %v1060 = vmul.f32 %v1013, %v1029
      %v1061 = vmul.f32 %v1018, %v1029
      %v1062 = vmul.f32 %v1021, %v1029
      %v1063 = vld [vmem:[%s3] sm:$0x1]
      %v1065 = vlaneseq
      %v1066 = vshrl.u32 %v1065, 7
      %v1067 = vsub.s32 0, %v1066
      %v1068 = vrot.slane %v1063, %v1067
      %v1070 = vadd.f32 %v1031, %v1068
      %v1071 = vadd.f32 %v1032, %v1068
      %v1072 = vadd.f32 %v1033, %v1068
      %v1073 = vadd.f32 %v1034, %v1068
      %v1074 = vadd.f32 %v1035, %v1068
      %v1075 = vadd.f32 %v1036, %v1068
      %v1076 = vadd.f32 %v1037, %v1068
      %v1077 = vadd.f32 %v1038, %v1068
      %v1078 = vadd.f32 %v1039, %v1068
      %v1079 = vadd.f32 %v1040, %v1068
      %v1080 = vadd.f32 %v1041, %v1068
      %v1081 = vadd.f32 %v1042, %v1068
      %v1082 = vadd.f32 %v1043, %v1068
      %v1083 = vadd.f32 %v1044, %v1068
      %v1084 = vadd.f32 %v1045, %v1068
      %v1085 = vadd.f32 %v1046, %v1068
      %v1086 = vadd.f32 %v1047, %v1068
      %v1087 = vadd.f32 %v1048, %v1068
      %v1088 = vadd.f32 %v1049, %v1068
      %v1089 = vadd.f32 %v1050, %v1068
      %v1090 = vadd.f32 %v1051, %v1068
      %v1091 = vadd.f32 %v1052, %v1068
      %v1092 = vadd.f32 %v1053, %v1068
      %v1093 = vadd.f32 %v1054, %v1068
      %v1094 = vadd.f32 %v1055, %v1068
      %v1095 = vadd.f32 %v1056, %v1068
      %v1096 = vadd.f32 %v1057, %v1068
      %v1097 = vadd.f32 %v1058, %v1068
      %v1098 = vadd.f32 %v1059, %v1068
      %v1099 = vadd.f32 %v1060, %v1068
      %v1100 = vadd.f32 %v1061, %v1068
      %v1101 = vadd.f32 %v1062, %v1068
      %vm1102 = vcmp.ge.f32.partialorder %v1070, 0.0
      %vm1103 = vcmp.ge.f32.partialorder %v1071, 0.0
      %vm1104 = vcmp.ge.f32.partialorder %v1072, 0.0
      %vm1105 = vcmp.ge.f32.partialorder %v1073, 0.0
      %vm1106 = vcmp.ge.f32.partialorder %v1074, 0.0
      %vm1107 = vcmp.ge.f32.partialorder %v1075, 0.0
      %vm1108 = vcmp.ge.f32.partialorder %v1076, 0.0
      %vm1109 = vcmp.ge.f32.partialorder %v1077, 0.0
      %vm1110 = vcmp.ge.f32.partialorder %v1078, 0.0
      %vm1111 = vcmp.ge.f32.partialorder %v1079, 0.0
      %vm1112 = vcmp.ge.f32.partialorder %v1080, 0.0
      %vm1113 = vcmp.ge.f32.partialorder %v1081, 0.0
      %vm1114 = vcmp.ge.f32.partialorder %v1082, 0.0
      %vm1115 = vcmp.ge.f32.partialorder %v1083, 0.0
      %vm1116 = vcmp.ge.f32.partialorder %v1084, 0.0
      %vm1117 = vcmp.ge.f32.partialorder %v1085, 0.0
      %vm1118 = vcmp.ge.f32.partialorder %v1086, 0.0
      %vm1119 = vcmp.ge.f32.partialorder %v1087, 0.0
      %vm1120 = vcmp.ge.f32.partialorder %v1088, 0.0
      %vm1121 = vcmp.ge.f32.partialorder %v1089, 0.0
      %vm1122 = vcmp.ge.f32.partialorder %v1090, 0.0
      %vm1123 = vcmp.ge.f32.partialorder %v1091, 0.0
      %vm1124 = vcmp.ge.f32.partialorder %v1092, 0.0
      %vm1125 = vcmp.ge.f32.partialorder %v1093, 0.0
      %vm1126 = vcmp.ge.f32.partialorder %v1094, 0.0
      %vm1127 = vcmp.ge.f32.partialorder %v1095, 0.0
      %vm1128 = vcmp.ge.f32.partialorder %v1096, 0.0
      %vm1129 = vcmp.ge.f32.partialorder %v1097, 0.0
      %vm1130 = vcmp.ge.f32.partialorder %v1098, 0.0
      %vm1131 = vcmp.ge.f32.partialorder %v1099, 0.0
      %vm1132 = vcmp.ge.f32.partialorder %v1100, 0.0
      %vm1133 = vcmp.ge.f32.partialorder %v1101, 0.0
      %v1134 = vmul.f32 %v1070, 0.2
      %v1135 = vmul.f32 %v1071, 0.2
      %v1136 = vmul.f32 %v1072, 0.2
      %v1137 = vmul.f32 %v1073, 0.2
      %v1138 = vmul.f32 %v1074, 0.2
      %v1139 = vmul.f32 %v1075, 0.2
      %v1140 = vmul.f32 %v1076, 0.2
      %v1141 = vmul.f32 %v1077, 0.2
      %v1142 = vmul.f32 %v1078, 0.2
      %v1143 = vmul.f32 %v1079, 0.2
      %v1144 = vmul.f32 %v1080, 0.2
      %v1145 = vmul.f32 %v1081, 0.2
      %v1146 = vmul.f32 %v1082, 0.2
      %v1147 = vmul.f32 %v1083, 0.2
      %v1148 = vmul.f32 %v1084, 0.2
      %v1149 = vmul.f32 %v1085, 0.2
      %v1150 = vmul.f32 %v1086, 0.2
      %v1151 = vmul.f32 %v1087, 0.2
      %v1152 = vmul.f32 %v1088, 0.2
      %v1153 = vmul.f32 %v1089, 0.2
      %v1154 = vmul.f32 %v1090, 0.2
      %v1155 = vmul.f32 %v1091, 0.2
      %v1156 = vmul.f32 %v1092, 0.2
      %v1157 = vmul.f32 %v1093, 0.2
      %v1158 = vmul.f32 %v1094, 0.2
      %v1159 = vmul.f32 %v1095, 0.2
      %v1160 = vmul.f32 %v1096, 0.2
      %v1161 = vmul.f32 %v1097, 0.2
      %v1162 = vmul.f32 %v1098, 0.2
      %v1163 = vmul.f32 %v1099, 0.2
      %v1164 = vmul.f32 %v1100, 0.2
      %v1165 = vmul.f32 %v1101, 0.2
      %v1166 = vsel %vm1102, %v1070, %v1134
      %v1167 = vsel %vm1103, %v1071, %v1135
      %v1168 = vsel %vm1104, %v1072, %v1136
      %v1169 = vsel %vm1105, %v1073, %v1137
      %v1170 = vsel %vm1106, %v1074, %v1138
      %v1171 = vsel %vm1107, %v1075, %v1139
      %v1172 = vsel %vm1108, %v1076, %v1140
      %v1173 = vsel %vm1109, %v1077, %v1141
      %v1174 = vsel %vm1110, %v1078, %v1142
      %v1175 = vsel %vm1111, %v1079, %v1143
      %v1176 = vsel %vm1112, %v1080, %v1144
      %v1177 = vsel %vm1113, %v1081, %v1145
      %v1178 = vsel %vm1114, %v1082, %v1146
      %v1179 = vsel %vm1115, %v1083, %v1147
      %v1180 = vsel %vm1116, %v1084, %v1148
      %v1181 = vsel %vm1117, %v1085, %v1149
      %v1182 = vsel %vm1118, %v1086, %v1150
      %v1183 = vsel %vm1119, %v1087, %v1151
      %v1184 = vsel %vm1120, %v1088, %v1152
      %v1185 = vsel %vm1121, %v1089, %v1153
      %v1186 = vsel %vm1122, %v1090, %v1154
      %v1187 = vsel %vm1123, %v1091, %v1155
      %v1188 = vsel %vm1124, %v1092, %v1156
      %v1189 = vsel %vm1125, %v1093, %v1157
      %v1190 = vsel %vm1126, %v1094, %v1158
      %v1191 = vsel %vm1127, %v1095, %v1159
      %v1192 = vsel %vm1128, %v1096, %v1160
      %v1193 = vsel %vm1129, %v1097, %v1161
      %v1194 = vsel %vm1130, %v1098, %v1162
      %v1195 = vsel %vm1131, %v1099, %v1163
      %v1196 = vsel %vm1132, %v1100, %v1164
      %v1197 = vsel %vm1133, %v1101, %v1165
      %v1198 = vpack.c.bf16 %v1167, %v1166
      %v1199 = vpack.c.bf16 %v1169, %v1168
      %v1200 = vpack.c.bf16 %v1171, %v1170
      %v1201 = vpack.c.bf16 %v1173, %v1172
      %v1202 = vpack.c.bf16 %v1175, %v1174
      %v1203 = vpack.c.bf16 %v1177, %v1176
      %v1204 = vpack.c.bf16 %v1179, %v1178
      %v1205 = vpack.c.bf16 %v1181, %v1180
      %v1206 = vpack.c.bf16 %v1183, %v1182
      %v1207 = vpack.c.bf16 %v1185, %v1184
      %v1208 = vpack.c.bf16 %v1187, %v1186
      %v1209 = vpack.c.bf16 %v1189, %v1188
      %v1210 = vpack.c.bf16 %v1191, %v1190
      %v1211 = vpack.c.bf16 %v1193, %v1192
      %v1212 = vpack.c.bf16 %v1195, %v1194
      %v1213 = vpack.c.bf16 %v1197, %v1196
      %v1230 = vunpack.c.l.b16 %v1198
      %v1231 = vunpack.c.h.b16 %v1198
      %v1232 = vunpack.c.l.b16 %v1199
      %v1233 = vunpack.c.h.b16 %v1199
      %v1234 = vunpack.c.l.b16 %v1200
      %v1235 = vunpack.c.h.b16 %v1200
      %v1236 = vunpack.c.l.b16 %v1201
      %v1237 = vunpack.c.h.b16 %v1201
      %v1238 = vunpack.c.l.b16 %v1202
      %v1239 = vunpack.c.h.b16 %v1202
      %v1240 = vunpack.c.l.b16 %v1203
      %v1241 = vunpack.c.h.b16 %v1203
      %v1242 = vunpack.c.l.b16 %v1204
      %v1243 = vunpack.c.h.b16 %v1204
      %v1244 = vunpack.c.l.b16 %v1205
      %v1245 = vunpack.c.h.b16 %v1205
      %v1246 = vunpack.c.l.b16 %v1206
      %v1247 = vunpack.c.h.b16 %v1206
      %v1248 = vunpack.c.l.b16 %v1207
      %v1249 = vunpack.c.h.b16 %v1207
      %v1250 = vunpack.c.l.b16 %v1208
      %v1251 = vunpack.c.h.b16 %v1208
      %v1252 = vunpack.c.l.b16 %v1209
      %v1253 = vunpack.c.h.b16 %v1209
      %v1254 = vunpack.c.l.b16 %v1210
      %v1255 = vunpack.c.h.b16 %v1210
      %v1256 = vunpack.c.l.b16 %v1211
      %v1257 = vunpack.c.h.b16 %v1211
      %v1258 = vunpack.c.l.b16 %v1212
      %v1259 = vunpack.c.h.b16 %v1212
      %v1260 = vunpack.c.l.b16 %v1213
      %v1261 = vunpack.c.h.b16 %v1213
      %v1262 = vpack.c.b16 %v1230, %v1230
      %v1263 = vpack.c.b16 %v1231, %v1231
      %v1264 = vpack.c.b16 %v1232, %v1232
      %v1265 = vpack.c.b16 %v1233, %v1233
      %v1266 = vpack.c.b16 %v1234, %v1234
      %v1267 = vpack.c.b16 %v1235, %v1235
      %v1268 = vpack.c.b16 %v1236, %v1236
      %v1269 = vpack.c.b16 %v1237, %v1237
      %v1270 = vpack.c.b16 %v1238, %v1238
      %v1271 = vpack.c.b16 %v1239, %v1239
      %v1272 = vpack.c.b16 %v1240, %v1240
      %v1273 = vpack.c.b16 %v1241, %v1241
      %v1274 = vpack.c.b16 %v1242, %v1242
      %v1275 = vpack.c.b16 %v1243, %v1243
      %v1276 = vpack.c.b16 %v1244, %v1244
      %v1277 = vpack.c.b16 %v1245, %v1245
      %v1278 = vpack.c.b16 %v1246, %v1246
      %v1279 = vpack.c.b16 %v1247, %v1247
      %v1280 = vpack.c.b16 %v1248, %v1248
      %v1281 = vpack.c.b16 %v1249, %v1249
      %v1282 = vpack.c.b16 %v1250, %v1250
      %v1283 = vpack.c.b16 %v1251, %v1251
      %v1284 = vpack.c.b16 %v1252, %v1252
      %v1285 = vpack.c.b16 %v1253, %v1253
      %v1286 = vpack.c.b16 %v1254, %v1254
      %v1287 = vpack.c.b16 %v1255, %v1255
      %v1288 = vpack.c.b16 %v1256, %v1256
      %v1289 = vpack.c.b16 %v1257, %v1257
      %v1290 = vpack.c.b16 %v1258, %v1258
      %v1291 = vpack.c.b16 %v1259, %v1259
      %v1292 = vpack.c.b16 %v1260, %v1260
      %v1293 = vpack.c.b16 %v1261, %v1261
      %vm1326 = vcmask 257024
      %1327 = vst.msk [vmem:[%s202] sm:$0xf] %vm1326, %v1262
      %1328 = vst.msk [vmem:[%s202 + $0x4] sm:$0xf] %vm1326, %v1263
      %1329 = vst.msk [vmem:[%s202 + $0x8] sm:$0xf] %vm1326, %v1264
      %1330 = vst.msk [vmem:[%s202 + $0xc] sm:$0xf] %vm1326, %v1265
      %1331 = vst.msk [vmem:[%s202 + $0x10] sm:$0xf] %vm1326, %v1266
      %1332 = vst.msk [vmem:[%s202 + $0x14] sm:$0xf] %vm1326, %v1267
      %1333 = vst.msk [vmem:[%s202 + $0x18] sm:$0xf] %vm1326, %v1268
      %1334 = vst.msk [vmem:[%s202 + $0x1c] sm:$0xf] %vm1326, %v1269
      %1335 = vst.msk [vmem:[%s202 + $0x20] sm:$0xf] %vm1326, %v1270
      %1336 = vst.msk [vmem:[%s202 + $0x24] sm:$0xf] %vm1326, %v1271
      %1337 = vst.msk [vmem:[%s202 + $0x28] sm:$0xf] %vm1326, %v1272
      %1338 = vst.msk [vmem:[%s202 + $0x2c] sm:$0xf] %vm1326, %v1273
      %1339 = vst.msk [vmem:[%s202 + $0x30] sm:$0xf] %vm1326, %v1274
      %1340 = vst.msk [vmem:[%s202 + $0x34] sm:$0xf] %vm1326, %v1275
      %1341 = vst.msk [vmem:[%s202 + $0x38] sm:$0xf] %vm1326, %v1276
      %1342 = vst.msk [vmem:[%s202 + $0x3c] sm:$0xf] %vm1326, %v1277
      %1343 = vst.msk [vmem:[%s202 + $0x40] sm:$0xf] %vm1326, %v1278
      %1344 = vst.msk [vmem:[%s202 + $0x44] sm:$0xf] %vm1326, %v1279
      %1345 = vst.msk [vmem:[%s202 + $0x48] sm:$0xf] %vm1326, %v1280
      %1346 = vst.msk [vmem:[%s202 + $0x4c] sm:$0xf] %vm1326, %v1281
      %1347 = vst.msk [vmem:[%s202 + $0x50] sm:$0xf] %vm1326, %v1282
      %1348 = vst.msk [vmem:[%s202 + $0x54] sm:$0xf] %vm1326, %v1283
      %1349 = vst.msk [vmem:[%s202 + $0x58] sm:$0xf] %vm1326, %v1284
      %1350 = vst.msk [vmem:[%s202 + $0x5c] sm:$0xf] %vm1326, %v1285
      %1351 = vst.msk [vmem:[%s202 + $0x60] sm:$0xf] %vm1326, %v1286
      %1352 = vst.msk [vmem:[%s202 + $0x64] sm:$0xf] %vm1326, %v1287
      %1353 = vst.msk [vmem:[%s202 + $0x68] sm:$0xf] %vm1326, %v1288
      %1354 = vst.msk [vmem:[%s202 + $0x6c] sm:$0xf] %vm1326, %v1289
      %1355 = vst.msk [vmem:[%s202 + $0x70] sm:$0xf] %vm1326, %v1290
      %1356 = vst.msk [vmem:[%s202 + $0x74] sm:$0xf] %vm1326, %v1291
      %1357 = vst.msk [vmem:[%s202 + $0x78] sm:$0xf] %vm1326, %v1292
      %1358 = vst.msk [vmem:[%s202 + $0x7c] sm:$0xf] %vm1326, %v1293
      %s1359 = smul.u32 32, %s15
      %p1360 = scmp.lt.s32.totalorder %s1359, 63
      %s1361 = scalar_select %p1360, %s1359, 63
      %s1362 = smul.addr %s1361, 4
      %s1363 = scalar_lea.vmem %s4, %s1362
      // Predicated region
      $region37: #{unet_forward.22} parent=35 // pred_check
        %p1364 = pneg %p122
      $region38: #{unet_forward.22} parent=35 // pred_check_branch
        %1366 = sbr.rel (%p1364) target = $region40
      $region39: #{unet_forward.22} parent=35 // pred_region
        %s1367 = smul.u32 32, %s15
      $region40: #{unet_forward.22} parent=35 // pred_fallthru
        _
    $region36: #{unet_forward.22} parent=5 // pred_fallthru
      _
    %p1368 = scmp.le.s32.totalorder 2, %s10
    // Predicated region
    $region41: #{unet_forward.22} parent=5 // pred_check
      %p1369 = pneg %p1368
    $region42: #{unet_forward.22} parent=5 // pred_check_branch
      %1371 = sbr.rel (%p1369) target = $region44
    $region43: #{unet_forward.22} parent=5 // pred_region
      %s1372 = ssub.s32 %s10, 2
      // Predicated region
      $region45: #{unet_forward.22} parent=43 // pred_check
        %p1373 = pneg %p128
      $region46: #{unet_forward.22} parent=43 // pred_check_branch
        %1375 = sbr.rel (%p1373) target = $region48
      $region47: #{unet_forward.22} parent=43 // pred_region
        %s1376 = smul.u32 32, %s16
        %p1377 = scmp.lt.s32.totalorder %s1376, 63
        %s1378 = scalar_select %p1377, %s1376, 63
        %s1379 = smul.addr %s1378, 4
        %s1380 = scalar_lea.vmem %s4, %s1379
      $region48: #{unet_forward.22} parent=43 // pred_fallthru
        _
    $region44: #{unet_forward.22} parent=5 // pred_fallthru
      _
  $region6: #{unet_forward.22} parent=0 // loop_footer
    %s14 = sadd.s32 1, %s10
  $region7: #{unet_forward.22} parent=0 // loop_footer_branch
    %9 = sbr.rel target = $region3
  $region8: #{unet_forward.22} parent=0 // loop_exit
    _

// kernel: unet_forward.23
$region0: #{unet_forward.23}
  #allocation0 [shape = 'u32[]', space=smem, size = 0x4, offset = 0x4, fixed_abs, tag = 'smem constant byte address 0x4 - core index']
  #allocation1 [shape = 'u32[144,128]{1,0:T(1,128)}', space=vmem, size = 0x12000, scoped, tag = 'internal scratch']
  %s0 = inlined_call_operand.vmem [shape: bf16[32,512], index: 0, kind: input, shape index: {}]
  %s1 = inlined_call_operand.vmem [shape: bf16[8,32], index: 1, kind: input, shape index: {}]
  %s2 = inlined_call_operand.vmem [shape: f32[8,1], index: 2, kind: input, shape index: {}]
  %s3 = inlined_call_operand.vmem [shape: f32[8,512], index: 3, kind: input, shape index: {}]
  %s4 = inlined_call_operand.vmem [shape: f32[8,512], index: 4, kind: output, shape index: {}]
  %s5 = sld [smem:[#allocation0]]
  $region87: #{unet_forward.23} parent=0
    _
  %s7 = ssub.s32 1, %s5
  %s8 = scalar_select 0, %s7, %s5
  $region1: #{unet_forward.23} parent=0
    #allocation2 [shape = 'u8[32768]{0}', space=vmem, size = 0x8000, scoped, tag = 'input window, operand 0']
    loop: start=0, step=1, limit=4
    $region2: #{unet_forward.23} parent=1 // loop_pre_header
      _
    $region3: #{unet_forward.23} parent=1 // loop_header
      %s10 = sphi 0, %s14
      %p11 = scmp.ge.s32.totalorder %s10, 4
      %s20 = sphi 0, %s22
      %s23 = sphi 0, %s20
      %s24 = sphi 0, %s23
      %s40 = sphi 0, %s24
      %s44 = sphi 0, %s44
      %s46 = sphi 0, %s44
      %s47 = sphi 0, %s46
      %s61 = sphi 0, %s47
      %s65 = sphi 0, %s65
      %s67 = sphi 0, %s65
      %s68 = sphi 0, %s67
      %s82 = sphi 0, %s68
      %s88 = sphi 0, %s90
      %s91 = sphi 0, %s88
      %s92 = sphi 0, %s91
      %s108 = sphi 0, %s92
      %s114 = sphi 0, %s116
      %s117 = sphi 0, %s114
      %s118 = sphi 0, %s117
      %s134 = sphi 0, %s118
    $region4: #{unet_forward.23} parent=1 // loop_header_branch
      %13 = sbr.rel (%p11) target = $region8
    $region5: #{unet_forward.23} parent=1 // loop_body
      %s15 = ssub.s32 %s10, 1
      %s16 = ssub.s32 %s10, 2
      %s17 = sadd.s32 %s10, 1
      %s18 = ssub.s32 %s10, %s17
      %p19 = scmp.eq.s32.totalorder %s18, 0
      %s21 = sadd.s32 %s20, 1
      %s22 = scalar_select %p19, %s20, %s21
      %p25 = pneg %p19
      %p26 = scmp.eq.s32.totalorder %s10, 1
      %p27 = por %p25, %p26
      %p28 = scmp.ne.s32.totalorder %s20, %s23
      %p29 = scmp.eq.s32.totalorder %s10, 0
      %p30 = por %p28, %p29
      %p31 = scmp.ne.s32.totalorder %s20, %s23
      %p32 = scmp.eq.s32.totalorder %s15, 1
      %p33 = por %p31, %p32
      %p34 = scmp.ne.s32.totalorder %s23, %s24
      %p35 = scmp.eq.s32.totalorder %s15, 0
      %p36 = por %p34, %p35
      %p37 = scmp.ne.s32.totalorder %s23, %s24
      %p38 = scmp.eq.s32.totalorder %s16, 1
      %p39 = por %p37, %p38
      %p41 = scmp.ne.s32.totalorder %s24, %s40
      %p42 = scmp.eq.s32.totalorder %s16, 0
      %p43 = por %p41, %p42
      %s45 = sadd.s32 %s44, 1
      %p48 = scmp.eq.s32.totalorder %s10, 1
      %p49 = scmp.ne.s32.totalorder %s44, %s46
      %p50 = scmp.eq.s32.totalorder %s10, 0
      %p51 = por %p49, %p50
      %p52 = scmp.ne.s32.totalorder %s44, %s46
      %p53 = scmp.eq.s32.totalorder %s15, 1
      %p54 = por %p52, %p53
      %p55 = scmp.ne.s32.totalorder %s46, %s47
      %p56 = scmp.eq.s32.totalorder %s15, 0
      %p57 = por %p55, %p56
      %p58 = scmp.ne.s32.totalorder %s46, %s47
      %p59 = scmp.eq.s32.totalorder %s16, 1
      %p60 = por %p58, %p59
      %p62 = scmp.ne.s32.totalorder %s47, %s61
      %p63 = scmp.eq.s32.totalorder %s16, 0
      %p64 = por %p62, %p63
      %s66 = sadd.s32 %s65, 1
      %p69 = scmp.eq.s32.totalorder %s10, 1
      %p70 = scmp.ne.s32.totalorder %s65, %s67
      %p71 = scmp.eq.s32.totalorder %s10, 0
      %p72 = por %p70, %p71
      %p73 = scmp.ne.s32.totalorder %s65, %s67
      %p74 = scmp.eq.s32.totalorder %s15, 1
      %p75 = por %p73, %p74
      %p76 = scmp.ne.s32.totalorder %s67, %s68
      %p77 = scmp.eq.s32.totalorder %s15, 0
      %p78 = por %p76, %p77
      %p79 = scmp.ne.s32.totalorder %s67, %s68
      %p80 = scmp.eq.s32.totalorder %s16, 1
      %p81 = por %p79, %p80
      %p83 = scmp.ne.s32.totalorder %s68, %s82
      %p84 = scmp.eq.s32.totalorder %s16, 0
      %p85 = por %p83, %p84
      %s86 = ssub.s32 %s10, %s17
      %p87 = scmp.eq.s32.totalorder %s86, 0
      %s89 = sadd.s32 %s88, 1
      %s90 = scalar_select %p87, %s88, %s89
      %p93 = pneg %p87
      %p94 = scmp.eq.s32.totalorder %s10, 1
      %p95 = por %p93, %p94
      %p96 = scmp.ne.s32.totalorder %s88, %s91
      %p97 = scmp.eq.s32.totalorder %s10, 0
      %p98 = por %p96, %p97
      %p99 = scmp.ne.s32.totalorder %s88, %s91
      %p100 = scmp.eq.s32.totalorder %s15, 1
      %p101 = por %p99, %p100
      %p102 = scmp.ne.s32.totalorder %s91, %s92
      %p103 = scmp.eq.s32.totalorder %s15, 0
      %p104 = por %p102, %p103
      %p105 = scmp.ne.s32.totalorder %s91, %s92
      %p106 = scmp.eq.s32.totalorder %s16, 1
      %p107 = por %p105, %p106
      %p109 = scmp.ne.s32.totalorder %s92, %s108
      %p110 = scmp.eq.s32.totalorder %s16, 0
      %p111 = por %p109, %p110
      %s112 = ssub.s32 %s10, %s17
      %p113 = scmp.eq.s32.totalorder %s112, 0
      %s115 = sadd.s32 %s114, 1
      %s116 = scalar_select %p113, %s114, %s115
      %p119 = pneg %p113
      %p120 = scmp.eq.s32.totalorder %s10, 1
      %p121 = por %p119, %p120
      %p122 = scmp.ne.s32.totalorder %s114, %s117
      %p123 = scmp.eq.s32.totalorder %s10, 0
      %p124 = por %p122, %p123
      %p125 = scmp.ne.s32.totalorder %s114, %s117
      %p126 = scmp.eq.s32.totalorder %s15, 1
      %p127 = por %p125, %p126
      %p128 = scmp.ne.s32.totalorder %s117, %s118
      %p129 = scmp.eq.s32.totalorder %s15, 0
      %p130 = por %p128, %p129
      %p131 = scmp.ne.s32.totalorder %s117, %s118
      %p132 = scmp.eq.s32.totalorder %s16, 1
      %p133 = por %p131, %p132
      %p135 = scmp.ne.s32.totalorder %s118, %s134
      %p136 = scmp.eq.s32.totalorder %s16, 0
      %p137 = por %p135, %p136
      %p138 = scmp.le.s32.totalorder 1, %s10
      %p139 = scmp.lt.s32.totalorder %s10, 3
      %p140 = pnand %p138, %p139
      %p141 = pneg %p140
      // Predicated region
      $region9: #{unet_forward.23} parent=5 // pred_check
        _
      $region10: #{unet_forward.23} parent=5 // pred_check_branch
        %143 = sbr.rel (%p140) target = $region12
      $region11: #{unet_forward.23} parent=5 // pred_region
        %s144 = ssub.s32 %s10, 1
        // Predicated region
        $region13: #{unet_forward.23} parent=11 // pred_check
          %p145 = pneg %p57
        $region14: #{unet_forward.23} parent=11 // pred_check_branch
          %147 = sbr.rel (%p145) target = $region16
        $region15: #{unet_forward.23} parent=11 // pred_region
          _
        $region16: #{unet_forward.23} parent=11 // pred_fallthru
          _
        // Predicated region
        $region17: #{unet_forward.23} parent=11 // pred_check
          %p148 = pneg %p78
        $region18: #{unet_forward.23} parent=11 // pred_check_branch
          %150 = sbr.rel (%p148) target = $region20
        $region19: #{unet_forward.23} parent=11 // pred_region
          _
        $region20: #{unet_forward.23} parent=11 // pred_fallthru
          _
      $region12: #{unet_forward.23} parent=5 // pred_fallthru
        _
      %p151 = scmp.lt.s32.totalorder %s10, 2
      // Predicated region
      $region21: #{unet_forward.23} parent=5 // pred_check
        %p152 = pneg %p151
      $region22: #{unet_forward.23} parent=5 // pred_check_branch
        %154 = sbr.rel (%p152) target = $region24
      $region23: #{unet_forward.23} parent=5 // pred_region
        // Predicated region
        $region25: #{unet_forward.23} parent=23 // pred_check
          %p155 = pneg %p30
        $region26: #{unet_forward.23} parent=23 // pred_check_branch
          %157 = sbr.rel (%p155) target = $region28
        $region27: #{unet_forward.23} parent=23 // pred_region
          %s158 = sand.u32 %s20, 1
          %s159 = sand.u32 %s20, 1
          %s160 = smul.addr %s159, 32
          %s161 = scalar_lea.vmem [#allocation2], %s160
          %s162 = smul.u32 2, %s10
          %s163 = smul.addr %s162, 4
          %s164 = scalar_lea.vmem %s0, %s163
          // Predicated region
          $region29: #{unet_forward.23} parent=27 // pred_check
            _
          $region30: #{unet_forward.23} parent=27 // pred_check_branch
            %166 = sbr.rel (0) target = $region32
          $region31: #{unet_forward.23} parent=27 // pred_region
            // Predicated region
            $region33: #{unet_forward.23} parent=31 // pred_check
              _
            $region34: #{unet_forward.23} parent=31 // pred_check_branch
              %168 = sbr.rel (0) target = $region36
            $region35: #{unet_forward.23} parent=31 // pred_region
              // Predicated region
              $region48: #{unet_forward.23} parent=35 // pred_check
                _
              $region49: #{unet_forward.23} parent=35 // pred_check_branch
                %190 = sbr.rel (0) target = $region51
              $region50: #{unet_forward.23} parent=35 // pred_region
                loop: start=0, step=1, limit=1
                $region52: #{unet_forward.23} parent=50 // loop_pre_header
                  _
                $region53: #{unet_forward.23} parent=50 // loop_header
                  %s192 = sphi 0, %s196
                  %p193 = scmp.ge.s32.totalorder %s192, 1
                  %s197 = sphi %s164, %s164
                  %s198 = sphi %s161, %s161
                $region54: #{unet_forward.23} parent=50 // loop_header_branch
                  %195 = sbr.rel (%p193) target = $region58
                $region55: #{unet_forward.23} parent=50 // loop_body
                  %v199 = vld [vmem:[%s197] sm:$0xff]
                  %200 = vst [vmem:[%s198] sm:$0xff] %v199
                  %v201 = vld [vmem:[%s197 + $0x10] sm:$0xff]
                  %202 = vst [vmem:[%s198 + $0x8] sm:$0xff] %v201
                  %v203 = vld [vmem:[%s197 + $0x20] sm:$0xff]
                  %204 = vst [vmem:[%s198 + $0x10] sm:$0xff] %v203
                  %v205 = vld [vmem:[%s197 + $0x30] sm:$0xff]
                  %206 = vst [vmem:[%s198 + $0x18] sm:$0xff] %v205
                $region56: #{unet_forward.23} parent=50 // loop_footer
                  %s196 = sadd.s32 1, %s192
                $region57: #{unet_forward.23} parent=50 // loop_footer_branch
                  %191 = sbr.rel target = $region53
                $region58: #{unet_forward.23} parent=50 // loop_exit
                  _
              $region51: #{unet_forward.23} parent=35 // pred_fallthru
                _
              // Predicated region
              $region59: #{unet_forward.23} parent=35 // pred_check
                _
              $region60: #{unet_forward.23} parent=35 // pred_check_branch
                %208 = sbr.rel target = $region62
              $region61: #{unet_forward.23} parent=35 // pred_region
                _
              $region62: #{unet_forward.23} parent=35 // pred_fallthru
                _
            $region36: #{unet_forward.23} parent=31 // pred_fallthru
              _
            // Predicated region
            $region37: #{unet_forward.23} parent=31 // pred_check
              _
            $region38: #{unet_forward.23} parent=31 // pred_check_branch
              %170 = sbr.rel target = $region40
            $region39: #{unet_forward.23} parent=31 // pred_region
              %s172 = ssub.s32 256, 1
              loop: start=0, step=1, limit=1
              $region41: #{unet_forward.23} parent=39 // loop_pre_header
                _
              $region42: #{unet_forward.23} parent=39 // loop_header
                %s174 = sphi 0, %s178
                %p175 = scmp.ge.s32.totalorder %s174, 1
                %s179 = sphi %s164, %s164
                %s180 = sphi %s161, %s161
              $region43: #{unet_forward.23} parent=39 // loop_header_branch
                %177 = sbr.rel (%p175) target = $region47
              $region44: #{unet_forward.23} parent=39 // loop_body
                %v181 = vld [vmem:[%s179] sm:%s172]
                %182 = vst [vmem:[%s180] sm:%s172] %v181
                %v183 = vld [vmem:[%s179 + $0x10] sm:%s172]
                %184 = vst [vmem:[%s180 + $0x8] sm:%s172] %v183
                %v185 = vld [vmem:[%s179 + $0x20] sm:%s172]
                %186 = vst [vmem:[%s180 + $0x10] sm:%s172] %v185
                %v187 = vld [vmem:[%s179 + $0x30] sm:%s172]
                %188 = vst [vmem:[%s180 + $0x18] sm:%s172] %v187
              $region45: #{unet_forward.23} parent=39 // loop_footer
                %s178 = sadd.s32 1, %s174
              $region46: #{unet_forward.23} parent=39 // loop_footer_branch
                %173 = sbr.rel target = $region42
              $region47: #{unet_forward.23} parent=39 // loop_exit
                _
            $region40: #{unet_forward.23} parent=31 // pred_fallthru
              _
          $region32: #{unet_forward.23} parent=27 // pred_fallthru
            _
          %209 = vnop
        $region28: #{unet_forward.23} parent=23 // pred_fallthru
          _
        // Predicated region
        $region63: #{unet_forward.23} parent=23 // pred_check
          %p210 = pneg %p98
        $region64: #{unet_forward.23} parent=23 // pred_check_branch
          %212 = sbr.rel (%p210) target = $region66
        $region65: #{unet_forward.23} parent=23 // pred_region
          %s213 = smul.u32 2, %s10
          %p214 = scmp.lt.s32.totalorder %s213, 3
          %s215 = scalar_select %p214, %s213, 3
          %s216 = smul.addr %s215, 8
          %s217 = scalar_lea.vmem %s3, %s216
          %s218 = smul.u32 2, %s10
        $region66: #{unet_forward.23} parent=23 // pred_fallthru
          _
      $region24: #{unet_forward.23} parent=5 // pred_fallthru
        _
      %p219 = scmp.le.s32.totalorder 1, %s10
      %p220 = scmp.lt.s32.totalorder %s10, 3
      %p221 = pnand %p219, %p220
      %p222 = pneg %p221
      // Predicated region
      $region67: #{unet_forward.23} parent=5 // pred_check
        _
      $region68: #{unet_forward.23} parent=5 // pred_check_branch
        %224 = sbr.rel (%p221) target = $region70
      $region69: #{unet_forward.23} parent=5 // pred_region
        %s225 = ssub.s32 %s10, 1
        %s226 = sand.u32 %s23, 1
        %s227 = sand.u32 %s23, 1
        %s228 = smul.addr %s227, 32
        %s229 = scalar_lea.vmem [#allocation2], %s228
        // Predicated region
        $region71: #{unet_forward.23} parent=69 // pred_check
          %p230 = pneg %p36
        $region72: #{unet_forward.23} parent=69 // pred_check_branch
          %232 = sbr.rel (%p230) target = $region74
        $region73: #{unet_forward.23} parent=69 // pred_region
          _
        $region74: #{unet_forward.23} parent=69 // pred_fallthru
          _
        %s233 = sand.u32 %s23, 1
        %s234 = sand.u32 %s23, 1
        %s235 = smul.addr %s234, 32
        %s236 = scalar_lea.vmem [#allocation2], %s235
        %p237 = pneg %p36
        %p238 = pneg %p33
        %p239 = pneg %p57
        %p240 = pneg %p54
        %p241 = pneg %p78
        %p242 = pneg %p75
        %s243 = smul.u32 2, %s15
        %p244 = scmp.lt.s32.totalorder %s243, 3
        %s245 = scalar_select %p244, %s243, 3
        %s246 = smul.addr %s245, 8
        %s247 = scalar_lea.vmem %s3, %s246
        %p248 = pneg %p104
        %p249 = pneg %p101
        %p250 = pneg %p130
        %p251 = pneg %p127
        %s252 = smul.u32 2, %s15
        %p253 = scmp.lt.s32.totalorder %s252, 3
        %s254 = scalar_select %p253, %s252, 3
        %s255 = smul.addr %s254, 8
        %s256 = scalar_lea.vmem %s4, %s255
        %s257 = smul.u32 2, %s15
        %s258 = smul.u32 2, %s15
        %p259 = scmp.lt.s32.totalorder %s258, 3
        %s260 = scalar_select %p259, %s258, 3
        %s261 = smul.addr %s260, 8
        %s262 = scalar_lea.vmem %s3, %s261
        %s263 = smul.u32 2, %s15
        %s264 = smul.u32 2, %s15
        %p265 = scmp.lt.s32.totalorder %s264, 3
        %s266 = scalar_select %p265, %s264, 3
        %s267 = smul.addr %s266, 8
        %s268 = scalar_lea.vmem %s4, %s267
        %s269 = smul.u32 2, %s15
        %v271 = vld [vmem:[%s1] sm:$0xf]
        %v272 = vld [vmem:[%s229] sm:$0xff]
        %v273 = vld [vmem:[%s229 + $0x8] sm:$0xff]
        %v274 = vld [vmem:[%s229 + $0x10] sm:$0xff]
        %v275 = vld [vmem:[%s229 + $0x18] sm:$0xff]
        %v276 = vld [vmem:[%s2] sm:$0xff]
        %278 = vset.pattern.permute.xlu0 0
        %279 = vperm.xlu0 %278, %v276
        %v280 = vpop.permute.xlu0 %279
        %v286 = vunpack.c.l.b16 %v272
        %v287 = vunpack.c.h.b16 %v272
        %v288 = vunpack.c.l.b16 %v273
        %v289 = vunpack.c.h.b16 %v273
        %v290 = vunpack.c.l.b16 %v274
        %v291 = vunpack.c.h.b16 %v274
        %v292 = vunpack.c.l.b16 %v275
        %v293 = vunpack.c.h.b16 %v275
        %v294 = vpack.c.b16 %v288, %v286
        %v295 = vpack.c.b16 %v289, %v287
        %v296 = vpack.c.b16 %v292, %v290
        %v297 = vpack.c.b16 %v293, %v291
        %vm302 = vcmask 261120
        %v304 = vsel %vm302, %v271, 0
        %306 = vmatprep.subr.bf16.mxu0 0
        %307 = vmatpush1.bf16.msra.mxu0 0
        %308 = vmatprep.subr.bf16.mxu0 0
        %309 = vmatpush1.bf16.msra.mxu0 0
        %310 = vmatprep.subr.bf16.mxu0 0
        %311 = vmatpush1.bf16.msra.mxu0 0
        %312 = vmatprep.subr.bf16.mxu0 0
        %313 = vmatpush1.bf16.msra.mxu0 0
        %314 = vmatprep.subr.bf16.mxu0 0
        %315 = vmatpush1.bf16.msra.mxu0 0
        %316 = vmatprep.subr.bf16.mxu0 0
        %317 = vmatpush1.bf16.msra.mxu0 0
        %318 = vmatprep.subr.bf16.mxu0 %v297
        %319 = vmatpush1.bf16.msra.mxu0 %v296
        %320 = vmatprep.subr.bf16.mxu0 %v295
        %321 = vmatpush1.bf16.msra.mxu0 %v294
        %322 = vmatprep.subr.bf16.mxu0 0
        %323 = vmatpush2.bf16.msra.mxu0 0
        %324 = vmatprep.subr.bf16.mxu0 0
        %325 = vmatpush2.bf16.msra.mxu0 0
        %326 = vmatprep.subr.bf16.mxu0 0
        %327 = vmatpush2.bf16.msra.mxu0 0
        %328 = vmatprep.subr.bf16.mxu0 0
        %329 = vmatpush2.bf16.msra.mxu0 0
        %330 = vmatprep.subr.bf16.mxu0 0
        %331 = vmatpush2.bf16.msra.mxu0 0
        %332 = vmatprep.subr.bf16.mxu0 0
        %333 = vmatpush2.bf16.msra.mxu0 0
        %334 = vmatprep.subr.bf16.mxu0 0
        %335 = vmatpush2.bf16.msra.mxu0 0
        %336 = vmatprep.subr.bf16.mxu0 0
        %337 = vmatpush2.bf16.msra.mxu0 0
        %338 = vmatprep.mubr.bf16.mxu0 0
        %339 = vmatmul.mubr.bf16.gmra.mxu0 %v304
        %v340 = vpop.f32.mrf.mxu0
        %v341 = vadd.f32 %v280, %v340
        %v342 = vpop.f32.mrf.mxu0
        %v343 = vadd.f32 %v280, %v342
        %v344 = vpop.f32.mrf.mxu0
        %v345 = vpop.f32.mrf.mxu0
        %346 = vdwg.mxu0
        %v347 = vld [vmem:[%s262] sm:$0xff]
        %v348 = vld [vmem:[%s262 + $0x8] sm:$0xff]
        %v349 = vadd.f32 %v341, %v347
        %v350 = vadd.f32 %v343, %v348
        %351 = vst [vmem:[%s268] sm:$0xff] %v349
        %352 = vst [vmem:[%s268 + $0x8] sm:$0xff] %v350
        %s353 = smul.u32 2, %s15
        %p354 = scmp.lt.s32.totalorder %s353, 3
        %s355 = scalar_select %p354, %s353, 3
        %s356 = smul.addr %s355, 8
        %s357 = scalar_lea.vmem %s4, %s356
        // Predicated region
        $region75: #{unet_forward.23} parent=69 // pred_check
          %p358 = pneg %p127
        $region76: #{unet_forward.23} parent=69 // pred_check_branch
          %360 = sbr.rel (%p358) target = $region78
        $region77: #{unet_forward.23} parent=69 // pred_region
          %s361 = smul.u32 2, %s15
        $region78: #{unet_forward.23} parent=69 // pred_fallthru
          _
      $region70: #{unet_forward.23} parent=5 // pred_fallthru
        _
      %p362 = scmp.le.s32.totalorder 2, %s10
      // Predicated region
      $region79: #{unet_forward.23} parent=5 // pred_check
        %p363 = pneg %p362
      $region80: #{unet_forward.23} parent=5 // pred_check_branch
        %365 = sbr.rel (%p363) target = $region82
      $region81: #{unet_forward.23} parent=5 // pred_region
        %s366 = ssub.s32 %s10, 2
        // Predicated region
        $region83: #{unet_forward.23} parent=81 // pred_check
          %p367 = pneg %p133
        $region84: #{unet_forward.23} parent=81 // pred_check_branch
          %369 = sbr.rel (%p367) target = $region86
        $region85: #{unet_forward.23} parent=81 // pred_region
          %s370 = smul.u32 2, %s16
          %p371 = scmp.lt.s32.totalorder %s370, 3
          %s372 = scalar_select %p371, %s370, 3
          %s373 = smul.addr %s372, 8
          %s374 = scalar_lea.vmem %s4, %s373
        $region86: #{unet_forward.23} parent=81 // pred_fallthru
          _
      $region82: #{unet_forward.23} parent=5 // pred_fallthru
        _
    $region6: #{unet_forward.23} parent=1 // loop_footer
      %s14 = sadd.s32 1, %s10
    $region7: #{unet_forward.23} parent=1 // loop_footer_branch
      %9 = sbr.rel target = $region3
    $region8: #{unet_forward.23} parent=1 // loop_exit
      _

</llo_original>
